<compile_context>
chip_gen: v6e
topology: v6e:2x2x1
jax: 0.10.0
libtpu: 0.0.40
codegen_flags: <defaults>
</compile_context>

<pallas_src>
from functools import partial

import numpy as np
import jax
import jax.numpy as jnp
from jax import lax
from jax.experimental import pallas as pl
from jax.experimental.pallas import tpu as pltpu

_LN_EPS = 1e-5
_BN_EPS = 1e-5

# MXU operand dtype (accumulation is always f32 via preferred_element_type).
_MATMUL_DTYPE = jnp.bfloat16

_VMEM_LIMIT = 32 * 1024 * 1024


# ------------------------------ kernel helpers -------------------------------

def _mm(a, b):
    return jnp.dot(a.astype(_MATMUL_DTYPE), b.astype(_MATMUL_DTYPE),
                   preferred_element_type=jnp.float32)


def _mm_nt(a, b):
    # a @ b.T without an in-kernel transpose: contract the last axes directly.
    return lax.dot_general(a.astype(_MATMUL_DTYPE), b.astype(_MATMUL_DTYPE),
                           dimension_numbers=(((1,), (1,)), ((), ())),
                           preferred_element_type=jnp.float32)


def _layernorm(x, g, b):
    mu = jnp.mean(x, axis=-1, keepdims=True)
    xc = x - mu
    var = jnp.mean(xc * xc, axis=-1, keepdims=True)
    return xc * lax.rsqrt(var + _LN_EPS) * g + b


# ------------------------------- fused kernel --------------------------------

def _vit_kernel(xp_ref, S_ref, pw_ref, pb_ref, peg_ref, peb_ref, cls_ref,
                ln1g_ref, ln1b_ref, convw_ref, convb_ref,
                wq_ref, wk_ref, wv_ref, wo_ref, bo_ref,
                ln2g_ref, ln2b_ref, w1_ref, b1_ref, w2_ref, b2_ref,
                o_ref, x_s, *, depth, num_heads, scale, HW):
    T, C = x_s.shape
    d = C // num_heads

    # ----------------- patch embed (conv-as-matmul) + LayerNorm -----------------
    tok = _mm(xp_ref[0], pw_ref[...]) + pb_ref[...]
    tok = _layernorm(tok, peg_ref[...], peb_ref[...])

    # Assemble the (T, C) token matrix once: row 0 = cls token, rows 1.. = patches.
    x_s[0:1, :] = cls_ref[...]
    x_s[1:1 + HW, :] = tok
    x = x_s[...]

    row0 = lax.broadcasted_iota(jnp.int32, (T, 1), 0) == 0
    gather = S_ref[...]                                   # (9*T, T) 0/1 shift matrix

    for layer in range(depth):
        # -------------------------------- attention --------------------------------
        xln = _layernorm(x, ln1g_ref[layer], ln1b_ref[layer])

        # Depthwise 3x3 conv (+ folded eval-mode BN) for q/k/v: one gather matmul
        # produces all nine shifted/zero-padded windows (shared by q, k, v);
        # no padded scratch, no per-row stores.
        g = jnp.dot(gather, xln, preferred_element_type=jnp.float32)   # (9*T, C)
        wins = [g[kk * T:(kk + 1) * T, :] for kk in range(9)]

        pre = []
        for t in range(3):                                # 0:q, 1:k, 2:v
            taps = convw_ref[layer * 3 + t]               # (9, 1, C), loaded once
            acc = convb_ref[layer * 3 + t]                # (1, C) folded BN shift
            for kk in range(9):
                acc = acc + wins[kk] * taps[kk]
            pre.append(jnp.where(row0, xln, acc))         # row 0 = LN'd cls token
        q_pre, k_pre, v_pre = pre

        # Full-width projections (qkv_bias=False in the reference module).
        q = _mm(q_pre, wq_ref[layer])                     # (T, C)
        km = _mm(k_pre, wk_ref[layer])
        v = _mm(v_pre, wv_ref[layer])

        # Per-head attention on lane slices; contexts concatenated so the output
        # projection is a single full-width (T,C)@(C,C) matmul.
        ctxs = []
        for h in range(num_heads):
            qh = q[:, h * d:(h + 1) * d]
            kh = km[:, h * d:(h + 1) * d]
            vh = v[:, h * d:(h + 1) * d]
            s = _mm_nt(qh, kh) * scale                    # (T, T)
            s = s - jnp.max(s, axis=-1, keepdims=True)
            e = jnp.exp(s)
            pa = e / jnp.sum(e, axis=-1, keepdims=True)   # exact softmax
            ctxs.append(_mm(pa, vh))                      # (T, d)
        ctx = jnp.concatenate(ctxs, axis=-1)              # (T, C)
        x = x + _mm(ctx, wo_ref[layer]) + bo_ref[layer]

        # ----------------------------------- MLP -----------------------------------
        xn = _layernorm(x, ln2g_ref[layer], ln2b_ref[layer])
        hmid = _mm(xn, w1_ref[layer]) + b1_ref[layer]
        # exact GELU (erf based), matching torch.nn.GELU() default
        hmid = 0.5 * hmid * (1.0 + lax.erf(hmid * 0.7071067811865476))
        x = x + _mm(hmid, w2_ref[layer]) + b2_ref[layer]

    o_ref[0] = x


def pallas_vit(xp, S, p, *, num_heads):
    B, HW, Kp = xp.shape
    T = HW + 1
    C = p['patch_w'].shape[1]
    depth = p['wq'].shape[0]
    scale = float(C) ** -0.5     # dim_out ** -0.5 (matches the reference CvT code)

    def rep(a):
        nd = a.ndim

        def im(b):
            return (0,) * nd
        return pl.BlockSpec(a.shape, im)

    weights = (S, p['patch_w'], p['patch_b'], p['pe_ln_g'], p['pe_ln_b'], p['cls'],
               p['ln1_g'], p['ln1_b'], p['convw'], p['convb'],
               p['wq'], p['wk'], p['wv'], p['wo'], p['bo'],
               p['ln2_g'], p['ln2_b'],
               p['fc1_w'], p['fc1_b'], p['fc2_w'], p['fc2_b'])

    kern = partial(_vit_kernel, depth=depth, num_heads=num_heads,
                   scale=scale, HW=HW)
    return pl.pallas_call(
        kern,
        out_shape=jax.ShapeDtypeStruct((B, T, C), jnp.float32),
        grid=(B,),
        in_specs=[pl.BlockSpec((1, HW, Kp), lambda b: (b, 0, 0))]
                 + [rep(a) for a in weights],
        out_specs=pl.BlockSpec((1, T, C), lambda b: (b, 0, 0)),
        scratch_shapes=[pltpu.VMEM((T, C), jnp.float32)],
        compiler_params=pltpu.CompilerParams(
            dimension_semantics=("parallel",),
            vmem_limit_bytes=_VMEM_LIMIT),
    )(xp, *weights)


# ------------------------------ model wrapper --------------------------------

def _conv_gather_matrix(H, W):
    """(9*T, T) 0/1 matrix: block k gathers the (dy,dx)-shifted, zero-padded
    spatial tokens into full-token rows (row 0 / out-of-image sources = 0)."""
    HW = H * W
    T = HW + 1
    S = np.zeros((9 * T, T), np.float32)
    k = 0
    for dy in (-1, 0, 1):
        for dx in (-1, 0, 1):
            for pidx in range(HW):
                y, x = divmod(pidx, W)
                yy, xx = y + dy, x + dx
                if 0 <= yy < H and 0 <= xx < W:
                    S[k * T + 1 + pidx, 1 + yy * W + xx] = 1.0
            k += 1
    return jnp.asarray(S)


def vit_forward(x_nchw, params, *, patch_size, num_heads):
    B, Cin, Hi, Wi = x_nchw.shape
    ps = patch_size
    H, W = Hi // ps, Wi // ps
    HW = H * W
    # patch-embed conv (stride == kernel, padding == 0) -> patchify + matmul;
    # patch vector ordered (Cin, ky, kx) to match torch Conv2d weight flattening.
    xp = (x_nchw.reshape(B, Cin, H, ps, W, ps)
          .transpose(0, 2, 4, 1, 3, 5)
          .reshape(B, HW, Cin * ps * ps))
    S = _conv_gather_matrix(H, W)
    tokens = pallas_vit(xp, S, params, num_heads=num_heads)          # (B, 1+HW, C)
    C = tokens.shape[-1]
    cls_out = tokens[:, :1, :]                                       # (B, 1, C)
    x_out = tokens[:, 1:, :].reshape(B, H, W, C).transpose(0, 3, 1, 2)  # NCHW
    return x_out, cls_out


# ------------------------------ parameter init -------------------------------

def _fold_bn(gamma, beta, mean, var):
    s = gamma / jnp.sqrt(var + _BN_EPS)
    return s, beta - mean * s


def init_params(key, *, in_chans, embed_dim, depth, num_heads, mlp_ratio, patch_size):
    C = embed_dim
    hidden = int(C * mlp_ratio)
    Kp = in_chans * patch_size * patch_size
    keys = iter(jax.random.split(key, 64))
    wdt = _MATMUL_DTYPE

    def nrm(shape, std=0.02):
        return std * jax.random.normal(next(keys), shape, jnp.float32)

    # Fold eval-mode BatchNorm running stats into the depthwise taps / shift.
    # TODO(synk): plug real running_mean/var/gamma/beta here when porting a
    # trained checkpoint; untrained stats (mean=0, var=1, g=1, b=0) are used.
    bn_s, bn_t = _fold_bn(jnp.ones((C,), jnp.float32), jnp.zeros((C,), jnp.float32),
                          jnp.zeros((C,), jnp.float32), jnp.ones((C,), jnp.float32))

    convw_list, convb_list = [], []
    for _ in range(depth):
        for _t in range(3):                               # q, k, v depthwise taps
            taps = nrm((9, C), std=0.1)                   # rows ordered (ky, kx)
            convw_list.append((taps * bn_s[None, :])[:, None, :])   # (9, 1, C)
            convb_list.append(bn_t[None, :])                        # (1, C)
    convw = jnp.stack(convw_list, 0)                      # (depth*3, 9, 1, C)
    convb = jnp.stack(convb_list, 0)                      # (depth*3, 1, C)

    params = {
        # torch-equivalent weights stored in (in, out) layout.
        'patch_w': nrm((Kp, C)).astype(wdt),
        'patch_b': jnp.zeros((1, C), jnp.float32),
        'pe_ln_g': jnp.ones((1, C), jnp.float32),
        'pe_ln_b': jnp.zeros((1, C), jnp.float32),
        'cls': nrm((1, C)),
        'ln1_g': jnp.ones((depth, 1, C), jnp.float32),
        'ln1_b': jnp.zeros((depth, 1, C), jnp.float32),
        'ln2_g': jnp.ones((depth, 1, C), jnp.float32),
        'ln2_b': jnp.zeros((depth, 1, C), jnp.float32),
        'convw': convw, 'convb': convb,
        'wq': nrm((depth, C, C)).astype(wdt),
        'wk': nrm((depth, C, C)).astype(wdt),
        'wv': nrm((depth, C, C)).astype(wdt),
        'wo': nrm((depth, C, C)).astype(wdt),
        'bo': jnp.zeros((depth, 1, C), jnp.float32),
        'fc1_w': nrm((depth, C, hidden)).astype(wdt),
        'fc1_b': jnp.zeros((depth, 1, hidden), jnp.float32),
        'fc2_w': nrm((depth, hidden, C)).astype(wdt),
        'fc2_b': jnp.zeros((depth, 1, C), jnp.float32),
    }
    return params


# ----------------------------------- main ------------------------------------

if __name__ == "__main__":
    B, Cin, Hi, Wi = 2, 3, 16, 16
    patch_size = 4
    embed_dim = 64
    depth = 2
    num_heads = 4
    mlp_ratio = 4.0

    key = jax.random.PRNGKey(0)
    k_in, k_par = jax.random.split(key)
    x = jax.random.normal(k_in, (B, Cin, Hi, Wi), jnp.float32)
    params = init_params(k_par, in_chans=Cin, embed_dim=embed_dim, depth=depth,
                         num_heads=num_heads, mlp_ratio=mlp_ratio,
                         patch_size=patch_size)

    fwd = jax.jit(partial(vit_forward, patch_size=patch_size, num_heads=num_heads))
    x_out, cls_out = fwd(x, params)
    jax.block_until_ready((x_out, cls_out))

    assert x_out.shape == (B, embed_dim, Hi // patch_size, Wi // patch_size)
    assert cls_out.shape == (B, 1, embed_dim)
    assert jnp.all(jnp.isfinite(x_out)) and jnp.all(jnp.isfinite(cls_out))
    print("KERNEL_OK")
</pallas_src>

<mosaic_0001>
module attributes {stable_mosaic.version = 11 : i64} {
  func.func @_vit_kernel(%arg0: i32, %arg1: memref<1x16x48xf32, #tpu.memory_space<vmem>>, %arg2: memref<153x17xf32, #tpu.memory_space<vmem>>, %arg3: memref<48x64xbf16, #tpu.memory_space<vmem>>, %arg4: memref<1x64xf32, #tpu.memory_space<vmem>>, %arg5: memref<1x64xf32, #tpu.memory_space<vmem>>, %arg6: memref<1x64xf32, #tpu.memory_space<vmem>>, %arg7: memref<1x64xf32, #tpu.memory_space<vmem>>, %arg8: memref<2x1x64xf32, #tpu.memory_space<vmem>>, %arg9: memref<2x1x64xf32, #tpu.memory_space<vmem>>, %arg10: memref<6x9x1x64xf32, #tpu.memory_space<vmem>>, %arg11: memref<6x1x64xf32, #tpu.memory_space<vmem>>, %arg12: memref<2x64x64xbf16, #tpu.memory_space<vmem>>, %arg13: memref<2x64x64xbf16, #tpu.memory_space<vmem>>, %arg14: memref<2x64x64xbf16, #tpu.memory_space<vmem>>, %arg15: memref<2x64x64xbf16, #tpu.memory_space<vmem>>, %arg16: memref<2x1x64xf32, #tpu.memory_space<vmem>>, %arg17: memref<2x1x64xf32, #tpu.memory_space<vmem>>, %arg18: memref<2x1x64xf32, #tpu.memory_space<vmem>>, %arg19: memref<2x64x256xbf16, #tpu.memory_space<vmem>>, %arg20: memref<2x1x256xf32, #tpu.memory_space<vmem>>, %arg21: memref<2x256x64xbf16, #tpu.memory_space<vmem>>, %arg22: memref<2x1x64xf32, #tpu.memory_space<vmem>>, %arg23: memref<1x17x64xf32, #tpu.memory_space<vmem>>, %arg24: memref<17x64xf32, #tpu.memory_space<vmem>>) attributes {dimension_semantics = [#tpu.dimension_semantics<parallel>], iteration_bounds = array<i64: 2>, scalar_prefetch = 0 : i64, scratch_operands = 1 : i64, tpu.core_type = #tpu.core_type<tc>, window_params = [{transform_indices = @transform_0, window_bounds = array<i64: 1, 16, 48>}, {pipeline_mode = #tpu.pipeline_mode<synchronous>, transform_indices = @transform_1, window_bounds = array<i64: 153, 17>}, {pipeline_mode = #tpu.pipeline_mode<synchronous>, transform_indices = @transform_2, window_bounds = array<i64: 48, 64>}, {pipeline_mode = #tpu.pipeline_mode<synchronous>, transform_indices = @transform_3, window_bounds = array<i64: 1, 64>}, {pipeline_mode = #tpu.pipeline_mode<synchronous>, transform_indices = @transform_4, window_bounds = array<i64: 1, 64>}, {pipeline_mode = #tpu.pipeline_mode<synchronous>, transform_indices = @transform_5, window_bounds = array<i64: 1, 64>}, {pipeline_mode = #tpu.pipeline_mode<synchronous>, transform_indices = @transform_6, window_bounds = array<i64: 1, 64>}, {pipeline_mode = #tpu.pipeline_mode<synchronous>, transform_indices = @transform_7, window_bounds = array<i64: 2, 1, 64>}, {pipeline_mode = #tpu.pipeline_mode<synchronous>, transform_indices = @transform_8, window_bounds = array<i64: 2, 1, 64>}, {pipeline_mode = #tpu.pipeline_mode<synchronous>, transform_indices = @transform_9, window_bounds = array<i64: 6, 9, 1, 64>}, {pipeline_mode = #tpu.pipeline_mode<synchronous>, transform_indices = @transform_10, window_bounds = array<i64: 6, 1, 64>}, {pipeline_mode = #tpu.pipeline_mode<synchronous>, transform_indices = @transform_11, window_bounds = array<i64: 2, 64, 64>}, {pipeline_mode = #tpu.pipeline_mode<synchronous>, transform_indices = @transform_12, window_bounds = array<i64: 2, 64, 64>}, {pipeline_mode = #tpu.pipeline_mode<synchronous>, transform_indices = @transform_13, window_bounds = array<i64: 2, 64, 64>}, {pipeline_mode = #tpu.pipeline_mode<synchronous>, transform_indices = @transform_14, window_bounds = array<i64: 2, 64, 64>}, {pipeline_mode = #tpu.pipeline_mode<synchronous>, transform_indices = @transform_15, window_bounds = array<i64: 2, 1, 64>}, {pipeline_mode = #tpu.pipeline_mode<synchronous>, transform_indices = @transform_16, window_bounds = array<i64: 2, 1, 64>}, {pipeline_mode = #tpu.pipeline_mode<synchronous>, transform_indices = @transform_17, window_bounds = array<i64: 2, 1, 64>}, {pipeline_mode = #tpu.pipeline_mode<synchronous>, transform_indices = @transform_18, window_bounds = array<i64: 2, 64, 256>}, {pipeline_mode = #tpu.pipeline_mode<synchronous>, transform_indices = @transform_19, window_bounds = array<i64: 2, 1, 256>}, {pipeline_mode = #tpu.pipeline_mode<synchronous>, transform_indices = @transform_20, window_bounds = array<i64: 2, 256, 64>}, {pipeline_mode = #tpu.pipeline_mode<synchronous>, transform_indices = @transform_21, window_bounds = array<i64: 2, 1, 64>}, {transform_indices = @transform_22, window_bounds = array<i64: 1, 17, 64>}]} {
    %c0 = arith.constant 0 : index
    %c0_0 = arith.constant 0 : index
    %c0_1 = arith.constant 0 : index
    %0 = vector.load %arg1[%c0, %c0_0, %c0_1] : memref<1x16x48xf32, #tpu.memory_space<vmem>>, vector<1x16x48xf32>
    %1 = vector.shape_cast %0 : vector<1x16x48xf32> to vector<16x48xf32>
    %c0_2 = arith.constant 0 : index
    %c0_3 = arith.constant 0 : index
    %2 = vector.load %arg3[%c0_2, %c0_3] : memref<48x64xbf16, #tpu.memory_space<vmem>>, vector<48x64xbf16>
    %3 = arith.truncf %1 : vector<16x48xf32> to vector<16x48xbf16>
    %cst = arith.constant dense<0.000000e+00> : vector<16x64xf32>
    %4 = tpu.matmul %3, %2, %cst {dimension_numbers = #tpu.dot_dimension_numbers<[1], [0], [0], [1], [0, 0, 1, 1], [], []>} : vector<16x48xbf16>, vector<48x64xbf16>, vector<16x64xf32> -> vector<16x64xf32>
    %c0_4 = arith.constant 0 : index
    %c0_5 = arith.constant 0 : index
    %5 = vector.load %arg4[%c0_4, %c0_5] : memref<1x64xf32, #tpu.memory_space<vmem>>, vector<1x64xf32>
    %6 = vector.broadcast %5 : vector<1x64xf32> to vector<16x64xf32>
    %7 = arith.addf %4, %6 : vector<16x64xf32>
    %c0_6 = arith.constant 0 : index
    %c0_7 = arith.constant 0 : index
    %8 = vector.load %arg5[%c0_6, %c0_7] : memref<1x64xf32, #tpu.memory_space<vmem>>, vector<1x64xf32>
    %c0_8 = arith.constant 0 : index
    %c0_9 = arith.constant 0 : index
    %9 = vector.load %arg6[%c0_8, %c0_9] : memref<1x64xf32, #tpu.memory_space<vmem>>, vector<1x64xf32>
    %cst_10 = arith.constant dense<0.000000e+00> : vector<16xf32>
    %10 = vector.multi_reduction <add>, %7, %cst_10 [1] : vector<16x64xf32> to vector<16xf32>
    %11 = vector.shape_cast %10 : vector<16xf32> to vector<16x1xf32>
    %cst_11 = arith.constant 6.400000e+01 : f32
    %12 = vector.broadcast %cst_11 : f32 to vector<16x1xf32>
    %13 = arith.divf %11, %12 : vector<16x1xf32>
    %14 = vector.broadcast %13 : vector<16x1xf32> to vector<16x64xf32>
    %15 = arith.subf %7, %14 : vector<16x64xf32>
    %16 = arith.mulf %15, %15 : vector<16x64xf32>
    %cst_12 = arith.constant dense<0.000000e+00> : vector<16xf32>
    %17 = vector.multi_reduction <add>, %16, %cst_12 [1] : vector<16x64xf32> to vector<16xf32>
    %18 = vector.shape_cast %17 : vector<16xf32> to vector<16x1xf32>
    %cst_13 = arith.constant 6.400000e+01 : f32
    %19 = vector.broadcast %cst_13 : f32 to vector<16x1xf32>
    %20 = arith.divf %18, %19 : vector<16x1xf32>
    %cst_14 = arith.constant 9.99999974E-6 : f32
    %21 = vector.broadcast %cst_14 : f32 to vector<16x1xf32>
    %22 = arith.addf %20, %21 : vector<16x1xf32>
    %23 = math.rsqrt %22 : vector<16x1xf32>
    %24 = vector.broadcast %23 : vector<16x1xf32> to vector<16x64xf32>
    %25 = arith.mulf %15, %24 : vector<16x64xf32>
    %26 = vector.broadcast %8 : vector<1x64xf32> to vector<16x64xf32>
    %27 = arith.mulf %25, %26 : vector<16x64xf32>
    %28 = vector.broadcast %9 : vector<1x64xf32> to vector<16x64xf32>
    %29 = arith.addf %27, %28 : vector<16x64xf32>
    %c0_15 = arith.constant 0 : index
    %c0_16 = arith.constant 0 : index
    %30 = vector.load %arg7[%c0_15, %c0_16] : memref<1x64xf32, #tpu.memory_space<vmem>>, vector<1x64xf32>
    %c0_17 = arith.constant 0 : index
    %c0_18 = arith.constant 0 : index
    %31 = vector.load %arg24[%c0_17, %c0_18] : memref<17x64xf32, #tpu.memory_space<vmem>>, vector<1x64xf32>
    tpu.vector_store %arg24[%c0_17, %c0_18], %30 {strides = array<i32>} : memref<17x64xf32, #tpu.memory_space<vmem>>, vector<1x64xf32>,
    %c1 = arith.constant 1 : index
    %c0_19 = arith.constant 0 : index
    %32 = vector.load %arg24[%c1, %c0_19] : memref<17x64xf32, #tpu.memory_space<vmem>>, vector<16x64xf32>
    tpu.vector_store %arg24[%c1, %c0_19], %29 {strides = array<i32>} : memref<17x64xf32, #tpu.memory_space<vmem>>, vector<16x64xf32>,
    %c0_20 = arith.constant 0 : index
    %c0_21 = arith.constant 0 : index
    %33 = vector.load %arg24[%c0_20, %c0_21] : memref<17x64xf32, #tpu.memory_space<vmem>>, vector<17x64xf32>
    %34 = tpu.iota {dimensions = array<i32: 0>} : vector<17x1xi32>
    %c0_i32 = arith.constant 0 : i32
    %35 = vector.broadcast %c0_i32 : i32 to vector<17x1xi32>
    %36 = arith.cmpi eq, %34, %35 : vector<17x1xi32>
    %c0_22 = arith.constant 0 : index
    %c0_23 = arith.constant 0 : index
    %37 = vector.load %arg2[%c0_22, %c0_23] : memref<153x17xf32, #tpu.memory_space<vmem>>, vector<153x17xf32>
    %c0_24 = arith.constant 0 : index
    %c0_25 = arith.constant 0 : index
    %c0_26 = arith.constant 0 : index
    %38 = vector.load %arg8[%c0_24, %c0_25, %c0_26] : memref<2x1x64xf32, #tpu.memory_space<vmem>>, vector<1x1x64xf32>
    %39 = vector.shape_cast %38 : vector<1x1x64xf32> to vector<1x64xf32>
    %c0_27 = arith.constant 0 : index
    %c0_28 = arith.constant 0 : index
    %c0_29 = arith.constant 0 : index
    %40 = vector.load %arg9[%c0_27, %c0_28, %c0_29] : memref<2x1x64xf32, #tpu.memory_space<vmem>>, vector<1x1x64xf32>
    %41 = vector.shape_cast %40 : vector<1x1x64xf32> to vector<1x64xf32>
    %cst_30 = arith.constant dense<0.000000e+00> : vector<17xf32>
    %42 = vector.multi_reduction <add>, %33, %cst_30 [1] : vector<17x64xf32> to vector<17xf32>
    %43 = vector.shape_cast %42 : vector<17xf32> to vector<17x1xf32>
    %cst_31 = arith.constant 6.400000e+01 : f32
    %44 = vector.broadcast %cst_31 : f32 to vector<17x1xf32>
    %45 = arith.divf %43, %44 : vector<17x1xf32>
    %46 = vector.broadcast %45 : vector<17x1xf32> to vector<17x64xf32>
    %47 = arith.subf %33, %46 : vector<17x64xf32>
    %48 = arith.mulf %47, %47 : vector<17x64xf32>
    %cst_32 = arith.constant dense<0.000000e+00> : vector<17xf32>
    %49 = vector.multi_reduction <add>, %48, %cst_32 [1] : vector<17x64xf32> to vector<17xf32>
    %50 = vector.shape_cast %49 : vector<17xf32> to vector<17x1xf32>
    %cst_33 = arith.constant 6.400000e+01 : f32
    %51 = vector.broadcast %cst_33 : f32 to vector<17x1xf32>
    %52 = arith.divf %50, %51 : vector<17x1xf32>
    %cst_34 = arith.constant 9.99999974E-6 : f32
    %53 = vector.broadcast %cst_34 : f32 to vector<17x1xf32>
    %54 = arith.addf %52, %53 : vector<17x1xf32>
    %55 = math.rsqrt %54 : vector<17x1xf32>
    %56 = vector.broadcast %55 : vector<17x1xf32> to vector<17x64xf32>
    %57 = arith.mulf %47, %56 : vector<17x64xf32>
    %58 = vector.broadcast %39 : vector<1x64xf32> to vector<17x64xf32>
    %59 = arith.mulf %57, %58 : vector<17x64xf32>
    %60 = vector.broadcast %41 : vector<1x64xf32> to vector<17x64xf32>
    %61 = arith.addf %59, %60 : vector<17x64xf32>
    %cst_35 = arith.constant dense<0.000000e+00> : vector<153x64xf32>
    %62 = tpu.matmul %37, %61, %cst_35 {dimension_numbers = #tpu.dot_dimension_numbers<[1], [0], [0], [1], [0, 0, 1, 1], [], []>} : vector<153x17xf32>, vector<17x64xf32>, vector<153x64xf32> -> vector<153x64xf32>
    %63 = vector.extract_strided_slice %62 {offsets = [0, 0], sizes = [17, 64], strides = [1, 1]} : vector<153x64xf32> to vector<17x64xf32>
    %64 = vector.extract_strided_slice %62 {offsets = [17, 0], sizes = [17, 64], strides = [1, 1]} : vector<153x64xf32> to vector<17x64xf32>
    %65 = vector.extract_strided_slice %62 {offsets = [34, 0], sizes = [17, 64], strides = [1, 1]} : vector<153x64xf32> to vector<17x64xf32>
    %66 = vector.extract_strided_slice %62 {offsets = [51, 0], sizes = [17, 64], strides = [1, 1]} : vector<153x64xf32> to vector<17x64xf32>
    %67 = vector.extract_strided_slice %62 {offsets = [68, 0], sizes = [17, 64], strides = [1, 1]} : vector<153x64xf32> to vector<17x64xf32>
    %68 = vector.extract_strided_slice %62 {offsets = [85, 0], sizes = [17, 64], strides = [1, 1]} : vector<153x64xf32> to vector<17x64xf32>
    %69 = vector.extract_strided_slice %62 {offsets = [102, 0], sizes = [17, 64], strides = [1, 1]} : vector<153x64xf32> to vector<17x64xf32>
    %70 = vector.extract_strided_slice %62 {offsets = [119, 0], sizes = [17, 64], strides = [1, 1]} : vector<153x64xf32> to vector<17x64xf32>
    %71 = vector.extract_strided_slice %62 {offsets = [136, 0], sizes = [17, 64], strides = [1, 1]} : vector<153x64xf32> to vector<17x64xf32>
    %c0_36 = arith.constant 0 : index
    %c0_37 = arith.constant 0 : index
    %c0_38 = arith.constant 0 : index
    %c0_39 = arith.constant 0 : index
    %72 = vector.load %arg10[%c0_36, %c0_37, %c0_38, %c0_39] : memref<6x9x1x64xf32, #tpu.memory_space<vmem>>, vector<1x9x1x64xf32>
    %73 = vector.shape_cast %72 : vector<1x9x1x64xf32> to vector<9x1x64xf32>
    %c0_40 = arith.constant 0 : index
    %c0_41 = arith.constant 0 : index
    %c0_42 = arith.constant 0 : index
    %74 = vector.load %arg11[%c0_40, %c0_41, %c0_42] : memref<6x1x64xf32, #tpu.memory_space<vmem>>, vector<1x1x64xf32>
    %75 = vector.shape_cast %74 : vector<1x1x64xf32> to vector<1x64xf32>
    %76 = vector.extract_strided_slice %73 {offsets = [0, 0, 0], sizes = [1, 1, 64], strides = [1, 1, 1]} : vector<9x1x64xf32> to vector<1x1x64xf32>
    %77 = vector.shape_cast %76 : vector<1x1x64xf32> to vector<1x64xf32>
    %78 = vector.broadcast %77 : vector<1x64xf32> to vector<17x64xf32>
    %79 = arith.mulf %63, %78 : vector<17x64xf32>
    %80 = vector.broadcast %75 : vector<1x64xf32> to vector<17x64xf32>
    %81 = arith.addf %80, %79 : vector<17x64xf32>
    %82 = vector.extract_strided_slice %73 {offsets = [1, 0, 0], sizes = [1, 1, 64], strides = [1, 1, 1]} : vector<9x1x64xf32> to vector<1x1x64xf32>
    %83 = vector.shape_cast %82 : vector<1x1x64xf32> to vector<1x64xf32>
    %84 = vector.broadcast %83 : vector<1x64xf32> to vector<17x64xf32>
    %85 = arith.mulf %64, %84 : vector<17x64xf32>
    %86 = arith.addf %81, %85 : vector<17x64xf32>
    %87 = vector.extract_strided_slice %73 {offsets = [2, 0, 0], sizes = [1, 1, 64], strides = [1, 1, 1]} : vector<9x1x64xf32> to vector<1x1x64xf32>
    %88 = vector.shape_cast %87 : vector<1x1x64xf32> to vector<1x64xf32>
    %89 = vector.broadcast %88 : vector<1x64xf32> to vector<17x64xf32>
    %90 = arith.mulf %65, %89 : vector<17x64xf32>
    %91 = arith.addf %86, %90 : vector<17x64xf32>
    %92 = vector.extract_strided_slice %73 {offsets = [3, 0, 0], sizes = [1, 1, 64], strides = [1, 1, 1]} : vector<9x1x64xf32> to vector<1x1x64xf32>
    %93 = vector.shape_cast %92 : vector<1x1x64xf32> to vector<1x64xf32>
    %94 = vector.broadcast %93 : vector<1x64xf32> to vector<17x64xf32>
    %95 = arith.mulf %66, %94 : vector<17x64xf32>
    %96 = arith.addf %91, %95 : vector<17x64xf32>
    %97 = vector.extract_strided_slice %73 {offsets = [4, 0, 0], sizes = [1, 1, 64], strides = [1, 1, 1]} : vector<9x1x64xf32> to vector<1x1x64xf32>
    %98 = vector.shape_cast %97 : vector<1x1x64xf32> to vector<1x64xf32>
    %99 = vector.broadcast %98 : vector<1x64xf32> to vector<17x64xf32>
    %100 = arith.mulf %67, %99 : vector<17x64xf32>
    %101 = arith.addf %96, %100 : vector<17x64xf32>
    %102 = vector.extract_strided_slice %73 {offsets = [5, 0, 0], sizes = [1, 1, 64], strides = [1, 1, 1]} : vector<9x1x64xf32> to vector<1x1x64xf32>
    %103 = vector.shape_cast %102 : vector<1x1x64xf32> to vector<1x64xf32>
    %104 = vector.broadcast %103 : vector<1x64xf32> to vector<17x64xf32>
    %105 = arith.mulf %68, %104 : vector<17x64xf32>
    %106 = arith.addf %101, %105 : vector<17x64xf32>
    %107 = vector.extract_strided_slice %73 {offsets = [6, 0, 0], sizes = [1, 1, 64], strides = [1, 1, 1]} : vector<9x1x64xf32> to vector<1x1x64xf32>
    %108 = vector.shape_cast %107 : vector<1x1x64xf32> to vector<1x64xf32>
    %109 = vector.broadcast %108 : vector<1x64xf32> to vector<17x64xf32>
    %110 = arith.mulf %69, %109 : vector<17x64xf32>
    %111 = arith.addf %106, %110 : vector<17x64xf32>
    %112 = vector.extract_strided_slice %73 {offsets = [7, 0, 0], sizes = [1, 1, 64], strides = [1, 1, 1]} : vector<9x1x64xf32> to vector<1x1x64xf32>
    %113 = vector.shape_cast %112 : vector<1x1x64xf32> to vector<1x64xf32>
    %114 = vector.broadcast %113 : vector<1x64xf32> to vector<17x64xf32>
    %115 = arith.mulf %70, %114 : vector<17x64xf32>
    %116 = arith.addf %111, %115 : vector<17x64xf32>
    %117 = vector.extract_strided_slice %73 {offsets = [8, 0, 0], sizes = [1, 1, 64], strides = [1, 1, 1]} : vector<9x1x64xf32> to vector<1x1x64xf32>
    %118 = vector.shape_cast %117 : vector<1x1x64xf32> to vector<1x64xf32>
    %119 = vector.broadcast %118 : vector<1x64xf32> to vector<17x64xf32>
    %120 = arith.mulf %71, %119 : vector<17x64xf32>
    %121 = arith.addf %116, %120 : vector<17x64xf32>
    %122 = vector.shape_cast %36 : vector<17x1xi1> to vector<17x1xi1>
    %123 = vector.broadcast %122 : vector<17x1xi1> to vector<17x64xi1>
    %124 = arith.select %123, %61, %121 : vector<17x64xi1>, vector<17x64xf32>
    %c1_43 = arith.constant 1 : index
    %c0_44 = arith.constant 0 : index
    %c0_45 = arith.constant 0 : index
    %c0_46 = arith.constant 0 : index
    %125 = vector.load %arg10[%c1_43, %c0_44, %c0_45, %c0_46] : memref<6x9x1x64xf32, #tpu.memory_space<vmem>>, vector<1x9x1x64xf32>
    %126 = vector.shape_cast %125 : vector<1x9x1x64xf32> to vector<9x1x64xf32>
    %c1_47 = arith.constant 1 : index
    %c0_48 = arith.constant 0 : index
    %c0_49 = arith.constant 0 : index
    %127 = vector.load %arg11[%c1_47, %c0_48, %c0_49] : memref<6x1x64xf32, #tpu.memory_space<vmem>>, vector<1x1x64xf32>
    %128 = vector.shape_cast %127 : vector<1x1x64xf32> to vector<1x64xf32>
    %129 = vector.extract_strided_slice %126 {offsets = [0, 0, 0], sizes = [1, 1, 64], strides = [1, 1, 1]} : vector<9x1x64xf32> to vector<1x1x64xf32>
    %130 = vector.shape_cast %129 : vector<1x1x64xf32> to vector<1x64xf32>
    %131 = vector.broadcast %130 : vector<1x64xf32> to vector<17x64xf32>
    %132 = arith.mulf %63, %131 : vector<17x64xf32>
    %133 = vector.broadcast %128 : vector<1x64xf32> to vector<17x64xf32>
    %134 = arith.addf %133, %132 : vector<17x64xf32>
    %135 = vector.extract_strided_slice %126 {offsets = [1, 0, 0], sizes = [1, 1, 64], strides = [1, 1, 1]} : vector<9x1x64xf32> to vector<1x1x64xf32>
    %136 = vector.shape_cast %135 : vector<1x1x64xf32> to vector<1x64xf32>
    %137 = vector.broadcast %136 : vector<1x64xf32> to vector<17x64xf32>
    %138 = arith.mulf %64, %137 : vector<17x64xf32>
    %139 = arith.addf %134, %138 : vector<17x64xf32>
    %140 = vector.extract_strided_slice %126 {offsets = [2, 0, 0], sizes = [1, 1, 64], strides = [1, 1, 1]} : vector<9x1x64xf32> to vector<1x1x64xf32>
    %141 = vector.shape_cast %140 : vector<1x1x64xf32> to vector<1x64xf32>
    %142 = vector.broadcast %141 : vector<1x64xf32> to vector<17x64xf32>
    %143 = arith.mulf %65, %142 : vector<17x64xf32>
    %144 = arith.addf %139, %143 : vector<17x64xf32>
    %145 = vector.extract_strided_slice %126 {offsets = [3, 0, 0], sizes = [1, 1, 64], strides = [1, 1, 1]} : vector<9x1x64xf32> to vector<1x1x64xf32>
    %146 = vector.shape_cast %145 : vector<1x1x64xf32> to vector<1x64xf32>
    %147 = vector.broadcast %146 : vector<1x64xf32> to vector<17x64xf32>
    %148 = arith.mulf %66, %147 : vector<17x64xf32>
    %149 = arith.addf %144, %148 : vector<17x64xf32>
    %150 = vector.extract_strided_slice %126 {offsets = [4, 0, 0], sizes = [1, 1, 64], strides = [1, 1, 1]} : vector<9x1x64xf32> to vector<1x1x64xf32>
    %151 = vector.shape_cast %150 : vector<1x1x64xf32> to vector<1x64xf32>
    %152 = vector.broadcast %151 : vector<1x64xf32> to vector<17x64xf32>
    %153 = arith.mulf %67, %152 : vector<17x64xf32>
    %154 = arith.addf %149, %153 : vector<17x64xf32>
    %155 = vector.extract_strided_slice %126 {offsets = [5, 0, 0], sizes = [1, 1, 64], strides = [1, 1, 1]} : vector<9x1x64xf32> to vector<1x1x64xf32>
    %156 = vector.shape_cast %155 : vector<1x1x64xf32> to vector<1x64xf32>
    %157 = vector.broadcast %156 : vector<1x64xf32> to vector<17x64xf32>
    %158 = arith.mulf %68, %157 : vector<17x64xf32>
    %159 = arith.addf %154, %158 : vector<17x64xf32>
    %160 = vector.extract_strided_slice %126 {offsets = [6, 0, 0], sizes = [1, 1, 64], strides = [1, 1, 1]} : vector<9x1x64xf32> to vector<1x1x64xf32>
    %161 = vector.shape_cast %160 : vector<1x1x64xf32> to vector<1x64xf32>
    %162 = vector.broadcast %161 : vector<1x64xf32> to vector<17x64xf32>
    %163 = arith.mulf %69, %162 : vector<17x64xf32>
    %164 = arith.addf %159, %163 : vector<17x64xf32>
    %165 = vector.extract_strided_slice %126 {offsets = [7, 0, 0], sizes = [1, 1, 64], strides = [1, 1, 1]} : vector<9x1x64xf32> to vector<1x1x64xf32>
    %166 = vector.shape_cast %165 : vector<1x1x64xf32> to vector<1x64xf32>
    %167 = vector.broadcast %166 : vector<1x64xf32> to vector<17x64xf32>
    %168 = arith.mulf %70, %167 : vector<17x64xf32>
    %169 = arith.addf %164, %168 : vector<17x64xf32>
    %170 = vector.extract_strided_slice %126 {offsets = [8, 0, 0], sizes = [1, 1, 64], strides = [1, 1, 1]} : vector<9x1x64xf32> to vector<1x1x64xf32>
    %171 = vector.shape_cast %170 : vector<1x1x64xf32> to vector<1x64xf32>
    %172 = vector.broadcast %171 : vector<1x64xf32> to vector<17x64xf32>
    %173 = arith.mulf %71, %172 : vector<17x64xf32>
    %174 = arith.addf %169, %173 : vector<17x64xf32>
    %175 = vector.shape_cast %36 : vector<17x1xi1> to vector<17x1xi1>
    %176 = vector.broadcast %175 : vector<17x1xi1> to vector<17x64xi1>
    %177 = arith.select %176, %61, %174 : vector<17x64xi1>, vector<17x64xf32>
    %c2 = arith.constant 2 : index
    %c0_50 = arith.constant 0 : index
    %c0_51 = arith.constant 0 : index
    %c0_52 = arith.constant 0 : index
    %178 = vector.load %arg10[%c2, %c0_50, %c0_51, %c0_52] : memref<6x9x1x64xf32, #tpu.memory_space<vmem>>, vector<1x9x1x64xf32>
    %179 = vector.shape_cast %178 : vector<1x9x1x64xf32> to vector<9x1x64xf32>
    %c2_53 = arith.constant 2 : index
    %c0_54 = arith.constant 0 : index
    %c0_55 = arith.constant 0 : index
    %180 = vector.load %arg11[%c2_53, %c0_54, %c0_55] : memref<6x1x64xf32, #tpu.memory_space<vmem>>, vector<1x1x64xf32>
    %181 = vector.shape_cast %180 : vector<1x1x64xf32> to vector<1x64xf32>
    %182 = vector.extract_strided_slice %179 {offsets = [0, 0, 0], sizes = [1, 1, 64], strides = [1, 1, 1]} : vector<9x1x64xf32> to vector<1x1x64xf32>
    %183 = vector.shape_cast %182 : vector<1x1x64xf32> to vector<1x64xf32>
    %184 = vector.broadcast %183 : vector<1x64xf32> to vector<17x64xf32>
    %185 = arith.mulf %63, %184 : vector<17x64xf32>
    %186 = vector.broadcast %181 : vector<1x64xf32> to vector<17x64xf32>
    %187 = arith.addf %186, %185 : vector<17x64xf32>
    %188 = vector.extract_strided_slice %179 {offsets = [1, 0, 0], sizes = [1, 1, 64], strides = [1, 1, 1]} : vector<9x1x64xf32> to vector<1x1x64xf32>
    %189 = vector.shape_cast %188 : vector<1x1x64xf32> to vector<1x64xf32>
    %190 = vector.broadcast %189 : vector<1x64xf32> to vector<17x64xf32>
    %191 = arith.mulf %64, %190 : vector<17x64xf32>
    %192 = arith.addf %187, %191 : vector<17x64xf32>
    %193 = vector.extract_strided_slice %179 {offsets = [2, 0, 0], sizes = [1, 1, 64], strides = [1, 1, 1]} : vector<9x1x64xf32> to vector<1x1x64xf32>
    %194 = vector.shape_cast %193 : vector<1x1x64xf32> to vector<1x64xf32>
    %195 = vector.broadcast %194 : vector<1x64xf32> to vector<17x64xf32>
    %196 = arith.mulf %65, %195 : vector<17x64xf32>
    %197 = arith.addf %192, %196 : vector<17x64xf32>
    %198 = vector.extract_strided_slice %179 {offsets = [3, 0, 0], sizes = [1, 1, 64], strides = [1, 1, 1]} : vector<9x1x64xf32> to vector<1x1x64xf32>
    %199 = vector.shape_cast %198 : vector<1x1x64xf32> to vector<1x64xf32>
    %200 = vector.broadcast %199 : vector<1x64xf32> to vector<17x64xf32>
    %201 = arith.mulf %66, %200 : vector<17x64xf32>
    %202 = arith.addf %197, %201 : vector<17x64xf32>
    %203 = vector.extract_strided_slice %179 {offsets = [4, 0, 0], sizes = [1, 1, 64], strides = [1, 1, 1]} : vector<9x1x64xf32> to vector<1x1x64xf32>
    %204 = vector.shape_cast %203 : vector<1x1x64xf32> to vector<1x64xf32>
    %205 = vector.broadcast %204 : vector<1x64xf32> to vector<17x64xf32>
    %206 = arith.mulf %67, %205 : vector<17x64xf32>
    %207 = arith.addf %202, %206 : vector<17x64xf32>
    %208 = vector.extract_strided_slice %179 {offsets = [5, 0, 0], sizes = [1, 1, 64], strides = [1, 1, 1]} : vector<9x1x64xf32> to vector<1x1x64xf32>
    %209 = vector.shape_cast %208 : vector<1x1x64xf32> to vector<1x64xf32>
    %210 = vector.broadcast %209 : vector<1x64xf32> to vector<17x64xf32>
    %211 = arith.mulf %68, %210 : vector<17x64xf32>
    %212 = arith.addf %207, %211 : vector<17x64xf32>
    %213 = vector.extract_strided_slice %179 {offsets = [6, 0, 0], sizes = [1, 1, 64], strides = [1, 1, 1]} : vector<9x1x64xf32> to vector<1x1x64xf32>
    %214 = vector.shape_cast %213 : vector<1x1x64xf32> to vector<1x64xf32>
    %215 = vector.broadcast %214 : vector<1x64xf32> to vector<17x64xf32>
    %216 = arith.mulf %69, %215 : vector<17x64xf32>
    %217 = arith.addf %212, %216 : vector<17x64xf32>
    %218 = vector.extract_strided_slice %179 {offsets = [7, 0, 0], sizes = [1, 1, 64], strides = [1, 1, 1]} : vector<9x1x64xf32> to vector<1x1x64xf32>
    %219 = vector.shape_cast %218 : vector<1x1x64xf32> to vector<1x64xf32>
    %220 = vector.broadcast %219 : vector<1x64xf32> to vector<17x64xf32>
    %221 = arith.mulf %70, %220 : vector<17x64xf32>
    %222 = arith.addf %217, %221 : vector<17x64xf32>
    %223 = vector.extract_strided_slice %179 {offsets = [8, 0, 0], sizes = [1, 1, 64], strides = [1, 1, 1]} : vector<9x1x64xf32> to vector<1x1x64xf32>
    %224 = vector.shape_cast %223 : vector<1x1x64xf32> to vector<1x64xf32>
    %225 = vector.broadcast %224 : vector<1x64xf32> to vector<17x64xf32>
    %226 = arith.mulf %71, %225 : vector<17x64xf32>
    %227 = arith.addf %222, %226 : vector<17x64xf32>
    %228 = vector.shape_cast %36 : vector<17x1xi1> to vector<17x1xi1>
    %229 = vector.broadcast %228 : vector<17x1xi1> to vector<17x64xi1>
    %230 = arith.select %229, %61, %227 : vector<17x64xi1>, vector<17x64xf32>
    %c0_56 = arith.constant 0 : index
    %c0_57 = arith.constant 0 : index
    %c0_58 = arith.constant 0 : index
    %231 = vector.load %arg12[%c0_56, %c0_57, %c0_58] : memref<2x64x64xbf16, #tpu.memory_space<vmem>>, vector<1x64x64xbf16>
    %232 = vector.shape_cast %231 : vector<1x64x64xbf16> to vector<64x64xbf16>
    %233 = arith.truncf %124 : vector<17x64xf32> to vector<17x64xbf16>
    %cst_59 = arith.constant dense<0.000000e+00> : vector<17x64xf32>
    %234 = tpu.matmul %233, %232, %cst_59 {dimension_numbers = #tpu.dot_dimension_numbers<[1], [0], [0], [1], [0, 0, 1, 1], [], []>} : vector<17x64xbf16>, vector<64x64xbf16>, vector<17x64xf32> -> vector<17x64xf32>
    %c0_60 = arith.constant 0 : index
    %c0_61 = arith.constant 0 : index
    %c0_62 = arith.constant 0 : index
    %235 = vector.load %arg13[%c0_60, %c0_61, %c0_62] : memref<2x64x64xbf16, #tpu.memory_space<vmem>>, vector<1x64x64xbf16>
    %236 = vector.shape_cast %235 : vector<1x64x64xbf16> to vector<64x64xbf16>
    %237 = arith.truncf %177 : vector<17x64xf32> to vector<17x64xbf16>
    %cst_63 = arith.constant dense<0.000000e+00> : vector<17x64xf32>
    %238 = tpu.matmul %237, %236, %cst_63 {dimension_numbers = #tpu.dot_dimension_numbers<[1], [0], [0], [1], [0, 0, 1, 1], [], []>} : vector<17x64xbf16>, vector<64x64xbf16>, vector<17x64xf32> -> vector<17x64xf32>
    %c0_64 = arith.constant 0 : index
    %c0_65 = arith.constant 0 : index
    %c0_66 = arith.constant 0 : index
    %239 = vector.load %arg14[%c0_64, %c0_65, %c0_66] : memref<2x64x64xbf16, #tpu.memory_space<vmem>>, vector<1x64x64xbf16>
    %240 = vector.shape_cast %239 : vector<1x64x64xbf16> to vector<64x64xbf16>
    %241 = arith.truncf %230 : vector<17x64xf32> to vector<17x64xbf16>
    %cst_67 = arith.constant dense<0.000000e+00> : vector<17x64xf32>
    %242 = tpu.matmul %241, %240, %cst_67 {dimension_numbers = #tpu.dot_dimension_numbers<[1], [0], [0], [1], [0, 0, 1, 1], [], []>} : vector<17x64xbf16>, vector<64x64xbf16>, vector<17x64xf32> -> vector<17x64xf32>
    %243 = vector.extract_strided_slice %234 {offsets = [0, 0], sizes = [17, 16], strides = [1, 1]} : vector<17x64xf32> to vector<17x16xf32>
    %244 = vector.extract_strided_slice %238 {offsets = [0, 0], sizes = [17, 16], strides = [1, 1]} : vector<17x64xf32> to vector<17x16xf32>
    %245 = vector.extract_strided_slice %242 {offsets = [0, 0], sizes = [17, 16], strides = [1, 1]} : vector<17x64xf32> to vector<17x16xf32>
    %246 = arith.truncf %243 : vector<17x16xf32> to vector<17x16xbf16>
    %247 = arith.truncf %244 : vector<17x16xf32> to vector<17x16xbf16>
    %cst_68 = arith.constant dense<0.000000e+00> : vector<17x17xf32>
    %248 = tpu.matmul %246, %247, %cst_68 {dimension_numbers = #tpu.dot_dimension_numbers<[1], [1], [0], [0], [0, 0, 1, 0], [], []>} : vector<17x16xbf16>, vector<17x16xbf16>, vector<17x17xf32> -> vector<17x17xf32>
    %cst_69 = arith.constant 1.250000e-01 : f32
    %249 = vector.broadcast %cst_69 : f32 to vector<17x17xf32>
    %250 = arith.mulf %248, %249 : vector<17x17xf32>
    %cst_70 = arith.constant dense<0xFF800000> : vector<17xf32>
    %251 = vector.multi_reduction <maximumf>, %250, %cst_70 [1] : vector<17x17xf32> to vector<17xf32>
    %252 = vector.shape_cast %251 : vector<17xf32> to vector<17x1xf32>
    %253 = vector.broadcast %252 : vector<17x1xf32> to vector<17x17xf32>
    %254 = arith.subf %250, %253 : vector<17x17xf32>
    %255 = math.exp %254 : vector<17x17xf32>
    %cst_71 = arith.constant dense<0.000000e+00> : vector<17xf32>
    %256 = vector.multi_reduction <add>, %255, %cst_71 [1] : vector<17x17xf32> to vector<17xf32>
    %257 = vector.shape_cast %256 : vector<17xf32> to vector<17x1xf32>
    %258 = vector.broadcast %257 : vector<17x1xf32> to vector<17x17xf32>
    %259 = arith.divf %255, %258 : vector<17x17xf32>
    %260 = arith.truncf %259 : vector<17x17xf32> to vector<17x17xbf16>
    %261 = arith.truncf %245 : vector<17x16xf32> to vector<17x16xbf16>
    %cst_72 = arith.constant dense<0.000000e+00> : vector<17x16xf32>
    %262 = tpu.matmul %260, %261, %cst_72 {dimension_numbers = #tpu.dot_dimension_numbers<[1], [0], [0], [1], [0, 0, 1, 1], [], []>} : vector<17x17xbf16>, vector<17x16xbf16>, vector<17x16xf32> -> vector<17x16xf32>
    %263 = vector.extract_strided_slice %234 {offsets = [0, 16], sizes = [17, 16], strides = [1, 1]} : vector<17x64xf32> to vector<17x16xf32>
    %264 = vector.extract_strided_slice %238 {offsets = [0, 16], sizes = [17, 16], strides = [1, 1]} : vector<17x64xf32> to vector<17x16xf32>
    %265 = vector.extract_strided_slice %242 {offsets = [0, 16], sizes = [17, 16], strides = [1, 1]} : vector<17x64xf32> to vector<17x16xf32>
    %266 = arith.truncf %263 : vector<17x16xf32> to vector<17x16xbf16>
    %267 = arith.truncf %264 : vector<17x16xf32> to vector<17x16xbf16>
    %cst_73 = arith.constant dense<0.000000e+00> : vector<17x17xf32>
    %268 = tpu.matmul %266, %267, %cst_73 {dimension_numbers = #tpu.dot_dimension_numbers<[1], [1], [0], [0], [0, 0, 1, 0], [], []>} : vector<17x16xbf16>, vector<17x16xbf16>, vector<17x17xf32> -> vector<17x17xf32>
    %cst_74 = arith.constant 1.250000e-01 : f32
    %269 = vector.broadcast %cst_74 : f32 to vector<17x17xf32>
    %270 = arith.mulf %268, %269 : vector<17x17xf32>
    %cst_75 = arith.constant dense<0xFF800000> : vector<17xf32>
    %271 = vector.multi_reduction <maximumf>, %270, %cst_75 [1] : vector<17x17xf32> to vector<17xf32>
    %272 = vector.shape_cast %271 : vector<17xf32> to vector<17x1xf32>
    %273 = vector.broadcast %272 : vector<17x1xf32> to vector<17x17xf32>
    %274 = arith.subf %270, %273 : vector<17x17xf32>
    %275 = math.exp %274 : vector<17x17xf32>
    %cst_76 = arith.constant dense<0.000000e+00> : vector<17xf32>
    %276 = vector.multi_reduction <add>, %275, %cst_76 [1] : vector<17x17xf32> to vector<17xf32>
    %277 = vector.shape_cast %276 : vector<17xf32> to vector<17x1xf32>
    %278 = vector.broadcast %277 : vector<17x1xf32> to vector<17x17xf32>
    %279 = arith.divf %275, %278 : vector<17x17xf32>
    %280 = arith.truncf %279 : vector<17x17xf32> to vector<17x17xbf16>
    %281 = arith.truncf %265 : vector<17x16xf32> to vector<17x16xbf16>
    %cst_77 = arith.constant dense<0.000000e+00> : vector<17x16xf32>
    %282 = tpu.matmul %280, %281, %cst_77 {dimension_numbers = #tpu.dot_dimension_numbers<[1], [0], [0], [1], [0, 0, 1, 1], [], []>} : vector<17x17xbf16>, vector<17x16xbf16>, vector<17x16xf32> -> vector<17x16xf32>
    %283 = vector.extract_strided_slice %234 {offsets = [0, 32], sizes = [17, 16], strides = [1, 1]} : vector<17x64xf32> to vector<17x16xf32>
    %284 = vector.extract_strided_slice %238 {offsets = [0, 32], sizes = [17, 16], strides = [1, 1]} : vector<17x64xf32> to vector<17x16xf32>
    %285 = vector.extract_strided_slice %242 {offsets = [0, 32], sizes = [17, 16], strides = [1, 1]} : vector<17x64xf32> to vector<17x16xf32>
    %286 = arith.truncf %283 : vector<17x16xf32> to vector<17x16xbf16>
    %287 = arith.truncf %284 : vector<17x16xf32> to vector<17x16xbf16>
    %cst_78 = arith.constant dense<0.000000e+00> : vector<17x17xf32>
    %288 = tpu.matmul %286, %287, %cst_78 {dimension_numbers = #tpu.dot_dimension_numbers<[1], [1], [0], [0], [0, 0, 1, 0], [], []>} : vector<17x16xbf16>, vector<17x16xbf16>, vector<17x17xf32> -> vector<17x17xf32>
    %cst_79 = arith.constant 1.250000e-01 : f32
    %289 = vector.broadcast %cst_79 : f32 to vector<17x17xf32>
    %290 = arith.mulf %288, %289 : vector<17x17xf32>
    %cst_80 = arith.constant dense<0xFF800000> : vector<17xf32>
    %291 = vector.multi_reduction <maximumf>, %290, %cst_80 [1] : vector<17x17xf32> to vector<17xf32>
    %292 = vector.shape_cast %291 : vector<17xf32> to vector<17x1xf32>
    %293 = vector.broadcast %292 : vector<17x1xf32> to vector<17x17xf32>
    %294 = arith.subf %290, %293 : vector<17x17xf32>
    %295 = math.exp %294 : vector<17x17xf32>
    %cst_81 = arith.constant dense<0.000000e+00> : vector<17xf32>
    %296 = vector.multi_reduction <add>, %295, %cst_81 [1] : vector<17x17xf32> to vector<17xf32>
    %297 = vector.shape_cast %296 : vector<17xf32> to vector<17x1xf32>
    %298 = vector.broadcast %297 : vector<17x1xf32> to vector<17x17xf32>
    %299 = arith.divf %295, %298 : vector<17x17xf32>
    %300 = arith.truncf %299 : vector<17x17xf32> to vector<17x17xbf16>
    %301 = arith.truncf %285 : vector<17x16xf32> to vector<17x16xbf16>
    %cst_82 = arith.constant dense<0.000000e+00> : vector<17x16xf32>
    %302 = tpu.matmul %300, %301, %cst_82 {dimension_numbers = #tpu.dot_dimension_numbers<[1], [0], [0], [1], [0, 0, 1, 1], [], []>} : vector<17x17xbf16>, vector<17x16xbf16>, vector<17x16xf32> -> vector<17x16xf32>
    %303 = vector.extract_strided_slice %234 {offsets = [0, 48], sizes = [17, 16], strides = [1, 1]} : vector<17x64xf32> to vector<17x16xf32>
    %304 = vector.extract_strided_slice %238 {offsets = [0, 48], sizes = [17, 16], strides = [1, 1]} : vector<17x64xf32> to vector<17x16xf32>
    %305 = vector.extract_strided_slice %242 {offsets = [0, 48], sizes = [17, 16], strides = [1, 1]} : vector<17x64xf32> to vector<17x16xf32>
    %306 = arith.truncf %303 : vector<17x16xf32> to vector<17x16xbf16>
    %307 = arith.truncf %304 : vector<17x16xf32> to vector<17x16xbf16>
    %cst_83 = arith.constant dense<0.000000e+00> : vector<17x17xf32>
    %308 = tpu.matmul %306, %307, %cst_83 {dimension_numbers = #tpu.dot_dimension_numbers<[1], [1], [0], [0], [0, 0, 1, 0], [], []>} : vector<17x16xbf16>, vector<17x16xbf16>, vector<17x17xf32> -> vector<17x17xf32>
    %cst_84 = arith.constant 1.250000e-01 : f32
    %309 = vector.broadcast %cst_84 : f32 to vector<17x17xf32>
    %310 = arith.mulf %308, %309 : vector<17x17xf32>
    %cst_85 = arith.constant dense<0xFF800000> : vector<17xf32>
    %311 = vector.multi_reduction <maximumf>, %310, %cst_85 [1] : vector<17x17xf32> to vector<17xf32>
    %312 = vector.shape_cast %311 : vector<17xf32> to vector<17x1xf32>
    %313 = vector.broadcast %312 : vector<17x1xf32> to vector<17x17xf32>
    %314 = arith.subf %310, %313 : vector<17x17xf32>
    %315 = math.exp %314 : vector<17x17xf32>
    %cst_86 = arith.constant dense<0.000000e+00> : vector<17xf32>
    %316 = vector.multi_reduction <add>, %315, %cst_86 [1] : vector<17x17xf32> to vector<17xf32>
    %317 = vector.shape_cast %316 : vector<17xf32> to vector<17x1xf32>
    %318 = vector.broadcast %317 : vector<17x1xf32> to vector<17x17xf32>
    %319 = arith.divf %315, %318 : vector<17x17xf32>
    %320 = arith.truncf %319 : vector<17x17xf32> to vector<17x17xbf16>
    %321 = arith.truncf %305 : vector<17x16xf32> to vector<17x16xbf16>
    %cst_87 = arith.constant dense<0.000000e+00> : vector<17x16xf32>
    %322 = tpu.matmul %320, %321, %cst_87 {dimension_numbers = #tpu.dot_dimension_numbers<[1], [0], [0], [1], [0, 0, 1, 1], [], []>} : vector<17x17xbf16>, vector<17x16xbf16>, vector<17x16xf32> -> vector<17x16xf32>
    %323 = tpu.concatenate %262, %282, %302, %322 in 1 : vector<17x16xf32>, vector<17x16xf32>, vector<17x16xf32>, vector<17x16xf32> -> vector<17x64xf32>
    %c0_88 = arith.constant 0 : index
    %c0_89 = arith.constant 0 : index
    %c0_90 = arith.constant 0 : index
    %324 = vector.load %arg15[%c0_88, %c0_89, %c0_90] : memref<2x64x64xbf16, #tpu.memory_space<vmem>>, vector<1x64x64xbf16>
    %325 = vector.shape_cast %324 : vector<1x64x64xbf16> to vector<64x64xbf16>
    %326 = arith.truncf %323 : vector<17x64xf32> to vector<17x64xbf16>
    %cst_91 = arith.constant dense<0.000000e+00> : vector<17x64xf32>
    %327 = tpu.matmul %326, %325, %cst_91 {dimension_numbers = #tpu.dot_dimension_numbers<[1], [0], [0], [1], [0, 0, 1, 1], [], []>} : vector<17x64xbf16>, vector<64x64xbf16>, vector<17x64xf32> -> vector<17x64xf32>
    %328 = arith.addf %33, %327 : vector<17x64xf32>
    %c0_92 = arith.constant 0 : index
    %c0_93 = arith.constant 0 : index
    %c0_94 = arith.constant 0 : index
    %329 = vector.load %arg16[%c0_92, %c0_93, %c0_94] : memref<2x1x64xf32, #tpu.memory_space<vmem>>, vector<1x1x64xf32>
    %330 = vector.shape_cast %329 : vector<1x1x64xf32> to vector<1x64xf32>
    %331 = vector.broadcast %330 : vector<1x64xf32> to vector<17x64xf32>
    %332 = arith.addf %328, %331 : vector<17x64xf32>
    %c0_95 = arith.constant 0 : index
    %c0_96 = arith.constant 0 : index
    %c0_97 = arith.constant 0 : index
    %333 = vector.load %arg17[%c0_95, %c0_96, %c0_97] : memref<2x1x64xf32, #tpu.memory_space<vmem>>, vector<1x1x64xf32>
    %334 = vector.shape_cast %333 : vector<1x1x64xf32> to vector<1x64xf32>
    %c0_98 = arith.constant 0 : index
    %c0_99 = arith.constant 0 : index
    %c0_100 = arith.constant 0 : index
    %335 = vector.load %arg18[%c0_98, %c0_99, %c0_100] : memref<2x1x64xf32, #tpu.memory_space<vmem>>, vector<1x1x64xf32>
    %336 = vector.shape_cast %335 : vector<1x1x64xf32> to vector<1x64xf32>
    %cst_101 = arith.constant dense<0.000000e+00> : vector<17xf32>
    %337 = vector.multi_reduction <add>, %332, %cst_101 [1] : vector<17x64xf32> to vector<17xf32>
    %338 = vector.shape_cast %337 : vector<17xf32> to vector<17x1xf32>
    %cst_102 = arith.constant 6.400000e+01 : f32
    %339 = vector.broadcast %cst_102 : f32 to vector<17x1xf32>
    %340 = arith.divf %338, %339 : vector<17x1xf32>
    %341 = vector.broadcast %340 : vector<17x1xf32> to vector<17x64xf32>
    %342 = arith.subf %332, %341 : vector<17x64xf32>
    %343 = arith.mulf %342, %342 : vector<17x64xf32>
    %cst_103 = arith.constant dense<0.000000e+00> : vector<17xf32>
    %344 = vector.multi_reduction <add>, %343, %cst_103 [1] : vector<17x64xf32> to vector<17xf32>
    %345 = vector.shape_cast %344 : vector<17xf32> to vector<17x1xf32>
    %cst_104 = arith.constant 6.400000e+01 : f32
    %346 = vector.broadcast %cst_104 : f32 to vector<17x1xf32>
    %347 = arith.divf %345, %346 : vector<17x1xf32>
    %cst_105 = arith.constant 9.99999974E-6 : f32
    %348 = vector.broadcast %cst_105 : f32 to vector<17x1xf32>
    %349 = arith.addf %347, %348 : vector<17x1xf32>
    %350 = math.rsqrt %349 : vector<17x1xf32>
    %351 = vector.broadcast %350 : vector<17x1xf32> to vector<17x64xf32>
    %352 = arith.mulf %342, %351 : vector<17x64xf32>
    %353 = vector.broadcast %334 : vector<1x64xf32> to vector<17x64xf32>
    %354 = arith.mulf %352, %353 : vector<17x64xf32>
    %355 = vector.broadcast %336 : vector<1x64xf32> to vector<17x64xf32>
    %356 = arith.addf %354, %355 : vector<17x64xf32>
    %c0_106 = arith.constant 0 : index
    %c0_107 = arith.constant 0 : index
    %c0_108 = arith.constant 0 : index
    %357 = vector.load %arg19[%c0_106, %c0_107, %c0_108] : memref<2x64x256xbf16, #tpu.memory_space<vmem>>, vector<1x64x256xbf16>
    %358 = vector.shape_cast %357 : vector<1x64x256xbf16> to vector<64x256xbf16>
    %359 = arith.truncf %356 : vector<17x64xf32> to vector<17x64xbf16>
    %cst_109 = arith.constant dense<0.000000e+00> : vector<17x256xf32>
    %360 = tpu.matmul %359, %358, %cst_109 {dimension_numbers = #tpu.dot_dimension_numbers<[1], [0], [0], [1], [0, 0, 1, 1], [], []>} : vector<17x64xbf16>, vector<64x256xbf16>, vector<17x256xf32> -> vector<17x256xf32>
    %c0_110 = arith.constant 0 : index
    %c0_111 = arith.constant 0 : index
    %c0_112 = arith.constant 0 : index
    %361 = vector.load %arg20[%c0_110, %c0_111, %c0_112] : memref<2x1x256xf32, #tpu.memory_space<vmem>>, vector<1x1x256xf32>
    %362 = vector.shape_cast %361 : vector<1x1x256xf32> to vector<1x256xf32>
    %363 = vector.broadcast %362 : vector<1x256xf32> to vector<17x256xf32>
    %364 = arith.addf %360, %363 : vector<17x256xf32>
    %cst_113 = arith.constant 5.000000e-01 : f32
    %365 = vector.broadcast %cst_113 : f32 to vector<17x256xf32>
    %366 = arith.mulf %365, %364 : vector<17x256xf32>
    %cst_114 = arith.constant 0.707106769 : f32
    %367 = vector.broadcast %cst_114 : f32 to vector<17x256xf32>
    %368 = arith.mulf %364, %367 : vector<17x256xf32>
    %369 = math.erf %368 : vector<17x256xf32>
    %cst_115 = arith.constant 1.000000e+00 : f32
    %370 = vector.broadcast %cst_115 : f32 to vector<17x256xf32>
    %371 = arith.addf %370, %369 : vector<17x256xf32>
    %372 = arith.mulf %366, %371 : vector<17x256xf32>
    %c0_116 = arith.constant 0 : index
    %c0_117 = arith.constant 0 : index
    %c0_118 = arith.constant 0 : index
    %373 = vector.load %arg21[%c0_116, %c0_117, %c0_118] : memref<2x256x64xbf16, #tpu.memory_space<vmem>>, vector<1x256x64xbf16>
    %374 = vector.shape_cast %373 : vector<1x256x64xbf16> to vector<256x64xbf16>
    %375 = arith.truncf %372 : vector<17x256xf32> to vector<17x256xbf16>
    %cst_119 = arith.constant dense<0.000000e+00> : vector<17x64xf32>
    %376 = tpu.matmul %375, %374, %cst_119 {dimension_numbers = #tpu.dot_dimension_numbers<[1], [0], [0], [1], [0, 0, 1, 1], [], []>} : vector<17x256xbf16>, vector<256x64xbf16>, vector<17x64xf32> -> vector<17x64xf32>
    %377 = arith.addf %332, %376 : vector<17x64xf32>
    %c0_120 = arith.constant 0 : index
    %c0_121 = arith.constant 0 : index
    %c0_122 = arith.constant 0 : index
    %378 = vector.load %arg22[%c0_120, %c0_121, %c0_122] : memref<2x1x64xf32, #tpu.memory_space<vmem>>, vector<1x1x64xf32>
    %379 = vector.shape_cast %378 : vector<1x1x64xf32> to vector<1x64xf32>
    %380 = vector.broadcast %379 : vector<1x64xf32> to vector<17x64xf32>
    %381 = arith.addf %377, %380 : vector<17x64xf32>
    %c1_123 = arith.constant 1 : index
    %c0_124 = arith.constant 0 : index
    %c0_125 = arith.constant 0 : index
    %382 = vector.load %arg8[%c1_123, %c0_124, %c0_125] : memref<2x1x64xf32, #tpu.memory_space<vmem>>, vector<1x1x64xf32>
    %383 = vector.shape_cast %382 : vector<1x1x64xf32> to vector<1x64xf32>
    %c1_126 = arith.constant 1 : index
    %c0_127 = arith.constant 0 : index
    %c0_128 = arith.constant 0 : index
    %384 = vector.load %arg9[%c1_126, %c0_127, %c0_128] : memref<2x1x64xf32, #tpu.memory_space<vmem>>, vector<1x1x64xf32>
    %385 = vector.shape_cast %384 : vector<1x1x64xf32> to vector<1x64xf32>
    %cst_129 = arith.constant dense<0.000000e+00> : vector<17xf32>
    %386 = vector.multi_reduction <add>, %381, %cst_129 [1] : vector<17x64xf32> to vector<17xf32>
    %387 = vector.shape_cast %386 : vector<17xf32> to vector<17x1xf32>
    %cst_130 = arith.constant 6.400000e+01 : f32
    %388 = vector.broadcast %cst_130 : f32 to vector<17x1xf32>
    %389 = arith.divf %387, %388 : vector<17x1xf32>
    %390 = vector.broadcast %389 : vector<17x1xf32> to vector<17x64xf32>
    %391 = arith.subf %381, %390 : vector<17x64xf32>
    %392 = arith.mulf %391, %391 : vector<17x64xf32>
    %cst_131 = arith.constant dense<0.000000e+00> : vector<17xf32>
    %393 = vector.multi_reduction <add>, %392, %cst_131 [1] : vector<17x64xf32> to vector<17xf32>
    %394 = vector.shape_cast %393 : vector<17xf32> to vector<17x1xf32>
    %cst_132 = arith.constant 6.400000e+01 : f32
    %395 = vector.broadcast %cst_132 : f32 to vector<17x1xf32>
    %396 = arith.divf %394, %395 : vector<17x1xf32>
    %cst_133 = arith.constant 9.99999974E-6 : f32
    %397 = vector.broadcast %cst_133 : f32 to vector<17x1xf32>
    %398 = arith.addf %396, %397 : vector<17x1xf32>
    %399 = math.rsqrt %398 : vector<17x1xf32>
    %400 = vector.broadcast %399 : vector<17x1xf32> to vector<17x64xf32>
    %401 = arith.mulf %391, %400 : vector<17x64xf32>
    %402 = vector.broadcast %383 : vector<1x64xf32> to vector<17x64xf32>
    %403 = arith.mulf %401, %402 : vector<17x64xf32>
    %404 = vector.broadcast %385 : vector<1x64xf32> to vector<17x64xf32>
    %405 = arith.addf %403, %404 : vector<17x64xf32>
    %cst_134 = arith.constant dense<0.000000e+00> : vector<153x64xf32>
    %406 = tpu.matmul %37, %405, %cst_134 {dimension_numbers = #tpu.dot_dimension_numbers<[1], [0], [0], [1], [0, 0, 1, 1], [], []>} : vector<153x17xf32>, vector<17x64xf32>, vector<153x64xf32> -> vector<153x64xf32>
    %407 = vector.extract_strided_slice %406 {offsets = [0, 0], sizes = [17, 64], strides = [1, 1]} : vector<153x64xf32> to vector<17x64xf32>
    %408 = vector.extract_strided_slice %406 {offsets = [17, 0], sizes = [17, 64], strides = [1, 1]} : vector<153x64xf32> to vector<17x64xf32>
    %409 = vector.extract_strided_slice %406 {offsets = [34, 0], sizes = [17, 64], strides = [1, 1]} : vector<153x64xf32> to vector<17x64xf32>
    %410 = vector.extract_strided_slice %406 {offsets = [51, 0], sizes = [17, 64], strides = [1, 1]} : vector<153x64xf32> to vector<17x64xf32>
    %411 = vector.extract_strided_slice %406 {offsets = [68, 0], sizes = [17, 64], strides = [1, 1]} : vector<153x64xf32> to vector<17x64xf32>
    %412 = vector.extract_strided_slice %406 {offsets = [85, 0], sizes = [17, 64], strides = [1, 1]} : vector<153x64xf32> to vector<17x64xf32>
    %413 = vector.extract_strided_slice %406 {offsets = [102, 0], sizes = [17, 64], strides = [1, 1]} : vector<153x64xf32> to vector<17x64xf32>
    %414 = vector.extract_strided_slice %406 {offsets = [119, 0], sizes = [17, 64], strides = [1, 1]} : vector<153x64xf32> to vector<17x64xf32>
    %415 = vector.extract_strided_slice %406 {offsets = [136, 0], sizes = [17, 64], strides = [1, 1]} : vector<153x64xf32> to vector<17x64xf32>
    %c3 = arith.constant 3 : index
    %c0_135 = arith.constant 0 : index
    %c0_136 = arith.constant 0 : index
    %c0_137 = arith.constant 0 : index
    %416 = vector.load %arg10[%c3, %c0_135, %c0_136, %c0_137] : memref<6x9x1x64xf32, #tpu.memory_space<vmem>>, vector<1x9x1x64xf32>
    %417 = vector.shape_cast %416 : vector<1x9x1x64xf32> to vector<9x1x64xf32>
    %c3_138 = arith.constant 3 : index
    %c0_139 = arith.constant 0 : index
    %c0_140 = arith.constant 0 : index
    %418 = vector.load %arg11[%c3_138, %c0_139, %c0_140] : memref<6x1x64xf32, #tpu.memory_space<vmem>>, vector<1x1x64xf32>
    %419 = vector.shape_cast %418 : vector<1x1x64xf32> to vector<1x64xf32>
    %420 = vector.extract_strided_slice %417 {offsets = [0, 0, 0], sizes = [1, 1, 64], strides = [1, 1, 1]} : vector<9x1x64xf32> to vector<1x1x64xf32>
    %421 = vector.shape_cast %420 : vector<1x1x64xf32> to vector<1x64xf32>
    %422 = vector.broadcast %421 : vector<1x64xf32> to vector<17x64xf32>
    %423 = arith.mulf %407, %422 : vector<17x64xf32>
    %424 = vector.broadcast %419 : vector<1x64xf32> to vector<17x64xf32>
    %425 = arith.addf %424, %423 : vector<17x64xf32>
    %426 = vector.extract_strided_slice %417 {offsets = [1, 0, 0], sizes = [1, 1, 64], strides = [1, 1, 1]} : vector<9x1x64xf32> to vector<1x1x64xf32>
    %427 = vector.shape_cast %426 : vector<1x1x64xf32> to vector<1x64xf32>
    %428 = vector.broadcast %427 : vector<1x64xf32> to vector<17x64xf32>
    %429 = arith.mulf %408, %428 : vector<17x64xf32>
    %430 = arith.addf %425, %429 : vector<17x64xf32>
    %431 = vector.extract_strided_slice %417 {offsets = [2, 0, 0], sizes = [1, 1, 64], strides = [1, 1, 1]} : vector<9x1x64xf32> to vector<1x1x64xf32>
    %432 = vector.shape_cast %431 : vector<1x1x64xf32> to vector<1x64xf32>
    %433 = vector.broadcast %432 : vector<1x64xf32> to vector<17x64xf32>
    %434 = arith.mulf %409, %433 : vector<17x64xf32>
    %435 = arith.addf %430, %434 : vector<17x64xf32>
    %436 = vector.extract_strided_slice %417 {offsets = [3, 0, 0], sizes = [1, 1, 64], strides = [1, 1, 1]} : vector<9x1x64xf32> to vector<1x1x64xf32>
    %437 = vector.shape_cast %436 : vector<1x1x64xf32> to vector<1x64xf32>
    %438 = vector.broadcast %437 : vector<1x64xf32> to vector<17x64xf32>
    %439 = arith.mulf %410, %438 : vector<17x64xf32>
    %440 = arith.addf %435, %439 : vector<17x64xf32>
    %441 = vector.extract_strided_slice %417 {offsets = [4, 0, 0], sizes = [1, 1, 64], strides = [1, 1, 1]} : vector<9x1x64xf32> to vector<1x1x64xf32>
    %442 = vector.shape_cast %441 : vector<1x1x64xf32> to vector<1x64xf32>
    %443 = vector.broadcast %442 : vector<1x64xf32> to vector<17x64xf32>
    %444 = arith.mulf %411, %443 : vector<17x64xf32>
    %445 = arith.addf %440, %444 : vector<17x64xf32>
    %446 = vector.extract_strided_slice %417 {offsets = [5, 0, 0], sizes = [1, 1, 64], strides = [1, 1, 1]} : vector<9x1x64xf32> to vector<1x1x64xf32>
    %447 = vector.shape_cast %446 : vector<1x1x64xf32> to vector<1x64xf32>
    %448 = vector.broadcast %447 : vector<1x64xf32> to vector<17x64xf32>
    %449 = arith.mulf %412, %448 : vector<17x64xf32>
    %450 = arith.addf %445, %449 : vector<17x64xf32>
    %451 = vector.extract_strided_slice %417 {offsets = [6, 0, 0], sizes = [1, 1, 64], strides = [1, 1, 1]} : vector<9x1x64xf32> to vector<1x1x64xf32>
    %452 = vector.shape_cast %451 : vector<1x1x64xf32> to vector<1x64xf32>
    %453 = vector.broadcast %452 : vector<1x64xf32> to vector<17x64xf32>
    %454 = arith.mulf %413, %453 : vector<17x64xf32>
    %455 = arith.addf %450, %454 : vector<17x64xf32>
    %456 = vector.extract_strided_slice %417 {offsets = [7, 0, 0], sizes = [1, 1, 64], strides = [1, 1, 1]} : vector<9x1x64xf32> to vector<1x1x64xf32>
    %457 = vector.shape_cast %456 : vector<1x1x64xf32> to vector<1x64xf32>
    %458 = vector.broadcast %457 : vector<1x64xf32> to vector<17x64xf32>
    %459 = arith.mulf %414, %458 : vector<17x64xf32>
    %460 = arith.addf %455, %459 : vector<17x64xf32>
    %461 = vector.extract_strided_slice %417 {offsets = [8, 0, 0], sizes = [1, 1, 64], strides = [1, 1, 1]} : vector<9x1x64xf32> to vector<1x1x64xf32>
    %462 = vector.shape_cast %461 : vector<1x1x64xf32> to vector<1x64xf32>
    %463 = vector.broadcast %462 : vector<1x64xf32> to vector<17x64xf32>
    %464 = arith.mulf %415, %463 : vector<17x64xf32>
    %465 = arith.addf %460, %464 : vector<17x64xf32>
    %466 = vector.shape_cast %36 : vector<17x1xi1> to vector<17x1xi1>
    %467 = vector.broadcast %466 : vector<17x1xi1> to vector<17x64xi1>
    %468 = arith.select %467, %405, %465 : vector<17x64xi1>, vector<17x64xf32>
    %c4 = arith.constant 4 : index
    %c0_141 = arith.constant 0 : index
    %c0_142 = arith.constant 0 : index
    %c0_143 = arith.constant 0 : index
    %469 = vector.load %arg10[%c4, %c0_141, %c0_142, %c0_143] : memref<6x9x1x64xf32, #tpu.memory_space<vmem>>, vector<1x9x1x64xf32>
    %470 = vector.shape_cast %469 : vector<1x9x1x64xf32> to vector<9x1x64xf32>
    %c4_144 = arith.constant 4 : index
    %c0_145 = arith.constant 0 : index
    %c0_146 = arith.constant 0 : index
    %471 = vector.load %arg11[%c4_144, %c0_145, %c0_146] : memref<6x1x64xf32, #tpu.memory_space<vmem>>, vector<1x1x64xf32>
    %472 = vector.shape_cast %471 : vector<1x1x64xf32> to vector<1x64xf32>
    %473 = vector.extract_strided_slice %470 {offsets = [0, 0, 0], sizes = [1, 1, 64], strides = [1, 1, 1]} : vector<9x1x64xf32> to vector<1x1x64xf32>
    %474 = vector.shape_cast %473 : vector<1x1x64xf32> to vector<1x64xf32>
    %475 = vector.broadcast %474 : vector<1x64xf32> to vector<17x64xf32>
    %476 = arith.mulf %407, %475 : vector<17x64xf32>
    %477 = vector.broadcast %472 : vector<1x64xf32> to vector<17x64xf32>
    %478 = arith.addf %477, %476 : vector<17x64xf32>
    %479 = vector.extract_strided_slice %470 {offsets = [1, 0, 0], sizes = [1, 1, 64], strides = [1, 1, 1]} : vector<9x1x64xf32> to vector<1x1x64xf32>
    %480 = vector.shape_cast %479 : vector<1x1x64xf32> to vector<1x64xf32>
    %481 = vector.broadcast %480 : vector<1x64xf32> to vector<17x64xf32>
    %482 = arith.mulf %408, %481 : vector<17x64xf32>
    %483 = arith.addf %478, %482 : vector<17x64xf32>
    %484 = vector.extract_strided_slice %470 {offsets = [2, 0, 0], sizes = [1, 1, 64], strides = [1, 1, 1]} : vector<9x1x64xf32> to vector<1x1x64xf32>
    %485 = vector.shape_cast %484 : vector<1x1x64xf32> to vector<1x64xf32>
    %486 = vector.broadcast %485 : vector<1x64xf32> to vector<17x64xf32>
    %487 = arith.mulf %409, %486 : vector<17x64xf32>
    %488 = arith.addf %483, %487 : vector<17x64xf32>
    %489 = vector.extract_strided_slice %470 {offsets = [3, 0, 0], sizes = [1, 1, 64], strides = [1, 1, 1]} : vector<9x1x64xf32> to vector<1x1x64xf32>
    %490 = vector.shape_cast %489 : vector<1x1x64xf32> to vector<1x64xf32>
    %491 = vector.broadcast %490 : vector<1x64xf32> to vector<17x64xf32>
    %492 = arith.mulf %410, %491 : vector<17x64xf32>
    %493 = arith.addf %488, %492 : vector<17x64xf32>
    %494 = vector.extract_strided_slice %470 {offsets = [4, 0, 0], sizes = [1, 1, 64], strides = [1, 1, 1]} : vector<9x1x64xf32> to vector<1x1x64xf32>
    %495 = vector.shape_cast %494 : vector<1x1x64xf32> to vector<1x64xf32>
    %496 = vector.broadcast %495 : vector<1x64xf32> to vector<17x64xf32>
    %497 = arith.mulf %411, %496 : vector<17x64xf32>
    %498 = arith.addf %493, %497 : vector<17x64xf32>
    %499 = vector.extract_strided_slice %470 {offsets = [5, 0, 0], sizes = [1, 1, 64], strides = [1, 1, 1]} : vector<9x1x64xf32> to vector<1x1x64xf32>
    %500 = vector.shape_cast %499 : vector<1x1x64xf32> to vector<1x64xf32>
    %501 = vector.broadcast %500 : vector<1x64xf32> to vector<17x64xf32>
    %502 = arith.mulf %412, %501 : vector<17x64xf32>
    %503 = arith.addf %498, %502 : vector<17x64xf32>
    %504 = vector.extract_strided_slice %470 {offsets = [6, 0, 0], sizes = [1, 1, 64], strides = [1, 1, 1]} : vector<9x1x64xf32> to vector<1x1x64xf32>
    %505 = vector.shape_cast %504 : vector<1x1x64xf32> to vector<1x64xf32>
    %506 = vector.broadcast %505 : vector<1x64xf32> to vector<17x64xf32>
    %507 = arith.mulf %413, %506 : vector<17x64xf32>
    %508 = arith.addf %503, %507 : vector<17x64xf32>
    %509 = vector.extract_strided_slice %470 {offsets = [7, 0, 0], sizes = [1, 1, 64], strides = [1, 1, 1]} : vector<9x1x64xf32> to vector<1x1x64xf32>
    %510 = vector.shape_cast %509 : vector<1x1x64xf32> to vector<1x64xf32>
    %511 = vector.broadcast %510 : vector<1x64xf32> to vector<17x64xf32>
    %512 = arith.mulf %414, %511 : vector<17x64xf32>
    %513 = arith.addf %508, %512 : vector<17x64xf32>
    %514 = vector.extract_strided_slice %470 {offsets = [8, 0, 0], sizes = [1, 1, 64], strides = [1, 1, 1]} : vector<9x1x64xf32> to vector<1x1x64xf32>
    %515 = vector.shape_cast %514 : vector<1x1x64xf32> to vector<1x64xf32>
    %516 = vector.broadcast %515 : vector<1x64xf32> to vector<17x64xf32>
    %517 = arith.mulf %415, %516 : vector<17x64xf32>
    %518 = arith.addf %513, %517 : vector<17x64xf32>
    %519 = vector.shape_cast %36 : vector<17x1xi1> to vector<17x1xi1>
    %520 = vector.broadcast %519 : vector<17x1xi1> to vector<17x64xi1>
    %521 = arith.select %520, %405, %518 : vector<17x64xi1>, vector<17x64xf32>
    %c5 = arith.constant 5 : index
    %c0_147 = arith.constant 0 : index
    %c0_148 = arith.constant 0 : index
    %c0_149 = arith.constant 0 : index
    %522 = vector.load %arg10[%c5, %c0_147, %c0_148, %c0_149] : memref<6x9x1x64xf32, #tpu.memory_space<vmem>>, vector<1x9x1x64xf32>
    %523 = vector.shape_cast %522 : vector<1x9x1x64xf32> to vector<9x1x64xf32>
    %c5_150 = arith.constant 5 : index
    %c0_151 = arith.constant 0 : index
    %c0_152 = arith.constant 0 : index
    %524 = vector.load %arg11[%c5_150, %c0_151, %c0_152] : memref<6x1x64xf32, #tpu.memory_space<vmem>>, vector<1x1x64xf32>
    %525 = vector.shape_cast %524 : vector<1x1x64xf32> to vector<1x64xf32>
    %526 = vector.extract_strided_slice %523 {offsets = [0, 0, 0], sizes = [1, 1, 64], strides = [1, 1, 1]} : vector<9x1x64xf32> to vector<1x1x64xf32>
    %527 = vector.shape_cast %526 : vector<1x1x64xf32> to vector<1x64xf32>
    %528 = vector.broadcast %527 : vector<1x64xf32> to vector<17x64xf32>
    %529 = arith.mulf %407, %528 : vector<17x64xf32>
    %530 = vector.broadcast %525 : vector<1x64xf32> to vector<17x64xf32>
    %531 = arith.addf %530, %529 : vector<17x64xf32>
    %532 = vector.extract_strided_slice %523 {offsets = [1, 0, 0], sizes = [1, 1, 64], strides = [1, 1, 1]} : vector<9x1x64xf32> to vector<1x1x64xf32>
    %533 = vector.shape_cast %532 : vector<1x1x64xf32> to vector<1x64xf32>
    %534 = vector.broadcast %533 : vector<1x64xf32> to vector<17x64xf32>
    %535 = arith.mulf %408, %534 : vector<17x64xf32>
    %536 = arith.addf %531, %535 : vector<17x64xf32>
    %537 = vector.extract_strided_slice %523 {offsets = [2, 0, 0], sizes = [1, 1, 64], strides = [1, 1, 1]} : vector<9x1x64xf32> to vector<1x1x64xf32>
    %538 = vector.shape_cast %537 : vector<1x1x64xf32> to vector<1x64xf32>
    %539 = vector.broadcast %538 : vector<1x64xf32> to vector<17x64xf32>
    %540 = arith.mulf %409, %539 : vector<17x64xf32>
    %541 = arith.addf %536, %540 : vector<17x64xf32>
    %542 = vector.extract_strided_slice %523 {offsets = [3, 0, 0], sizes = [1, 1, 64], strides = [1, 1, 1]} : vector<9x1x64xf32> to vector<1x1x64xf32>
    %543 = vector.shape_cast %542 : vector<1x1x64xf32> to vector<1x64xf32>
    %544 = vector.broadcast %543 : vector<1x64xf32> to vector<17x64xf32>
    %545 = arith.mulf %410, %544 : vector<17x64xf32>
    %546 = arith.addf %541, %545 : vector<17x64xf32>
    %547 = vector.extract_strided_slice %523 {offsets = [4, 0, 0], sizes = [1, 1, 64], strides = [1, 1, 1]} : vector<9x1x64xf32> to vector<1x1x64xf32>
    %548 = vector.shape_cast %547 : vector<1x1x64xf32> to vector<1x64xf32>
    %549 = vector.broadcast %548 : vector<1x64xf32> to vector<17x64xf32>
    %550 = arith.mulf %411, %549 : vector<17x64xf32>
    %551 = arith.addf %546, %550 : vector<17x64xf32>
    %552 = vector.extract_strided_slice %523 {offsets = [5, 0, 0], sizes = [1, 1, 64], strides = [1, 1, 1]} : vector<9x1x64xf32> to vector<1x1x64xf32>
    %553 = vector.shape_cast %552 : vector<1x1x64xf32> to vector<1x64xf32>
    %554 = vector.broadcast %553 : vector<1x64xf32> to vector<17x64xf32>
    %555 = arith.mulf %412, %554 : vector<17x64xf32>
    %556 = arith.addf %551, %555 : vector<17x64xf32>
    %557 = vector.extract_strided_slice %523 {offsets = [6, 0, 0], sizes = [1, 1, 64], strides = [1, 1, 1]} : vector<9x1x64xf32> to vector<1x1x64xf32>
    %558 = vector.shape_cast %557 : vector<1x1x64xf32> to vector<1x64xf32>
    %559 = vector.broadcast %558 : vector<1x64xf32> to vector<17x64xf32>
    %560 = arith.mulf %413, %559 : vector<17x64xf32>
    %561 = arith.addf %556, %560 : vector<17x64xf32>
    %562 = vector.extract_strided_slice %523 {offsets = [7, 0, 0], sizes = [1, 1, 64], strides = [1, 1, 1]} : vector<9x1x64xf32> to vector<1x1x64xf32>
    %563 = vector.shape_cast %562 : vector<1x1x64xf32> to vector<1x64xf32>
    %564 = vector.broadcast %563 : vector<1x64xf32> to vector<17x64xf32>
    %565 = arith.mulf %414, %564 : vector<17x64xf32>
    %566 = arith.addf %561, %565 : vector<17x64xf32>
    %567 = vector.extract_strided_slice %523 {offsets = [8, 0, 0], sizes = [1, 1, 64], strides = [1, 1, 1]} : vector<9x1x64xf32> to vector<1x1x64xf32>
    %568 = vector.shape_cast %567 : vector<1x1x64xf32> to vector<1x64xf32>
    %569 = vector.broadcast %568 : vector<1x64xf32> to vector<17x64xf32>
    %570 = arith.mulf %415, %569 : vector<17x64xf32>
    %571 = arith.addf %566, %570 : vector<17x64xf32>
    %572 = vector.shape_cast %36 : vector<17x1xi1> to vector<17x1xi1>
    %573 = vector.broadcast %572 : vector<17x1xi1> to vector<17x64xi1>
    %574 = arith.select %573, %405, %571 : vector<17x64xi1>, vector<17x64xf32>
    %c1_153 = arith.constant 1 : index
    %c0_154 = arith.constant 0 : index
    %c0_155 = arith.constant 0 : index
    %575 = vector.load %arg12[%c1_153, %c0_154, %c0_155] : memref<2x64x64xbf16, #tpu.memory_space<vmem>>, vector<1x64x64xbf16>
    %576 = vector.shape_cast %575 : vector<1x64x64xbf16> to vector<64x64xbf16>
    %577 = arith.truncf %468 : vector<17x64xf32> to vector<17x64xbf16>
    %cst_156 = arith.constant dense<0.000000e+00> : vector<17x64xf32>
    %578 = tpu.matmul %577, %576, %cst_156 {dimension_numbers = #tpu.dot_dimension_numbers<[1], [0], [0], [1], [0, 0, 1, 1], [], []>} : vector<17x64xbf16>, vector<64x64xbf16>, vector<17x64xf32> -> vector<17x64xf32>
    %c1_157 = arith.constant 1 : index
    %c0_158 = arith.constant 0 : index
    %c0_159 = arith.constant 0 : index
    %579 = vector.load %arg13[%c1_157, %c0_158, %c0_159] : memref<2x64x64xbf16, #tpu.memory_space<vmem>>, vector<1x64x64xbf16>
    %580 = vector.shape_cast %579 : vector<1x64x64xbf16> to vector<64x64xbf16>
    %581 = arith.truncf %521 : vector<17x64xf32> to vector<17x64xbf16>
    %cst_160 = arith.constant dense<0.000000e+00> : vector<17x64xf32>
    %582 = tpu.matmul %581, %580, %cst_160 {dimension_numbers = #tpu.dot_dimension_numbers<[1], [0], [0], [1], [0, 0, 1, 1], [], []>} : vector<17x64xbf16>, vector<64x64xbf16>, vector<17x64xf32> -> vector<17x64xf32>
    %c1_161 = arith.constant 1 : index
    %c0_162 = arith.constant 0 : index
    %c0_163 = arith.constant 0 : index
    %583 = vector.load %arg14[%c1_161, %c0_162, %c0_163] : memref<2x64x64xbf16, #tpu.memory_space<vmem>>, vector<1x64x64xbf16>
    %584 = vector.shape_cast %583 : vector<1x64x64xbf16> to vector<64x64xbf16>
    %585 = arith.truncf %574 : vector<17x64xf32> to vector<17x64xbf16>
    %cst_164 = arith.constant dense<0.000000e+00> : vector<17x64xf32>
    %586 = tpu.matmul %585, %584, %cst_164 {dimension_numbers = #tpu.dot_dimension_numbers<[1], [0], [0], [1], [0, 0, 1, 1], [], []>} : vector<17x64xbf16>, vector<64x64xbf16>, vector<17x64xf32> -> vector<17x64xf32>
    %587 = vector.extract_strided_slice %578 {offsets = [0, 0], sizes = [17, 16], strides = [1, 1]} : vector<17x64xf32> to vector<17x16xf32>
    %588 = vector.extract_strided_slice %582 {offsets = [0, 0], sizes = [17, 16], strides = [1, 1]} : vector<17x64xf32> to vector<17x16xf32>
    %589 = vector.extract_strided_slice %586 {offsets = [0, 0], sizes = [17, 16], strides = [1, 1]} : vector<17x64xf32> to vector<17x16xf32>
    %590 = arith.truncf %587 : vector<17x16xf32> to vector<17x16xbf16>
    %591 = arith.truncf %588 : vector<17x16xf32> to vector<17x16xbf16>
    %cst_165 = arith.constant dense<0.000000e+00> : vector<17x17xf32>
    %592 = tpu.matmul %590, %591, %cst_165 {dimension_numbers = #tpu.dot_dimension_numbers<[1], [1], [0], [0], [0, 0, 1, 0], [], []>} : vector<17x16xbf16>, vector<17x16xbf16>, vector<17x17xf32> -> vector<17x17xf32>
    %cst_166 = arith.constant 1.250000e-01 : f32
    %593 = vector.broadcast %cst_166 : f32 to vector<17x17xf32>
    %594 = arith.mulf %592, %593 : vector<17x17xf32>
    %cst_167 = arith.constant dense<0xFF800000> : vector<17xf32>
    %595 = vector.multi_reduction <maximumf>, %594, %cst_167 [1] : vector<17x17xf32> to vector<17xf32>
    %596 = vector.shape_cast %595 : vector<17xf32> to vector<17x1xf32>
    %597 = vector.broadcast %596 : vector<17x1xf32> to vector<17x17xf32>
    %598 = arith.subf %594, %597 : vector<17x17xf32>
    %599 = math.exp %598 : vector<17x17xf32>
    %cst_168 = arith.constant dense<0.000000e+00> : vector<17xf32>
    %600 = vector.multi_reduction <add>, %599, %cst_168 [1] : vector<17x17xf32> to vector<17xf32>
    %601 = vector.shape_cast %600 : vector<17xf32> to vector<17x1xf32>
    %602 = vector.broadcast %601 : vector<17x1xf32> to vector<17x17xf32>
    %603 = arith.divf %599, %602 : vector<17x17xf32>
    %604 = arith.truncf %603 : vector<17x17xf32> to vector<17x17xbf16>
    %605 = arith.truncf %589 : vector<17x16xf32> to vector<17x16xbf16>
    %cst_169 = arith.constant dense<0.000000e+00> : vector<17x16xf32>
    %606 = tpu.matmul %604, %605, %cst_169 {dimension_numbers = #tpu.dot_dimension_numbers<[1], [0], [0], [1], [0, 0, 1, 1], [], []>} : vector<17x17xbf16>, vector<17x16xbf16>, vector<17x16xf32> -> vector<17x16xf32>
    %607 = vector.extract_strided_slice %578 {offsets = [0, 16], sizes = [17, 16], strides = [1, 1]} : vector<17x64xf32> to vector<17x16xf32>
    %608 = vector.extract_strided_slice %582 {offsets = [0, 16], sizes = [17, 16], strides = [1, 1]} : vector<17x64xf32> to vector<17x16xf32>
    %609 = vector.extract_strided_slice %586 {offsets = [0, 16], sizes = [17, 16], strides = [1, 1]} : vector<17x64xf32> to vector<17x16xf32>
    %610 = arith.truncf %607 : vector<17x16xf32> to vector<17x16xbf16>
    %611 = arith.truncf %608 : vector<17x16xf32> to vector<17x16xbf16>
    %cst_170 = arith.constant dense<0.000000e+00> : vector<17x17xf32>
    %612 = tpu.matmul %610, %611, %cst_170 {dimension_numbers = #tpu.dot_dimension_numbers<[1], [1], [0], [0], [0, 0, 1, 0], [], []>} : vector<17x16xbf16>, vector<17x16xbf16>, vector<17x17xf32> -> vector<17x17xf32>
    %cst_171 = arith.constant 1.250000e-01 : f32
    %613 = vector.broadcast %cst_171 : f32 to vector<17x17xf32>
    %614 = arith.mulf %612, %613 : vector<17x17xf32>
    %cst_172 = arith.constant dense<0xFF800000> : vector<17xf32>
    %615 = vector.multi_reduction <maximumf>, %614, %cst_172 [1] : vector<17x17xf32> to vector<17xf32>
    %616 = vector.shape_cast %615 : vector<17xf32> to vector<17x1xf32>
    %617 = vector.broadcast %616 : vector<17x1xf32> to vector<17x17xf32>
    %618 = arith.subf %614, %617 : vector<17x17xf32>
    %619 = math.exp %618 : vector<17x17xf32>
    %cst_173 = arith.constant dense<0.000000e+00> : vector<17xf32>
    %620 = vector.multi_reduction <add>, %619, %cst_173 [1] : vector<17x17xf32> to vector<17xf32>
    %621 = vector.shape_cast %620 : vector<17xf32> to vector<17x1xf32>
    %622 = vector.broadcast %621 : vector<17x1xf32> to vector<17x17xf32>
    %623 = arith.divf %619, %622 : vector<17x17xf32>
    %624 = arith.truncf %623 : vector<17x17xf32> to vector<17x17xbf16>
    %625 = arith.truncf %609 : vector<17x16xf32> to vector<17x16xbf16>
    %cst_174 = arith.constant dense<0.000000e+00> : vector<17x16xf32>
    %626 = tpu.matmul %624, %625, %cst_174 {dimension_numbers = #tpu.dot_dimension_numbers<[1], [0], [0], [1], [0, 0, 1, 1], [], []>} : vector<17x17xbf16>, vector<17x16xbf16>, vector<17x16xf32> -> vector<17x16xf32>
    %627 = vector.extract_strided_slice %578 {offsets = [0, 32], sizes = [17, 16], strides = [1, 1]} : vector<17x64xf32> to vector<17x16xf32>
    %628 = vector.extract_strided_slice %582 {offsets = [0, 32], sizes = [17, 16], strides = [1, 1]} : vector<17x64xf32> to vector<17x16xf32>
    %629 = vector.extract_strided_slice %586 {offsets = [0, 32], sizes = [17, 16], strides = [1, 1]} : vector<17x64xf32> to vector<17x16xf32>
    %630 = arith.truncf %627 : vector<17x16xf32> to vector<17x16xbf16>
    %631 = arith.truncf %628 : vector<17x16xf32> to vector<17x16xbf16>
    %cst_175 = arith.constant dense<0.000000e+00> : vector<17x17xf32>
    %632 = tpu.matmul %630, %631, %cst_175 {dimension_numbers = #tpu.dot_dimension_numbers<[1], [1], [0], [0], [0, 0, 1, 0], [], []>} : vector<17x16xbf16>, vector<17x16xbf16>, vector<17x17xf32> -> vector<17x17xf32>
    %cst_176 = arith.constant 1.250000e-01 : f32
    %633 = vector.broadcast %cst_176 : f32 to vector<17x17xf32>
    %634 = arith.mulf %632, %633 : vector<17x17xf32>
    %cst_177 = arith.constant dense<0xFF800000> : vector<17xf32>
    %635 = vector.multi_reduction <maximumf>, %634, %cst_177 [1] : vector<17x17xf32> to vector<17xf32>
    %636 = vector.shape_cast %635 : vector<17xf32> to vector<17x1xf32>
    %637 = vector.broadcast %636 : vector<17x1xf32> to vector<17x17xf32>
    %638 = arith.subf %634, %637 : vector<17x17xf32>
    %639 = math.exp %638 : vector<17x17xf32>
    %cst_178 = arith.constant dense<0.000000e+00> : vector<17xf32>
    %640 = vector.multi_reduction <add>, %639, %cst_178 [1] : vector<17x17xf32> to vector<17xf32>
    %641 = vector.shape_cast %640 : vector<17xf32> to vector<17x1xf32>
    %642 = vector.broadcast %641 : vector<17x1xf32> to vector<17x17xf32>
    %643 = arith.divf %639, %642 : vector<17x17xf32>
    %644 = arith.truncf %643 : vector<17x17xf32> to vector<17x17xbf16>
    %645 = arith.truncf %629 : vector<17x16xf32> to vector<17x16xbf16>
    %cst_179 = arith.constant dense<0.000000e+00> : vector<17x16xf32>
    %646 = tpu.matmul %644, %645, %cst_179 {dimension_numbers = #tpu.dot_dimension_numbers<[1], [0], [0], [1], [0, 0, 1, 1], [], []>} : vector<17x17xbf16>, vector<17x16xbf16>, vector<17x16xf32> -> vector<17x16xf32>
    %647 = vector.extract_strided_slice %578 {offsets = [0, 48], sizes = [17, 16], strides = [1, 1]} : vector<17x64xf32> to vector<17x16xf32>
    %648 = vector.extract_strided_slice %582 {offsets = [0, 48], sizes = [17, 16], strides = [1, 1]} : vector<17x64xf32> to vector<17x16xf32>
    %649 = vector.extract_strided_slice %586 {offsets = [0, 48], sizes = [17, 16], strides = [1, 1]} : vector<17x64xf32> to vector<17x16xf32>
    %650 = arith.truncf %647 : vector<17x16xf32> to vector<17x16xbf16>
    %651 = arith.truncf %648 : vector<17x16xf32> to vector<17x16xbf16>
    %cst_180 = arith.constant dense<0.000000e+00> : vector<17x17xf32>
    %652 = tpu.matmul %650, %651, %cst_180 {dimension_numbers = #tpu.dot_dimension_numbers<[1], [1], [0], [0], [0, 0, 1, 0], [], []>} : vector<17x16xbf16>, vector<17x16xbf16>, vector<17x17xf32> -> vector<17x17xf32>
    %cst_181 = arith.constant 1.250000e-01 : f32
    %653 = vector.broadcast %cst_181 : f32 to vector<17x17xf32>
    %654 = arith.mulf %652, %653 : vector<17x17xf32>
    %cst_182 = arith.constant dense<0xFF800000> : vector<17xf32>
    %655 = vector.multi_reduction <maximumf>, %654, %cst_182 [1] : vector<17x17xf32> to vector<17xf32>
    %656 = vector.shape_cast %655 : vector<17xf32> to vector<17x1xf32>
    %657 = vector.broadcast %656 : vector<17x1xf32> to vector<17x17xf32>
    %658 = arith.subf %654, %657 : vector<17x17xf32>
    %659 = math.exp %658 : vector<17x17xf32>
    %cst_183 = arith.constant dense<0.000000e+00> : vector<17xf32>
    %660 = vector.multi_reduction <add>, %659, %cst_183 [1] : vector<17x17xf32> to vector<17xf32>
    %661 = vector.shape_cast %660 : vector<17xf32> to vector<17x1xf32>
    %662 = vector.broadcast %661 : vector<17x1xf32> to vector<17x17xf32>
    %663 = arith.divf %659, %662 : vector<17x17xf32>
    %664 = arith.truncf %663 : vector<17x17xf32> to vector<17x17xbf16>
    %665 = arith.truncf %649 : vector<17x16xf32> to vector<17x16xbf16>
    %cst_184 = arith.constant dense<0.000000e+00> : vector<17x16xf32>
    %666 = tpu.matmul %664, %665, %cst_184 {dimension_numbers = #tpu.dot_dimension_numbers<[1], [0], [0], [1], [0, 0, 1, 1], [], []>} : vector<17x17xbf16>, vector<17x16xbf16>, vector<17x16xf32> -> vector<17x16xf32>
    %667 = tpu.concatenate %606, %626, %646, %666 in 1 : vector<17x16xf32>, vector<17x16xf32>, vector<17x16xf32>, vector<17x16xf32> -> vector<17x64xf32>
    %c1_185 = arith.constant 1 : index
    %c0_186 = arith.constant 0 : index
    %c0_187 = arith.constant 0 : index
    %668 = vector.load %arg15[%c1_185, %c0_186, %c0_187] : memref<2x64x64xbf16, #tpu.memory_space<vmem>>, vector<1x64x64xbf16>
    %669 = vector.shape_cast %668 : vector<1x64x64xbf16> to vector<64x64xbf16>
    %670 = arith.truncf %667 : vector<17x64xf32> to vector<17x64xbf16>
    %cst_188 = arith.constant dense<0.000000e+00> : vector<17x64xf32>
    %671 = tpu.matmul %670, %669, %cst_188 {dimension_numbers = #tpu.dot_dimension_numbers<[1], [0], [0], [1], [0, 0, 1, 1], [], []>} : vector<17x64xbf16>, vector<64x64xbf16>, vector<17x64xf32> -> vector<17x64xf32>
    %672 = arith.addf %381, %671 : vector<17x64xf32>
    %c1_189 = arith.constant 1 : index
    %c0_190 = arith.constant 0 : index
    %c0_191 = arith.constant 0 : index
    %673 = vector.load %arg16[%c1_189, %c0_190, %c0_191] : memref<2x1x64xf32, #tpu.memory_space<vmem>>, vector<1x1x64xf32>
    %674 = vector.shape_cast %673 : vector<1x1x64xf32> to vector<1x64xf32>
    %675 = vector.broadcast %674 : vector<1x64xf32> to vector<17x64xf32>
    %676 = arith.addf %672, %675 : vector<17x64xf32>
    %c1_192 = arith.constant 1 : index
    %c0_193 = arith.constant 0 : index
    %c0_194 = arith.constant 0 : index
    %677 = vector.load %arg17[%c1_192, %c0_193, %c0_194] : memref<2x1x64xf32, #tpu.memory_space<vmem>>, vector<1x1x64xf32>
    %678 = vector.shape_cast %677 : vector<1x1x64xf32> to vector<1x64xf32>
    %c1_195 = arith.constant 1 : index
    %c0_196 = arith.constant 0 : index
    %c0_197 = arith.constant 0 : index
    %679 = vector.load %arg18[%c1_195, %c0_196, %c0_197] : memref<2x1x64xf32, #tpu.memory_space<vmem>>, vector<1x1x64xf32>
    %680 = vector.shape_cast %679 : vector<1x1x64xf32> to vector<1x64xf32>
    %cst_198 = arith.constant dense<0.000000e+00> : vector<17xf32>
    %681 = vector.multi_reduction <add>, %676, %cst_198 [1] : vector<17x64xf32> to vector<17xf32>
    %682 = vector.shape_cast %681 : vector<17xf32> to vector<17x1xf32>
    %cst_199 = arith.constant 6.400000e+01 : f32
    %683 = vector.broadcast %cst_199 : f32 to vector<17x1xf32>
    %684 = arith.divf %682, %683 : vector<17x1xf32>
    %685 = vector.broadcast %684 : vector<17x1xf32> to vector<17x64xf32>
    %686 = arith.subf %676, %685 : vector<17x64xf32>
    %687 = arith.mulf %686, %686 : vector<17x64xf32>
    %cst_200 = arith.constant dense<0.000000e+00> : vector<17xf32>
    %688 = vector.multi_reduction <add>, %687, %cst_200 [1] : vector<17x64xf32> to vector<17xf32>
    %689 = vector.shape_cast %688 : vector<17xf32> to vector<17x1xf32>
    %cst_201 = arith.constant 6.400000e+01 : f32
    %690 = vector.broadcast %cst_201 : f32 to vector<17x1xf32>
    %691 = arith.divf %689, %690 : vector<17x1xf32>
    %cst_202 = arith.constant 9.99999974E-6 : f32
    %692 = vector.broadcast %cst_202 : f32 to vector<17x1xf32>
    %693 = arith.addf %691, %692 : vector<17x1xf32>
    %694 = math.rsqrt %693 : vector<17x1xf32>
    %695 = vector.broadcast %694 : vector<17x1xf32> to vector<17x64xf32>
    %696 = arith.mulf %686, %695 : vector<17x64xf32>
    %697 = vector.broadcast %678 : vector<1x64xf32> to vector<17x64xf32>
    %698 = arith.mulf %696, %697 : vector<17x64xf32>
    %699 = vector.broadcast %680 : vector<1x64xf32> to vector<17x64xf32>
    %700 = arith.addf %698, %699 : vector<17x64xf32>
    %c1_203 = arith.constant 1 : index
    %c0_204 = arith.constant 0 : index
    %c0_205 = arith.constant 0 : index
    %701 = vector.load %arg19[%c1_203, %c0_204, %c0_205] : memref<2x64x256xbf16, #tpu.memory_space<vmem>>, vector<1x64x256xbf16>
    %702 = vector.shape_cast %701 : vector<1x64x256xbf16> to vector<64x256xbf16>
    %703 = arith.truncf %700 : vector<17x64xf32> to vector<17x64xbf16>
    %cst_206 = arith.constant dense<0.000000e+00> : vector<17x256xf32>
    %704 = tpu.matmul %703, %702, %cst_206 {dimension_numbers = #tpu.dot_dimension_numbers<[1], [0], [0], [1], [0, 0, 1, 1], [], []>} : vector<17x64xbf16>, vector<64x256xbf16>, vector<17x256xf32> -> vector<17x256xf32>
    %c1_207 = arith.constant 1 : index
    %c0_208 = arith.constant 0 : index
    %c0_209 = arith.constant 0 : index
    %705 = vector.load %arg20[%c1_207, %c0_208, %c0_209] : memref<2x1x256xf32, #tpu.memory_space<vmem>>, vector<1x1x256xf32>
    %706 = vector.shape_cast %705 : vector<1x1x256xf32> to vector<1x256xf32>
    %707 = vector.broadcast %706 : vector<1x256xf32> to vector<17x256xf32>
    %708 = arith.addf %704, %707 : vector<17x256xf32>
    %cst_210 = arith.constant 5.000000e-01 : f32
    %709 = vector.broadcast %cst_210 : f32 to vector<17x256xf32>
    %710 = arith.mulf %709, %708 : vector<17x256xf32>
    %cst_211 = arith.constant 0.707106769 : f32
    %711 = vector.broadcast %cst_211 : f32 to vector<17x256xf32>
    %712 = arith.mulf %708, %711 : vector<17x256xf32>
    %713 = math.erf %712 : vector<17x256xf32>
    %cst_212 = arith.constant 1.000000e+00 : f32
    %714 = vector.broadcast %cst_212 : f32 to vector<17x256xf32>
    %715 = arith.addf %714, %713 : vector<17x256xf32>
    %716 = arith.mulf %710, %715 : vector<17x256xf32>
    %c1_213 = arith.constant 1 : index
    %c0_214 = arith.constant 0 : index
    %c0_215 = arith.constant 0 : index
    %717 = vector.load %arg21[%c1_213, %c0_214, %c0_215] : memref<2x256x64xbf16, #tpu.memory_space<vmem>>, vector<1x256x64xbf16>
    %718 = vector.shape_cast %717 : vector<1x256x64xbf16> to vector<256x64xbf16>
    %719 = arith.truncf %716 : vector<17x256xf32> to vector<17x256xbf16>
    %cst_216 = arith.constant dense<0.000000e+00> : vector<17x64xf32>
    %720 = tpu.matmul %719, %718, %cst_216 {dimension_numbers = #tpu.dot_dimension_numbers<[1], [0], [0], [1], [0, 0, 1, 1], [], []>} : vector<17x256xbf16>, vector<256x64xbf16>, vector<17x64xf32> -> vector<17x64xf32>
    %721 = arith.addf %676, %720 : vector<17x64xf32>
    %c1_217 = arith.constant 1 : index
    %c0_218 = arith.constant 0 : index
    %c0_219 = arith.constant 0 : index
    %722 = vector.load %arg22[%c1_217, %c0_218, %c0_219] : memref<2x1x64xf32, #tpu.memory_space<vmem>>, vector<1x1x64xf32>
    %723 = vector.shape_cast %722 : vector<1x1x64xf32> to vector<1x64xf32>
    %724 = vector.broadcast %723 : vector<1x64xf32> to vector<17x64xf32>
    %725 = arith.addf %721, %724 : vector<17x64xf32>
    %c0_220 = arith.constant 0 : index
    %c0_221 = arith.constant 0 : index
    %c0_222 = arith.constant 0 : index
    %726 = vector.load %arg23[%c0_220, %c0_221, %c0_222] : memref<1x17x64xf32, #tpu.memory_space<vmem>>, vector<1x17x64xf32>
    %727 = vector.shape_cast %726 : vector<1x17x64xf32> to vector<17x64xf32>
    %728 = vector.shape_cast %725 : vector<17x64xf32> to vector<1x17x64xf32>
    tpu.vector_store %arg23[%c0_220, %c0_221, %c0_222], %728 {strides = array<i32>} : memref<1x17x64xf32, #tpu.memory_space<vmem>>, vector<1x17x64xf32>,
    return
  }
  func.func @transform_0(%arg0: i32) -> (i32, i32, i32) {
    %c0_i32 = arith.constant 0 : i32
    %c0_i32_0 = arith.constant 0 : i32
    %c0_i32_1 = arith.constant 0 : i32
    return %arg0, %c0_i32, %c0_i32_0 : i32, i32, i32
  }
  func.func @transform_1(%arg0: i32) -> (i32, i32) {
    %c0_i32 = arith.constant 0 : i32
    %c0_i32_0 = arith.constant 0 : i32
    %c0_i32_1 = arith.constant 0 : i32
    return %c0_i32, %c0_i32_0 : i32, i32
  }
  func.func @transform_2(%arg0: i32) -> (i32, i32) {
    %c0_i32 = arith.constant 0 : i32
    %c0_i32_0 = arith.constant 0 : i32
    %c0_i32_1 = arith.constant 0 : i32
    return %c0_i32, %c0_i32_0 : i32, i32
  }
  func.func @transform_3(%arg0: i32) -> (i32, i32) {
    %c0_i32 = arith.constant 0 : i32
    %c0_i32_0 = arith.constant 0 : i32
    %c0_i32_1 = arith.constant 0 : i32
    return %c0_i32, %c0_i32_0 : i32, i32
  }
  func.func @transform_4(%arg0: i32) -> (i32, i32) {
    %c0_i32 = arith.constant 0 : i32
    %c0_i32_0 = arith.constant 0 : i32
    %c0_i32_1 = arith.constant 0 : i32
    return %c0_i32, %c0_i32_0 : i32, i32
  }
  func.func @transform_5(%arg0: i32) -> (i32, i32) {
    %c0_i32 = arith.constant 0 : i32
    %c0_i32_0 = arith.constant 0 : i32
    %c0_i32_1 = arith.constant 0 : i32
    return %c0_i32, %c0_i32_0 : i32, i32
  }
  func.func @transform_6(%arg0: i32) -> (i32, i32) {
    %c0_i32 = arith.constant 0 : i32
    %c0_i32_0 = arith.constant 0 : i32
    %c0_i32_1 = arith.constant 0 : i32
    return %c0_i32, %c0_i32_0 : i32, i32
  }
  func.func @transform_7(%arg0: i32) -> (i32, i32, i32) {
    %c0_i32 = arith.constant 0 : i32
    %c0_i32_0 = arith.constant 0 : i32
    %c0_i32_1 = arith.constant 0 : i32
    %c0_i32_2 = arith.constant 0 : i32
    return %c0_i32, %c0_i32_0, %c0_i32_1 : i32, i32, i32
  }
  func.func @transform_8(%arg0: i32) -> (i32, i32, i32) {
    %c0_i32 = arith.constant 0 : i32
    %c0_i32_0 = arith.constant 0 : i32
    %c0_i32_1 = arith.constant 0 : i32
    %c0_i32_2 = arith.constant 0 : i32
    return %c0_i32, %c0_i32_0, %c0_i32_1 : i32, i32, i32
  }
  func.func @transform_9(%arg0: i32) -> (i32, i32, i32, i32) {
    %c0_i32 = arith.constant 0 : i32
    %c0_i32_0 = arith.constant 0 : i32
    %c0_i32_1 = arith.constant 0 : i32
    %c0_i32_2 = arith.constant 0 : i32
    %c0_i32_3 = arith.constant 0 : i32
    return %c0_i32, %c0_i32_0, %c0_i32_1, %c0_i32_2 : i32, i32, i32, i32
  }
  func.func @transform_10(%arg0: i32) -> (i32, i32, i32) {
    %c0_i32 = arith.constant 0 : i32
    %c0_i32_0 = arith.constant 0 : i32
    %c0_i32_1 = arith.constant 0 : i32
    %c0_i32_2 = arith.constant 0 : i32
    return %c0_i32, %c0_i32_0, %c0_i32_1 : i32, i32, i32
  }
  func.func @transform_11(%arg0: i32) -> (i32, i32, i32) {
    %c0_i32 = arith.constant 0 : i32
    %c0_i32_0 = arith.constant 0 : i32
    %c0_i32_1 = arith.constant 0 : i32
    %c0_i32_2 = arith.constant 0 : i32
    return %c0_i32, %c0_i32_0, %c0_i32_1 : i32, i32, i32
  }
  func.func @transform_12(%arg0: i32) -> (i32, i32, i32) {
    %c0_i32 = arith.constant 0 : i32
    %c0_i32_0 = arith.constant 0 : i32
    %c0_i32_1 = arith.constant 0 : i32
    %c0_i32_2 = arith.constant 0 : i32
    return %c0_i32, %c0_i32_0, %c0_i32_1 : i32, i32, i32
  }
  func.func @transform_13(%arg0: i32) -> (i32, i32, i32) {
    %c0_i32 = arith.constant 0 : i32
    %c0_i32_0 = arith.constant 0 : i32
    %c0_i32_1 = arith.constant 0 : i32
    %c0_i32_2 = arith.constant 0 : i32
    return %c0_i32, %c0_i32_0, %c0_i32_1 : i32, i32, i32
  }
  func.func @transform_14(%arg0: i32) -> (i32, i32, i32) {
    %c0_i32 = arith.constant 0 : i32
    %c0_i32_0 = arith.constant 0 : i32
    %c0_i32_1 = arith.constant 0 : i32
    %c0_i32_2 = arith.constant 0 : i32
    return %c0_i32, %c0_i32_0, %c0_i32_1 : i32, i32, i32
  }
  func.func @transform_15(%arg0: i32) -> (i32, i32, i32) {
    %c0_i32 = arith.constant 0 : i32
    %c0_i32_0 = arith.constant 0 : i32
    %c0_i32_1 = arith.constant 0 : i32
    %c0_i32_2 = arith.constant 0 : i32
    return %c0_i32, %c0_i32_0, %c0_i32_1 : i32, i32, i32
  }
  func.func @transform_16(%arg0: i32) -> (i32, i32, i32) {
    %c0_i32 = arith.constant 0 : i32
    %c0_i32_0 = arith.constant 0 : i32
    %c0_i32_1 = arith.constant 0 : i32
    %c0_i32_2 = arith.constant 0 : i32
    return %c0_i32, %c0_i32_0, %c0_i32_1 : i32, i32, i32
  }
  func.func @transform_17(%arg0: i32) -> (i32, i32, i32) {
    %c0_i32 = arith.constant 0 : i32
    %c0_i32_0 = arith.constant 0 : i32
    %c0_i32_1 = arith.constant 0 : i32
    %c0_i32_2 = arith.constant 0 : i32
    return %c0_i32, %c0_i32_0, %c0_i32_1 : i32, i32, i32
  }
  func.func @transform_18(%arg0: i32) -> (i32, i32, i32) {
    %c0_i32 = arith.constant 0 : i32
    %c0_i32_0 = arith.constant 0 : i32
    %c0_i32_1 = arith.constant 0 : i32
    %c0_i32_2 = arith.constant 0 : i32
    return %c0_i32, %c0_i32_0, %c0_i32_1 : i32, i32, i32
  }
  func.func @transform_19(%arg0: i32) -> (i32, i32, i32) {
    %c0_i32 = arith.constant 0 : i32
    %c0_i32_0 = arith.constant 0 : i32
    %c0_i32_1 = arith.constant 0 : i32
    %c0_i32_2 = arith.constant 0 : i32
    return %c0_i32, %c0_i32_0, %c0_i32_1 : i32, i32, i32
  }
  func.func @transform_20(%arg0: i32) -> (i32, i32, i32) {
    %c0_i32 = arith.constant 0 : i32
    %c0_i32_0 = arith.constant 0 : i32
    %c0_i32_1 = arith.constant 0 : i32
    %c0_i32_2 = arith.constant 0 : i32
    return %c0_i32, %c0_i32_0, %c0_i32_1 : i32, i32, i32
  }
  func.func @transform_21(%arg0: i32) -> (i32, i32, i32) {
    %c0_i32 = arith.constant 0 : i32
    %c0_i32_0 = arith.constant 0 : i32
    %c0_i32_1 = arith.constant 0 : i32
    %c0_i32_2 = arith.constant 0 : i32
    return %c0_i32, %c0_i32_0, %c0_i32_1 : i32, i32, i32
  }
  func.func @transform_22(%arg0: i32) -> (i32, i32, i32) {
    %c0_i32 = arith.constant 0 : i32
    %c0_i32_0 = arith.constant 0 : i32
    %c0_i32_1 = arith.constant 0 : i32
    return %arg0, %c0_i32, %c0_i32_0 : i32, i32, i32
  }
}

</mosaic_0001>

<llo_original>
// kernel: vit_forward.1
$region0: #{vit_forward.1}
  #allocation0 [shape = 'u32[]', space=smem, size = 0x4, offset = 0x4, fixed_abs, tag = 'smem constant byte address 0x4 - core index']
  #allocation1 [shape = 'u32[144,128]{1,0:T(1,128)}', space=vmem, size = 0x12000, scoped, tag = 'internal scratch']
  #allocation2 [shape = 'f32[17,64]{1,0:T(8,128)}', space=vmem, size = 0x3000, scoped, tag = 'scratch operand']
  %s0 = inlined_call_operand.vmem [shape: f32[2,16,48], index: 0, kind: input, shape index: {}]
  %s1 = inlined_call_operand.vmem [shape: f32[153,17], index: 1, kind: input, shape index: {}]
  %s2 = inlined_call_operand.vmem [shape: bf16[48,64], index: 2, kind: input, shape index: {}]
  %s3 = inlined_call_operand.vmem [shape: f32[1,64], index: 3, kind: input, shape index: {}]
  %s4 = inlined_call_operand.vmem [shape: f32[1,64], index: 4, kind: input, shape index: {}]
  %s5 = inlined_call_operand.vmem [shape: f32[1,64], index: 5, kind: input, shape index: {}]
  %s6 = inlined_call_operand.vmem [shape: f32[1,64], index: 6, kind: input, shape index: {}]
  %s7 = inlined_call_operand.vmem [shape: f32[2,1,64], index: 7, kind: input, shape index: {}]
  %s8 = inlined_call_operand.vmem [shape: f32[2,1,64], index: 8, kind: input, shape index: {}]
  %s9 = inlined_call_operand.vmem [shape: f32[6,9,1,64], index: 9, kind: input, shape index: {}]
  %s10 = inlined_call_operand.vmem [shape: f32[6,1,64], index: 10, kind: input, shape index: {}]
  %s11 = inlined_call_operand.vmem [shape: bf16[2,64,64], index: 11, kind: input, shape index: {}]
  %s12 = inlined_call_operand.vmem [shape: bf16[2,64,64], index: 12, kind: input, shape index: {}]
  %s13 = inlined_call_operand.vmem [shape: bf16[2,64,64], index: 13, kind: input, shape index: {}]
  %s14 = inlined_call_operand.vmem [shape: bf16[2,64,64], index: 14, kind: input, shape index: {}]
  %s15 = inlined_call_operand.vmem [shape: f32[2,1,64], index: 15, kind: input, shape index: {}]
  %s16 = inlined_call_operand.vmem [shape: f32[2,1,64], index: 16, kind: input, shape index: {}]
  %s17 = inlined_call_operand.vmem [shape: f32[2,1,64], index: 17, kind: input, shape index: {}]
  %s18 = inlined_call_operand.vmem [shape: bf16[2,64,256], index: 18, kind: input, shape index: {}]
  %s19 = inlined_call_operand.vmem [shape: f32[2,1,256], index: 19, kind: input, shape index: {}]
  %s20 = inlined_call_operand.vmem [shape: bf16[2,256,64], index: 20, kind: input, shape index: {}]
  %s21 = inlined_call_operand.vmem [shape: f32[2,1,64], index: 21, kind: input, shape index: {}]
  %s22 = inlined_call_operand.vmem [shape: f32[2,17,64], index: 22, kind: output, shape index: {}]
  %s23 = sld [smem:[#allocation0]]
  $region121: #{vit_forward.1} parent=0
    _
  %s25 = ssub.s32 1, %s23
  %s26 = scalar_select 0, %s25, %s23
  loop: start=0, step=1, limit=4
  $region2: #{vit_forward.1} parent=0 // loop_pre_header
    _
  $region3: #{vit_forward.1} parent=0 // loop_header
    %s28 = sphi 0, %s32
    %p29 = scmp.ge.s32.totalorder %s28, 4
    %s38 = sphi 0, %s40
    %s41 = sphi 0, %s38
    %s42 = sphi 0, %s41
    %s58 = sphi 0, %s42
    %s62 = sphi 0, %s62
    %s64 = sphi 0, %s62
    %s65 = sphi 0, %s64
    %s79 = sphi 0, %s65
    %s83 = sphi 0, %s83
    %s85 = sphi 0, %s83
    %s86 = sphi 0, %s85
    %s100 = sphi 0, %s86
    %s104 = sphi 0, %s104
    %s106 = sphi 0, %s104
    %s107 = sphi 0, %s106
    %s121 = sphi 0, %s107
    %s125 = sphi 0, %s125
    %s127 = sphi 0, %s125
    %s128 = sphi 0, %s127
    %s142 = sphi 0, %s128
    %s146 = sphi 0, %s146
    %s148 = sphi 0, %s146
    %s149 = sphi 0, %s148
    %s163 = sphi 0, %s149
    %s167 = sphi 0, %s167
    %s169 = sphi 0, %s167
    %s170 = sphi 0, %s169
    %s184 = sphi 0, %s170
    %s188 = sphi 0, %s188
    %s190 = sphi 0, %s188
    %s191 = sphi 0, %s190
    %s205 = sphi 0, %s191
    %s209 = sphi 0, %s209
    %s211 = sphi 0, %s209
    %s212 = sphi 0, %s211
    %s226 = sphi 0, %s212
    %s230 = sphi 0, %s230
    %s232 = sphi 0, %s230
    %s233 = sphi 0, %s232
    %s247 = sphi 0, %s233
    %s251 = sphi 0, %s251
    %s253 = sphi 0, %s251
    %s254 = sphi 0, %s253
    %s268 = sphi 0, %s254
    %s272 = sphi 0, %s272
    %s274 = sphi 0, %s272
    %s275 = sphi 0, %s274
    %s289 = sphi 0, %s275
    %s293 = sphi 0, %s293
    %s295 = sphi 0, %s293
    %s296 = sphi 0, %s295
    %s310 = sphi 0, %s296
    %s314 = sphi 0, %s314
    %s316 = sphi 0, %s314
    %s317 = sphi 0, %s316
    %s331 = sphi 0, %s317
    %s335 = sphi 0, %s335
    %s337 = sphi 0, %s335
    %s338 = sphi 0, %s337
    %s352 = sphi 0, %s338
    %s356 = sphi 0, %s356
    %s358 = sphi 0, %s356
    %s359 = sphi 0, %s358
    %s373 = sphi 0, %s359
    %s377 = sphi 0, %s377
    %s379 = sphi 0, %s377
    %s380 = sphi 0, %s379
    %s394 = sphi 0, %s380
    %s398 = sphi 0, %s398
    %s400 = sphi 0, %s398
    %s401 = sphi 0, %s400
    %s415 = sphi 0, %s401
    %s419 = sphi 0, %s419
    %s421 = sphi 0, %s419
    %s422 = sphi 0, %s421
    %s436 = sphi 0, %s422
    %s440 = sphi 0, %s440
    %s442 = sphi 0, %s440
    %s443 = sphi 0, %s442
    %s457 = sphi 0, %s443
    %s461 = sphi 0, %s461
    %s463 = sphi 0, %s461
    %s464 = sphi 0, %s463
    %s478 = sphi 0, %s464
    %s482 = sphi 0, %s482
    %s484 = sphi 0, %s482
    %s485 = sphi 0, %s484
    %s499 = sphi 0, %s485
    %s505 = sphi 0, %s507
    %s508 = sphi 0, %s505
    %s509 = sphi 0, %s508
    %s525 = sphi 0, %s509
  $region4: #{vit_forward.1} parent=0 // loop_header_branch
    %31 = sbr.rel (%p29) target = $region8
  $region5: #{vit_forward.1} parent=0 // loop_body
    %s33 = ssub.s32 %s28, 1
    %s34 = ssub.s32 %s28, 2
    %s35 = sadd.s32 %s28, 1
    %s36 = ssub.s32 %s28, %s35
    %p37 = scmp.eq.s32.totalorder %s36, 0
    %s39 = sadd.s32 %s38, 1
    %s40 = scalar_select %p37, %s38, %s39
    %p43 = pneg %p37
    %p44 = scmp.eq.s32.totalorder %s28, 1
    %p45 = por %p43, %p44
    %p46 = scmp.ne.s32.totalorder %s38, %s41
    %p47 = scmp.eq.s32.totalorder %s28, 0
    %p48 = por %p46, %p47
    %p49 = scmp.ne.s32.totalorder %s38, %s41
    %p50 = scmp.eq.s32.totalorder %s33, 1
    %p51 = por %p49, %p50
    %p52 = scmp.ne.s32.totalorder %s41, %s42
    %p53 = scmp.eq.s32.totalorder %s33, 0
    %p54 = por %p52, %p53
    %p55 = scmp.ne.s32.totalorder %s41, %s42
    %p56 = scmp.eq.s32.totalorder %s34, 1
    %p57 = por %p55, %p56
    %p59 = scmp.ne.s32.totalorder %s42, %s58
    %p60 = scmp.eq.s32.totalorder %s34, 0
    %p61 = por %p59, %p60
    %s63 = sadd.s32 %s62, 1
    %p66 = scmp.eq.s32.totalorder %s28, 1
    %p67 = scmp.ne.s32.totalorder %s62, %s64
    %p68 = scmp.eq.s32.totalorder %s28, 0
    %p69 = por %p67, %p68
    %p70 = scmp.ne.s32.totalorder %s62, %s64
    %p71 = scmp.eq.s32.totalorder %s33, 1
    %p72 = por %p70, %p71
    %p73 = scmp.ne.s32.totalorder %s64, %s65
    %p74 = scmp.eq.s32.totalorder %s33, 0
    %p75 = por %p73, %p74
    %p76 = scmp.ne.s32.totalorder %s64, %s65
    %p77 = scmp.eq.s32.totalorder %s34, 1
    %p78 = por %p76, %p77
    %p80 = scmp.ne.s32.totalorder %s65, %s79
    %p81 = scmp.eq.s32.totalorder %s34, 0
    %p82 = por %p80, %p81
    %s84 = sadd.s32 %s83, 1
    %p87 = scmp.eq.s32.totalorder %s28, 1
    %p88 = scmp.ne.s32.totalorder %s83, %s85
    %p89 = scmp.eq.s32.totalorder %s28, 0
    %p90 = por %p88, %p89
    %p91 = scmp.ne.s32.totalorder %s83, %s85
    %p92 = scmp.eq.s32.totalorder %s33, 1
    %p93 = por %p91, %p92
    %p94 = scmp.ne.s32.totalorder %s85, %s86
    %p95 = scmp.eq.s32.totalorder %s33, 0
    %p96 = por %p94, %p95
    %p97 = scmp.ne.s32.totalorder %s85, %s86
    %p98 = scmp.eq.s32.totalorder %s34, 1
    %p99 = por %p97, %p98
    %p101 = scmp.ne.s32.totalorder %s86, %s100
    %p102 = scmp.eq.s32.totalorder %s34, 0
    %p103 = por %p101, %p102
    %s105 = sadd.s32 %s104, 1
    %p108 = scmp.eq.s32.totalorder %s28, 1
    %p109 = scmp.ne.s32.totalorder %s104, %s106
    %p110 = scmp.eq.s32.totalorder %s28, 0
    %p111 = por %p109, %p110
    %p112 = scmp.ne.s32.totalorder %s104, %s106
    %p113 = scmp.eq.s32.totalorder %s33, 1
    %p114 = por %p112, %p113
    %p115 = scmp.ne.s32.totalorder %s106, %s107
    %p116 = scmp.eq.s32.totalorder %s33, 0
    %p117 = por %p115, %p116
    %p118 = scmp.ne.s32.totalorder %s106, %s107
    %p119 = scmp.eq.s32.totalorder %s34, 1
    %p120 = por %p118, %p119
    %p122 = scmp.ne.s32.totalorder %s107, %s121
    %p123 = scmp.eq.s32.totalorder %s34, 0
    %p124 = por %p122, %p123
    %s126 = sadd.s32 %s125, 1
    %p129 = scmp.eq.s32.totalorder %s28, 1
    %p130 = scmp.ne.s32.totalorder %s125, %s127
    %p131 = scmp.eq.s32.totalorder %s28, 0
    %p132 = por %p130, %p131
    %p133 = scmp.ne.s32.totalorder %s125, %s127
    %p134 = scmp.eq.s32.totalorder %s33, 1
    %p135 = por %p133, %p134
    %p136 = scmp.ne.s32.totalorder %s127, %s128
    %p137 = scmp.eq.s32.totalorder %s33, 0
    %p138 = por %p136, %p137
    %p139 = scmp.ne.s32.totalorder %s127, %s128
    %p140 = scmp.eq.s32.totalorder %s34, 1
    %p141 = por %p139, %p140
    %p143 = scmp.ne.s32.totalorder %s128, %s142
    %p144 = scmp.eq.s32.totalorder %s34, 0
    %p145 = por %p143, %p144
    %s147 = sadd.s32 %s146, 1
    %p150 = scmp.eq.s32.totalorder %s28, 1
    %p151 = scmp.ne.s32.totalorder %s146, %s148
    %p152 = scmp.eq.s32.totalorder %s28, 0
    %p153 = por %p151, %p152
    %p154 = scmp.ne.s32.totalorder %s146, %s148
    %p155 = scmp.eq.s32.totalorder %s33, 1
    %p156 = por %p154, %p155
    %p157 = scmp.ne.s32.totalorder %s148, %s149
    %p158 = scmp.eq.s32.totalorder %s33, 0
    %p159 = por %p157, %p158
    %p160 = scmp.ne.s32.totalorder %s148, %s149
    %p161 = scmp.eq.s32.totalorder %s34, 1
    %p162 = por %p160, %p161
    %p164 = scmp.ne.s32.totalorder %s149, %s163
    %p165 = scmp.eq.s32.totalorder %s34, 0
    %p166 = por %p164, %p165
    %s168 = sadd.s32 %s167, 1
    %p171 = scmp.eq.s32.totalorder %s28, 1
    %p172 = scmp.ne.s32.totalorder %s167, %s169
    %p173 = scmp.eq.s32.totalorder %s28, 0
    %p174 = por %p172, %p173
    %p175 = scmp.ne.s32.totalorder %s167, %s169
    %p176 = scmp.eq.s32.totalorder %s33, 1
    %p177 = por %p175, %p176
    %p178 = scmp.ne.s32.totalorder %s169, %s170
    %p179 = scmp.eq.s32.totalorder %s33, 0
    %p180 = por %p178, %p179
    %p181 = scmp.ne.s32.totalorder %s169, %s170
    %p182 = scmp.eq.s32.totalorder %s34, 1
    %p183 = por %p181, %p182
    %p185 = scmp.ne.s32.totalorder %s170, %s184
    %p186 = scmp.eq.s32.totalorder %s34, 0
    %p187 = por %p185, %p186
    %s189 = sadd.s32 %s188, 1
    %p192 = scmp.eq.s32.totalorder %s28, 1
    %p193 = scmp.ne.s32.totalorder %s188, %s190
    %p194 = scmp.eq.s32.totalorder %s28, 0
    %p195 = por %p193, %p194
    %p196 = scmp.ne.s32.totalorder %s188, %s190
    %p197 = scmp.eq.s32.totalorder %s33, 1
    %p198 = por %p196, %p197
    %p199 = scmp.ne.s32.totalorder %s190, %s191
    %p200 = scmp.eq.s32.totalorder %s33, 0
    %p201 = por %p199, %p200
    %p202 = scmp.ne.s32.totalorder %s190, %s191
    %p203 = scmp.eq.s32.totalorder %s34, 1
    %p204 = por %p202, %p203
    %p206 = scmp.ne.s32.totalorder %s191, %s205
    %p207 = scmp.eq.s32.totalorder %s34, 0
    %p208 = por %p206, %p207
    %s210 = sadd.s32 %s209, 1
    %p213 = scmp.eq.s32.totalorder %s28, 1
    %p214 = scmp.ne.s32.totalorder %s209, %s211
    %p215 = scmp.eq.s32.totalorder %s28, 0
    %p216 = por %p214, %p215
    %p217 = scmp.ne.s32.totalorder %s209, %s211
    %p218 = scmp.eq.s32.totalorder %s33, 1
    %p219 = por %p217, %p218
    %p220 = scmp.ne.s32.totalorder %s211, %s212
    %p221 = scmp.eq.s32.totalorder %s33, 0
    %p222 = por %p220, %p221
    %p223 = scmp.ne.s32.totalorder %s211, %s212
    %p224 = scmp.eq.s32.totalorder %s34, 1
    %p225 = por %p223, %p224
    %p227 = scmp.ne.s32.totalorder %s212, %s226
    %p228 = scmp.eq.s32.totalorder %s34, 0
    %p229 = por %p227, %p228
    %s231 = sadd.s32 %s230, 1
    %p234 = scmp.eq.s32.totalorder %s28, 1
    %p235 = scmp.ne.s32.totalorder %s230, %s232
    %p236 = scmp.eq.s32.totalorder %s28, 0
    %p237 = por %p235, %p236
    %p238 = scmp.ne.s32.totalorder %s230, %s232
    %p239 = scmp.eq.s32.totalorder %s33, 1
    %p240 = por %p238, %p239
    %p241 = scmp.ne.s32.totalorder %s232, %s233
    %p242 = scmp.eq.s32.totalorder %s33, 0
    %p243 = por %p241, %p242
    %p244 = scmp.ne.s32.totalorder %s232, %s233
    %p245 = scmp.eq.s32.totalorder %s34, 1
    %p246 = por %p244, %p245
    %p248 = scmp.ne.s32.totalorder %s233, %s247
    %p249 = scmp.eq.s32.totalorder %s34, 0
    %p250 = por %p248, %p249
    %s252 = sadd.s32 %s251, 1
    %p255 = scmp.eq.s32.totalorder %s28, 1
    %p256 = scmp.ne.s32.totalorder %s251, %s253
    %p257 = scmp.eq.s32.totalorder %s28, 0
    %p258 = por %p256, %p257
    %p259 = scmp.ne.s32.totalorder %s251, %s253
    %p260 = scmp.eq.s32.totalorder %s33, 1
    %p261 = por %p259, %p260
    %p262 = scmp.ne.s32.totalorder %s253, %s254
    %p263 = scmp.eq.s32.totalorder %s33, 0
    %p264 = por %p262, %p263
    %p265 = scmp.ne.s32.totalorder %s253, %s254
    %p266 = scmp.eq.s32.totalorder %s34, 1
    %p267 = por %p265, %p266
    %p269 = scmp.ne.s32.totalorder %s254, %s268
    %p270 = scmp.eq.s32.totalorder %s34, 0
    %p271 = por %p269, %p270
    %s273 = sadd.s32 %s272, 1
    %p276 = scmp.eq.s32.totalorder %s28, 1
    %p277 = scmp.ne.s32.totalorder %s272, %s274
    %p278 = scmp.eq.s32.totalorder %s28, 0
    %p279 = por %p277, %p278
    %p280 = scmp.ne.s32.totalorder %s272, %s274
    %p281 = scmp.eq.s32.totalorder %s33, 1
    %p282 = por %p280, %p281
    %p283 = scmp.ne.s32.totalorder %s274, %s275
    %p284 = scmp.eq.s32.totalorder %s33, 0
    %p285 = por %p283, %p284
    %p286 = scmp.ne.s32.totalorder %s274, %s275
    %p287 = scmp.eq.s32.totalorder %s34, 1
    %p288 = por %p286, %p287
    %p290 = scmp.ne.s32.totalorder %s275, %s289
    %p291 = scmp.eq.s32.totalorder %s34, 0
    %p292 = por %p290, %p291
    %s294 = sadd.s32 %s293, 1
    %p297 = scmp.eq.s32.totalorder %s28, 1
    %p298 = scmp.ne.s32.totalorder %s293, %s295
    %p299 = scmp.eq.s32.totalorder %s28, 0
    %p300 = por %p298, %p299
    %p301 = scmp.ne.s32.totalorder %s293, %s295
    %p302 = scmp.eq.s32.totalorder %s33, 1
    %p303 = por %p301, %p302
    %p304 = scmp.ne.s32.totalorder %s295, %s296
    %p305 = scmp.eq.s32.totalorder %s33, 0
    %p306 = por %p304, %p305
    %p307 = scmp.ne.s32.totalorder %s295, %s296
    %p308 = scmp.eq.s32.totalorder %s34, 1
    %p309 = por %p307, %p308
    %p311 = scmp.ne.s32.totalorder %s296, %s310
    %p312 = scmp.eq.s32.totalorder %s34, 0
    %p313 = por %p311, %p312
    %s315 = sadd.s32 %s314, 1
    %p318 = scmp.eq.s32.totalorder %s28, 1
    %p319 = scmp.ne.s32.totalorder %s314, %s316
    %p320 = scmp.eq.s32.totalorder %s28, 0
    %p321 = por %p319, %p320
    %p322 = scmp.ne.s32.totalorder %s314, %s316
    %p323 = scmp.eq.s32.totalorder %s33, 1
    %p324 = por %p322, %p323
    %p325 = scmp.ne.s32.totalorder %s316, %s317
    %p326 = scmp.eq.s32.totalorder %s33, 0
    %p327 = por %p325, %p326
    %p328 = scmp.ne.s32.totalorder %s316, %s317
    %p329 = scmp.eq.s32.totalorder %s34, 1
    %p330 = por %p328, %p329
    %p332 = scmp.ne.s32.totalorder %s317, %s331
    %p333 = scmp.eq.s32.totalorder %s34, 0
    %p334 = por %p332, %p333
    %s336 = sadd.s32 %s335, 1
    %p339 = scmp.eq.s32.totalorder %s28, 1
    %p340 = scmp.ne.s32.totalorder %s335, %s337
    %p341 = scmp.eq.s32.totalorder %s28, 0
    %p342 = por %p340, %p341
    %p343 = scmp.ne.s32.totalorder %s335, %s337
    %p344 = scmp.eq.s32.totalorder %s33, 1
    %p345 = por %p343, %p344
    %p346 = scmp.ne.s32.totalorder %s337, %s338
    %p347 = scmp.eq.s32.totalorder %s33, 0
    %p348 = por %p346, %p347
    %p349 = scmp.ne.s32.totalorder %s337, %s338
    %p350 = scmp.eq.s32.totalorder %s34, 1
    %p351 = por %p349, %p350
    %p353 = scmp.ne.s32.totalorder %s338, %s352
    %p354 = scmp.eq.s32.totalorder %s34, 0
    %p355 = por %p353, %p354
    %s357 = sadd.s32 %s356, 1
    %p360 = scmp.eq.s32.totalorder %s28, 1
    %p361 = scmp.ne.s32.totalorder %s356, %s358
    %p362 = scmp.eq.s32.totalorder %s28, 0
    %p363 = por %p361, %p362
    %p364 = scmp.ne.s32.totalorder %s356, %s358
    %p365 = scmp.eq.s32.totalorder %s33, 1
    %p366 = por %p364, %p365
    %p367 = scmp.ne.s32.totalorder %s358, %s359
    %p368 = scmp.eq.s32.totalorder %s33, 0
    %p369 = por %p367, %p368
    %p370 = scmp.ne.s32.totalorder %s358, %s359
    %p371 = scmp.eq.s32.totalorder %s34, 1
    %p372 = por %p370, %p371
    %p374 = scmp.ne.s32.totalorder %s359, %s373
    %p375 = scmp.eq.s32.totalorder %s34, 0
    %p376 = por %p374, %p375
    %s378 = sadd.s32 %s377, 1
    %p381 = scmp.eq.s32.totalorder %s28, 1
    %p382 = scmp.ne.s32.totalorder %s377, %s379
    %p383 = scmp.eq.s32.totalorder %s28, 0
    %p384 = por %p382, %p383
    %p385 = scmp.ne.s32.totalorder %s377, %s379
    %p386 = scmp.eq.s32.totalorder %s33, 1
    %p387 = por %p385, %p386
    %p388 = scmp.ne.s32.totalorder %s379, %s380
    %p389 = scmp.eq.s32.totalorder %s33, 0
    %p390 = por %p388, %p389
    %p391 = scmp.ne.s32.totalorder %s379, %s380
    %p392 = scmp.eq.s32.totalorder %s34, 1
    %p393 = por %p391, %p392
    %p395 = scmp.ne.s32.totalorder %s380, %s394
    %p396 = scmp.eq.s32.totalorder %s34, 0
    %p397 = por %p395, %p396
    %s399 = sadd.s32 %s398, 1
    %p402 = scmp.eq.s32.totalorder %s28, 1
    %p403 = scmp.ne.s32.totalorder %s398, %s400
    %p404 = scmp.eq.s32.totalorder %s28, 0
    %p405 = por %p403, %p404
    %p406 = scmp.ne.s32.totalorder %s398, %s400
    %p407 = scmp.eq.s32.totalorder %s33, 1
    %p408 = por %p406, %p407
    %p409 = scmp.ne.s32.totalorder %s400, %s401
    %p410 = scmp.eq.s32.totalorder %s33, 0
    %p411 = por %p409, %p410
    %p412 = scmp.ne.s32.totalorder %s400, %s401
    %p413 = scmp.eq.s32.totalorder %s34, 1
    %p414 = por %p412, %p413
    %p416 = scmp.ne.s32.totalorder %s401, %s415
    %p417 = scmp.eq.s32.totalorder %s34, 0
    %p418 = por %p416, %p417
    %s420 = sadd.s32 %s419, 1
    %p423 = scmp.eq.s32.totalorder %s28, 1
    %p424 = scmp.ne.s32.totalorder %s419, %s421
    %p425 = scmp.eq.s32.totalorder %s28, 0
    %p426 = por %p424, %p425
    %p427 = scmp.ne.s32.totalorder %s419, %s421
    %p428 = scmp.eq.s32.totalorder %s33, 1
    %p429 = por %p427, %p428
    %p430 = scmp.ne.s32.totalorder %s421, %s422
    %p431 = scmp.eq.s32.totalorder %s33, 0
    %p432 = por %p430, %p431
    %p433 = scmp.ne.s32.totalorder %s421, %s422
    %p434 = scmp.eq.s32.totalorder %s34, 1
    %p435 = por %p433, %p434
    %p437 = scmp.ne.s32.totalorder %s422, %s436
    %p438 = scmp.eq.s32.totalorder %s34, 0
    %p439 = por %p437, %p438
    %s441 = sadd.s32 %s440, 1
    %p444 = scmp.eq.s32.totalorder %s28, 1
    %p445 = scmp.ne.s32.totalorder %s440, %s442
    %p446 = scmp.eq.s32.totalorder %s28, 0
    %p447 = por %p445, %p446
    %p448 = scmp.ne.s32.totalorder %s440, %s442
    %p449 = scmp.eq.s32.totalorder %s33, 1
    %p450 = por %p448, %p449
    %p451 = scmp.ne.s32.totalorder %s442, %s443
    %p452 = scmp.eq.s32.totalorder %s33, 0
    %p453 = por %p451, %p452
    %p454 = scmp.ne.s32.totalorder %s442, %s443
    %p455 = scmp.eq.s32.totalorder %s34, 1
    %p456 = por %p454, %p455
    %p458 = scmp.ne.s32.totalorder %s443, %s457
    %p459 = scmp.eq.s32.totalorder %s34, 0
    %p460 = por %p458, %p459
    %s462 = sadd.s32 %s461, 1
    %p465 = scmp.eq.s32.totalorder %s28, 1
    %p466 = scmp.ne.s32.totalorder %s461, %s463
    %p467 = scmp.eq.s32.totalorder %s28, 0
    %p468 = por %p466, %p467
    %p469 = scmp.ne.s32.totalorder %s461, %s463
    %p470 = scmp.eq.s32.totalorder %s33, 1
    %p471 = por %p469, %p470
    %p472 = scmp.ne.s32.totalorder %s463, %s464
    %p473 = scmp.eq.s32.totalorder %s33, 0
    %p474 = por %p472, %p473
    %p475 = scmp.ne.s32.totalorder %s463, %s464
    %p476 = scmp.eq.s32.totalorder %s34, 1
    %p477 = por %p475, %p476
    %p479 = scmp.ne.s32.totalorder %s464, %s478
    %p480 = scmp.eq.s32.totalorder %s34, 0
    %p481 = por %p479, %p480
    %s483 = sadd.s32 %s482, 1
    %p486 = scmp.eq.s32.totalorder %s28, 1
    %p487 = scmp.ne.s32.totalorder %s482, %s484
    %p488 = scmp.eq.s32.totalorder %s28, 0
    %p489 = por %p487, %p488
    %p490 = scmp.ne.s32.totalorder %s482, %s484
    %p491 = scmp.eq.s32.totalorder %s33, 1
    %p492 = por %p490, %p491
    %p493 = scmp.ne.s32.totalorder %s484, %s485
    %p494 = scmp.eq.s32.totalorder %s33, 0
    %p495 = por %p493, %p494
    %p496 = scmp.ne.s32.totalorder %s484, %s485
    %p497 = scmp.eq.s32.totalorder %s34, 1
    %p498 = por %p496, %p497
    %p500 = scmp.ne.s32.totalorder %s485, %s499
    %p501 = scmp.eq.s32.totalorder %s34, 0
    %p502 = por %p500, %p501
    %s503 = ssub.s32 %s28, %s35
    %p504 = scmp.eq.s32.totalorder %s503, 0
    %s506 = sadd.s32 %s505, 1
    %s507 = scalar_select %p504, %s505, %s506
    %p510 = pneg %p504
    %p511 = scmp.eq.s32.totalorder %s28, 1
    %p512 = por %p510, %p511
    %p513 = scmp.ne.s32.totalorder %s505, %s508
    %p514 = scmp.eq.s32.totalorder %s28, 0
    %p515 = por %p513, %p514
    %p516 = scmp.ne.s32.totalorder %s505, %s508
    %p517 = scmp.eq.s32.totalorder %s33, 1
    %p518 = por %p516, %p517
    %p519 = scmp.ne.s32.totalorder %s508, %s509
    %p520 = scmp.eq.s32.totalorder %s33, 0
    %p521 = por %p519, %p520
    %p522 = scmp.ne.s32.totalorder %s508, %s509
    %p523 = scmp.eq.s32.totalorder %s34, 1
    %p524 = por %p522, %p523
    %p526 = scmp.ne.s32.totalorder %s509, %s525
    %p527 = scmp.eq.s32.totalorder %s34, 0
    %p528 = por %p526, %p527
    %p529 = scmp.le.s32.totalorder 1, %s28
    %p530 = scmp.lt.s32.totalorder %s28, 3
    %p531 = pnand %p529, %p530
    %p532 = pneg %p531
    // Predicated region
    $region9: #{vit_forward.1} parent=5 // pred_check
      _
    $region10: #{vit_forward.1} parent=5 // pred_check_branch
      %534 = sbr.rel (%p531) target = $region12
    $region11: #{vit_forward.1} parent=5 // pred_region
      %s535 = ssub.s32 %s28, 1
      // Predicated region
      $region13: #{vit_forward.1} parent=11 // pred_check
        %p536 = pneg %p75
      $region14: #{vit_forward.1} parent=11 // pred_check_branch
        %538 = sbr.rel (%p536) target = $region16
      $region15: #{vit_forward.1} parent=11 // pred_region
        _
      $region16: #{vit_forward.1} parent=11 // pred_fallthru
        _
      // Predicated region
      $region17: #{vit_forward.1} parent=11 // pred_check
        %p539 = pneg %p96
      $region18: #{vit_forward.1} parent=11 // pred_check_branch
        %541 = sbr.rel (%p539) target = $region20
      $region19: #{vit_forward.1} parent=11 // pred_region
        _
      $region20: #{vit_forward.1} parent=11 // pred_fallthru
        _
      // Predicated region
      $region21: #{vit_forward.1} parent=11 // pred_check
        %p542 = pneg %p117
      $region22: #{vit_forward.1} parent=11 // pred_check_branch
        %544 = sbr.rel (%p542) target = $region24
      $region23: #{vit_forward.1} parent=11 // pred_region
        _
      $region24: #{vit_forward.1} parent=11 // pred_fallthru
        _
      // Predicated region
      $region25: #{vit_forward.1} parent=11 // pred_check
        %p545 = pneg %p138
      $region26: #{vit_forward.1} parent=11 // pred_check_branch
        %547 = sbr.rel (%p545) target = $region28
      $region27: #{vit_forward.1} parent=11 // pred_region
        _
      $region28: #{vit_forward.1} parent=11 // pred_fallthru
        _
      // Predicated region
      $region29: #{vit_forward.1} parent=11 // pred_check
        %p548 = pneg %p159
      $region30: #{vit_forward.1} parent=11 // pred_check_branch
        %550 = sbr.rel (%p548) target = $region32
      $region31: #{vit_forward.1} parent=11 // pred_region
        _
      $region32: #{vit_forward.1} parent=11 // pred_fallthru
        _
      // Predicated region
      $region33: #{vit_forward.1} parent=11 // pred_check
        %p551 = pneg %p180
      $region34: #{vit_forward.1} parent=11 // pred_check_branch
        %553 = sbr.rel (%p551) target = $region36
      $region35: #{vit_forward.1} parent=11 // pred_region
        _
      $region36: #{vit_forward.1} parent=11 // pred_fallthru
        _
      // Predicated region
      $region37: #{vit_forward.1} parent=11 // pred_check
        %p554 = pneg %p201
      $region38: #{vit_forward.1} parent=11 // pred_check_branch
        %556 = sbr.rel (%p554) target = $region40
      $region39: #{vit_forward.1} parent=11 // pred_region
        _
      $region40: #{vit_forward.1} parent=11 // pred_fallthru
        _
      // Predicated region
      $region41: #{vit_forward.1} parent=11 // pred_check
        %p557 = pneg %p222
      $region42: #{vit_forward.1} parent=11 // pred_check_branch
        %559 = sbr.rel (%p557) target = $region44
      $region43: #{vit_forward.1} parent=11 // pred_region
        _
      $region44: #{vit_forward.1} parent=11 // pred_fallthru
        _
      // Predicated region
      $region45: #{vit_forward.1} parent=11 // pred_check
        %p560 = pneg %p243
      $region46: #{vit_forward.1} parent=11 // pred_check_branch
        %562 = sbr.rel (%p560) target = $region48
      $region47: #{vit_forward.1} parent=11 // pred_region
        _
      $region48: #{vit_forward.1} parent=11 // pred_fallthru
        _
      // Predicated region
      $region49: #{vit_forward.1} parent=11 // pred_check
        %p563 = pneg %p264
      $region50: #{vit_forward.1} parent=11 // pred_check_branch
        %565 = sbr.rel (%p563) target = $region52
      $region51: #{vit_forward.1} parent=11 // pred_region
        _
      $region52: #{vit_forward.1} parent=11 // pred_fallthru
        _
      // Predicated region
      $region53: #{vit_forward.1} parent=11 // pred_check
        %p566 = pneg %p285
      $region54: #{vit_forward.1} parent=11 // pred_check_branch
        %568 = sbr.rel (%p566) target = $region56
      $region55: #{vit_forward.1} parent=11 // pred_region
        _
      $region56: #{vit_forward.1} parent=11 // pred_fallthru
        _
      // Predicated region
      $region57: #{vit_forward.1} parent=11 // pred_check
        %p569 = pneg %p306
      $region58: #{vit_forward.1} parent=11 // pred_check_branch
        %571 = sbr.rel (%p569) target = $region60
      $region59: #{vit_forward.1} parent=11 // pred_region
        _
      $region60: #{vit_forward.1} parent=11 // pred_fallthru
        _
      // Predicated region
      $region61: #{vit_forward.1} parent=11 // pred_check
        %p572 = pneg %p327
      $region62: #{vit_forward.1} parent=11 // pred_check_branch
        %574 = sbr.rel (%p572) target = $region64
      $region63: #{vit_forward.1} parent=11 // pred_region
        _
      $region64: #{vit_forward.1} parent=11 // pred_fallthru
        _
      // Predicated region
      $region65: #{vit_forward.1} parent=11 // pred_check
        %p575 = pneg %p348
      $region66: #{vit_forward.1} parent=11 // pred_check_branch
        %577 = sbr.rel (%p575) target = $region68
      $region67: #{vit_forward.1} parent=11 // pred_region
        _
      $region68: #{vit_forward.1} parent=11 // pred_fallthru
        _
      // Predicated region
      $region69: #{vit_forward.1} parent=11 // pred_check
        %p578 = pneg %p369
      $region70: #{vit_forward.1} parent=11 // pred_check_branch
        %580 = sbr.rel (%p578) target = $region72
      $region71: #{vit_forward.1} parent=11 // pred_region
        _
      $region72: #{vit_forward.1} parent=11 // pred_fallthru
        _
      // Predicated region
      $region73: #{vit_forward.1} parent=11 // pred_check
        %p581 = pneg %p390
      $region74: #{vit_forward.1} parent=11 // pred_check_branch
        %583 = sbr.rel (%p581) target = $region76
      $region75: #{vit_forward.1} parent=11 // pred_region
        _
      $region76: #{vit_forward.1} parent=11 // pred_fallthru
        _
      // Predicated region
      $region77: #{vit_forward.1} parent=11 // pred_check
        %p584 = pneg %p411
      $region78: #{vit_forward.1} parent=11 // pred_check_branch
        %586 = sbr.rel (%p584) target = $region80
      $region79: #{vit_forward.1} parent=11 // pred_region
        _
      $region80: #{vit_forward.1} parent=11 // pred_fallthru
        _
      // Predicated region
      $region81: #{vit_forward.1} parent=11 // pred_check
        %p587 = pneg %p432
      $region82: #{vit_forward.1} parent=11 // pred_check_branch
        %589 = sbr.rel (%p587) target = $region84
      $region83: #{vit_forward.1} parent=11 // pred_region
        _
      $region84: #{vit_forward.1} parent=11 // pred_fallthru
        _
      // Predicated region
      $region85: #{vit_forward.1} parent=11 // pred_check
        %p590 = pneg %p453
      $region86: #{vit_forward.1} parent=11 // pred_check_branch
        %592 = sbr.rel (%p590) target = $region88
      $region87: #{vit_forward.1} parent=11 // pred_region
        _
      $region88: #{vit_forward.1} parent=11 // pred_fallthru
        _
      // Predicated region
      $region89: #{vit_forward.1} parent=11 // pred_check
        %p593 = pneg %p474
      $region90: #{vit_forward.1} parent=11 // pred_check_branch
        %595 = sbr.rel (%p593) target = $region92
      $region91: #{vit_forward.1} parent=11 // pred_region
        _
      $region92: #{vit_forward.1} parent=11 // pred_fallthru
        _
      // Predicated region
      $region93: #{vit_forward.1} parent=11 // pred_check
        %p596 = pneg %p495
      $region94: #{vit_forward.1} parent=11 // pred_check_branch
        %598 = sbr.rel (%p596) target = $region96
      $region95: #{vit_forward.1} parent=11 // pred_region
        _
      $region96: #{vit_forward.1} parent=11 // pred_fallthru
        _
    $region12: #{vit_forward.1} parent=5 // pred_fallthru
      _
    %p599 = scmp.lt.s32.totalorder %s28, 2
    // Predicated region
    $region97: #{vit_forward.1} parent=5 // pred_check
      %p600 = pneg %p599
    $region98: #{vit_forward.1} parent=5 // pred_check_branch
      %602 = sbr.rel (%p600) target = $region100
    $region99: #{vit_forward.1} parent=5 // pred_region
      // Predicated region
      $region101: #{vit_forward.1} parent=99 // pred_check
        %p603 = pneg %p48
      $region102: #{vit_forward.1} parent=99 // pred_check_branch
        %605 = sbr.rel (%p603) target = $region104
      $region103: #{vit_forward.1} parent=99 // pred_region
        %p606 = scmp.lt.s32.totalorder %s28, 1
        %s607 = scalar_select %p606, %s28, 1
        %s608 = smul.addr %s607, 2
        %s609 = smul.addr %s608, 8
        %s610 = scalar_lea.vmem %s0, %s609
      $region104: #{vit_forward.1} parent=99 // pred_fallthru
        _
    $region100: #{vit_forward.1} parent=5 // pred_fallthru
      _
    %p611 = scmp.le.s32.totalorder 1, %s28
    %p612 = scmp.lt.s32.totalorder %s28, 3
    %p613 = pnand %p611, %p612
    %p614 = pneg %p613
    // Predicated region
    $region105: #{vit_forward.1} parent=5 // pred_check
      _
    $region106: #{vit_forward.1} parent=5 // pred_check_branch
      %616 = sbr.rel (%p613) target = $region108
    $region107: #{vit_forward.1} parent=5 // pred_region
      %s617 = ssub.s32 %s28, 1
      %p618 = scmp.lt.s32.totalorder %s33, 1
      %s619 = scalar_select %p618, %s33, 1
      %s620 = smul.addr %s619, 2
      %s621 = smul.addr %s620, 8
      %s622 = scalar_lea.vmem %s0, %s621
      %p623 = pneg %p54
      %p624 = pneg %p51
      %p625 = pneg %p75
      %p626 = pneg %p72
      %p627 = pneg %p96
      %p628 = pneg %p93
      %p629 = pneg %p117
      %p630 = pneg %p114
      %p631 = pneg %p138
      %p632 = pneg %p135
      %p633 = pneg %p159
      %p634 = pneg %p156
      %p635 = pneg %p180
      %p636 = pneg %p177
      %p637 = pneg %p201
      %p638 = pneg %p198
      %p639 = pneg %p222
      %p640 = pneg %p219
      %p641 = pneg %p243
      %p642 = pneg %p240
      %p643 = pneg %p264
      %p644 = pneg %p261
      %p645 = pneg %p285
      %p646 = pneg %p282
      %p647 = pneg %p306
      %p648 = pneg %p303
      %p649 = pneg %p327
      %p650 = pneg %p324
      %p651 = pneg %p348
      %p652 = pneg %p345
      %p653 = pneg %p369
      %p654 = pneg %p366
      %p655 = pneg %p390
      %p656 = pneg %p387
      %p657 = pneg %p411
      %p658 = pneg %p408
      %p659 = pneg %p432
      %p660 = pneg %p429
      %p661 = pneg %p453
      %p662 = pneg %p450
      %p663 = pneg %p474
      %p664 = pneg %p471
      %p665 = pneg %p495
      %p666 = pneg %p492
      %p667 = pneg %p521
      %p668 = pneg %p518
      %p669 = scmp.lt.s32.totalorder %s33, 1
      %s670 = scalar_select %p669, %s33, 1
      %s671 = smul.addr %s670, 3
      %s672 = smul.addr %s671, 8
      %s673 = scalar_lea.vmem %s22, %s672
      %p674 = scmp.lt.s32.totalorder %s33, 1
      %s675 = scalar_select %p674, %s33, 1
      %s676 = smul.addr %s675, 2
      %s677 = smul.addr %s676, 8
      %s678 = scalar_lea.vmem %s0, %s677
      %p679 = scmp.lt.s32.totalorder %s33, 1
      %s680 = scalar_select %p679, %s33, 1
      %s681 = smul.addr %s680, 3
      %s682 = smul.addr %s681, 8
      %s683 = scalar_lea.vmem %s22, %s682
      %v685 = vld [vmem:[%s678] sm:$0xff]
      %v686 = vld [vmem:[%s678 + $0x8] sm:$0xff]
      %v687 = vld [vmem:[%s2] sm:$0xf]
      %v688 = vld [vmem:[%s2 + $0x4] sm:$0xf]
      %v689 = vld [vmem:[%s2 + $0x8] sm:$0xf]
      %v690 = vld [vmem:[%s2 + $0xc] sm:$0xf]
      %v691 = vld [vmem:[%s2 + $0x10] sm:$0xf]
      %v692 = vld [vmem:[%s2 + $0x14] sm:$0xf]
      %v693 = vpack.c.bf16 %v686, %v685
      %v694 = vld [vmem:[%s3] sm:$0x1]
      %v696 = vlaneseq
      %v697 = vshrl.u32 %v696, 7
      %v698 = vsub.s32 0, %v697
      %v699 = vrot.slane %v694, %v698
      %v707 = vunpack.c.l.b16 %v687
      %v708 = vunpack.c.l.b16 %v688
      %v709 = vunpack.c.l.b16 %v689
      %v710 = vunpack.c.l.b16 %v690
      %v711 = vunpack.c.l.b16 %v691
      %v712 = vunpack.c.l.b16 %v692
      %v713 = vpack.c.b16 %v708, %v707
      %v714 = vpack.c.b16 %v710, %v709
      %v715 = vpack.c.b16 %v712, %v711
      %vm719 = vcmask 392192
      %v721 = vsel %vm719, %v693, 0
      %723 = vmatprep.subr.bf16.mxu0 0
      %724 = vmatpush1.bf16.msra.mxu0 0
      %725 = vmatprep.subr.bf16.mxu0 0
      %726 = vmatpush1.bf16.msra.mxu0 0
      %727 = vmatprep.subr.bf16.mxu0 0
      %728 = vmatpush1.bf16.msra.mxu0 0
      %729 = vmatprep.subr.bf16.mxu0 0
      %730 = vmatpush1.bf16.msra.mxu0 0
      %731 = vmatprep.subr.bf16.mxu0 0
      %732 = vmatpush1.bf16.msra.mxu0 0
      %733 = vmatprep.subr.bf16.mxu0 0
      %734 = vmatpush1.bf16.msra.mxu0 %v715
      %735 = vmatprep.subr.bf16.mxu0 0
      %736 = vmatpush1.bf16.msra.mxu0 %v714
      %737 = vmatprep.subr.bf16.mxu0 0
      %738 = vmatpush1.bf16.msra.mxu0 %v713
      %739 = vmatprep.subr.bf16.mxu0 0
      %740 = vmatpush2.bf16.msra.mxu0 0
      %741 = vmatprep.subr.bf16.mxu0 0
      %742 = vmatpush2.bf16.msra.mxu0 0
      %743 = vmatprep.subr.bf16.mxu0 0
      %744 = vmatpush2.bf16.msra.mxu0 0
      %745 = vmatprep.subr.bf16.mxu0 0
      %746 = vmatpush2.bf16.msra.mxu0 0
      %747 = vmatprep.subr.bf16.mxu0 0
      %748 = vmatpush2.bf16.msra.mxu0 0
      %749 = vmatprep.subr.bf16.mxu0 0
      %750 = vmatpush2.bf16.msra.mxu0 0
      %751 = vmatprep.subr.bf16.mxu0 0
      %752 = vmatpush2.bf16.msra.mxu0 0
      %753 = vmatprep.subr.bf16.mxu0 0
      %754 = vmatpush2.bf16.msra.mxu0 0
      %755 = vmatprep.mubr.bf16.mxu0 0
      %756 = vmatmul.mubr.bf16.gmra.mxu0 %v721
      %v757 = vpop.f32.mrf.mxu0
      %v758 = vadd.f32 %v699, %v757
      %v759 = vpop.f32.mrf.mxu0
      %v760 = vpop.f32.mrf.mxu0
      %v761 = vadd.f32 %v699, %v760
      %v762 = vpop.f32.mrf.mxu0
      %763 = vdwg.mxu0
      %v764 = vld [vmem:[%s4] sm:$0x1]
      %v765 = vld [vmem:[%s5] sm:$0x1]
      %vm766 = vcmask 523264
      %v767 = vsel %vm766, %v758, 0.0
      %768 = vadd.xlane.f32.xlu0 %v767
      %v769 = vpop.xlane.xlu0 %768
      %v770 = vsel %vm766, %v761, 0.0
      %771 = vadd.xlane.f32.xlu0 %v770
      %v772 = vpop.xlane.xlu0 %771
      %v773 = vrcp.pop 64.0
      %v774 = vmul.f32 %v769, %v773
      %v775 = vmul.f32 %v772, %v773
      %v776 = vsub.f32 %v758, %v774
      %v777 = vsub.f32 %v761, %v775
      %v778 = vmul.f32 %v776, %v776
      %v779 = vmul.f32 %v777, %v777
      %v780 = vsel %vm766, %v778, 0.0
      %781 = vadd.xlane.f32.xlu0 %v780
      %v782 = vpop.xlane.xlu0 %781
      %v783 = vsel %vm766, %v779, 0.0
      %784 = vadd.xlane.f32.xlu0 %v783
      %v785 = vpop.xlane.xlu0 %784
      %v786 = vmul.f32 %v782, %v773
      %v787 = vmul.f32 %v785, %v773
      %v788 = vadd.f32 %v786, 1e-05
      %v789 = vadd.f32 %v787, 1e-05
      %v790 = vrsqrt.pop %v788
      %v791 = vrsqrt.pop %v789
      %v792 = vmul.f32 %v776, %v790
      %v793 = vmul.f32 %v777, %v791
      %v795 = vlaneseq
      %v796 = vshrl.u32 %v795, 7
      %v797 = vsub.s32 0, %v796
      %v798 = vrot.slane %v764, %v797
      %v800 = vmul.f32 %v792, %v798
      %v801 = vmul.f32 %v793, %v798
      %v803 = vlaneseq
      %v804 = vshrl.u32 %v803, 7
      %v805 = vsub.s32 0, %v804
      %v806 = vrot.slane %v765, %v805
      %v808 = vadd.f32 %v800, %v806
      %v809 = vadd.f32 %v801, %v806
      %v810 = vld [vmem:[%s6] sm:$0x1]
      %vm811 = vcmask 516096
      %812 = vst.msk [vmem:[#allocation2] sm:$0x1] %vm811, %v810
      %813 = vst.msk [vmem:[#allocation2 + $0x1] sm:$0xff] %vm766, %v808
      %814 = vst.msk [vmem:[#allocation2 + $0x9] sm:$0xff] %vm766, %v809
      %v815 = vld [vmem:[#allocation2] sm:$0xff]
      %v816 = vld [vmem:[#allocation2 + $0x8] sm:$0xff]
      %v817 = vld [vmem:[#allocation2 + $0x10] sm:$0x1]
      %v818 = vlaneseq
      %v819 = vshrl.u32 %v818, 7
      %v820 = vadd.s32 %v819, 8
      %v821 = vadd.s32 %v819, 16
      %vm822 = vcmp.eq.s32.totalorder %v819, 0
      %vm823 = vcmp.eq.s32.totalorder %v820, 0
      %vm824 = vcmp.eq.s32.totalorder %v821, 0
      %v825 = vld [vmem:[%s1] sm:$0xff]
      %v826 = vld [vmem:[%s1 + $0x8] sm:$0xff]
      %v827 = vld [vmem:[%s1 + $0x10] sm:$0xff]
      %v828 = vld [vmem:[%s1 + $0x18] sm:$0xff]
      %v829 = vld [vmem:[%s1 + $0x20] sm:$0xff]
      %v830 = vld [vmem:[%s1 + $0x28] sm:$0xff]
      %v831 = vld [vmem:[%s1 + $0x30] sm:$0xff]
      %v832 = vld [vmem:[%s1 + $0x38] sm:$0xff]
      %v833 = vld [vmem:[%s1 + $0x40] sm:$0xff]
      %v834 = vld [vmem:[%s1 + $0x48] sm:$0xff]
      %v835 = vld [vmem:[%s1 + $0x50] sm:$0xff]
      %v836 = vld [vmem:[%s1 + $0x58] sm:$0xff]
      %v837 = vld [vmem:[%s1 + $0x60] sm:$0xff]
      %v838 = vld [vmem:[%s1 + $0x68] sm:$0xff]
      %v839 = vld [vmem:[%s1 + $0x70] sm:$0xff]
      %v840 = vld [vmem:[%s1 + $0x78] sm:$0xff]
      %v841 = vld [vmem:[%s1 + $0x80] sm:$0xff]
      %v842 = vld [vmem:[%s1 + $0x88] sm:$0xff]
      %v843 = vld [vmem:[%s1 + $0x90] sm:$0xff]
      %v844 = vld [vmem:[%s1 + $0x98] sm:$0x1]
      %v845 = vld [vmem:[%s7] sm:$0x1]
      %v846 = vld [vmem:[%s8] sm:$0x1]
      %v847 = vsel %vm766, %v815, 0.0
      %848 = vadd.xlane.f32.xlu0 %v847
      %v849 = vpop.xlane.xlu0 %848
      %v850 = vsel %vm766, %v816, 0.0
      %851 = vadd.xlane.f32.xlu0 %v850
      %v852 = vpop.xlane.xlu0 %851
      %v853 = vsel %vm811, %v817, 0.0
      %854 = vadd.xlane.f32.xlu0 %v853
      %v855 = vpop.xlane.xlu0 %854
      %v856 = vmul.f32 %v849, %v773
      %v857 = vmul.f32 %v852, %v773
      %v858 = vmul.f32 %v855, %v773
      %v859 = vsub.f32 %v815, %v856
      %v860 = vsub.f32 %v816, %v857
      %v861 = vsub.f32 %v817, %v858
      %v862 = vmul.f32 %v859, %v859
      %v863 = vmul.f32 %v860, %v860
      %v864 = vmul.f32 %v861, %v861
      %v865 = vsel %vm766, %v862, 0.0
      %866 = vadd.xlane.f32.xlu0 %v865
      %v867 = vpop.xlane.xlu0 %866
      %v868 = vsel %vm766, %v863, 0.0
      %869 = vadd.xlane.f32.xlu0 %v868
      %v870 = vpop.xlane.xlu0 %869
      %v871 = vsel %vm811, %v864, 0.0
      %872 = vadd.xlane.f32.xlu0 %v871
      %v873 = vpop.xlane.xlu0 %872
      %v874 = vmul.f32 %v867, %v773
      %v875 = vmul.f32 %v870, %v773
      %v876 = vmul.f32 %v873, %v773
      %v877 = vadd.f32 %v874, 1e-05
      %v878 = vadd.f32 %v875, 1e-05
      %v879 = vadd.f32 %v876, 1e-05
      %v880 = vrsqrt.pop %v877
      %v881 = vrsqrt.pop %v878
      %v882 = vrsqrt.pop %v879
      %v883 = vmul.f32 %v859, %v880
      %v884 = vmul.f32 %v860, %v881
      %v885 = vmul.f32 %v861, %v882
      %v887 = vlaneseq
      %v888 = vshrl.u32 %v887, 7
      %v889 = vsub.s32 0, %v888
      %v890 = vrot.slane %v845, %v889
      %v892 = vmul.f32 %v883, %v890
      %v893 = vmul.f32 %v884, %v890
      %v894 = vmul.f32 %v885, %v890
      %v896 = vlaneseq
      %v897 = vshrl.u32 %v896, 7
      %v898 = vsub.s32 0, %v897
      %v899 = vrot.slane %v846, %v898
      %v901 = vadd.f32 %v892, %v899
      %v902 = vadd.f32 %v893, %v899
      %v903 = vadd.f32 %v894, %v899
      %vm904 = vcmask 138240
      %v906 = vsel %vm904, %v825, 0
      %v909 = vsel %vm904, %v826, 0
      %v912 = vsel %vm904, %v827, 0
      %v915 = vsel %vm904, %v828, 0
      %v918 = vsel %vm904, %v829, 0
      %v921 = vsel %vm904, %v830, 0
      %v924 = vsel %vm904, %v831, 0
      %v927 = vsel %vm904, %v832, 0
      %v930 = vsel %vm904, %v833, 0
      %v933 = vsel %vm904, %v834, 0
      %v936 = vsel %vm904, %v835, 0
      %v939 = vsel %vm904, %v836, 0
      %v942 = vsel %vm904, %v837, 0
      %v945 = vsel %vm904, %v838, 0
      %v948 = vsel %vm904, %v839, 0
      %v951 = vsel %vm904, %v840, 0
      %v954 = vsel %vm904, %v841, 0
      %v957 = vsel %vm904, %v842, 0
      %v960 = vsel %vm904, %v843, 0
      %v963 = vsel %vm904, %v844, 0
      %vm965 = vcmask 1040384
      %v967 = vsel %vm965, %v903, 0
      %969 = vmatprep.subr.mxu0 0.0
      %970 = vmatpush1.msra.mxu0 0.0
      %971 = vmatprep.subr.mxu0 0.0
      %972 = vmatpush1.msra.mxu0 0.0
      %973 = vmatprep.subr.mxu0 0.0
      %974 = vmatpush1.msra.mxu0 0.0
      %975 = vmatprep.subr.mxu0 0.0
      %976 = vmatpush1.msra.mxu0 0.0
      %977 = vmatprep.subr.mxu0 0.0
      %978 = vmatpush1.msra.mxu0 0.0
      %979 = vmatprep.subr.mxu0 0.0
      %980 = vmatpush1.msra.mxu0 0.0
      %981 = vmatprep.subr.mxu0 0.0
      %982 = vmatpush1.msra.mxu0 0.0
      %983 = vmatprep.subr.mxu0 0.0
      %984 = vmatpush1.msra.mxu0 0.0
      %985 = vmatprep.subr.mxu0 0.0
      %986 = vmatpush1.msra.mxu0 0.0
      %987 = vmatprep.subr.mxu0 0.0
      %988 = vmatpush1.msra.mxu0 0.0
      %989 = vmatprep.subr.mxu0 0.0
      %990 = vmatpush1.msra.mxu0 0.0
      %991 = vmatprep.subr.mxu0 0.0
      %992 = vmatpush1.msra.mxu0 0.0
      %993 = vmatprep.subr.mxu0 0.0
      %994 = vmatpush1.msra.mxu0 0.0
      %995 = vmatprep.subr.mxu0 0.0
      %996 = vmatpush1.msra.mxu0 %v967
      %997 = vmatprep.subr.mxu0 0.0
      %998 = vmatpush1.msra.mxu0 %v902
      %999 = vmatprep.subr.mxu0 0.0
      %1000 = vmatpush1.msra.mxu0 %v901
      %1001 = vmatprep.subr.mxu0 0.0
      %1002 = vmatpush2.msra.mxu0 0.0
      %1003 = vmatprep.subr.mxu0 0.0
      %1004 = vmatpush2.msra.mxu0 0.0
      %1005 = vmatprep.subr.mxu0 0.0
      %1006 = vmatpush2.msra.mxu0 0.0
      %1007 = vmatprep.subr.mxu0 0.0
      %1008 = vmatpush2.msra.mxu0 0.0
      %1009 = vmatprep.subr.mxu0 0.0
      %1010 = vmatpush2.msra.mxu0 0.0
      %1011 = vmatprep.subr.mxu0 0.0
      %1012 = vmatpush2.msra.mxu0 0.0
      %1013 = vmatprep.subr.mxu0 0.0
      %1014 = vmatpush2.msra.mxu0 0.0
      %1015 = vmatprep.subr.mxu0 0.0
      %1016 = vmatpush2.msra.mxu0 0.0
      %1017 = vmatprep.subr.mxu0 0.0
      %1018 = vmatpush2.msra.mxu0 0.0
      %1019 = vmatprep.subr.mxu0 0.0
      %1020 = vmatpush2.msra.mxu0 0.0
      %1021 = vmatprep.subr.mxu0 0.0
      %1022 = vmatpush2.msra.mxu0 0.0
      %1023 = vmatprep.subr.mxu0 0.0
      %1024 = vmatpush2.msra.mxu0 0.0
      %1025 = vmatprep.subr.mxu0 0.0
      %1026 = vmatpush2.msra.mxu0 0.0
      %1027 = vmatprep.subr.mxu0 0.0
      %1028 = vmatpush2.msra.mxu0 0.0
      %1029 = vmatprep.subr.mxu0 0.0
      %1030 = vmatpush2.msra.mxu0 0.0
      %1031 = vmatprep.subr.mxu0 0.0
      %1032 = vmatpush2.msra.mxu0 0.0
      %1033 = vmatprep.mubr.f32.mxu0 0.0
      %1034 = vmatmul.mubr.f32.gmra.mxu0 %v906
      %v1035 = vpop.f32.mrf.mxu0
      %v1036 = vadd.f32 0.0, %v1035
      %v1037 = vpop.f32.mrf.mxu0
      %1038 = vmatprep.mubr.f32.mxu0 0.0
      %1039 = vmatmul.mubr.f32.gmra.mxu0 %v909
      %v1040 = vpop.f32.mrf.mxu0
      %v1041 = vadd.f32 0.0, %v1040
      %v1042 = vpop.f32.mrf.mxu0
      %1043 = vmatprep.mubr.f32.mxu0 0.0
      %1044 = vmatmul.mubr.f32.gmra.mxu0 %v912
      %v1045 = vpop.f32.mrf.mxu0
      %v1046 = vadd.f32 0.0, %v1045
      %v1047 = vpop.f32.mrf.mxu0
      %1048 = vmatprep.mubr.f32.mxu0 0.0
      %1049 = vmatmul.mubr.f32.gmra.mxu0 %v915
      %v1050 = vpop.f32.mrf.mxu0
      %v1051 = vadd.f32 0.0, %v1050
      %v1052 = vpop.f32.mrf.mxu0
      %1053 = vmatprep.mubr.f32.mxu0 0.0
      %1054 = vmatmul.mubr.f32.gmra.mxu0 %v918
      %v1055 = vpop.f32.mrf.mxu0
      %v1056 = vadd.f32 0.0, %v1055
      %v1057 = vpop.f32.mrf.mxu0
      %1058 = vmatprep.mubr.f32.mxu0 0.0
      %1059 = vmatmul.mubr.f32.gmra.mxu0 %v921
      %v1060 = vpop.f32.mrf.mxu0
      %v1061 = vadd.f32 0.0, %v1060
      %v1062 = vpop.f32.mrf.mxu0
      %1063 = vmatprep.mubr.f32.mxu0 0.0
      %1064 = vmatmul.mubr.f32.gmra.mxu0 %v924
      %v1065 = vpop.f32.mrf.mxu0
      %v1066 = vadd.f32 0.0, %v1065
      %v1067 = vpop.f32.mrf.mxu0
      %1068 = vmatprep.mubr.f32.mxu0 0.0
      %1069 = vmatmul.mubr.f32.gmra.mxu0 %v927
      %v1070 = vpop.f32.mrf.mxu0
      %v1071 = vadd.f32 0.0, %v1070
      %v1072 = vpop.f32.mrf.mxu0
      %1073 = vmatprep.mubr.f32.mxu0 0.0
      %1074 = vmatmul.mubr.f32.gmra.mxu0 %v930
      %v1075 = vpop.f32.mrf.mxu0
      %v1076 = vadd.f32 0.0, %v1075
      %v1077 = vpop.f32.mrf.mxu0
      %1078 = vmatprep.mubr.f32.mxu0 0.0
      %1079 = vmatmul.mubr.f32.gmra.mxu0 %v933
      %v1080 = vpop.f32.mrf.mxu0
      %v1081 = vadd.f32 0.0, %v1080
      %v1082 = vpop.f32.mrf.mxu0
      %1083 = vmatprep.mubr.f32.mxu0 0.0
      %1084 = vmatmul.mubr.f32.gmra.mxu0 %v936
      %v1085 = vpop.f32.mrf.mxu0
      %v1086 = vadd.f32 0.0, %v1085
      %v1087 = vpop.f32.mrf.mxu0
      %1088 = vmatprep.mubr.f32.mxu0 0.0
      %1089 = vmatmul.mubr.f32.gmra.mxu0 %v939
      %v1090 = vpop.f32.mrf.mxu0
      %v1091 = vadd.f32 0.0, %v1090
      %v1092 = vpop.f32.mrf.mxu0
      %1093 = vmatprep.mubr.f32.mxu0 0.0
      %1094 = vmatmul.mubr.f32.gmra.mxu0 %v942
      %v1095 = vpop.f32.mrf.mxu0
      %v1096 = vadd.f32 0.0, %v1095
      %v1097 = vpop.f32.mrf.mxu0
      %1098 = vmatprep.mubr.f32.mxu0 0.0
      %1099 = vmatmul.mubr.f32.gmra.mxu0 %v945
      %v1100 = vpop.f32.mrf.mxu0
      %v1101 = vadd.f32 0.0, %v1100
      %v1102 = vpop.f32.mrf.mxu0
      %1103 = vmatprep.mubr.f32.mxu0 0.0
      %1104 = vmatmul.mubr.f32.gmra.mxu0 %v948
      %v1105 = vpop.f32.mrf.mxu0
      %v1106 = vadd.f32 0.0, %v1105
      %v1107 = vpop.f32.mrf.mxu0
      %1108 = vmatprep.mubr.f32.mxu0 0.0
      %1109 = vmatmul.mubr.f32.gmra.mxu0 %v951
      %v1110 = vpop.f32.mrf.mxu0
      %v1111 = vadd.f32 0.0, %v1110
      %v1112 = vpop.f32.mrf.mxu0
      %1113 = vmatprep.mubr.f32.mxu0 0.0
      %1114 = vmatmul.mubr.f32.gmra.mxu0 %v954
      %v1115 = vpop.f32.mrf.mxu0
      %v1116 = vadd.f32 0.0, %v1115
      %v1117 = vpop.f32.mrf.mxu0
      %1118 = vmatprep.mubr.f32.mxu0 0.0
      %1119 = vmatmul.mubr.f32.gmra.mxu0 %v957
      %v1120 = vpop.f32.mrf.mxu0
      %v1121 = vadd.f32 0.0, %v1120
      %v1122 = vpop.f32.mrf.mxu0
      %1123 = vmatprep.mubr.f32.mxu0 0.0
      %1124 = vmatmul.mubr.f32.gmra.mxu0 %v960
      %v1125 = vpop.f32.mrf.mxu0
      %v1126 = vadd.f32 0.0, %v1125
      %v1127 = vpop.f32.mrf.mxu0
      %1128 = vmatprep.mubr.f32.mxu0 0.0
      %1129 = vmatmul.mubr.f32.gmra.mxu0 %v963
      %v1130 = vpop.f32.mrf.mxu0
      %v1131 = vadd.f32 0.0, %v1130
      %v1132 = vpop.f32.mrf.mxu0
      %1133 = vdwg.mxu0
      %v1134 = vld [vmem:[%s9] sm:$0x1]
      %v1135 = vld [vmem:[%s9 + $0x1] sm:$0x1]
      %v1136 = vld [vmem:[%s9 + $0x2] sm:$0x1]
      %v1137 = vld [vmem:[%s9 + $0x3] sm:$0x1]
      %v1138 = vld [vmem:[%s9 + $0x4] sm:$0x1]
      %v1139 = vld [vmem:[%s9 + $0x5] sm:$0x1]
      %v1140 = vld [vmem:[%s9 + $0x6] sm:$0x1]
      %v1141 = vld [vmem:[%s9 + $0x7] sm:$0x1]
      %v1142 = vld [vmem:[%s9 + $0x8] sm:$0x1]
      %v1143 = vld [vmem:[%s10] sm:$0x1]
      %v1145 = vlaneseq
      %v1146 = vshrl.u32 %v1145, 7
      %v1147 = vsub.s32 0, %v1146
      %v1148 = vrot.slane %v1134, %v1147
      %v1150 = vmul.f32 %v1036, %v1148
      %v1151 = vmul.f32 %v1041, %v1148
      %v1152 = vmul.f32 %v1046, %v1148
      %v1154 = vlaneseq
      %v1155 = vshrl.u32 %v1154, 7
      %v1156 = vsub.s32 0, %v1155
      %v1157 = vrot.slane %v1143, %v1156
      %v1159 = vadd.f32 %v1157, %v1150
      %v1160 = vadd.f32 %v1157, %v1151
      %v1161 = vadd.f32 %v1157, %v1152
      %v1163 = vlaneseq
      %v1164 = vshrl.u32 %v1163, 7
      %v1165 = vsub.s32 0, %v1164
      %v1166 = vrot.slane %v1135, %v1165
      %v1168 = vmul.f32 %v1046, %v1166
      %v1169 = vmul.f32 %v1051, %v1166
      %v1170 = vmul.f32 %v1056, %v1166
      %vm1174 = vcmask 1046528
      %v1175 = vrot.slane %v1168, 1
      %v1176 = vrot.slane %v1169, 1
      %v1177 = vsel %vm1174, %v1175, %v1176
      %v1178 = vrot.slane %v1170, 1
      %v1179 = vsel %vm1174, %v1176, %v1178
      %v1183 = vadd.f32 %v1159, %v1177
      %v1184 = vadd.f32 %v1160, %v1179
      %v1185 = vadd.f32 %v1161, %v1178
      %v1187 = vlaneseq
      %v1188 = vshrl.u32 %v1187, 7
      %v1189 = vsub.s32 0, %v1188
      %v1190 = vrot.slane %v1136, %v1189
      %v1192 = vmul.f32 %v1056, %v1190
      %v1193 = vmul.f32 %v1061, %v1190
      %v1194 = vmul.f32 %v1066, %v1190
      %vm1198 = vcmask 1045504
      %v1199 = vrot.slane %v1192, 2
      %v1200 = vrot.slane %v1193, 2
      %v1201 = vsel %vm1198, %v1199, %v1200
      %v1202 = vrot.slane %v1194, 2
      %v1203 = vsel %vm1198, %v1200, %v1202
      %v1207 = vadd.f32 %v1183, %v1201
      %v1208 = vadd.f32 %v1184, %v1203
      %v1209 = vadd.f32 %v1185, %v1202
      %v1211 = vlaneseq
      %v1212 = vshrl.u32 %v1211, 7
      %v1213 = vsub.s32 0, %v1212
      %v1214 = vrot.slane %v1137, %v1213
      %v1216 = vmul.f32 %v1066, %v1214
      %v1217 = vmul.f32 %v1071, %v1214
      %v1218 = vmul.f32 %v1076, %v1214
      %vm1222 = vcmask 1044480
      %v1223 = vrot.slane %v1216, 3
      %v1224 = vrot.slane %v1217, 3
      %v1225 = vsel %vm1222, %v1223, %v1224
      %v1226 = vrot.slane %v1218, 3
      %v1227 = vsel %vm1222, %v1224, %v1226
      %v1231 = vadd.f32 %v1207, %v1225
      %v1232 = vadd.f32 %v1208, %v1227
      %v1233 = vadd.f32 %v1209, %v1226
      %v1235 = vlaneseq
      %v1236 = vshrl.u32 %v1235, 7
      %v1237 = vsub.s32 0, %v1236
      %v1238 = vrot.slane %v1138, %v1237
      %v1240 = vmul.f32 %v1076, %v1238
      %v1241 = vmul.f32 %v1081, %v1238
      %v1242 = vmul.f32 %v1086, %v1238
      %vm1246 = vcmask 1043456
      %v1247 = vrot.slane %v1240, 4
      %v1248 = vrot.slane %v1241, 4
      %v1249 = vsel %vm1246, %v1247, %v1248
      %v1250 = vrot.slane %v1242, 4
      %v1251 = vsel %vm1246, %v1248, %v1250
      %v1255 = vadd.f32 %v1231, %v1249
      %v1256 = vadd.f32 %v1232, %v1251
      %v1257 = vadd.f32 %v1233, %v1250
      %v1259 = vlaneseq
      %v1260 = vshrl.u32 %v1259, 7
      %v1261 = vsub.s32 0, %v1260
      %v1262 = vrot.slane %v1139, %v1261
      %v1264 = vmul.f32 %v1086, %v1262
      %v1265 = vmul.f32 %v1091, %v1262
      %v1266 = vmul.f32 %v1096, %v1262
      %vm1270 = vcmask 1042432
      %v1271 = vrot.slane %v1264, 5
      %v1272 = vrot.slane %v1265, 5
      %v1273 = vsel %vm1270, %v1271, %v1272
      %v1274 = vrot.slane %v1266, 5
      %v1275 = vsel %vm1270, %v1272, %v1274
      %v1279 = vadd.f32 %v1255, %v1273
      %v1280 = vadd.f32 %v1256, %v1275
      %v1281 = vadd.f32 %v1257, %v1274
      %v1283 = vlaneseq
      %v1284 = vshrl.u32 %v1283, 7
      %v1285 = vsub.s32 0, %v1284
      %v1286 = vrot.slane %v1140, %v1285
      %v1288 = vmul.f32 %v1096, %v1286
      %v1289 = vmul.f32 %v1101, %v1286
      %v1290 = vmul.f32 %v1106, %v1286
      %vm1294 = vcmask 1041408
      %v1295 = vrot.slane %v1288, 6
      %v1296 = vrot.slane %v1289, 6
      %v1297 = vsel %vm1294, %v1295, %v1296
      %v1298 = vrot.slane %v1290, 6
      %v1299 = vsel %vm1294, %v1296, %v1298
      %v1303 = vadd.f32 %v1279, %v1297
      %v1304 = vadd.f32 %v1280, %v1299
      %v1305 = vadd.f32 %v1281, %v1298
      %v1307 = vlaneseq
      %v1308 = vshrl.u32 %v1307, 7
      %v1309 = vsub.s32 0, %v1308
      %v1310 = vrot.slane %v1141, %v1309
      %v1312 = vmul.f32 %v1106, %v1310
      %v1313 = vmul.f32 %v1111, %v1310
      %v1314 = vmul.f32 %v1116, %v1310
      %v1318 = vrot.slane %v1312, 7
      %v1319 = vrot.slane %v1313, 7
      %v1320 = vsel %vm965, %v1318, %v1319
      %v1321 = vrot.slane %v1314, 7
      %v1322 = vsel %vm965, %v1319, %v1321
      %v1326 = vadd.f32 %v1303, %v1320
      %v1327 = vadd.f32 %v1304, %v1322
      %v1328 = vadd.f32 %v1305, %v1321
      %v1330 = vlaneseq
      %v1331 = vshrl.u32 %v1330, 7
      %v1332 = vsub.s32 0, %v1331
      %v1333 = vrot.slane %v1142, %v1332
      %v1335 = vmul.f32 %v1121, %v1333
      %v1336 = vmul.f32 %v1126, %v1333
      %v1337 = vmul.f32 %v1131, %v1333
      %v1338 = vadd.f32 %v1326, %v1335
      %v1339 = vadd.f32 %v1327, %v1336
      %v1340 = vadd.f32 %v1328, %v1337
      %v1341 = vsel %vm822, 1, 0
      %v1342 = vsel %vm823, 1, 0
      %v1343 = vsel %vm824, 1, 0
      %vm1344 = vcmp.eq.s32.totalorder %v1341, 1
      %vm1345 = vcmp.eq.s32.totalorder %v1342, 1
      %vm1346 = vcmp.eq.s32.totalorder %v1343, 1
      %v1347 = vsel %vm1344, %v901, %v1338
      %v1348 = vsel %vm1345, %v902, %v1339
      %v1349 = vsel %vm1346, %v903, %v1340
      %s1350 = scalar_lea.vmem %s9, 9
      %v1351 = vld [vmem:[%s1350] sm:$0x1]
      %v1352 = vld [vmem:[%s1350 + $0x1] sm:$0x1]
      %v1353 = vld [vmem:[%s1350 + $0x2] sm:$0x1]
      %v1354 = vld [vmem:[%s1350 + $0x3] sm:$0x1]
      %v1355 = vld [vmem:[%s1350 + $0x4] sm:$0x1]
      %v1356 = vld [vmem:[%s1350 + $0x5] sm:$0x1]
      %v1357 = vld [vmem:[%s1350 + $0x6] sm:$0x1]
      %v1358 = vld [vmem:[%s1350 + $0x7] sm:$0x1]
      %v1359 = vld [vmem:[%s1350 + $0x8] sm:$0x1]
      %s1360 = scalar_lea.vmem %s10, 1
      %v1361 = vld [vmem:[%s1360] sm:$0x1]
      %v1363 = vlaneseq
      %v1364 = vshrl.u32 %v1363, 7
      %v1365 = vsub.s32 0, %v1364
      %v1366 = vrot.slane %v1351, %v1365
      %v1368 = vmul.f32 %v1036, %v1366
      %v1369 = vmul.f32 %v1041, %v1366
      %v1370 = vmul.f32 %v1046, %v1366
      %v1372 = vlaneseq
      %v1373 = vshrl.u32 %v1372, 7
      %v1374 = vsub.s32 0, %v1373
      %v1375 = vrot.slane %v1361, %v1374
      %v1377 = vadd.f32 %v1375, %v1368
      %v1378 = vadd.f32 %v1375, %v1369
      %v1379 = vadd.f32 %v1375, %v1370
      %v1381 = vlaneseq
      %v1382 = vshrl.u32 %v1381, 7
      %v1383 = vsub.s32 0, %v1382
      %v1384 = vrot.slane %v1352, %v1383
      %v1386 = vmul.f32 %v1046, %v1384
      %v1387 = vmul.f32 %v1051, %v1384
      %v1388 = vmul.f32 %v1056, %v1384
      %v1392 = vrot.slane %v1386, 1
      %v1393 = vrot.slane %v1387, 1
      %v1394 = vsel %vm1174, %v1392, %v1393
      %v1395 = vrot.slane %v1388, 1
      %v1396 = vsel %vm1174, %v1393, %v1395
      %v1400 = vadd.f32 %v1377, %v1394
      %v1401 = vadd.f32 %v1378, %v1396
      %v1402 = vadd.f32 %v1379, %v1395
      %v1404 = vlaneseq
      %v1405 = vshrl.u32 %v1404, 7
      %v1406 = vsub.s32 0, %v1405
      %v1407 = vrot.slane %v1353, %v1406
      %v1409 = vmul.f32 %v1056, %v1407
      %v1410 = vmul.f32 %v1061, %v1407
      %v1411 = vmul.f32 %v1066, %v1407
      %v1415 = vrot.slane %v1409, 2
      %v1416 = vrot.slane %v1410, 2
      %v1417 = vsel %vm1198, %v1415, %v1416
      %v1418 = vrot.slane %v1411, 2
      %v1419 = vsel %vm1198, %v1416, %v1418
      %v1423 = vadd.f32 %v1400, %v1417
      %v1424 = vadd.f32 %v1401, %v1419
      %v1425 = vadd.f32 %v1402, %v1418
      %v1427 = vlaneseq
      %v1428 = vshrl.u32 %v1427, 7
      %v1429 = vsub.s32 0, %v1428
      %v1430 = vrot.slane %v1354, %v1429
      %v1432 = vmul.f32 %v1066, %v1430
      %v1433 = vmul.f32 %v1071, %v1430
      %v1434 = vmul.f32 %v1076, %v1430
      %v1438 = vrot.slane %v1432, 3
      %v1439 = vrot.slane %v1433, 3
      %v1440 = vsel %vm1222, %v1438, %v1439
      %v1441 = vrot.slane %v1434, 3
      %v1442 = vsel %vm1222, %v1439, %v1441
      %v1446 = vadd.f32 %v1423, %v1440
      %v1447 = vadd.f32 %v1424, %v1442
      %v1448 = vadd.f32 %v1425, %v1441
      %v1450 = vlaneseq
      %v1451 = vshrl.u32 %v1450, 7
      %v1452 = vsub.s32 0, %v1451
      %v1453 = vrot.slane %v1355, %v1452
      %v1455 = vmul.f32 %v1076, %v1453
      %v1456 = vmul.f32 %v1081, %v1453
      %v1457 = vmul.f32 %v1086, %v1453
      %v1461 = vrot.slane %v1455, 4
      %v1462 = vrot.slane %v1456, 4
      %v1463 = vsel %vm1246, %v1461, %v1462
      %v1464 = vrot.slane %v1457, 4
      %v1465 = vsel %vm1246, %v1462, %v1464
      %v1469 = vadd.f32 %v1446, %v1463
      %v1470 = vadd.f32 %v1447, %v1465
      %v1471 = vadd.f32 %v1448, %v1464
      %v1473 = vlaneseq
      %v1474 = vshrl.u32 %v1473, 7
      %v1475 = vsub.s32 0, %v1474
      %v1476 = vrot.slane %v1356, %v1475
      %v1478 = vmul.f32 %v1086, %v1476
      %v1479 = vmul.f32 %v1091, %v1476
      %v1480 = vmul.f32 %v1096, %v1476
      %v1484 = vrot.slane %v1478, 5
      %v1485 = vrot.slane %v1479, 5
      %v1486 = vsel %vm1270, %v1484, %v1485
      %v1487 = vrot.slane %v1480, 5
      %v1488 = vsel %vm1270, %v1485, %v1487
      %v1492 = vadd.f32 %v1469, %v1486
      %v1493 = vadd.f32 %v1470, %v1488
      %v1494 = vadd.f32 %v1471, %v1487
      %v1496 = vlaneseq
      %v1497 = vshrl.u32 %v1496, 7
      %v1498 = vsub.s32 0, %v1497
      %v1499 = vrot.slane %v1357, %v1498
      %v1501 = vmul.f32 %v1096, %v1499
      %v1502 = vmul.f32 %v1101, %v1499
      %v1503 = vmul.f32 %v1106, %v1499
      %v1507 = vrot.slane %v1501, 6
      %v1508 = vrot.slane %v1502, 6
      %v1509 = vsel %vm1294, %v1507, %v1508
      %v1510 = vrot.slane %v1503, 6
      %v1511 = vsel %vm1294, %v1508, %v1510
      %v1515 = vadd.f32 %v1492, %v1509
      %v1516 = vadd.f32 %v1493, %v1511
      %v1517 = vadd.f32 %v1494, %v1510
      %v1519 = vlaneseq
      %v1520 = vshrl.u32 %v1519, 7
      %v1521 = vsub.s32 0, %v1520
      %v1522 = vrot.slane %v1358, %v1521
      %v1524 = vmul.f32 %v1106, %v1522
      %v1525 = vmul.f32 %v1111, %v1522
      %v1526 = vmul.f32 %v1116, %v1522
      %v1530 = vrot.slane %v1524, 7
      %v1531 = vrot.slane %v1525, 7
      %v1532 = vsel %vm965, %v1530, %v1531
      %v1533 = vrot.slane %v1526, 7
      %v1534 = vsel %vm965, %v1531, %v1533
      %v1538 = vadd.f32 %v1515, %v1532
      %v1539 = vadd.f32 %v1516, %v1534
      %v1540 = vadd.f32 %v1517, %v1533
      %v1542 = vlaneseq
      %v1543 = vshrl.u32 %v1542, 7
      %v1544 = vsub.s32 0, %v1543
      %v1545 = vrot.slane %v1359, %v1544
      %v1547 = vmul.f32 %v1121, %v1545
      %v1548 = vmul.f32 %v1126, %v1545
      %v1549 = vmul.f32 %v1131, %v1545
      %v1550 = vadd.f32 %v1538, %v1547
      %v1551 = vadd.f32 %v1539, %v1548
      %v1552 = vadd.f32 %v1540, %v1549
      %v1553 = vsel %vm1344, %v901, %v1550
      %v1554 = vsel %vm1345, %v902, %v1551
      %v1555 = vsel %vm1346, %v903, %v1552
      %s1556 = scalar_lea.vmem %s9, 18
      %v1557 = vld [vmem:[%s1556] sm:$0x1]
      %v1558 = vld [vmem:[%s1556 + $0x1] sm:$0x1]
      %v1559 = vld [vmem:[%s1556 + $0x2] sm:$0x1]
      %v1560 = vld [vmem:[%s1556 + $0x3] sm:$0x1]
      %v1561 = vld [vmem:[%s1556 + $0x4] sm:$0x1]
      %v1562 = vld [vmem:[%s1556 + $0x5] sm:$0x1]
      %v1563 = vld [vmem:[%s1556 + $0x6] sm:$0x1]
      %v1564 = vld [vmem:[%s1556 + $0x7] sm:$0x1]
      %v1565 = vld [vmem:[%s1556 + $0x8] sm:$0x1]
      %s1566 = scalar_lea.vmem %s10, 2
      %v1567 = vld [vmem:[%s1566] sm:$0x1]
      %v1569 = vlaneseq
      %v1570 = vshrl.u32 %v1569, 7
      %v1571 = vsub.s32 0, %v1570
      %v1572 = vrot.slane %v1557, %v1571
      %v1574 = vmul.f32 %v1036, %v1572
      %v1575 = vmul.f32 %v1041, %v1572
      %v1576 = vmul.f32 %v1046, %v1572
      %v1578 = vlaneseq
      %v1579 = vshrl.u32 %v1578, 7
      %v1580 = vsub.s32 0, %v1579
      %v1581 = vrot.slane %v1567, %v1580
      %v1583 = vadd.f32 %v1581, %v1574
      %v1584 = vadd.f32 %v1581, %v1575
      %v1585 = vadd.f32 %v1581, %v1576
      %v1587 = vlaneseq
      %v1588 = vshrl.u32 %v1587, 7
      %v1589 = vsub.s32 0, %v1588
      %v1590 = vrot.slane %v1558, %v1589
      %v1592 = vmul.f32 %v1046, %v1590
      %v1593 = vmul.f32 %v1051, %v1590
      %v1594 = vmul.f32 %v1056, %v1590
      %v1598 = vrot.slane %v1592, 1
      %v1599 = vrot.slane %v1593, 1
      %v1600 = vsel %vm1174, %v1598, %v1599
      %v1601 = vrot.slane %v1594, 1
      %v1602 = vsel %vm1174, %v1599, %v1601
      %v1606 = vadd.f32 %v1583, %v1600
      %v1607 = vadd.f32 %v1584, %v1602
      %v1608 = vadd.f32 %v1585, %v1601
      %v1610 = vlaneseq
      %v1611 = vshrl.u32 %v1610, 7
      %v1612 = vsub.s32 0, %v1611
      %v1613 = vrot.slane %v1559, %v1612
      %v1615 = vmul.f32 %v1056, %v1613
      %v1616 = vmul.f32 %v1061, %v1613
      %v1617 = vmul.f32 %v1066, %v1613
      %v1621 = vrot.slane %v1615, 2
      %v1622 = vrot.slane %v1616, 2
      %v1623 = vsel %vm1198, %v1621, %v1622
      %v1624 = vrot.slane %v1617, 2
      %v1625 = vsel %vm1198, %v1622, %v1624
      %v1629 = vadd.f32 %v1606, %v1623
      %v1630 = vadd.f32 %v1607, %v1625
      %v1631 = vadd.f32 %v1608, %v1624
      %v1633 = vlaneseq
      %v1634 = vshrl.u32 %v1633, 7
      %v1635 = vsub.s32 0, %v1634
      %v1636 = vrot.slane %v1560, %v1635
      %v1638 = vmul.f32 %v1066, %v1636
      %v1639 = vmul.f32 %v1071, %v1636
      %v1640 = vmul.f32 %v1076, %v1636
      %v1644 = vrot.slane %v1638, 3
      %v1645 = vrot.slane %v1639, 3
      %v1646 = vsel %vm1222, %v1644, %v1645
      %v1647 = vrot.slane %v1640, 3
      %v1648 = vsel %vm1222, %v1645, %v1647
      %v1652 = vadd.f32 %v1629, %v1646
      %v1653 = vadd.f32 %v1630, %v1648
      %v1654 = vadd.f32 %v1631, %v1647
      %v1656 = vlaneseq
      %v1657 = vshrl.u32 %v1656, 7
      %v1658 = vsub.s32 0, %v1657
      %v1659 = vrot.slane %v1561, %v1658
      %v1661 = vmul.f32 %v1076, %v1659
      %v1662 = vmul.f32 %v1081, %v1659
      %v1663 = vmul.f32 %v1086, %v1659
      %v1667 = vrot.slane %v1661, 4
      %v1668 = vrot.slane %v1662, 4
      %v1669 = vsel %vm1246, %v1667, %v1668
      %v1670 = vrot.slane %v1663, 4
      %v1671 = vsel %vm1246, %v1668, %v1670
      %v1675 = vadd.f32 %v1652, %v1669
      %v1676 = vadd.f32 %v1653, %v1671
      %v1677 = vadd.f32 %v1654, %v1670
      %v1679 = vlaneseq
      %v1680 = vshrl.u32 %v1679, 7
      %v1681 = vsub.s32 0, %v1680
      %v1682 = vrot.slane %v1562, %v1681
      %v1684 = vmul.f32 %v1086, %v1682
      %v1685 = vmul.f32 %v1091, %v1682
      %v1686 = vmul.f32 %v1096, %v1682
      %v1690 = vrot.slane %v1684, 5
      %v1691 = vrot.slane %v1685, 5
      %v1692 = vsel %vm1270, %v1690, %v1691
      %v1693 = vrot.slane %v1686, 5
      %v1694 = vsel %vm1270, %v1691, %v1693
      %v1698 = vadd.f32 %v1675, %v1692
      %v1699 = vadd.f32 %v1676, %v1694
      %v1700 = vadd.f32 %v1677, %v1693
      %v1702 = vlaneseq
      %v1703 = vshrl.u32 %v1702, 7
      %v1704 = vsub.s32 0, %v1703
      %v1705 = vrot.slane %v1563, %v1704
      %v1707 = vmul.f32 %v1096, %v1705
      %v1708 = vmul.f32 %v1101, %v1705
      %v1709 = vmul.f32 %v1106, %v1705
      %v1713 = vrot.slane %v1707, 6
      %v1714 = vrot.slane %v1708, 6
      %v1715 = vsel %vm1294, %v1713, %v1714
      %v1716 = vrot.slane %v1709, 6
      %v1717 = vsel %vm1294, %v1714, %v1716
      %v1721 = vadd.f32 %v1698, %v1715
      %v1722 = vadd.f32 %v1699, %v1717
      %v1723 = vadd.f32 %v1700, %v1716
      %v1725 = vlaneseq
      %v1726 = vshrl.u32 %v1725, 7
      %v1727 = vsub.s32 0, %v1726
      %v1728 = vrot.slane %v1564, %v1727
      %v1730 = vmul.f32 %v1106, %v1728
      %v1731 = vmul.f32 %v1111, %v1728
      %v1732 = vmul.f32 %v1116, %v1728
      %v1736 = vrot.slane %v1730, 7
      %v1737 = vrot.slane %v1731, 7
      %v1738 = vsel %vm965, %v1736, %v1737
      %v1739 = vrot.slane %v1732, 7
      %v1740 = vsel %vm965, %v1737, %v1739
      %v1744 = vadd.f32 %v1721, %v1738
      %v1745 = vadd.f32 %v1722, %v1740
      %v1746 = vadd.f32 %v1723, %v1739
      %v1748 = vlaneseq
      %v1749 = vshrl.u32 %v1748, 7
      %v1750 = vsub.s32 0, %v1749
      %v1751 = vrot.slane %v1565, %v1750
      %v1753 = vmul.f32 %v1121, %v1751
      %v1754 = vmul.f32 %v1126, %v1751
      %v1755 = vmul.f32 %v1131, %v1751
      %v1756 = vadd.f32 %v1744, %v1753
      %v1757 = vadd.f32 %v1745, %v1754
      %v1758 = vadd.f32 %v1746, %v1755
      %v1759 = vsel %vm1344, %v901, %v1756
      %v1760 = vsel %vm1345, %v902, %v1757
      %v1761 = vsel %vm1346, %v903, %v1758
      %v1762 = vld [vmem:[%s11] sm:$0xf]
      %v1763 = vld [vmem:[%s11 + $0x4] sm:$0xf]
      %v1764 = vld [vmem:[%s11 + $0x8] sm:$0xf]
      %v1765 = vld [vmem:[%s11 + $0xc] sm:$0xf]
      %v1766 = vld [vmem:[%s11 + $0x10] sm:$0xf]
      %v1767 = vld [vmem:[%s11 + $0x14] sm:$0xf]
      %v1768 = vld [vmem:[%s11 + $0x18] sm:$0xf]
      %v1769 = vld [vmem:[%s11 + $0x1c] sm:$0xf]
      %v1770 = vpack.c.bf16 %v1348, %v1347
      %v1771 = vpack.c.bf16 %v1349, %v1349
      %v1780 = vunpack.c.l.b16 %v1762
      %v1781 = vunpack.c.l.b16 %v1763
      %v1782 = vunpack.c.l.b16 %v1764
      %v1783 = vunpack.c.l.b16 %v1765
      %v1784 = vunpack.c.l.b16 %v1766
      %v1785 = vunpack.c.l.b16 %v1767
      %v1786 = vunpack.c.l.b16 %v1768
      %v1787 = vunpack.c.l.b16 %v1769
      %v1788 = vpack.c.b16 %v1781, %v1780
      %v1789 = vpack.c.b16 %v1783, %v1782
      %v1790 = vpack.c.b16 %v1785, %v1784
      %v1791 = vpack.c.b16 %v1787, %v1786
      %v1797 = vsel %vm766, %v1770, 0
      %v1800 = vsel %vm766, %v1771, 0
      %1802 = vmatprep.subr.bf16.mxu0 0
      %1803 = vmatpush1.bf16.msra.mxu0 0
      %1804 = vmatprep.subr.bf16.mxu0 0
      %1805 = vmatpush1.bf16.msra.mxu0 0
      %1806 = vmatprep.subr.bf16.mxu0 0
      %1807 = vmatpush1.bf16.msra.mxu0 0
      %1808 = vmatprep.subr.bf16.mxu0 0
      %1809 = vmatpush1.bf16.msra.mxu0 0
      %1810 = vmatprep.subr.bf16.mxu0 0
      %1811 = vmatpush1.bf16.msra.mxu0 %v1791
      %1812 = vmatprep.subr.bf16.mxu0 0
      %1813 = vmatpush1.bf16.msra.mxu0 %v1790
      %1814 = vmatprep.subr.bf16.mxu0 0
      %1815 = vmatpush1.bf16.msra.mxu0 %v1789
      %1816 = vmatprep.subr.bf16.mxu0 0
      %1817 = vmatpush1.bf16.msra.mxu0 %v1788
      %1818 = vmatprep.subr.bf16.mxu0 0
      %1819 = vmatpush2.bf16.msra.mxu0 0
      %1820 = vmatprep.subr.bf16.mxu0 0
      %1821 = vmatpush2.bf16.msra.mxu0 0
      %1822 = vmatprep.subr.bf16.mxu0 0
      %1823 = vmatpush2.bf16.msra.mxu0 0
      %1824 = vmatprep.subr.bf16.mxu0 0
      %1825 = vmatpush2.bf16.msra.mxu0 0
      %1826 = vmatprep.subr.bf16.mxu0 0
      %1827 = vmatpush2.bf16.msra.mxu0 0
      %1828 = vmatprep.subr.bf16.mxu0 0
      %1829 = vmatpush2.bf16.msra.mxu0 0
      %1830 = vmatprep.subr.bf16.mxu0 0
      %1831 = vmatpush2.bf16.msra.mxu0 0
      %1832 = vmatprep.subr.bf16.mxu0 0
      %1833 = vmatpush2.bf16.msra.mxu0 0
      %1834 = vmatprep.mubr.bf16.mxu0 0
      %1835 = vmatmul.mubr.bf16.gmra.mxu0 %v1797
      %v1836 = vpop.f32.mrf.mxu0
      %v1837 = vadd.f32 0.0, %v1836
      %v1838 = vpop.f32.mrf.mxu0
      %v1839 = vpop.f32.mrf.mxu0
      %v1840 = vadd.f32 0.0, %v1839
      %v1841 = vpop.f32.mrf.mxu0
      %1842 = vmatprep.mubr.bf16.mxu0 0
      %1843 = vmatmul.mubr.bf16.gmra.mxu0 %v1800
      %v1844 = vpop.f32.mrf.mxu0
      %v1845 = vadd.f32 0.0, %v1844
      %v1846 = vpop.f32.mrf.mxu0
      %v1847 = vpop.f32.mrf.mxu0
      %v1848 = vpop.f32.mrf.mxu0
      %1849 = vdwg.mxu0
      %v1850 = vld [vmem:[%s12] sm:$0xf]
      %v1851 = vld [vmem:[%s12 + $0x4] sm:$0xf]
      %v1852 = vld [vmem:[%s12 + $0x8] sm:$0xf]
      %v1853 = vld [vmem:[%s12 + $0xc] sm:$0xf]
      %v1854 = vld [vmem:[%s12 + $0x10] sm:$0xf]
      %v1855 = vld [vmem:[%s12 + $0x14] sm:$0xf]
      %v1856 = vld [vmem:[%s12 + $0x18] sm:$0xf]
      %v1857 = vld [vmem:[%s12 + $0x1c] sm:$0xf]
      %v1858 = vpack.c.bf16 %v1554, %v1553
      %v1859 = vpack.c.bf16 %v1555, %v1555
      %v1868 = vunpack.c.l.b16 %v1850
      %v1869 = vunpack.c.l.b16 %v1851
      %v1870 = vunpack.c.l.b16 %v1852
      %v1871 = vunpack.c.l.b16 %v1853
      %v1872 = vunpack.c.l.b16 %v1854
      %v1873 = vunpack.c.l.b16 %v1855
      %v1874 = vunpack.c.l.b16 %v1856
      %v1875 = vunpack.c.l.b16 %v1857
      %v1876 = vpack.c.b16 %v1869, %v1868
      %v1877 = vpack.c.b16 %v1871, %v1870
      %v1878 = vpack.c.b16 %v1873, %v1872
      %v1879 = vpack.c.b16 %v1875, %v1874
      %v1885 = vsel %vm766, %v1858, 0
      %v1888 = vsel %vm766, %v1859, 0
      %1890 = vmatprep.subr.bf16.mxu0 0
      %1891 = vmatpush1.bf16.msra.mxu0 0
      %1892 = vmatprep.subr.bf16.mxu0 0
      %1893 = vmatpush1.bf16.msra.mxu0 0
      %1894 = vmatprep.subr.bf16.mxu0 0
      %1895 = vmatpush1.bf16.msra.mxu0 0
      %1896 = vmatprep.subr.bf16.mxu0 0
      %1897 = vmatpush1.bf16.msra.mxu0 0
      %1898 = vmatprep.subr.bf16.mxu0 0
      %1899 = vmatpush1.bf16.msra.mxu0 %v1879
      %1900 = vmatprep.subr.bf16.mxu0 0
      %1901 = vmatpush1.bf16.msra.mxu0 %v1878
      %1902 = vmatprep.subr.bf16.mxu0 0
      %1903 = vmatpush1.bf16.msra.mxu0 %v1877
      %1904 = vmatprep.subr.bf16.mxu0 0
      %1905 = vmatpush1.bf16.msra.mxu0 %v1876
      %1906 = vmatprep.subr.bf16.mxu0 0
      %1907 = vmatpush2.bf16.msra.mxu0 0
      %1908 = vmatprep.subr.bf16.mxu0 0
      %1909 = vmatpush2.bf16.msra.mxu0 0
      %1910 = vmatprep.subr.bf16.mxu0 0
      %1911 = vmatpush2.bf16.msra.mxu0 0
      %1912 = vmatprep.subr.bf16.mxu0 0
      %1913 = vmatpush2.bf16.msra.mxu0 0
      %1914 = vmatprep.subr.bf16.mxu0 0
      %1915 = vmatpush2.bf16.msra.mxu0 0
      %1916 = vmatprep.subr.bf16.mxu0 0
      %1917 = vmatpush2.bf16.msra.mxu0 0
      %1918 = vmatprep.subr.bf16.mxu0 0
      %1919 = vmatpush2.bf16.msra.mxu0 0
      %1920 = vmatprep.subr.bf16.mxu0 0
      %1921 = vmatpush2.bf16.msra.mxu0 0
      %1922 = vmatprep.mubr.bf16.mxu0 0
      %1923 = vmatmul.mubr.bf16.gmra.mxu0 %v1885
      %v1924 = vpop.f32.mrf.mxu0
      %v1925 = vadd.f32 0.0, %v1924
      %v1926 = vpop.f32.mrf.mxu0
      %v1927 = vpop.f32.mrf.mxu0
      %v1928 = vadd.f32 0.0, %v1927
      %v1929 = vpop.f32.mrf.mxu0
      %1930 = vmatprep.mubr.bf16.mxu0 0
      %1931 = vmatmul.mubr.bf16.gmra.mxu0 %v1888
      %v1932 = vpop.f32.mrf.mxu0
      %v1933 = vadd.f32 0.0, %v1932
      %v1934 = vpop.f32.mrf.mxu0
      %v1935 = vpop.f32.mrf.mxu0
      %v1936 = vpop.f32.mrf.mxu0
      %1937 = vdwg.mxu0
      %v1938 = vld [vmem:[%s13] sm:$0xf]
      %v1939 = vld [vmem:[%s13 + $0x4] sm:$0xf]
      %v1940 = vld [vmem:[%s13 + $0x8] sm:$0xf]
      %v1941 = vld [vmem:[%s13 + $0xc] sm:$0xf]
      %v1942 = vld [vmem:[%s13 + $0x10] sm:$0xf]
      %v1943 = vld [vmem:[%s13 + $0x14] sm:$0xf]
      %v1944 = vld [vmem:[%s13 + $0x18] sm:$0xf]
      %v1945 = vld [vmem:[%s13 + $0x1c] sm:$0xf]
      %v1946 = vpack.c.bf16 %v1760, %v1759
      %v1947 = vpack.c.bf16 %v1761, %v1761
      %v1956 = vunpack.c.l.b16 %v1938
      %v1957 = vunpack.c.l.b16 %v1939
      %v1958 = vunpack.c.l.b16 %v1940
      %v1959 = vunpack.c.l.b16 %v1941
      %v1960 = vunpack.c.l.b16 %v1942
      %v1961 = vunpack.c.l.b16 %v1943
      %v1962 = vunpack.c.l.b16 %v1944
      %v1963 = vunpack.c.l.b16 %v1945
      %v1964 = vpack.c.b16 %v1957, %v1956
      %v1965 = vpack.c.b16 %v1959, %v1958
      %v1966 = vpack.c.b16 %v1961, %v1960
      %v1967 = vpack.c.b16 %v1963, %v1962
      %v1973 = vsel %vm766, %v1946, 0
      %v1976 = vsel %vm766, %v1947, 0
      %1978 = vmatprep.subr.bf16.mxu0 0
      %1979 = vmatpush1.bf16.msra.mxu0 0
      %1980 = vmatprep.subr.bf16.mxu0 0
      %1981 = vmatpush1.bf16.msra.mxu0 0
      %1982 = vmatprep.subr.bf16.mxu0 0
      %1983 = vmatpush1.bf16.msra.mxu0 0
      %1984 = vmatprep.subr.bf16.mxu0 0
      %1985 = vmatpush1.bf16.msra.mxu0 0
      %1986 = vmatprep.subr.bf16.mxu0 0
      %1987 = vmatpush1.bf16.msra.mxu0 %v1967
      %1988 = vmatprep.subr.bf16.mxu0 0
      %1989 = vmatpush1.bf16.msra.mxu0 %v1966
      %1990 = vmatprep.subr.bf16.mxu0 0
      %1991 = vmatpush1.bf16.msra.mxu0 %v1965
      %1992 = vmatprep.subr.bf16.mxu0 0
      %1993 = vmatpush1.bf16.msra.mxu0 %v1964
      %1994 = vmatprep.subr.bf16.mxu0 0
      %1995 = vmatpush2.bf16.msra.mxu0 0
      %1996 = vmatprep.subr.bf16.mxu0 0
      %1997 = vmatpush2.bf16.msra.mxu0 0
      %1998 = vmatprep.subr.bf16.mxu0 0
      %1999 = vmatpush2.bf16.msra.mxu0 0
      %2000 = vmatprep.subr.bf16.mxu0 0
      %2001 = vmatpush2.bf16.msra.mxu0 0
      %2002 = vmatprep.subr.bf16.mxu0 0
      %2003 = vmatpush2.bf16.msra.mxu0 0
      %2004 = vmatprep.subr.bf16.mxu0 0
      %2005 = vmatpush2.bf16.msra.mxu0 0
      %2006 = vmatprep.subr.bf16.mxu0 0
      %2007 = vmatpush2.bf16.msra.mxu0 0
      %2008 = vmatprep.subr.bf16.mxu0 0
      %2009 = vmatpush2.bf16.msra.mxu0 0
      %2010 = vmatprep.mubr.bf16.mxu0 0
      %2011 = vmatmul.mubr.bf16.gmra.mxu0 %v1973
      %v2012 = vpop.f32.mrf.mxu0
      %v2013 = vadd.f32 0.0, %v2012
      %v2014 = vpop.f32.mrf.mxu0
      %v2015 = vpop.f32.mrf.mxu0
      %v2016 = vadd.f32 0.0, %v2015
      %v2017 = vpop.f32.mrf.mxu0
      %2018 = vmatprep.mubr.bf16.mxu0 0
      %2019 = vmatmul.mubr.bf16.gmra.mxu0 %v1976
      %v2020 = vpop.f32.mrf.mxu0
      %v2021 = vadd.f32 0.0, %v2020
      %v2022 = vpop.f32.mrf.mxu0
      %v2023 = vpop.f32.mrf.mxu0
      %v2024 = vpop.f32.mrf.mxu0
      %2025 = vdwg.mxu0
      %v2026 = vpack.c.bf16 %v1840, %v1837
      %v2027 = vpack.c.bf16 %v1845, %v1845
      %v2028 = vpack.c.bf16 %v1928, %v1925
      %v2029 = vpack.c.bf16 %v1933, %v1933
      %vm2030 = vcmask 130048
      %v2032 = vsel %vm2030, %v2026, 0
      %v2035 = vsel %vm2030, %v2027, 0
      %v2038 = vsel %vm2030, %v2028, 0
      %v2041 = vsel %vm2030, %v2029, 0
      %2043 = vmatprep.subr.bf16.mxu0 0
      %2044 = vmatpush1.bf16.xpose.msra.mxu0 0
      %2045 = vmatprep.subr.bf16.mxu0 0
      %2046 = vmatpush1.bf16.xpose.msra.mxu0 0
      %2047 = vmatprep.subr.bf16.mxu0 0
      %2048 = vmatpush1.bf16.xpose.msra.mxu0 0
      %2049 = vmatprep.subr.bf16.mxu0 0
      %2050 = vmatpush1.bf16.xpose.msra.mxu0 0
      %2051 = vmatprep.subr.bf16.mxu0 0
      %2052 = vmatpush1.bf16.xpose.msra.mxu0 0
      %2053 = vmatprep.subr.bf16.mxu0 0
      %2054 = vmatpush1.bf16.xpose.msra.mxu0 0
      %2055 = vmatprep.subr.bf16.mxu0 0
      %2056 = vmatpush1.bf16.xpose.msra.mxu0 %v2041
      %2057 = vmatprep.subr.bf16.mxu0 0
      %2058 = vmatpush1.bf16.xpose.msra.mxu0 %v2038
      %2059 = vmatprep.subr.bf16.mxu0 0
      %2060 = vmatpush2.bf16.xpose.msra.mxu0 0
      %2061 = vmatprep.subr.bf16.mxu0 0
      %2062 = vmatpush2.bf16.xpose.msra.mxu0 0
      %2063 = vmatprep.subr.bf16.mxu0 0
      %2064 = vmatpush2.bf16.xpose.msra.mxu0 0
      %2065 = vmatprep.subr.bf16.mxu0 0
      %2066 = vmatpush2.bf16.xpose.msra.mxu0 0
      %2067 = vmatprep.subr.bf16.mxu0 0
      %2068 = vmatpush2.bf16.xpose.msra.mxu0 0
      %2069 = vmatprep.subr.bf16.mxu0 0
      %2070 = vmatpush2.bf16.xpose.msra.mxu0 0
      %2071 = vmatprep.subr.bf16.mxu0 0
      %2072 = vmatpush2.bf16.xpose.msra.mxu0 0
      %2073 = vmatprep.subr.bf16.mxu0 0
      %2074 = vmatpush2.bf16.xpose.msra.mxu0 0
      %2075 = vmatprep.mubr.bf16.mxu0 0
      %2076 = vmatmul.mubr.bf16.gmra.mxu0 %v2032
      %v2077 = vpop.f32.mrf.mxu0
      %v2078 = vadd.f32 0.0, %v2077
      %v2079 = vpop.f32.mrf.mxu0
      %v2080 = vpop.f32.mrf.mxu0
      %v2081 = vadd.f32 0.0, %v2080
      %v2082 = vpop.f32.mrf.mxu0
      %2083 = vmatprep.mubr.bf16.mxu0 0
      %2084 = vmatmul.mubr.bf16.gmra.mxu0 %v2035
      %v2085 = vpop.f32.mrf.mxu0
      %v2086 = vadd.f32 0.0, %v2085
      %v2087 = vpop.f32.mrf.mxu0
      %v2088 = vpop.f32.mrf.mxu0
      %v2089 = vpop.f32.mrf.mxu0
      %2090 = vdwg.mxu0
      %v2091 = vmul.f32 %v2078, 0.125
      %v2092 = vmul.f32 %v2081, 0.125
      %v2093 = vmul.f32 %v2086, 0.125
      %v2094 = vsel %vm904, %v2091, -inf
      %2095 = vmax.xlane.f32.xlu0 %v2094
      %v2096 = vpop.xlane.xlu0 %2095
      %v2097 = vsel %vm904, %v2092, -inf
      %2098 = vmax.xlane.f32.xlu0 %v2097
      %v2099 = vpop.xlane.xlu0 %2098
      %vm2100 = vcmask 131072
      %v2101 = vsel %vm2100, %v2093, -inf
      %2102 = vmax.xlane.f32.xlu0 %v2101
      %v2103 = vpop.xlane.xlu0 %2102
      %v2104 = vsub.f32 %v2091, %v2096
      %v2105 = vsub.f32 %v2092, %v2099
      %v2106 = vsub.f32 %v2093, %v2103
      %v2107 = vmul.f32 %v2104, 1.442695
      %v2108 = vpow.pop %v2107
      %v2109 = vmul.f32 %v2105, 1.442695
      %v2110 = vpow.pop %v2109
      %v2111 = vmul.f32 %v2106, 1.442695
      %v2112 = vpow.pop %v2111
      %v2113 = vsel %vm904, %v2108, 0.0
      %2114 = vadd.xlane.f32.xlu0 %v2113
      %v2115 = vpop.xlane.xlu0 %2114
      %v2116 = vsel %vm904, %v2110, 0.0
      %2117 = vadd.xlane.f32.xlu0 %v2116
      %v2118 = vpop.xlane.xlu0 %2117
      %v2119 = vsel %vm2100, %v2112, 0.0
      %2120 = vadd.xlane.f32.xlu0 %v2119
      %v2121 = vpop.xlane.xlu0 %2120
      %v2122 = vrcp.pop %v2115
      %v2123 = vmul.f32 %v2108, %v2122
      %v2124 = vrcp.pop %v2118
      %v2125 = vmul.f32 %v2110, %v2124
      %v2126 = vrcp.pop %v2121
      %v2127 = vmul.f32 %v2112, %v2126
      %v2128 = vpack.c.bf16 %v2125, %v2123
      %v2129 = vpack.c.bf16 %v2127, %v2127
      %v2130 = vpack.c.bf16 %v2016, %v2013
      %v2131 = vpack.c.bf16 %v2021, %v2021
      %v2133 = vsel %vm904, %v2128, 0
      %v2136 = vsel %vm904, %v2129, 0
      %v2138 = vsel 0, 4294967295, 65535
      %v2139 = vsel %vm965, %v2138, 0
      %v2141 = vand.u32 %v2131, %v2139
      %2143 = vmatprep.subr.bf16.mxu0 0
      %2144 = vmatpush1.bf16.msra.mxu0 0
      %2145 = vmatprep.subr.bf16.mxu0 0
      %2146 = vmatpush1.bf16.msra.mxu0 0
      %2147 = vmatprep.subr.bf16.mxu0 0
      %2148 = vmatpush1.bf16.msra.mxu0 0
      %2149 = vmatprep.subr.bf16.mxu0 0
      %2150 = vmatpush1.bf16.msra.mxu0 0
      %2151 = vmatprep.subr.bf16.mxu0 0
      %2152 = vmatpush1.bf16.msra.mxu0 0
      %2153 = vmatprep.subr.bf16.mxu0 0
      %2154 = vmatpush1.bf16.msra.mxu0 0
      %2155 = vmatprep.subr.bf16.mxu0 0
      %2156 = vmatpush1.bf16.msra.mxu0 %v2141
      %2157 = vmatprep.subr.bf16.mxu0 0
      %2158 = vmatpush1.bf16.msra.mxu0 %v2130
      %2159 = vmatprep.subr.bf16.mxu0 0
      %2160 = vmatpush2.bf16.msra.mxu0 0
      %2161 = vmatprep.subr.bf16.mxu0 0
      %2162 = vmatpush2.bf16.msra.mxu0 0
      %2163 = vmatprep.subr.bf16.mxu0 0
      %2164 = vmatpush2.bf16.msra.mxu0 0
      %2165 = vmatprep.subr.bf16.mxu0 0
      %2166 = vmatpush2.bf16.msra.mxu0 0
      %2167 = vmatprep.subr.bf16.mxu0 0
      %2168 = vmatpush2.bf16.msra.mxu0 0
      %2169 = vmatprep.subr.bf16.mxu0 0
      %2170 = vmatpush2.bf16.msra.mxu0 0
      %2171 = vmatprep.subr.bf16.mxu0 0
      %2172 = vmatpush2.bf16.msra.mxu0 0
      %2173 = vmatprep.subr.bf16.mxu0 0
      %2174 = vmatpush2.bf16.msra.mxu0 0
      %2175 = vmatprep.mubr.bf16.mxu0 0
      %2176 = vmatmul.mubr.bf16.gmra.mxu0 %v2133
      %v2177 = vpop.f32.mrf.mxu0
      %v2178 = vadd.f32 0.0, %v2177
      %v2179 = vpop.f32.mrf.mxu0
      %v2180 = vpop.f32.mrf.mxu0
      %v2181 = vadd.f32 0.0, %v2180
      %v2182 = vpop.f32.mrf.mxu0
      %2183 = vmatprep.mubr.bf16.mxu0 0
      %2184 = vmatmul.mubr.bf16.gmra.mxu0 %v2136
      %v2185 = vpop.f32.mrf.mxu0
      %v2186 = vadd.f32 0.0, %v2185
      %v2187 = vpop.f32.mrf.mxu0
      %v2188 = vpop.f32.mrf.mxu0
      %v2189 = vpop.f32.mrf.mxu0
      %2190 = vdwg.mxu0
      %2193 = vrot.lane.b32.xlu0 %v2026, 112
      %v2194 = vpop.permute.xlu0 %2193
      %2195 = vrot.lane.b32.xlu0 %v2027, 112
      %v2196 = vpop.permute.xlu0 %2195
      %2199 = vrot.lane.b32.xlu0 %v2028, 112
      %v2200 = vpop.permute.xlu0 %2199
      %2201 = vrot.lane.b32.xlu0 %v2029, 112
      %v2202 = vpop.permute.xlu0 %2201
      %v2204 = vsel %vm2030, %v2194, 0
      %v2207 = vsel %vm2030, %v2196, 0
      %v2210 = vsel %vm2030, %v2200, 0
      %v2213 = vsel %vm2030, %v2202, 0
      %2215 = vmatprep.subr.bf16.mxu0 0
      %2216 = vmatpush1.bf16.xpose.msra.mxu0 0
      %2217 = vmatprep.subr.bf16.mxu0 0
      %2218 = vmatpush1.bf16.xpose.msra.mxu0 0
      %2219 = vmatprep.subr.bf16.mxu0 0
      %2220 = vmatpush1.bf16.xpose.msra.mxu0 0
      %2221 = vmatprep.subr.bf16.mxu0 0
      %2222 = vmatpush1.bf16.xpose.msra.mxu0 0
      %2223 = vmatprep.subr.bf16.mxu0 0
      %2224 = vmatpush1.bf16.xpose.msra.mxu0 0
      %2225 = vmatprep.subr.bf16.mxu0 0
      %2226 = vmatpush1.bf16.xpose.msra.mxu0 0
      %2227 = vmatprep.subr.bf16.mxu0 0
      %2228 = vmatpush1.bf16.xpose.msra.mxu0 %v2213
      %2229 = vmatprep.subr.bf16.mxu0 0
      %2230 = vmatpush1.bf16.xpose.msra.mxu0 %v2210
      %2231 = vmatprep.subr.bf16.mxu0 0
      %2232 = vmatpush2.bf16.xpose.msra.mxu0 0
      %2233 = vmatprep.subr.bf16.mxu0 0
      %2234 = vmatpush2.bf16.xpose.msra.mxu0 0
      %2235 = vmatprep.subr.bf16.mxu0 0
      %2236 = vmatpush2.bf16.xpose.msra.mxu0 0
      %2237 = vmatprep.subr.bf16.mxu0 0
      %2238 = vmatpush2.bf16.xpose.msra.mxu0 0
      %2239 = vmatprep.subr.bf16.mxu0 0
      %2240 = vmatpush2.bf16.xpose.msra.mxu0 0
      %2241 = vmatprep.subr.bf16.mxu0 0
      %2242 = vmatpush2.bf16.xpose.msra.mxu0 0
      %2243 = vmatprep.subr.bf16.mxu0 0
      %2244 = vmatpush2.bf16.xpose.msra.mxu0 0
      %2245 = vmatprep.subr.bf16.mxu0 0
      %2246 = vmatpush2.bf16.xpose.msra.mxu0 0
      %2247 = vmatprep.mubr.bf16.mxu0 0
      %2248 = vmatmul.mubr.bf16.gmra.mxu0 %v2204
      %v2249 = vpop.f32.mrf.mxu0
      %v2250 = vadd.f32 0.0, %v2249
      %v2251 = vpop.f32.mrf.mxu0
      %v2252 = vpop.f32.mrf.mxu0
      %v2253 = vadd.f32 0.0, %v2252
      %v2254 = vpop.f32.mrf.mxu0
      %2255 = vmatprep.mubr.bf16.mxu0 0
      %2256 = vmatmul.mubr.bf16.gmra.mxu0 %v2207
      %v2257 = vpop.f32.mrf.mxu0
      %v2258 = vadd.f32 0.0, %v2257
      %v2259 = vpop.f32.mrf.mxu0
      %v2260 = vpop.f32.mrf.mxu0
      %v2261 = vpop.f32.mrf.mxu0
      %2262 = vdwg.mxu0
      %v2263 = vmul.f32 %v2250, 0.125
      %v2264 = vmul.f32 %v2253, 0.125
      %v2265 = vmul.f32 %v2258, 0.125
      %v2266 = vsel %vm904, %v2263, -inf
      %2267 = vmax.xlane.f32.xlu0 %v2266
      %v2268 = vpop.xlane.xlu0 %2267
      %v2269 = vsel %vm904, %v2264, -inf
      %2270 = vmax.xlane.f32.xlu0 %v2269
      %v2271 = vpop.xlane.xlu0 %2270
      %v2272 = vsel %vm2100, %v2265, -inf
      %2273 = vmax.xlane.f32.xlu0 %v2272
      %v2274 = vpop.xlane.xlu0 %2273
      %v2275 = vsub.f32 %v2263, %v2268
      %v2276 = vsub.f32 %v2264, %v2271
      %v2277 = vsub.f32 %v2265, %v2274
      %v2278 = vmul.f32 %v2275, 1.442695
      %v2279 = vpow.pop %v2278
      %v2280 = vmul.f32 %v2276, 1.442695
      %v2281 = vpow.pop %v2280
      %v2282 = vmul.f32 %v2277, 1.442695
      %v2283 = vpow.pop %v2282
      %v2284 = vsel %vm904, %v2279, 0.0
      %2285 = vadd.xlane.f32.xlu0 %v2284
      %v2286 = vpop.xlane.xlu0 %2285
      %v2287 = vsel %vm904, %v2281, 0.0
      %2288 = vadd.xlane.f32.xlu0 %v2287
      %v2289 = vpop.xlane.xlu0 %2288
      %v2290 = vsel %vm2100, %v2283, 0.0
      %2291 = vadd.xlane.f32.xlu0 %v2290
      %v2292 = vpop.xlane.xlu0 %2291
      %v2293 = vrcp.pop %v2286
      %v2294 = vmul.f32 %v2279, %v2293
      %v2295 = vrcp.pop %v2289
      %v2296 = vmul.f32 %v2281, %v2295
      %v2297 = vrcp.pop %v2292
      %v2298 = vmul.f32 %v2283, %v2297
      %v2299 = vpack.c.bf16 %v2296, %v2294
      %v2300 = vpack.c.bf16 %v2298, %v2298
      %2303 = vrot.lane.b32.xlu0 %v2130, 112
      %v2304 = vpop.permute.xlu0 %2303
      %2305 = vrot.lane.b32.xlu0 %v2131, 112
      %v2306 = vpop.permute.xlu0 %2305
      %v2309 = vsel %vm904, %v2299, 0
      %v2312 = vsel %vm904, %v2300, 0
      %v2315 = vand.u32 %v2306, %v2139
      %2317 = vmatprep.subr.bf16.mxu0 0
      %2318 = vmatpush1.bf16.msra.mxu0 0
      %2319 = vmatprep.subr.bf16.mxu0 0
      %2320 = vmatpush1.bf16.msra.mxu0 0
      %2321 = vmatprep.subr.bf16.mxu0 0
      %2322 = vmatpush1.bf16.msra.mxu0 0
      %2323 = vmatprep.subr.bf16.mxu0 0
      %2324 = vmatpush1.bf16.msra.mxu0 0
      %2325 = vmatprep.subr.bf16.mxu0 0
      %2326 = vmatpush1.bf16.msra.mxu0 0
      %2327 = vmatprep.subr.bf16.mxu0 0
      %2328 = vmatpush1.bf16.msra.mxu0 0
      %2329 = vmatprep.subr.bf16.mxu0 0
      %2330 = vmatpush1.bf16.msra.mxu0 %v2315
      %2331 = vmatprep.subr.bf16.mxu0 0
      %2332 = vmatpush1.bf16.msra.mxu0 %v2304
      %2333 = vmatprep.subr.bf16.mxu0 0
      %2334 = vmatpush2.bf16.msra.mxu0 0
      %2335 = vmatprep.subr.bf16.mxu0 0
      %2336 = vmatpush2.bf16.msra.mxu0 0
      %2337 = vmatprep.subr.bf16.mxu0 0
      %2338 = vmatpush2.bf16.msra.mxu0 0
      %2339 = vmatprep.subr.bf16.mxu0 0
      %2340 = vmatpush2.bf16.msra.mxu0 0
      %2341 = vmatprep.subr.bf16.mxu0 0
      %2342 = vmatpush2.bf16.msra.mxu0 0
      %2343 = vmatprep.subr.bf16.mxu0 0
      %2344 = vmatpush2.bf16.msra.mxu0 0
      %2345 = vmatprep.subr.bf16.mxu0 0
      %2346 = vmatpush2.bf16.msra.mxu0 0
      %2347 = vmatprep.subr.bf16.mxu0 0
      %2348 = vmatpush2.bf16.msra.mxu0 0
      %2349 = vmatprep.mubr.bf16.mxu0 0
      %2350 = vmatmul.mubr.bf16.gmra.mxu0 %v2309
      %v2351 = vpop.f32.mrf.mxu0
      %v2352 = vadd.f32 0.0, %v2351
      %v2353 = vpop.f32.mrf.mxu0
      %v2354 = vpop.f32.mrf.mxu0
      %v2355 = vadd.f32 0.0, %v2354
      %v2356 = vpop.f32.mrf.mxu0
      %2357 = vmatprep.mubr.bf16.mxu0 0
      %2358 = vmatmul.mubr.bf16.gmra.mxu0 %v2312
      %v2359 = vpop.f32.mrf.mxu0
      %v2360 = vadd.f32 0.0, %v2359
      %v2361 = vpop.f32.mrf.mxu0
      %v2362 = vpop.f32.mrf.mxu0
      %v2363 = vpop.f32.mrf.mxu0
      %2364 = vdwg.mxu0
      %2365 = vrot.lane.b32.xlu0 %v2026, 96
      %v2366 = vpop.permute.xlu0 %2365
      %2367 = vrot.lane.b32.xlu0 %v2027, 96
      %v2368 = vpop.permute.xlu0 %2367
      %2369 = vrot.lane.b32.xlu0 %v2028, 96
      %v2370 = vpop.permute.xlu0 %2369
      %2371 = vrot.lane.b32.xlu0 %v2029, 96
      %v2372 = vpop.permute.xlu0 %2371
      %v2374 = vsel %vm2030, %v2366, 0
      %v2377 = vsel %vm2030, %v2368, 0
      %v2380 = vsel %vm2030, %v2370, 0
      %v2383 = vsel %vm2030, %v2372, 0
      %2385 = vmatprep.subr.bf16.mxu0 0
      %2386 = vmatpush1.bf16.xpose.msra.mxu0 0
      %2387 = vmatprep.subr.bf16.mxu0 0
      %2388 = vmatpush1.bf16.xpose.msra.mxu0 0
      %2389 = vmatprep.subr.bf16.mxu0 0
      %2390 = vmatpush1.bf16.xpose.msra.mxu0 0
      %2391 = vmatprep.subr.bf16.mxu0 0
      %2392 = vmatpush1.bf16.xpose.msra.mxu0 0
      %2393 = vmatprep.subr.bf16.mxu0 0
      %2394 = vmatpush1.bf16.xpose.msra.mxu0 0
      %2395 = vmatprep.subr.bf16.mxu0 0
      %2396 = vmatpush1.bf16.xpose.msra.mxu0 0
      %2397 = vmatprep.subr.bf16.mxu0 0
      %2398 = vmatpush1.bf16.xpose.msra.mxu0 %v2383
      %2399 = vmatprep.subr.bf16.mxu0 0
      %2400 = vmatpush1.bf16.xpose.msra.mxu0 %v2380
      %2401 = vmatprep.subr.bf16.mxu0 0
      %2402 = vmatpush2.bf16.xpose.msra.mxu0 0
      %2403 = vmatprep.subr.bf16.mxu0 0
      %2404 = vmatpush2.bf16.xpose.msra.mxu0 0
      %2405 = vmatprep.subr.bf16.mxu0 0
      %2406 = vmatpush2.bf16.xpose.msra.mxu0 0
      %2407 = vmatprep.subr.bf16.mxu0 0
      %2408 = vmatpush2.bf16.xpose.msra.mxu0 0
      %2409 = vmatprep.subr.bf16.mxu0 0
      %2410 = vmatpush2.bf16.xpose.msra.mxu0 0
      %2411 = vmatprep.subr.bf16.mxu0 0
      %2412 = vmatpush2.bf16.xpose.msra.mxu0 0
      %2413 = vmatprep.subr.bf16.mxu0 0
      %2414 = vmatpush2.bf16.xpose.msra.mxu0 0
      %2415 = vmatprep.subr.bf16.mxu0 0
      %2416 = vmatpush2.bf16.xpose.msra.mxu0 0
      %2417 = vmatprep.mubr.bf16.mxu0 0
      %2418 = vmatmul.mubr.bf16.gmra.mxu0 %v2374
      %v2419 = vpop.f32.mrf.mxu0
      %v2420 = vadd.f32 0.0, %v2419
      %v2421 = vpop.f32.mrf.mxu0
      %v2422 = vpop.f32.mrf.mxu0
      %v2423 = vadd.f32 0.0, %v2422
      %v2424 = vpop.f32.mrf.mxu0
      %2425 = vmatprep.mubr.bf16.mxu0 0
      %2426 = vmatmul.mubr.bf16.gmra.mxu0 %v2377
      %v2427 = vpop.f32.mrf.mxu0
      %v2428 = vadd.f32 0.0, %v2427
      %v2429 = vpop.f32.mrf.mxu0
      %v2430 = vpop.f32.mrf.mxu0
      %v2431 = vpop.f32.mrf.mxu0
      %2432 = vdwg.mxu0
      %v2433 = vmul.f32 %v2420, 0.125
      %v2434 = vmul.f32 %v2423, 0.125
      %v2435 = vmul.f32 %v2428, 0.125
      %v2436 = vsel %vm904, %v2433, -inf
      %2437 = vmax.xlane.f32.xlu0 %v2436
      %v2438 = vpop.xlane.xlu0 %2437
      %v2439 = vsel %vm904, %v2434, -inf
      %2440 = vmax.xlane.f32.xlu0 %v2439
      %v2441 = vpop.xlane.xlu0 %2440
      %v2442 = vsel %vm2100, %v2435, -inf
      %2443 = vmax.xlane.f32.xlu0 %v2442
      %v2444 = vpop.xlane.xlu0 %2443
      %v2445 = vsub.f32 %v2433, %v2438
      %v2446 = vsub.f32 %v2434, %v2441
      %v2447 = vsub.f32 %v2435, %v2444
      %v2448 = vmul.f32 %v2445, 1.442695
      %v2449 = vpow.pop %v2448
      %v2450 = vmul.f32 %v2446, 1.442695
      %v2451 = vpow.pop %v2450
      %v2452 = vmul.f32 %v2447, 1.442695
      %v2453 = vpow.pop %v2452
      %v2454 = vsel %vm904, %v2449, 0.0
      %2455 = vadd.xlane.f32.xlu0 %v2454
      %v2456 = vpop.xlane.xlu0 %2455
      %v2457 = vsel %vm904, %v2451, 0.0
      %2458 = vadd.xlane.f32.xlu0 %v2457
      %v2459 = vpop.xlane.xlu0 %2458
      %v2460 = vsel %vm2100, %v2453, 0.0
      %2461 = vadd.xlane.f32.xlu0 %v2460
      %v2462 = vpop.xlane.xlu0 %2461
      %v2463 = vrcp.pop %v2456
      %v2464 = vmul.f32 %v2449, %v2463
      %v2465 = vrcp.pop %v2459
      %v2466 = vmul.f32 %v2451, %v2465
      %v2467 = vrcp.pop %v2462
      %v2468 = vmul.f32 %v2453, %v2467
      %v2469 = vpack.c.bf16 %v2466, %v2464
      %v2470 = vpack.c.bf16 %v2468, %v2468
      %2471 = vrot.lane.b32.xlu0 %v2130, 96
      %v2472 = vpop.permute.xlu0 %2471
      %2473 = vrot.lane.b32.xlu0 %v2131, 96
      %v2474 = vpop.permute.xlu0 %2473
      %v2477 = vsel %vm904, %v2469, 0
      %v2480 = vsel %vm904, %v2470, 0
      %v2483 = vand.u32 %v2474, %v2139
      %2485 = vmatprep.subr.bf16.mxu0 0
      %2486 = vmatpush1.bf16.msra.mxu0 0
      %2487 = vmatprep.subr.bf16.mxu0 0
      %2488 = vmatpush1.bf16.msra.mxu0 0
      %2489 = vmatprep.subr.bf16.mxu0 0
      %2490 = vmatpush1.bf16.msra.mxu0 0
      %2491 = vmatprep.subr.bf16.mxu0 0
      %2492 = vmatpush1.bf16.msra.mxu0 0
      %2493 = vmatprep.subr.bf16.mxu0 0
      %2494 = vmatpush1.bf16.msra.mxu0 0
      %2495 = vmatprep.subr.bf16.mxu0 0
      %2496 = vmatpush1.bf16.msra.mxu0 0
      %2497 = vmatprep.subr.bf16.mxu0 0
      %2498 = vmatpush1.bf16.msra.mxu0 %v2483
      %2499 = vmatprep.subr.bf16.mxu0 0
      %2500 = vmatpush1.bf16.msra.mxu0 %v2472
      %2501 = vmatprep.subr.bf16.mxu0 0
      %2502 = vmatpush2.bf16.msra.mxu0 0
      %2503 = vmatprep.subr.bf16.mxu0 0
      %2504 = vmatpush2.bf16.msra.mxu0 0
      %2505 = vmatprep.subr.bf16.mxu0 0
      %2506 = vmatpush2.bf16.msra.mxu0 0
      %2507 = vmatprep.subr.bf16.mxu0 0
      %2508 = vmatpush2.bf16.msra.mxu0 0
      %2509 = vmatprep.subr.bf16.mxu0 0
      %2510 = vmatpush2.bf16.msra.mxu0 0
      %2511 = vmatprep.subr.bf16.mxu0 0
      %2512 = vmatpush2.bf16.msra.mxu0 0
      %2513 = vmatprep.subr.bf16.mxu0 0
      %2514 = vmatpush2.bf16.msra.mxu0 0
      %2515 = vmatprep.subr.bf16.mxu0 0
      %2516 = vmatpush2.bf16.msra.mxu0 0
      %2517 = vmatprep.mubr.bf16.mxu0 0
      %2518 = vmatmul.mubr.bf16.gmra.mxu0 %v2477
      %v2519 = vpop.f32.mrf.mxu0
      %v2520 = vadd.f32 0.0, %v2519
      %v2521 = vpop.f32.mrf.mxu0
      %v2522 = vpop.f32.mrf.mxu0
      %v2523 = vadd.f32 0.0, %v2522
      %v2524 = vpop.f32.mrf.mxu0
      %2525 = vmatprep.mubr.bf16.mxu0 0
      %2526 = vmatmul.mubr.bf16.gmra.mxu0 %v2480
      %v2527 = vpop.f32.mrf.mxu0
      %v2528 = vadd.f32 0.0, %v2527
      %v2529 = vpop.f32.mrf.mxu0
      %v2530 = vpop.f32.mrf.mxu0
      %v2531 = vpop.f32.mrf.mxu0
      %2532 = vdwg.mxu0
      %2533 = vrot.lane.b32.xlu0 %v2026, 80
      %v2534 = vpop.permute.xlu0 %2533
      %2535 = vrot.lane.b32.xlu0 %v2027, 80
      %v2536 = vpop.permute.xlu0 %2535
      %2537 = vrot.lane.b32.xlu0 %v2028, 80
      %v2538 = vpop.permute.xlu0 %2537
      %2539 = vrot.lane.b32.xlu0 %v2029, 80
      %v2540 = vpop.permute.xlu0 %2539
      %v2542 = vsel %vm2030, %v2534, 0
      %v2545 = vsel %vm2030, %v2536, 0
      %v2548 = vsel %vm2030, %v2538, 0
      %v2551 = vsel %vm2030, %v2540, 0
      %2553 = vmatprep.subr.bf16.mxu0 0
      %2554 = vmatpush1.bf16.xpose.msra.mxu0 0
      %2555 = vmatprep.subr.bf16.mxu0 0
      %2556 = vmatpush1.bf16.xpose.msra.mxu0 0
      %2557 = vmatprep.subr.bf16.mxu0 0
      %2558 = vmatpush1.bf16.xpose.msra.mxu0 0
      %2559 = vmatprep.subr.bf16.mxu0 0
      %2560 = vmatpush1.bf16.xpose.msra.mxu0 0
      %2561 = vmatprep.subr.bf16.mxu0 0
      %2562 = vmatpush1.bf16.xpose.msra.mxu0 0
      %2563 = vmatprep.subr.bf16.mxu0 0
      %2564 = vmatpush1.bf16.xpose.msra.mxu0 0
      %2565 = vmatprep.subr.bf16.mxu0 0
      %2566 = vmatpush1.bf16.xpose.msra.mxu0 %v2551
      %2567 = vmatprep.subr.bf16.mxu0 0
      %2568 = vmatpush1.bf16.xpose.msra.mxu0 %v2548
      %2569 = vmatprep.subr.bf16.mxu0 0
      %2570 = vmatpush2.bf16.xpose.msra.mxu0 0
      %2571 = vmatprep.subr.bf16.mxu0 0
      %2572 = vmatpush2.bf16.xpose.msra.mxu0 0
      %2573 = vmatprep.subr.bf16.mxu0 0
      %2574 = vmatpush2.bf16.xpose.msra.mxu0 0
      %2575 = vmatprep.subr.bf16.mxu0 0
      %2576 = vmatpush2.bf16.xpose.msra.mxu0 0
      %2577 = vmatprep.subr.bf16.mxu0 0
      %2578 = vmatpush2.bf16.xpose.msra.mxu0 0
      %2579 = vmatprep.subr.bf16.mxu0 0
      %2580 = vmatpush2.bf16.xpose.msra.mxu0 0
      %2581 = vmatprep.subr.bf16.mxu0 0
      %2582 = vmatpush2.bf16.xpose.msra.mxu0 0
      %2583 = vmatprep.subr.bf16.mxu0 0
      %2584 = vmatpush2.bf16.xpose.msra.mxu0 0
      %2585 = vmatprep.mubr.bf16.mxu0 0
      %2586 = vmatmul.mubr.bf16.gmra.mxu0 %v2542
      %v2587 = vpop.f32.mrf.mxu0
      %v2588 = vadd.f32 0.0, %v2587
      %v2589 = vpop.f32.mrf.mxu0
      %v2590 = vpop.f32.mrf.mxu0
      %v2591 = vadd.f32 0.0, %v2590
      %v2592 = vpop.f32.mrf.mxu0
      %2593 = vmatprep.mubr.bf16.mxu0 0
      %2594 = vmatmul.mubr.bf16.gmra.mxu0 %v2545
      %v2595 = vpop.f32.mrf.mxu0
      %v2596 = vadd.f32 0.0, %v2595
      %v2597 = vpop.f32.mrf.mxu0
      %v2598 = vpop.f32.mrf.mxu0
      %v2599 = vpop.f32.mrf.mxu0
      %2600 = vdwg.mxu0
      %v2601 = vmul.f32 %v2588, 0.125
      %v2602 = vmul.f32 %v2591, 0.125
      %v2603 = vmul.f32 %v2596, 0.125
      %v2604 = vsel %vm904, %v2601, -inf
      %2605 = vmax.xlane.f32.xlu0 %v2604
      %v2606 = vpop.xlane.xlu0 %2605
      %v2607 = vsel %vm904, %v2602, -inf
      %2608 = vmax.xlane.f32.xlu0 %v2607
      %v2609 = vpop.xlane.xlu0 %2608
      %v2610 = vsel %vm2100, %v2603, -inf
      %2611 = vmax.xlane.f32.xlu0 %v2610
      %v2612 = vpop.xlane.xlu0 %2611
      %v2613 = vsub.f32 %v2601, %v2606
      %v2614 = vsub.f32 %v2602, %v2609
      %v2615 = vsub.f32 %v2603, %v2612
      %v2616 = vmul.f32 %v2613, 1.442695
      %v2617 = vpow.pop %v2616
      %v2618 = vmul.f32 %v2614, 1.442695
      %v2619 = vpow.pop %v2618
      %v2620 = vmul.f32 %v2615, 1.442695
      %v2621 = vpow.pop %v2620
      %v2622 = vsel %vm904, %v2617, 0.0
      %2623 = vadd.xlane.f32.xlu0 %v2622
      %v2624 = vpop.xlane.xlu0 %2623
      %v2625 = vsel %vm904, %v2619, 0.0
      %2626 = vadd.xlane.f32.xlu0 %v2625
      %v2627 = vpop.xlane.xlu0 %2626
      %v2628 = vsel %vm2100, %v2621, 0.0
      %2629 = vadd.xlane.f32.xlu0 %v2628
      %v2630 = vpop.xlane.xlu0 %2629
      %v2631 = vrcp.pop %v2624
      %v2632 = vmul.f32 %v2617, %v2631
      %v2633 = vrcp.pop %v2627
      %v2634 = vmul.f32 %v2619, %v2633
      %v2635 = vrcp.pop %v2630
      %v2636 = vmul.f32 %v2621, %v2635
      %v2637 = vpack.c.bf16 %v2634, %v2632
      %v2638 = vpack.c.bf16 %v2636, %v2636
      %2639 = vrot.lane.b32.xlu0 %v2130, 80
      %v2640 = vpop.permute.xlu0 %2639
      %2641 = vrot.lane.b32.xlu0 %v2131, 80
      %v2642 = vpop.permute.xlu0 %2641
      %v2645 = vsel %vm904, %v2637, 0
      %v2648 = vsel %vm904, %v2638, 0
      %v2651 = vand.u32 %v2642, %v2139
      %2653 = vmatprep.subr.bf16.mxu0 0
      %2654 = vmatpush1.bf16.msra.mxu0 0
      %2655 = vmatprep.subr.bf16.mxu0 0
      %2656 = vmatpush1.bf16.msra.mxu0 0
      %2657 = vmatprep.subr.bf16.mxu0 0
      %2658 = vmatpush1.bf16.msra.mxu0 0
      %2659 = vmatprep.subr.bf16.mxu0 0
      %2660 = vmatpush1.bf16.msra.mxu0 0
      %2661 = vmatprep.subr.bf16.mxu0 0
      %2662 = vmatpush1.bf16.msra.mxu0 0
      %2663 = vmatprep.subr.bf16.mxu0 0
      %2664 = vmatpush1.bf16.msra.mxu0 0
      %2665 = vmatprep.subr.bf16.mxu0 0
      %2666 = vmatpush1.bf16.msra.mxu0 %v2651
      %2667 = vmatprep.subr.bf16.mxu0 0
      %2668 = vmatpush1.bf16.msra.mxu0 %v2640
      %2669 = vmatprep.subr.bf16.mxu0 0
      %2670 = vmatpush2.bf16.msra.mxu0 0
      %2671 = vmatprep.subr.bf16.mxu0 0
      %2672 = vmatpush2.bf16.msra.mxu0 0
      %2673 = vmatprep.subr.bf16.mxu0 0
      %2674 = vmatpush2.bf16.msra.mxu0 0
      %2675 = vmatprep.subr.bf16.mxu0 0
      %2676 = vmatpush2.bf16.msra.mxu0 0
      %2677 = vmatprep.subr.bf16.mxu0 0
      %2678 = vmatpush2.bf16.msra.mxu0 0
      %2679 = vmatprep.subr.bf16.mxu0 0
      %2680 = vmatpush2.bf16.msra.mxu0 0
      %2681 = vmatprep.subr.bf16.mxu0 0
      %2682 = vmatpush2.bf16.msra.mxu0 0
      %2683 = vmatprep.subr.bf16.mxu0 0
      %2684 = vmatpush2.bf16.msra.mxu0 0
      %2685 = vmatprep.mubr.bf16.mxu0 0
      %2686 = vmatmul.mubr.bf16.gmra.mxu0 %v2645
      %v2687 = vpop.f32.mrf.mxu0
      %v2688 = vadd.f32 0.0, %v2687
      %v2689 = vpop.f32.mrf.mxu0
      %v2690 = vpop.f32.mrf.mxu0
      %v2691 = vadd.f32 0.0, %v2690
      %v2692 = vpop.f32.mrf.mxu0
      %2693 = vmatprep.mubr.bf16.mxu0 0
      %2694 = vmatmul.mubr.bf16.gmra.mxu0 %v2648
      %v2695 = vpop.f32.mrf.mxu0
      %v2696 = vadd.f32 0.0, %v2695
      %v2697 = vpop.f32.mrf.mxu0
      %v2698 = vpop.f32.mrf.mxu0
      %v2699 = vpop.f32.mrf.mxu0
      %2700 = vdwg.mxu0
      %2704 = vrot.lane.b32.xlu0 %v2352, 16
      %v2705 = vpop.permute.xlu0 %2704
      %2706 = vrot.lane.b32.xlu0 %v2355, 16
      %v2707 = vpop.permute.xlu0 %2706
      %2708 = vrot.lane.b32.xlu0 %v2360, 16
      %v2709 = vpop.permute.xlu0 %2708
      %2716 = vrot.lane.b32.xlu0 %v2520, 32
      %v2717 = vpop.permute.xlu0 %2716
      %2718 = vrot.lane.b32.xlu0 %v2523, 32
      %v2719 = vpop.permute.xlu0 %2718
      %2720 = vrot.lane.b32.xlu0 %v2528, 32
      %v2721 = vpop.permute.xlu0 %2720
      %2728 = vrot.lane.b32.xlu0 %v2688, 48
      %v2729 = vpop.permute.xlu0 %2728
      %2730 = vrot.lane.b32.xlu0 %v2691, 48
      %v2731 = vpop.permute.xlu0 %2730
      %2732 = vrot.lane.b32.xlu0 %v2696, 48
      %v2733 = vpop.permute.xlu0 %2732
      %v2737 = vsel %vm2030, %v2178, %v2705
      %v2738 = vsel %vm2030, %v2181, %v2707
      %v2739 = vsel %vm2030, %v2186, %v2709
      %vm2740 = vcmask 261120
      %v2741 = vsel %vm2740, %v2737, %v2717
      %v2742 = vsel %vm2740, %v2738, %v2719
      %v2743 = vsel %vm2740, %v2739, %v2721
      %v2744 = vsel %vm719, %v2741, %v2729
      %v2745 = vsel %vm719, %v2742, %v2731
      %v2746 = vsel %vm719, %v2743, %v2733
      %v2747 = vld [vmem:[%s14] sm:$0xf]
      %v2748 = vld [vmem:[%s14 + $0x4] sm:$0xf]
      %v2749 = vld [vmem:[%s14 + $0x8] sm:$0xf]
      %v2750 = vld [vmem:[%s14 + $0xc] sm:$0xf]
      %v2751 = vld [vmem:[%s14 + $0x10] sm:$0xf]
      %v2752 = vld [vmem:[%s14 + $0x14] sm:$0xf]
      %v2753 = vld [vmem:[%s14 + $0x18] sm:$0xf]
      %v2754 = vld [vmem:[%s14 + $0x1c] sm:$0xf]
      %v2755 = vpack.c.bf16 %v2745, %v2744
      %v2756 = vpack.c.bf16 %v2746, %v2746
      %v2765 = vunpack.c.l.b16 %v2747
      %v2766 = vunpack.c.l.b16 %v2748
      %v2767 = vunpack.c.l.b16 %v2749
      %v2768 = vunpack.c.l.b16 %v2750
      %v2769 = vunpack.c.l.b16 %v2751
      %v2770 = vunpack.c.l.b16 %v2752
      %v2771 = vunpack.c.l.b16 %v2753
      %v2772 = vunpack.c.l.b16 %v2754
      %v2773 = vpack.c.b16 %v2766, %v2765
      %v2774 = vpack.c.b16 %v2768, %v2767
      %v2775 = vpack.c.b16 %v2770, %v2769
      %v2776 = vpack.c.b16 %v2772, %v2771
      %v2782 = vsel %vm766, %v2755, 0
      %v2785 = vsel %vm766, %v2756, 0
      %2787 = vmatprep.subr.bf16.mxu0 0
      %2788 = vmatpush1.bf16.msra.mxu0 0
      %2789 = vmatprep.subr.bf16.mxu0 0
      %2790 = vmatpush1.bf16.msra.mxu0 0
      %2791 = vmatprep.subr.bf16.mxu0 0
      %2792 = vmatpush1.bf16.msra.mxu0 0
      %2793 = vmatprep.subr.bf16.mxu0 0
      %2794 = vmatpush1.bf16.msra.mxu0 0
      %2795 = vmatprep.subr.bf16.mxu0 0
      %2796 = vmatpush1.bf16.msra.mxu0 %v2776
      %2797 = vmatprep.subr.bf16.mxu0 0
      %2798 = vmatpush1.bf16.msra.mxu0 %v2775
      %2799 = vmatprep.subr.bf16.mxu0 0
      %2800 = vmatpush1.bf16.msra.mxu0 %v2774
      %2801 = vmatprep.subr.bf16.mxu0 0
      %2802 = vmatpush1.bf16.msra.mxu0 %v2773
      %2803 = vmatprep.subr.bf16.mxu0 0
      %2804 = vmatpush2.bf16.msra.mxu0 0
      %2805 = vmatprep.subr.bf16.mxu0 0
      %2806 = vmatpush2.bf16.msra.mxu0 0
      %2807 = vmatprep.subr.bf16.mxu0 0
      %2808 = vmatpush2.bf16.msra.mxu0 0
      %2809 = vmatprep.subr.bf16.mxu0 0
      %2810 = vmatpush2.bf16.msra.mxu0 0
      %2811 = vmatprep.subr.bf16.mxu0 0
      %2812 = vmatpush2.bf16.msra.mxu0 0
      %2813 = vmatprep.subr.bf16.mxu0 0
      %2814 = vmatpush2.bf16.msra.mxu0 0
      %2815 = vmatprep.subr.bf16.mxu0 0
      %2816 = vmatpush2.bf16.msra.mxu0 0
      %2817 = vmatprep.subr.bf16.mxu0 0
      %2818 = vmatpush2.bf16.msra.mxu0 0
      %2819 = vmatprep.mubr.bf16.mxu0 0
      %2820 = vmatmul.mubr.bf16.gmra.mxu0 %v2782
      %v2821 = vpop.f32.mrf.mxu0
      %v2822 = vadd.f32 0.0, %v2821
      %v2823 = vpop.f32.mrf.mxu0
      %v2824 = vpop.f32.mrf.mxu0
      %v2825 = vadd.f32 0.0, %v2824
      %v2826 = vpop.f32.mrf.mxu0
      %2827 = vmatprep.mubr.bf16.mxu0 0
      %2828 = vmatmul.mubr.bf16.gmra.mxu0 %v2785
      %v2829 = vpop.f32.mrf.mxu0
      %v2830 = vadd.f32 0.0, %v2829
      %v2831 = vpop.f32.mrf.mxu0
      %v2832 = vpop.f32.mrf.mxu0
      %v2833 = vpop.f32.mrf.mxu0
      %2834 = vdwg.mxu0
      %v2835 = vadd.f32 %v815, %v2822
      %v2836 = vadd.f32 %v816, %v2825
      %v2837 = vadd.f32 %v817, %v2830
      %v2838 = vld [vmem:[%s15] sm:$0x1]
      %v2840 = vlaneseq
      %v2841 = vshrl.u32 %v2840, 7
      %v2842 = vsub.s32 0, %v2841
      %v2843 = vrot.slane %v2838, %v2842
      %v2845 = vadd.f32 %v2835, %v2843
      %v2846 = vadd.f32 %v2836, %v2843
      %v2847 = vadd.f32 %v2837, %v2843
      %v2848 = vld [vmem:[%s16] sm:$0x1]
      %v2849 = vld [vmem:[%s17] sm:$0x1]
      %v2850 = vsel %vm766, %v2845, 0.0
      %2851 = vadd.xlane.f32.xlu0 %v2850
      %v2852 = vpop.xlane.xlu0 %2851
      %v2853 = vsel %vm766, %v2846, 0.0
      %2854 = vadd.xlane.f32.xlu0 %v2853
      %v2855 = vpop.xlane.xlu0 %2854
      %v2856 = vsel %vm811, %v2847, 0.0
      %2857 = vadd.xlane.f32.xlu0 %v2856
      %v2858 = vpop.xlane.xlu0 %2857
      %v2859 = vmul.f32 %v2852, %v773
      %v2860 = vmul.f32 %v2855, %v773
      %v2861 = vmul.f32 %v2858, %v773
      %v2862 = vsub.f32 %v2845, %v2859
      %v2863 = vsub.f32 %v2846, %v2860
      %v2864 = vsub.f32 %v2847, %v2861
      %v2865 = vmul.f32 %v2862, %v2862
      %v2866 = vmul.f32 %v2863, %v2863
      %v2867 = vmul.f32 %v2864, %v2864
      %v2868 = vsel %vm766, %v2865, 0.0
      %2869 = vadd.xlane.f32.xlu0 %v2868
      %v2870 = vpop.xlane.xlu0 %2869
      %v2871 = vsel %vm766, %v2866, 0.0
      %2872 = vadd.xlane.f32.xlu0 %v2871
      %v2873 = vpop.xlane.xlu0 %2872
      %v2874 = vsel %vm811, %v2867, 0.0
      %2875 = vadd.xlane.f32.xlu0 %v2874
      %v2876 = vpop.xlane.xlu0 %2875
      %v2877 = vmul.f32 %v2870, %v773
      %v2878 = vmul.f32 %v2873, %v773
      %v2879 = vmul.f32 %v2876, %v773
      %v2880 = vadd.f32 %v2877, 1e-05
      %v2881 = vadd.f32 %v2878, 1e-05
      %v2882 = vadd.f32 %v2879, 1e-05
      %v2883 = vrsqrt.pop %v2880
      %v2884 = vrsqrt.pop %v2881
      %v2885 = vrsqrt.pop %v2882
      %v2886 = vmul.f32 %v2862, %v2883
      %v2887 = vmul.f32 %v2863, %v2884
      %v2888 = vmul.f32 %v2864, %v2885
      %v2890 = vlaneseq
      %v2891 = vshrl.u32 %v2890, 7
      %v2892 = vsub.s32 0, %v2891
      %v2893 = vrot.slane %v2848, %v2892
      %v2895 = vmul.f32 %v2886, %v2893
      %v2896 = vmul.f32 %v2887, %v2893
      %v2897 = vmul.f32 %v2888, %v2893
      %v2899 = vlaneseq
      %v2900 = vshrl.u32 %v2899, 7
      %v2901 = vsub.s32 0, %v2900
      %v2902 = vrot.slane %v2849, %v2901
      %v2904 = vadd.f32 %v2895, %v2902
      %v2905 = vadd.f32 %v2896, %v2902
      %v2906 = vadd.f32 %v2897, %v2902
      %v2907 = vld [vmem:[%s18] sm:$0xff]
      %v2908 = vld [vmem:[%s18 + $0x8] sm:$0xff]
      %v2909 = vld [vmem:[%s18 + $0x10] sm:$0xff]
      %v2910 = vld [vmem:[%s18 + $0x18] sm:$0xff]
      %v2911 = vld [vmem:[%s18 + $0x20] sm:$0xff]
      %v2912 = vld [vmem:[%s18 + $0x28] sm:$0xff]
      %v2913 = vld [vmem:[%s18 + $0x30] sm:$0xff]
      %v2914 = vld [vmem:[%s18 + $0x38] sm:$0xff]
      %v2915 = vpack.c.bf16 %v2905, %v2904
      %v2916 = vpack.c.bf16 %v2906, %v2906
      %v2917 = vld [vmem:[%s19] sm:$0x3]
      %v2919 = vlaneseq
      %v2920 = vshrl.u32 %v2919, 7
      %v2921 = vsub.s32 0, %v2920
      %v2922 = vrot.slane %v2917, %v2921
      %v2923 = vlaneseq
      %v2924 = vshrl.u32 %v2923, 7
      %v2925 = vsub.s32 1, %v2924
      %v2926 = vrot.slane %v2917, %v2925
      %v2937 = vunpack.c.l.b16 %v2907
      %v2938 = vunpack.c.h.b16 %v2907
      %v2939 = vunpack.c.l.b16 %v2908
      %v2940 = vunpack.c.h.b16 %v2908
      %v2941 = vunpack.c.l.b16 %v2909
      %v2942 = vunpack.c.h.b16 %v2909
      %v2943 = vunpack.c.l.b16 %v2910
      %v2944 = vunpack.c.h.b16 %v2910
      %v2945 = vunpack.c.l.b16 %v2911
      %v2946 = vunpack.c.h.b16 %v2911
      %v2947 = vunpack.c.l.b16 %v2912
      %v2948 = vunpack.c.h.b16 %v2912
      %v2949 = vunpack.c.l.b16 %v2913
      %v2950 = vunpack.c.h.b16 %v2913
      %v2951 = vunpack.c.l.b16 %v2914
      %v2952 = vunpack.c.h.b16 %v2914
      %v2953 = vpack.c.b16 %v2939, %v2937
      %v2954 = vpack.c.b16 %v2940, %v2938
      %v2955 = vpack.c.b16 %v2943, %v2941
      %v2956 = vpack.c.b16 %v2944, %v2942
      %v2957 = vpack.c.b16 %v2947, %v2945
      %v2958 = vpack.c.b16 %v2948, %v2946
      %v2959 = vpack.c.b16 %v2951, %v2949
      %v2960 = vpack.c.b16 %v2952, %v2950
      %v2970 = vsel %vm766, %v2915, 0
      %v2973 = vsel %vm766, %v2916, 0
      %2975 = vmatprep.subr.bf16.mxu0 0
      %2976 = vmatpush1.bf16.msra.mxu0 0
      %2977 = vmatprep.subr.bf16.mxu0 0
      %2978 = vmatpush1.bf16.msra.mxu0 0
      %2979 = vmatprep.subr.bf16.mxu0 0
      %2980 = vmatpush1.bf16.msra.mxu0 0
      %2981 = vmatprep.subr.bf16.mxu0 0
      %2982 = vmatpush1.bf16.msra.mxu0 0
      %2983 = vmatprep.subr.bf16.mxu0 %v2960
      %2984 = vmatpush1.bf16.msra.mxu0 %v2959
      %2985 = vmatprep.subr.bf16.mxu0 %v2958
      %2986 = vmatpush1.bf16.msra.mxu0 %v2957
      %2987 = vmatprep.subr.bf16.mxu0 %v2956
      %2988 = vmatpush1.bf16.msra.mxu0 %v2955
      %2989 = vmatprep.subr.bf16.mxu0 %v2954
      %2990 = vmatpush1.bf16.msra.mxu0 %v2953
      %2991 = vmatprep.subr.bf16.mxu0 0
      %2992 = vmatpush2.bf16.msra.mxu0 0
      %2993 = vmatprep.subr.bf16.mxu0 0
      %2994 = vmatpush2.bf16.msra.mxu0 0
      %2995 = vmatprep.subr.bf16.mxu0 0
      %2996 = vmatpush2.bf16.msra.mxu0 0
      %2997 = vmatprep.subr.bf16.mxu0 0
      %2998 = vmatpush2.bf16.msra.mxu0 0
      %2999 = vmatprep.subr.bf16.mxu0 0
      %3000 = vmatpush2.bf16.msra.mxu0 0
      %3001 = vmatprep.subr.bf16.mxu0 0
      %3002 = vmatpush2.bf16.msra.mxu0 0
      %3003 = vmatprep.subr.bf16.mxu0 0
      %3004 = vmatpush2.bf16.msra.mxu0 0
      %3005 = vmatprep.subr.bf16.mxu0 0
      %3006 = vmatpush2.bf16.msra.mxu0 0
      %3007 = vmatprep.mubr.bf16.mxu0 0
      %3008 = vmatmul.mubr.bf16.gmra.mxu0 %v2970
      %v3009 = vpop.f32.mrf.mxu0
      %v3010 = vadd.f32 %v2922, %v3009
      %v3011 = vpop.f32.mrf.mxu0
      %v3012 = vadd.f32 %v2926, %v3011
      %v3013 = vpop.f32.mrf.mxu0
      %v3014 = vadd.f32 %v2922, %v3013
      %v3015 = vpop.f32.mrf.mxu0
      %v3016 = vadd.f32 %v2926, %v3015
      %3017 = vmatprep.mubr.bf16.mxu0 0
      %3018 = vmatmul.mubr.bf16.gmra.mxu0 %v2973
      %v3019 = vpop.f32.mrf.mxu0
      %v3020 = vadd.f32 %v2922, %v3019
      %v3021 = vpop.f32.mrf.mxu0
      %v3022 = vadd.f32 %v2926, %v3021
      %v3023 = vpop.f32.mrf.mxu0
      %v3024 = vpop.f32.mrf.mxu0
      %3025 = vdwg.mxu0
      %v3026 = vmul.f32 %v3010, 0.5
      %v3027 = vmul.f32 %v3012, 0.5
      %v3028 = vmul.f32 %v3014, 0.5
      %v3029 = vmul.f32 %v3016, 0.5
      %v3030 = vmul.f32 %v3020, 0.5
      %v3031 = vmul.f32 %v3022, 0.5
      %v3032 = vmul.f32 %v3010, 0.70710677
      %v3033 = vmul.f32 %v3012, 0.70710677
      %v3034 = vmul.f32 %v3014, 0.70710677
      %v3035 = vmul.f32 %v3016, 0.70710677
      %v3036 = vmul.f32 %v3020, 0.70710677
      %v3037 = vmul.f32 %v3022, 0.70710677
      %v3038 = verf.f32.pop %v3032
      %v3039 = verf.f32.pop %v3033
      %v3040 = verf.f32.pop %v3034
      %v3041 = verf.f32.pop %v3035
      %v3042 = verf.f32.pop %v3036
      %v3043 = verf.f32.pop %v3037
      %v3044 = vadd.f32 %v3038, 1.0
      %v3045 = vadd.f32 %v3039, 1.0
      %v3046 = vadd.f32 %v3040, 1.0
      %v3047 = vadd.f32 %v3041, 1.0
      %v3048 = vadd.f32 %v3042, 1.0
      %v3049 = vadd.f32 %v3043, 1.0
      %v3050 = vmul.f32 %v3026, %v3044
      %v3051 = vmul.f32 %v3027, %v3045
      %v3052 = vmul.f32 %v3028, %v3046
      %v3053 = vmul.f32 %v3029, %v3047
      %v3054 = vmul.f32 %v3030, %v3048
      %v3055 = vmul.f32 %v3031, %v3049
      %v3056 = vld [vmem:[%s20] sm:$0xf]
      %v3057 = vld [vmem:[%s20 + $0x4] sm:$0xf]
      %v3058 = vld [vmem:[%s20 + $0x8] sm:$0xf]
      %v3059 = vld [vmem:[%s20 + $0xc] sm:$0xf]
      %v3060 = vld [vmem:[%s20 + $0x10] sm:$0xf]
      %v3061 = vld [vmem:[%s20 + $0x14] sm:$0xf]
      %v3062 = vld [vmem:[%s20 + $0x18] sm:$0xf]
      %v3063 = vld [vmem:[%s20 + $0x1c] sm:$0xf]
      %v3064 = vld [vmem:[%s20 + $0x20] sm:$0xf]
      %v3065 = vld [vmem:[%s20 + $0x24] sm:$0xf]
      %v3066 = vld [vmem:[%s20 + $0x28] sm:$0xf]
      %v3067 = vld [vmem:[%s20 + $0x2c] sm:$0xf]
      %v3068 = vld [vmem:[%s20 + $0x30] sm:$0xf]
      %v3069 = vld [vmem:[%s20 + $0x34] sm:$0xf]
      %v3070 = vld [vmem:[%s20 + $0x38] sm:$0xf]
      %v3071 = vld [vmem:[%s20 + $0x3c] sm:$0xf]
      %v3072 = vld [vmem:[%s20 + $0x40] sm:$0xf]
      %v3073 = vld [vmem:[%s20 + $0x44] sm:$0xf]
      %v3074 = vld [vmem:[%s20 + $0x48] sm:$0xf]
      %v3075 = vld [vmem:[%s20 + $0x4c] sm:$0xf]
      %v3076 = vld [vmem:[%s20 + $0x50] sm:$0xf]
      %v3077 = vld [vmem:[%s20 + $0x54] sm:$0xf]
      %v3078 = vld [vmem:[%s20 + $0x58] sm:$0xf]
      %v3079 = vld [vmem:[%s20 + $0x5c] sm:$0xf]
      %v3080 = vld [vmem:[%s20 + $0x60] sm:$0xf]
      %v3081 = vld [vmem:[%s20 + $0x64] sm:$0xf]
      %v3082 = vld [vmem:[%s20 + $0x68] sm:$0xf]
      %v3083 = vld [vmem:[%s20 + $0x6c] sm:$0xf]
      %v3084 = vld [vmem:[%s20 + $0x70] sm:$0xf]
      %v3085 = vld [vmem:[%s20 + $0x74] sm:$0xf]
      %v3086 = vld [vmem:[%s20 + $0x78] sm:$0xf]
      %v3087 = vld [vmem:[%s20 + $0x7c] sm:$0xf]
      %v3088 = vpack.c.bf16 %v3052, %v3050
      %v3089 = vpack.c.bf16 %v3053, %v3051
      %v3090 = vpack.c.bf16 %v3054, %v3054
      %v3091 = vpack.c.bf16 %v3055, %v3055
      %v3124 = vunpack.c.l.b16 %v3056
      %v3125 = vunpack.c.l.b16 %v3057
      %v3126 = vunpack.c.l.b16 %v3058
      %v3127 = vunpack.c.l.b16 %v3059
      %v3128 = vunpack.c.l.b16 %v3060
      %v3129 = vunpack.c.l.b16 %v3061
      %v3130 = vunpack.c.l.b16 %v3062
      %v3131 = vunpack.c.l.b16 %v3063
      %v3132 = vunpack.c.l.b16 %v3064
      %v3133 = vunpack.c.l.b16 %v3065
      %v3134 = vunpack.c.l.b16 %v3066
      %v3135 = vunpack.c.l.b16 %v3067
      %v3136 = vunpack.c.l.b16 %v3068
      %v3137 = vunpack.c.l.b16 %v3069
      %v3138 = vunpack.c.l.b16 %v3070
      %v3139 = vunpack.c.l.b16 %v3071
      %v3140 = vunpack.c.l.b16 %v3072
      %v3141 = vunpack.c.l.b16 %v3073
      %v3142 = vunpack.c.l.b16 %v3074
      %v3143 = vunpack.c.l.b16 %v3075
      %v3144 = vunpack.c.l.b16 %v3076
      %v3145 = vunpack.c.l.b16 %v3077
      %v3146 = vunpack.c.l.b16 %v3078
      %v3147 = vunpack.c.l.b16 %v3079
      %v3148 = vunpack.c.l.b16 %v3080
      %v3149 = vunpack.c.l.b16 %v3081
      %v3150 = vunpack.c.l.b16 %v3082
      %v3151 = vunpack.c.l.b16 %v3083
      %v3152 = vunpack.c.l.b16 %v3084
      %v3153 = vunpack.c.l.b16 %v3085
      %v3154 = vunpack.c.l.b16 %v3086
      %v3155 = vunpack.c.l.b16 %v3087
      %v3156 = vpack.c.b16 %v3125, %v3124
      %v3157 = vpack.c.b16 %v3127, %v3126
      %v3158 = vpack.c.b16 %v3129, %v3128
      %v3159 = vpack.c.b16 %v3131, %v3130
      %v3160 = vpack.c.b16 %v3133, %v3132
      %v3161 = vpack.c.b16 %v3135, %v3134
      %v3162 = vpack.c.b16 %v3137, %v3136
      %v3163 = vpack.c.b16 %v3139, %v3138
      %v3164 = vpack.c.b16 %v3141, %v3140
      %v3165 = vpack.c.b16 %v3143, %v3142
      %v3166 = vpack.c.b16 %v3145, %v3144
      %v3167 = vpack.c.b16 %v3147, %v3146
      %v3168 = vpack.c.b16 %v3149, %v3148
      %v3169 = vpack.c.b16 %v3151, %v3150
      %v3170 = vpack.c.b16 %v3153, %v3152
      %v3171 = vpack.c.b16 %v3155, %v3154
      %3188 = vmatprep.subr.bf16.mxu0 0
      %3189 = vmatpush1.bf16.msra.mxu0 %v3163
      %3190 = vmatprep.subr.bf16.mxu0 0
      %3191 = vmatpush1.bf16.msra.mxu0 %v3162
      %3192 = vmatprep.subr.bf16.mxu0 0
      %3193 = vmatpush1.bf16.msra.mxu0 %v3161
      %3194 = vmatprep.subr.bf16.mxu0 0
      %3195 = vmatpush1.bf16.msra.mxu0 %v3160
      %3196 = vmatprep.subr.bf16.mxu0 0
      %3197 = vmatpush1.bf16.msra.mxu0 %v3159
      %3198 = vmatprep.subr.bf16.mxu0 0
      %3199 = vmatpush1.bf16.msra.mxu0 %v3158
      %3200 = vmatprep.subr.bf16.mxu0 0
      %3201 = vmatpush1.bf16.msra.mxu0 %v3157
      %3202 = vmatprep.subr.bf16.mxu0 0
      %3203 = vmatpush1.bf16.msra.mxu0 %v3156
      %3204 = vmatprep.subr.bf16.mxu0 0
      %3205 = vmatpush2.bf16.msra.mxu0 %v3171
      %3206 = vmatprep.subr.bf16.mxu0 0
      %3207 = vmatpush2.bf16.msra.mxu0 %v3170
      %3208 = vmatprep.subr.bf16.mxu0 0
      %3209 = vmatpush2.bf16.msra.mxu0 %v3169
      %3210 = vmatprep.subr.bf16.mxu0 0
      %3211 = vmatpush2.bf16.msra.mxu0 %v3168
      %3212 = vmatprep.subr.bf16.mxu0 0
      %3213 = vmatpush2.bf16.msra.mxu0 %v3167
      %3214 = vmatprep.subr.bf16.mxu0 0
      %3215 = vmatpush2.bf16.msra.mxu0 %v3166
      %3216 = vmatprep.subr.bf16.mxu0 0
      %3217 = vmatpush2.bf16.msra.mxu0 %v3165
      %3218 = vmatprep.subr.bf16.mxu0 0
      %3219 = vmatpush2.bf16.msra.mxu0 %v3164
      %3220 = vmatprep.mubr.bf16.mxu0 %v3089
      %3221 = vmatmul.mubr.bf16.gmra.mxu0 %v3088
      %v3222 = vpop.f32.mrf.mxu0
      %v3223 = vadd.f32 0.0, %v3222
      %v3224 = vpop.f32.mrf.mxu0
      %v3225 = vpop.f32.mrf.mxu0
      %v3226 = vadd.f32 0.0, %v3225
      %v3227 = vpop.f32.mrf.mxu0
      %3228 = vmatprep.mubr.bf16.mxu0 %v3091
      %3229 = vmatmul.mubr.bf16.gmra.mxu0 %v3090
      %v3230 = vpop.f32.mrf.mxu0
      %v3231 = vadd.f32 0.0, %v3230
      %v3232 = vpop.f32.mrf.mxu0
      %v3233 = vpop.f32.mrf.mxu0
      %v3234 = vpop.f32.mrf.mxu0
      %3235 = vdwg.mxu0
      %v3236 = vadd.f32 %v2845, %v3223
      %v3237 = vadd.f32 %v2846, %v3226
      %v3238 = vadd.f32 %v2847, %v3231
      %v3239 = vld [vmem:[%s21] sm:$0x1]
      %v3241 = vlaneseq
      %v3242 = vshrl.u32 %v3241, 7
      %v3243 = vsub.s32 0, %v3242
      %v3244 = vrot.slane %v3239, %v3243
      %v3246 = vadd.f32 %v3236, %v3244
      %v3247 = vadd.f32 %v3237, %v3244
      %v3248 = vadd.f32 %v3238, %v3244
      %s3249 = scalar_lea.vmem %s7, 1
      %v3250 = vld [vmem:[%s3249] sm:$0x1]
      %s3251 = scalar_lea.vmem %s8, 1
      %v3252 = vld [vmem:[%s3251] sm:$0x1]
      %v3253 = vsel %vm766, %v3246, 0.0
      %3254 = vadd.xlane.f32.xlu0 %v3253
      %v3255 = vpop.xlane.xlu0 %3254
      %v3256 = vsel %vm766, %v3247, 0.0
      %3257 = vadd.xlane.f32.xlu0 %v3256
      %v3258 = vpop.xlane.xlu0 %3257
      %v3259 = vsel %vm811, %v3248, 0.0
      %3260 = vadd.xlane.f32.xlu0 %v3259
      %v3261 = vpop.xlane.xlu0 %3260
      %v3262 = vmul.f32 %v3255, %v773
      %v3263 = vmul.f32 %v3258, %v773
      %v3264 = vmul.f32 %v3261, %v773
      %v3265 = vsub.f32 %v3246, %v3262
      %v3266 = vsub.f32 %v3247, %v3263
      %v3267 = vsub.f32 %v3248, %v3264
      %v3268 = vmul.f32 %v3265, %v3265
      %v3269 = vmul.f32 %v3266, %v3266
      %v3270 = vmul.f32 %v3267, %v3267
      %v3271 = vsel %vm766, %v3268, 0.0
      %3272 = vadd.xlane.f32.xlu0 %v3271
      %v3273 = vpop.xlane.xlu0 %3272
      %v3274 = vsel %vm766, %v3269, 0.0
      %3275 = vadd.xlane.f32.xlu0 %v3274
      %v3276 = vpop.xlane.xlu0 %3275
      %v3277 = vsel %vm811, %v3270, 0.0
      %3278 = vadd.xlane.f32.xlu0 %v3277
      %v3279 = vpop.xlane.xlu0 %3278
      %v3280 = vmul.f32 %v3273, %v773
      %v3281 = vmul.f32 %v3276, %v773
      %v3282 = vmul.f32 %v3279, %v773
      %v3283 = vadd.f32 %v3280, 1e-05
      %v3284 = vadd.f32 %v3281, 1e-05
      %v3285 = vadd.f32 %v3282, 1e-05
      %v3286 = vrsqrt.pop %v3283
      %v3287 = vrsqrt.pop %v3284
      %v3288 = vrsqrt.pop %v3285
      %v3289 = vmul.f32 %v3265, %v3286
      %v3290 = vmul.f32 %v3266, %v3287
      %v3291 = vmul.f32 %v3267, %v3288
      %v3293 = vlaneseq
      %v3294 = vshrl.u32 %v3293, 7
      %v3295 = vsub.s32 0, %v3294
      %v3296 = vrot.slane %v3250, %v3295
      %v3298 = vmul.f32 %v3289, %v3296
      %v3299 = vmul.f32 %v3290, %v3296
      %v3300 = vmul.f32 %v3291, %v3296
      %v3302 = vlaneseq
      %v3303 = vshrl.u32 %v3302, 7
      %v3304 = vsub.s32 0, %v3303
      %v3305 = vrot.slane %v3252, %v3304
      %v3307 = vadd.f32 %v3298, %v3305
      %v3308 = vadd.f32 %v3299, %v3305
      %v3309 = vadd.f32 %v3300, %v3305
      %v3311 = vsel %vm965, %v3309, 0
      %3313 = vmatprep.subr.mxu0 0.0
      %3314 = vmatpush1.msra.mxu0 0.0
      %3315 = vmatprep.subr.mxu0 0.0
      %3316 = vmatpush1.msra.mxu0 0.0
      %3317 = vmatprep.subr.mxu0 0.0
      %3318 = vmatpush1.msra.mxu0 0.0
      %3319 = vmatprep.subr.mxu0 0.0
      %3320 = vmatpush1.msra.mxu0 0.0
      %3321 = vmatprep.subr.mxu0 0.0
      %3322 = vmatpush1.msra.mxu0 0.0
      %3323 = vmatprep.subr.mxu0 0.0
      %3324 = vmatpush1.msra.mxu0 0.0
      %3325 = vmatprep.subr.mxu0 0.0
      %3326 = vmatpush1.msra.mxu0 0.0
      %3327 = vmatprep.subr.mxu0 0.0
      %3328 = vmatpush1.msra.mxu0 0.0
      %3329 = vmatprep.subr.mxu0 0.0
      %3330 = vmatpush1.msra.mxu0 0.0
      %3331 = vmatprep.subr.mxu0 0.0
      %3332 = vmatpush1.msra.mxu0 0.0
      %3333 = vmatprep.subr.mxu0 0.0
      %3334 = vmatpush1.msra.mxu0 0.0
      %3335 = vmatprep.subr.mxu0 0.0
      %3336 = vmatpush1.msra.mxu0 0.0
      %3337 = vmatprep.subr.mxu0 0.0
      %3338 = vmatpush1.msra.mxu0 0.0
      %3339 = vmatprep.subr.mxu0 0.0
      %3340 = vmatpush1.msra.mxu0 %v3311
      %3341 = vmatprep.subr.mxu0 0.0
      %3342 = vmatpush1.msra.mxu0 %v3308
      %3343 = vmatprep.subr.mxu0 0.0
      %3344 = vmatpush1.msra.mxu0 %v3307
      %3345 = vmatprep.subr.mxu0 0.0
      %3346 = vmatpush2.msra.mxu0 0.0
      %3347 = vmatprep.subr.mxu0 0.0
      %3348 = vmatpush2.msra.mxu0 0.0
      %3349 = vmatprep.subr.mxu0 0.0
      %3350 = vmatpush2.msra.mxu0 0.0
      %3351 = vmatprep.subr.mxu0 0.0
      %3352 = vmatpush2.msra.mxu0 0.0
      %3353 = vmatprep.subr.mxu0 0.0
      %3354 = vmatpush2.msra.mxu0 0.0
      %3355 = vmatprep.subr.mxu0 0.0
      %3356 = vmatpush2.msra.mxu0 0.0
      %3357 = vmatprep.subr.mxu0 0.0
      %3358 = vmatpush2.msra.mxu0 0.0
      %3359 = vmatprep.subr.mxu0 0.0
      %3360 = vmatpush2.msra.mxu0 0.0
      %3361 = vmatprep.subr.mxu0 0.0
      %3362 = vmatpush2.msra.mxu0 0.0
      %3363 = vmatprep.subr.mxu0 0.0
      %3364 = vmatpush2.msra.mxu0 0.0
      %3365 = vmatprep.subr.mxu0 0.0
      %3366 = vmatpush2.msra.mxu0 0.0
      %3367 = vmatprep.subr.mxu0 0.0
      %3368 = vmatpush2.msra.mxu0 0.0
      %3369 = vmatprep.subr.mxu0 0.0
      %3370 = vmatpush2.msra.mxu0 0.0
      %3371 = vmatprep.subr.mxu0 0.0
      %3372 = vmatpush2.msra.mxu0 0.0
      %3373 = vmatprep.subr.mxu0 0.0
      %3374 = vmatpush2.msra.mxu0 0.0
      %3375 = vmatprep.subr.mxu0 0.0
      %3376 = vmatpush2.msra.mxu0 0.0
      %3377 = vmatprep.mubr.f32.mxu0 0.0
      %3378 = vmatmul.mubr.f32.gmra.mxu0 %v906
      %v3379 = vpop.f32.mrf.mxu0
      %v3380 = vadd.f32 0.0, %v3379
      %v3381 = vpop.f32.mrf.mxu0
      %3382 = vmatprep.mubr.f32.mxu0 0.0
      %3383 = vmatmul.mubr.f32.gmra.mxu0 %v909
      %v3384 = vpop.f32.mrf.mxu0
      %v3385 = vadd.f32 0.0, %v3384
      %v3386 = vpop.f32.mrf.mxu0
      %3387 = vmatprep.mubr.f32.mxu0 0.0
      %3388 = vmatmul.mubr.f32.gmra.mxu0 %v912
      %v3389 = vpop.f32.mrf.mxu0
      %v3390 = vadd.f32 0.0, %v3389
      %v3391 = vpop.f32.mrf.mxu0
      %3392 = vmatprep.mubr.f32.mxu0 0.0
      %3393 = vmatmul.mubr.f32.gmra.mxu0 %v915
      %v3394 = vpop.f32.mrf.mxu0
      %v3395 = vadd.f32 0.0, %v3394
      %v3396 = vpop.f32.mrf.mxu0
      %3397 = vmatprep.mubr.f32.mxu0 0.0
      %3398 = vmatmul.mubr.f32.gmra.mxu0 %v918
      %v3399 = vpop.f32.mrf.mxu0
      %v3400 = vadd.f32 0.0, %v3399
      %v3401 = vpop.f32.mrf.mxu0
      %3402 = vmatprep.mubr.f32.mxu0 0.0
      %3403 = vmatmul.mubr.f32.gmra.mxu0 %v921
      %v3404 = vpop.f32.mrf.mxu0
      %v3405 = vadd.f32 0.0, %v3404
      %v3406 = vpop.f32.mrf.mxu0
      %3407 = vmatprep.mubr.f32.mxu0 0.0
      %3408 = vmatmul.mubr.f32.gmra.mxu0 %v924
      %v3409 = vpop.f32.mrf.mxu0
      %v3410 = vadd.f32 0.0, %v3409
      %v3411 = vpop.f32.mrf.mxu0
      %3412 = vmatprep.mubr.f32.mxu0 0.0
      %3413 = vmatmul.mubr.f32.gmra.mxu0 %v927
      %v3414 = vpop.f32.mrf.mxu0
      %v3415 = vadd.f32 0.0, %v3414
      %v3416 = vpop.f32.mrf.mxu0
      %3417 = vmatprep.mubr.f32.mxu0 0.0
      %3418 = vmatmul.mubr.f32.gmra.mxu0 %v930
      %v3419 = vpop.f32.mrf.mxu0
      %v3420 = vadd.f32 0.0, %v3419
      %v3421 = vpop.f32.mrf.mxu0
      %3422 = vmatprep.mubr.f32.mxu0 0.0
      %3423 = vmatmul.mubr.f32.gmra.mxu0 %v933
      %v3424 = vpop.f32.mrf.mxu0
      %v3425 = vadd.f32 0.0, %v3424
      %v3426 = vpop.f32.mrf.mxu0
      %3427 = vmatprep.mubr.f32.mxu0 0.0
      %3428 = vmatmul.mubr.f32.gmra.mxu0 %v936
      %v3429 = vpop.f32.mrf.mxu0
      %v3430 = vadd.f32 0.0, %v3429
      %v3431 = vpop.f32.mrf.mxu0
      %3432 = vmatprep.mubr.f32.mxu0 0.0
      %3433 = vmatmul.mubr.f32.gmra.mxu0 %v939
      %v3434 = vpop.f32.mrf.mxu0
      %v3435 = vadd.f32 0.0, %v3434
      %v3436 = vpop.f32.mrf.mxu0
      %3437 = vmatprep.mubr.f32.mxu0 0.0
      %3438 = vmatmul.mubr.f32.gmra.mxu0 %v942
      %v3439 = vpop.f32.mrf.mxu0
      %v3440 = vadd.f32 0.0, %v3439
      %v3441 = vpop.f32.mrf.mxu0
      %3442 = vmatprep.mubr.f32.mxu0 0.0
      %3443 = vmatmul.mubr.f32.gmra.mxu0 %v945
      %v3444 = vpop.f32.mrf.mxu0
      %v3445 = vadd.f32 0.0, %v3444
      %v3446 = vpop.f32.mrf.mxu0
      %3447 = vmatprep.mubr.f32.mxu0 0.0
      %3448 = vmatmul.mubr.f32.gmra.mxu0 %v948
      %v3449 = vpop.f32.mrf.mxu0
      %v3450 = vadd.f32 0.0, %v3449
      %v3451 = vpop.f32.mrf.mxu0
      %3452 = vmatprep.mubr.f32.mxu0 0.0
      %3453 = vmatmul.mubr.f32.gmra.mxu0 %v951
      %v3454 = vpop.f32.mrf.mxu0
      %v3455 = vadd.f32 0.0, %v3454
      %v3456 = vpop.f32.mrf.mxu0
      %3457 = vmatprep.mubr.f32.mxu0 0.0
      %3458 = vmatmul.mubr.f32.gmra.mxu0 %v954
      %v3459 = vpop.f32.mrf.mxu0
      %v3460 = vadd.f32 0.0, %v3459
      %v3461 = vpop.f32.mrf.mxu0
      %3462 = vmatprep.mubr.f32.mxu0 0.0
      %3463 = vmatmul.mubr.f32.gmra.mxu0 %v957
      %v3464 = vpop.f32.mrf.mxu0
      %v3465 = vadd.f32 0.0, %v3464
      %v3466 = vpop.f32.mrf.mxu0
      %3467 = vmatprep.mubr.f32.mxu0 0.0
      %3468 = vmatmul.mubr.f32.gmra.mxu0 %v960
      %v3469 = vpop.f32.mrf.mxu0
      %v3470 = vadd.f32 0.0, %v3469
      %v3471 = vpop.f32.mrf.mxu0
      %3472 = vmatprep.mubr.f32.mxu0 0.0
      %3473 = vmatmul.mubr.f32.gmra.mxu0 %v963
      %v3474 = vpop.f32.mrf.mxu0
      %v3475 = vadd.f32 0.0, %v3474
      %v3476 = vpop.f32.mrf.mxu0
      %3477 = vdwg.mxu0
      %s3478 = scalar_lea.vmem %s9, 27
      %v3479 = vld [vmem:[%s3478] sm:$0x1]
      %v3480 = vld [vmem:[%s3478 + $0x1] sm:$0x1]
      %v3481 = vld [vmem:[%s3478 + $0x2] sm:$0x1]
      %v3482 = vld [vmem:[%s3478 + $0x3] sm:$0x1]
      %v3483 = vld [vmem:[%s3478 + $0x4] sm:$0x1]
      %v3484 = vld [vmem:[%s3478 + $0x5] sm:$0x1]
      %v3485 = vld [vmem:[%s3478 + $0x6] sm:$0x1]
      %v3486 = vld [vmem:[%s3478 + $0x7] sm:$0x1]
      %v3487 = vld [vmem:[%s3478 + $0x8] sm:$0x1]
      %s3488 = scalar_lea.vmem %s10, 3
      %v3489 = vld [vmem:[%s3488] sm:$0x1]
      %v3491 = vlaneseq
      %v3492 = vshrl.u32 %v3491, 7
      %v3493 = vsub.s32 0, %v3492
      %v3494 = vrot.slane %v3479, %v3493
      %v3496 = vmul.f32 %v3380, %v3494
      %v3497 = vmul.f32 %v3385, %v3494
      %v3498 = vmul.f32 %v3390, %v3494
      %v3500 = vlaneseq
      %v3501 = vshrl.u32 %v3500, 7
      %v3502 = vsub.s32 0, %v3501
      %v3503 = vrot.slane %v3489, %v3502
      %v3505 = vadd.f32 %v3503, %v3496
      %v3506 = vadd.f32 %v3503, %v3497
      %v3507 = vadd.f32 %v3503, %v3498
      %v3509 = vlaneseq
      %v3510 = vshrl.u32 %v3509, 7
      %v3511 = vsub.s32 0, %v3510
      %v3512 = vrot.slane %v3480, %v3511
      %v3514 = vmul.f32 %v3390, %v3512
      %v3515 = vmul.f32 %v3395, %v3512
      %v3516 = vmul.f32 %v3400, %v3512
      %v3520 = vrot.slane %v3514, 1
      %v3521 = vrot.slane %v3515, 1
      %v3522 = vsel %vm1174, %v3520, %v3521
      %v3523 = vrot.slane %v3516, 1
      %v3524 = vsel %vm1174, %v3521, %v3523
      %v3528 = vadd.f32 %v3505, %v3522
      %v3529 = vadd.f32 %v3506, %v3524
      %v3530 = vadd.f32 %v3507, %v3523
      %v3532 = vlaneseq
      %v3533 = vshrl.u32 %v3532, 7
      %v3534 = vsub.s32 0, %v3533
      %v3535 = vrot.slane %v3481, %v3534
      %v3537 = vmul.f32 %v3400, %v3535
      %v3538 = vmul.f32 %v3405, %v3535
      %v3539 = vmul.f32 %v3410, %v3535
      %v3543 = vrot.slane %v3537, 2
      %v3544 = vrot.slane %v3538, 2
      %v3545 = vsel %vm1198, %v3543, %v3544
      %v3546 = vrot.slane %v3539, 2
      %v3547 = vsel %vm1198, %v3544, %v3546
      %v3551 = vadd.f32 %v3528, %v3545
      %v3552 = vadd.f32 %v3529, %v3547
      %v3553 = vadd.f32 %v3530, %v3546
      %v3555 = vlaneseq
      %v3556 = vshrl.u32 %v3555, 7
      %v3557 = vsub.s32 0, %v3556
      %v3558 = vrot.slane %v3482, %v3557
      %v3560 = vmul.f32 %v3410, %v3558
      %v3561 = vmul.f32 %v3415, %v3558
      %v3562 = vmul.f32 %v3420, %v3558
      %v3566 = vrot.slane %v3560, 3
      %v3567 = vrot.slane %v3561, 3
      %v3568 = vsel %vm1222, %v3566, %v3567
      %v3569 = vrot.slane %v3562, 3
      %v3570 = vsel %vm1222, %v3567, %v3569
      %v3574 = vadd.f32 %v3551, %v3568
      %v3575 = vadd.f32 %v3552, %v3570
      %v3576 = vadd.f32 %v3553, %v3569
      %v3578 = vlaneseq
      %v3579 = vshrl.u32 %v3578, 7
      %v3580 = vsub.s32 0, %v3579
      %v3581 = vrot.slane %v3483, %v3580
      %v3583 = vmul.f32 %v3420, %v3581
      %v3584 = vmul.f32 %v3425, %v3581
      %v3585 = vmul.f32 %v3430, %v3581
      %v3589 = vrot.slane %v3583, 4
      %v3590 = vrot.slane %v3584, 4
      %v3591 = vsel %vm1246, %v3589, %v3590
      %v3592 = vrot.slane %v3585, 4
      %v3593 = vsel %vm1246, %v3590, %v3592
      %v3597 = vadd.f32 %v3574, %v3591
      %v3598 = vadd.f32 %v3575, %v3593
      %v3599 = vadd.f32 %v3576, %v3592
      %v3601 = vlaneseq
      %v3602 = vshrl.u32 %v3601, 7
      %v3603 = vsub.s32 0, %v3602
      %v3604 = vrot.slane %v3484, %v3603
      %v3606 = vmul.f32 %v3430, %v3604
      %v3607 = vmul.f32 %v3435, %v3604
      %v3608 = vmul.f32 %v3440, %v3604
      %v3612 = vrot.slane %v3606, 5
      %v3613 = vrot.slane %v3607, 5
      %v3614 = vsel %vm1270, %v3612, %v3613
      %v3615 = vrot.slane %v3608, 5
      %v3616 = vsel %vm1270, %v3613, %v3615
      %v3620 = vadd.f32 %v3597, %v3614
      %v3621 = vadd.f32 %v3598, %v3616
      %v3622 = vadd.f32 %v3599, %v3615
      %v3624 = vlaneseq
      %v3625 = vshrl.u32 %v3624, 7
      %v3626 = vsub.s32 0, %v3625
      %v3627 = vrot.slane %v3485, %v3626
      %v3629 = vmul.f32 %v3440, %v3627
      %v3630 = vmul.f32 %v3445, %v3627
      %v3631 = vmul.f32 %v3450, %v3627
      %v3635 = vrot.slane %v3629, 6
      %v3636 = vrot.slane %v3630, 6
      %v3637 = vsel %vm1294, %v3635, %v3636
      %v3638 = vrot.slane %v3631, 6
      %v3639 = vsel %vm1294, %v3636, %v3638
      %v3643 = vadd.f32 %v3620, %v3637
      %v3644 = vadd.f32 %v3621, %v3639
      %v3645 = vadd.f32 %v3622, %v3638
      %v3647 = vlaneseq
      %v3648 = vshrl.u32 %v3647, 7
      %v3649 = vsub.s32 0, %v3648
      %v3650 = vrot.slane %v3486, %v3649
      %v3652 = vmul.f32 %v3450, %v3650
      %v3653 = vmul.f32 %v3455, %v3650
      %v3654 = vmul.f32 %v3460, %v3650
      %v3658 = vrot.slane %v3652, 7
      %v3659 = vrot.slane %v3653, 7
      %v3660 = vsel %vm965, %v3658, %v3659
      %v3661 = vrot.slane %v3654, 7
      %v3662 = vsel %vm965, %v3659, %v3661
      %v3666 = vadd.f32 %v3643, %v3660
      %v3667 = vadd.f32 %v3644, %v3662
      %v3668 = vadd.f32 %v3645, %v3661
      %v3670 = vlaneseq
      %v3671 = vshrl.u32 %v3670, 7
      %v3672 = vsub.s32 0, %v3671
      %v3673 = vrot.slane %v3487, %v3672
      %v3675 = vmul.f32 %v3465, %v3673
      %v3676 = vmul.f32 %v3470, %v3673
      %v3677 = vmul.f32 %v3475, %v3673
      %v3678 = vadd.f32 %v3666, %v3675
      %v3679 = vadd.f32 %v3667, %v3676
      %v3680 = vadd.f32 %v3668, %v3677
      %v3681 = vsel %vm1344, %v3307, %v3678
      %v3682 = vsel %vm1345, %v3308, %v3679
      %v3683 = vsel %vm1346, %v3309, %v3680
      %s3684 = scalar_lea.vmem %s9, 36
      %v3685 = vld [vmem:[%s3684] sm:$0x1]
      %v3686 = vld [vmem:[%s3684 + $0x1] sm:$0x1]
      %v3687 = vld [vmem:[%s3684 + $0x2] sm:$0x1]
      %v3688 = vld [vmem:[%s3684 + $0x3] sm:$0x1]
      %v3689 = vld [vmem:[%s3684 + $0x4] sm:$0x1]
      %v3690 = vld [vmem:[%s3684 + $0x5] sm:$0x1]
      %v3691 = vld [vmem:[%s3684 + $0x6] sm:$0x1]
      %v3692 = vld [vmem:[%s3684 + $0x7] sm:$0x1]
      %v3693 = vld [vmem:[%s3684 + $0x8] sm:$0x1]
      %s3694 = scalar_lea.vmem %s10, 4
      %v3695 = vld [vmem:[%s3694] sm:$0x1]
      %v3697 = vlaneseq
      %v3698 = vshrl.u32 %v3697, 7
      %v3699 = vsub.s32 0, %v3698
      %v3700 = vrot.slane %v3685, %v3699
      %v3702 = vmul.f32 %v3380, %v3700
      %v3703 = vmul.f32 %v3385, %v3700
      %v3704 = vmul.f32 %v3390, %v3700
      %v3706 = vlaneseq
      %v3707 = vshrl.u32 %v3706, 7
      %v3708 = vsub.s32 0, %v3707
      %v3709 = vrot.slane %v3695, %v3708
      %v3711 = vadd.f32 %v3709, %v3702
      %v3712 = vadd.f32 %v3709, %v3703
      %v3713 = vadd.f32 %v3709, %v3704
      %v3715 = vlaneseq
      %v3716 = vshrl.u32 %v3715, 7
      %v3717 = vsub.s32 0, %v3716
      %v3718 = vrot.slane %v3686, %v3717
      %v3720 = vmul.f32 %v3390, %v3718
      %v3721 = vmul.f32 %v3395, %v3718
      %v3722 = vmul.f32 %v3400, %v3718
      %v3726 = vrot.slane %v3720, 1
      %v3727 = vrot.slane %v3721, 1
      %v3728 = vsel %vm1174, %v3726, %v3727
      %v3729 = vrot.slane %v3722, 1
      %v3730 = vsel %vm1174, %v3727, %v3729
      %v3734 = vadd.f32 %v3711, %v3728
      %v3735 = vadd.f32 %v3712, %v3730
      %v3736 = vadd.f32 %v3713, %v3729
      %v3738 = vlaneseq
      %v3739 = vshrl.u32 %v3738, 7
      %v3740 = vsub.s32 0, %v3739
      %v3741 = vrot.slane %v3687, %v3740
      %v3743 = vmul.f32 %v3400, %v3741
      %v3744 = vmul.f32 %v3405, %v3741
      %v3745 = vmul.f32 %v3410, %v3741
      %v3749 = vrot.slane %v3743, 2
      %v3750 = vrot.slane %v3744, 2
      %v3751 = vsel %vm1198, %v3749, %v3750
      %v3752 = vrot.slane %v3745, 2
      %v3753 = vsel %vm1198, %v3750, %v3752
      %v3757 = vadd.f32 %v3734, %v3751
      %v3758 = vadd.f32 %v3735, %v3753
      %v3759 = vadd.f32 %v3736, %v3752
      %v3761 = vlaneseq
      %v3762 = vshrl.u32 %v3761, 7
      %v3763 = vsub.s32 0, %v3762
      %v3764 = vrot.slane %v3688, %v3763
      %v3766 = vmul.f32 %v3410, %v3764
      %v3767 = vmul.f32 %v3415, %v3764
      %v3768 = vmul.f32 %v3420, %v3764
      %v3772 = vrot.slane %v3766, 3
      %v3773 = vrot.slane %v3767, 3
      %v3774 = vsel %vm1222, %v3772, %v3773
      %v3775 = vrot.slane %v3768, 3
      %v3776 = vsel %vm1222, %v3773, %v3775
      %v3780 = vadd.f32 %v3757, %v3774
      %v3781 = vadd.f32 %v3758, %v3776
      %v3782 = vadd.f32 %v3759, %v3775
      %v3784 = vlaneseq
      %v3785 = vshrl.u32 %v3784, 7
      %v3786 = vsub.s32 0, %v3785
      %v3787 = vrot.slane %v3689, %v3786
      %v3789 = vmul.f32 %v3420, %v3787
      %v3790 = vmul.f32 %v3425, %v3787
      %v3791 = vmul.f32 %v3430, %v3787
      %v3795 = vrot.slane %v3789, 4
      %v3796 = vrot.slane %v3790, 4
      %v3797 = vsel %vm1246, %v3795, %v3796
      %v3798 = vrot.slane %v3791, 4
      %v3799 = vsel %vm1246, %v3796, %v3798
      %v3803 = vadd.f32 %v3780, %v3797
      %v3804 = vadd.f32 %v3781, %v3799
      %v3805 = vadd.f32 %v3782, %v3798
      %v3807 = vlaneseq
      %v3808 = vshrl.u32 %v3807, 7
      %v3809 = vsub.s32 0, %v3808
      %v3810 = vrot.slane %v3690, %v3809
      %v3812 = vmul.f32 %v3430, %v3810
      %v3813 = vmul.f32 %v3435, %v3810
      %v3814 = vmul.f32 %v3440, %v3810
      %v3818 = vrot.slane %v3812, 5
      %v3819 = vrot.slane %v3813, 5
      %v3820 = vsel %vm1270, %v3818, %v3819
      %v3821 = vrot.slane %v3814, 5
      %v3822 = vsel %vm1270, %v3819, %v3821
      %v3826 = vadd.f32 %v3803, %v3820
      %v3827 = vadd.f32 %v3804, %v3822
      %v3828 = vadd.f32 %v3805, %v3821
      %v3830 = vlaneseq
      %v3831 = vshrl.u32 %v3830, 7
      %v3832 = vsub.s32 0, %v3831
      %v3833 = vrot.slane %v3691, %v3832
      %v3835 = vmul.f32 %v3440, %v3833
      %v3836 = vmul.f32 %v3445, %v3833
      %v3837 = vmul.f32 %v3450, %v3833
      %v3841 = vrot.slane %v3835, 6
      %v3842 = vrot.slane %v3836, 6
      %v3843 = vsel %vm1294, %v3841, %v3842
      %v3844 = vrot.slane %v3837, 6
      %v3845 = vsel %vm1294, %v3842, %v3844
      %v3849 = vadd.f32 %v3826, %v3843
      %v3850 = vadd.f32 %v3827, %v3845
      %v3851 = vadd.f32 %v3828, %v3844
      %v3853 = vlaneseq
      %v3854 = vshrl.u32 %v3853, 7
      %v3855 = vsub.s32 0, %v3854
      %v3856 = vrot.slane %v3692, %v3855
      %v3858 = vmul.f32 %v3450, %v3856
      %v3859 = vmul.f32 %v3455, %v3856
      %v3860 = vmul.f32 %v3460, %v3856
      %v3864 = vrot.slane %v3858, 7
      %v3865 = vrot.slane %v3859, 7
      %v3866 = vsel %vm965, %v3864, %v3865
      %v3867 = vrot.slane %v3860, 7
      %v3868 = vsel %vm965, %v3865, %v3867
      %v3872 = vadd.f32 %v3849, %v3866
      %v3873 = vadd.f32 %v3850, %v3868
      %v3874 = vadd.f32 %v3851, %v3867
      %v3876 = vlaneseq
      %v3877 = vshrl.u32 %v3876, 7
      %v3878 = vsub.s32 0, %v3877
      %v3879 = vrot.slane %v3693, %v3878
      %v3881 = vmul.f32 %v3465, %v3879
      %v3882 = vmul.f32 %v3470, %v3879
      %v3883 = vmul.f32 %v3475, %v3879
      %v3884 = vadd.f32 %v3872, %v3881
      %v3885 = vadd.f32 %v3873, %v3882
      %v3886 = vadd.f32 %v3874, %v3883
      %v3887 = vsel %vm1344, %v3307, %v3884
      %v3888 = vsel %vm1345, %v3308, %v3885
      %v3889 = vsel %vm1346, %v3309, %v3886
      %s3890 = scalar_lea.vmem %s9, 45
      %v3891 = vld [vmem:[%s3890] sm:$0x1]
      %v3892 = vld [vmem:[%s3890 + $0x1] sm:$0x1]
      %v3893 = vld [vmem:[%s3890 + $0x2] sm:$0x1]
      %v3894 = vld [vmem:[%s3890 + $0x3] sm:$0x1]
      %v3895 = vld [vmem:[%s3890 + $0x4] sm:$0x1]
      %v3896 = vld [vmem:[%s3890 + $0x5] sm:$0x1]
      %v3897 = vld [vmem:[%s3890 + $0x6] sm:$0x1]
      %v3898 = vld [vmem:[%s3890 + $0x7] sm:$0x1]
      %v3899 = vld [vmem:[%s3890 + $0x8] sm:$0x1]
      %s3900 = scalar_lea.vmem %s10, 5
      %v3901 = vld [vmem:[%s3900] sm:$0x1]
      %v3903 = vlaneseq
      %v3904 = vshrl.u32 %v3903, 7
      %v3905 = vsub.s32 0, %v3904
      %v3906 = vrot.slane %v3891, %v3905
      %v3908 = vmul.f32 %v3380, %v3906
      %v3909 = vmul.f32 %v3385, %v3906
      %v3910 = vmul.f32 %v3390, %v3906
      %v3912 = vlaneseq
      %v3913 = vshrl.u32 %v3912, 7
      %v3914 = vsub.s32 0, %v3913
      %v3915 = vrot.slane %v3901, %v3914
      %v3917 = vadd.f32 %v3915, %v3908
      %v3918 = vadd.f32 %v3915, %v3909
      %v3919 = vadd.f32 %v3915, %v3910
      %v3921 = vlaneseq
      %v3922 = vshrl.u32 %v3921, 7
      %v3923 = vsub.s32 0, %v3922
      %v3924 = vrot.slane %v3892, %v3923
      %v3926 = vmul.f32 %v3390, %v3924
      %v3927 = vmul.f32 %v3395, %v3924
      %v3928 = vmul.f32 %v3400, %v3924
      %v3932 = vrot.slane %v3926, 1
      %v3933 = vrot.slane %v3927, 1
      %v3934 = vsel %vm1174, %v3932, %v3933
      %v3935 = vrot.slane %v3928, 1
      %v3936 = vsel %vm1174, %v3933, %v3935
      %v3940 = vadd.f32 %v3917, %v3934
      %v3941 = vadd.f32 %v3918, %v3936
      %v3942 = vadd.f32 %v3919, %v3935
      %v3944 = vlaneseq
      %v3945 = vshrl.u32 %v3944, 7
      %v3946 = vsub.s32 0, %v3945
      %v3947 = vrot.slane %v3893, %v3946
      %v3949 = vmul.f32 %v3400, %v3947
      %v3950 = vmul.f32 %v3405, %v3947
      %v3951 = vmul.f32 %v3410, %v3947
      %v3955 = vrot.slane %v3949, 2
      %v3956 = vrot.slane %v3950, 2
      %v3957 = vsel %vm1198, %v3955, %v3956
      %v3958 = vrot.slane %v3951, 2
      %v3959 = vsel %vm1198, %v3956, %v3958
      %v3963 = vadd.f32 %v3940, %v3957
      %v3964 = vadd.f32 %v3941, %v3959
      %v3965 = vadd.f32 %v3942, %v3958
      %v3967 = vlaneseq
      %v3968 = vshrl.u32 %v3967, 7
      %v3969 = vsub.s32 0, %v3968
      %v3970 = vrot.slane %v3894, %v3969
      %v3972 = vmul.f32 %v3410, %v3970
      %v3973 = vmul.f32 %v3415, %v3970
      %v3974 = vmul.f32 %v3420, %v3970
      %v3978 = vrot.slane %v3972, 3
      %v3979 = vrot.slane %v3973, 3
      %v3980 = vsel %vm1222, %v3978, %v3979
      %v3981 = vrot.slane %v3974, 3
      %v3982 = vsel %vm1222, %v3979, %v3981
      %v3986 = vadd.f32 %v3963, %v3980
      %v3987 = vadd.f32 %v3964, %v3982
      %v3988 = vadd.f32 %v3965, %v3981
      %v3990 = vlaneseq
      %v3991 = vshrl.u32 %v3990, 7
      %v3992 = vsub.s32 0, %v3991
      %v3993 = vrot.slane %v3895, %v3992
      %v3995 = vmul.f32 %v3420, %v3993
      %v3996 = vmul.f32 %v3425, %v3993
      %v3997 = vmul.f32 %v3430, %v3993
      %v4001 = vrot.slane %v3995, 4
      %v4002 = vrot.slane %v3996, 4
      %v4003 = vsel %vm1246, %v4001, %v4002
      %v4004 = vrot.slane %v3997, 4
      %v4005 = vsel %vm1246, %v4002, %v4004
      %v4009 = vadd.f32 %v3986, %v4003
      %v4010 = vadd.f32 %v3987, %v4005
      %v4011 = vadd.f32 %v3988, %v4004
      %v4013 = vlaneseq
      %v4014 = vshrl.u32 %v4013, 7
      %v4015 = vsub.s32 0, %v4014
      %v4016 = vrot.slane %v3896, %v4015
      %v4018 = vmul.f32 %v3430, %v4016
      %v4019 = vmul.f32 %v3435, %v4016
      %v4020 = vmul.f32 %v3440, %v4016
      %v4024 = vrot.slane %v4018, 5
      %v4025 = vrot.slane %v4019, 5
      %v4026 = vsel %vm1270, %v4024, %v4025
      %v4027 = vrot.slane %v4020, 5
      %v4028 = vsel %vm1270, %v4025, %v4027
      %v4032 = vadd.f32 %v4009, %v4026
      %v4033 = vadd.f32 %v4010, %v4028
      %v4034 = vadd.f32 %v4011, %v4027
      %v4036 = vlaneseq
      %v4037 = vshrl.u32 %v4036, 7
      %v4038 = vsub.s32 0, %v4037
      %v4039 = vrot.slane %v3897, %v4038
      %v4041 = vmul.f32 %v3440, %v4039
      %v4042 = vmul.f32 %v3445, %v4039
      %v4043 = vmul.f32 %v3450, %v4039
      %v4047 = vrot.slane %v4041, 6
      %v4048 = vrot.slane %v4042, 6
      %v4049 = vsel %vm1294, %v4047, %v4048
      %v4050 = vrot.slane %v4043, 6
      %v4051 = vsel %vm1294, %v4048, %v4050
      %v4055 = vadd.f32 %v4032, %v4049
      %v4056 = vadd.f32 %v4033, %v4051
      %v4057 = vadd.f32 %v4034, %v4050
      %v4059 = vlaneseq
      %v4060 = vshrl.u32 %v4059, 7
      %v4061 = vsub.s32 0, %v4060
      %v4062 = vrot.slane %v3898, %v4061
      %v4064 = vmul.f32 %v3450, %v4062
      %v4065 = vmul.f32 %v3455, %v4062
      %v4066 = vmul.f32 %v3460, %v4062
      %v4070 = vrot.slane %v4064, 7
      %v4071 = vrot.slane %v4065, 7
      %v4072 = vsel %vm965, %v4070, %v4071
      %v4073 = vrot.slane %v4066, 7
      %v4074 = vsel %vm965, %v4071, %v4073
      %v4078 = vadd.f32 %v4055, %v4072
      %v4079 = vadd.f32 %v4056, %v4074
      %v4080 = vadd.f32 %v4057, %v4073
      %v4082 = vlaneseq
      %v4083 = vshrl.u32 %v4082, 7
      %v4084 = vsub.s32 0, %v4083
      %v4085 = vrot.slane %v3899, %v4084
      %v4087 = vmul.f32 %v3465, %v4085
      %v4088 = vmul.f32 %v3470, %v4085
      %v4089 = vmul.f32 %v3475, %v4085
      %v4090 = vadd.f32 %v4078, %v4087
      %v4091 = vadd.f32 %v4079, %v4088
      %v4092 = vadd.f32 %v4080, %v4089
      %v4093 = vsel %vm1344, %v3307, %v4090
      %v4094 = vsel %vm1345, %v3308, %v4091
      %v4095 = vsel %vm1346, %v3309, %v4092
      %s4096 = scalar_lea.vmem %s11, 32
      %v4097 = vld [vmem:[%s4096] sm:$0xf]
      %v4098 = vld [vmem:[%s4096 + $0x4] sm:$0xf]
      %v4099 = vld [vmem:[%s4096 + $0x8] sm:$0xf]
      %v4100 = vld [vmem:[%s4096 + $0xc] sm:$0xf]
      %v4101 = vld [vmem:[%s4096 + $0x10] sm:$0xf]
      %v4102 = vld [vmem:[%s4096 + $0x14] sm:$0xf]
      %v4103 = vld [vmem:[%s4096 + $0x18] sm:$0xf]
      %v4104 = vld [vmem:[%s4096 + $0x1c] sm:$0xf]
      %v4105 = vpack.c.bf16 %v3682, %v3681
      %v4106 = vpack.c.bf16 %v3683, %v3683
      %v4115 = vunpack.c.l.b16 %v4097
      %v4116 = vunpack.c.l.b16 %v4098
      %v4117 = vunpack.c.l.b16 %v4099
      %v4118 = vunpack.c.l.b16 %v4100
      %v4119 = vunpack.c.l.b16 %v4101
      %v4120 = vunpack.c.l.b16 %v4102
      %v4121 = vunpack.c.l.b16 %v4103
      %v4122 = vunpack.c.l.b16 %v4104
      %v4123 = vpack.c.b16 %v4116, %v4115
      %v4124 = vpack.c.b16 %v4118, %v4117
      %v4125 = vpack.c.b16 %v4120, %v4119
      %v4126 = vpack.c.b16 %v4122, %v4121
      %v4132 = vsel %vm766, %v4105, 0
      %v4135 = vsel %vm766, %v4106, 0
      %4137 = vmatprep.subr.bf16.mxu0 0
      %4138 = vmatpush1.bf16.msra.mxu0 0
      %4139 = vmatprep.subr.bf16.mxu0 0
      %4140 = vmatpush1.bf16.msra.mxu0 0
      %4141 = vmatprep.subr.bf16.mxu0 0
      %4142 = vmatpush1.bf16.msra.mxu0 0
      %4143 = vmatprep.subr.bf16.mxu0 0
      %4144 = vmatpush1.bf16.msra.mxu0 0
      %4145 = vmatprep.subr.bf16.mxu0 0
      %4146 = vmatpush1.bf16.msra.mxu0 %v4126
      %4147 = vmatprep.subr.bf16.mxu0 0
      %4148 = vmatpush1.bf16.msra.mxu0 %v4125
      %4149 = vmatprep.subr.bf16.mxu0 0
      %4150 = vmatpush1.bf16.msra.mxu0 %v4124
      %4151 = vmatprep.subr.bf16.mxu0 0
      %4152 = vmatpush1.bf16.msra.mxu0 %v4123
      %4153 = vmatprep.subr.bf16.mxu0 0
      %4154 = vmatpush2.bf16.msra.mxu0 0
      %4155 = vmatprep.subr.bf16.mxu0 0
      %4156 = vmatpush2.bf16.msra.mxu0 0
      %4157 = vmatprep.subr.bf16.mxu0 0
      %4158 = vmatpush2.bf16.msra.mxu0 0
      %4159 = vmatprep.subr.bf16.mxu0 0
      %4160 = vmatpush2.bf16.msra.mxu0 0
      %4161 = vmatprep.subr.bf16.mxu0 0
      %4162 = vmatpush2.bf16.msra.mxu0 0
      %4163 = vmatprep.subr.bf16.mxu0 0
      %4164 = vmatpush2.bf16.msra.mxu0 0
      %4165 = vmatprep.subr.bf16.mxu0 0
      %4166 = vmatpush2.bf16.msra.mxu0 0
      %4167 = vmatprep.subr.bf16.mxu0 0
      %4168 = vmatpush2.bf16.msra.mxu0 0
      %4169 = vmatprep.mubr.bf16.mxu0 0
      %4170 = vmatmul.mubr.bf16.gmra.mxu0 %v4132
      %v4171 = vpop.f32.mrf.mxu0
      %v4172 = vadd.f32 0.0, %v4171
      %v4173 = vpop.f32.mrf.mxu0
      %v4174 = vpop.f32.mrf.mxu0
      %v4175 = vadd.f32 0.0, %v4174
      %v4176 = vpop.f32.mrf.mxu0
      %4177 = vmatprep.mubr.bf16.mxu0 0
      %4178 = vmatmul.mubr.bf16.gmra.mxu0 %v4135
      %v4179 = vpop.f32.mrf.mxu0
      %v4180 = vadd.f32 0.0, %v4179
      %v4181 = vpop.f32.mrf.mxu0
      %v4182 = vpop.f32.mrf.mxu0
      %v4183 = vpop.f32.mrf.mxu0
      %4184 = vdwg.mxu0
      %s4185 = scalar_lea.vmem %s12, 32
      %v4186 = vld [vmem:[%s4185] sm:$0xf]
      %v4187 = vld [vmem:[%s4185 + $0x4] sm:$0xf]
      %v4188 = vld [vmem:[%s4185 + $0x8] sm:$0xf]
      %v4189 = vld [vmem:[%s4185 + $0xc] sm:$0xf]
      %v4190 = vld [vmem:[%s4185 + $0x10] sm:$0xf]
      %v4191 = vld [vmem:[%s4185 + $0x14] sm:$0xf]
      %v4192 = vld [vmem:[%s4185 + $0x18] sm:$0xf]
      %v4193 = vld [vmem:[%s4185 + $0x1c] sm:$0xf]
      %v4194 = vpack.c.bf16 %v3888, %v3887
      %v4195 = vpack.c.bf16 %v3889, %v3889
      %v4204 = vunpack.c.l.b16 %v4186
      %v4205 = vunpack.c.l.b16 %v4187
      %v4206 = vunpack.c.l.b16 %v4188
      %v4207 = vunpack.c.l.b16 %v4189
      %v4208 = vunpack.c.l.b16 %v4190
      %v4209 = vunpack.c.l.b16 %v4191
      %v4210 = vunpack.c.l.b16 %v4192
      %v4211 = vunpack.c.l.b16 %v4193
      %v4212 = vpack.c.b16 %v4205, %v4204
      %v4213 = vpack.c.b16 %v4207, %v4206
      %v4214 = vpack.c.b16 %v4209, %v4208
      %v4215 = vpack.c.b16 %v4211, %v4210
      %v4221 = vsel %vm766, %v4194, 0
      %v4224 = vsel %vm766, %v4195, 0
      %4226 = vmatprep.subr.bf16.mxu0 0
      %4227 = vmatpush1.bf16.msra.mxu0 0
      %4228 = vmatprep.subr.bf16.mxu0 0
      %4229 = vmatpush1.bf16.msra.mxu0 0
      %4230 = vmatprep.subr.bf16.mxu0 0
      %4231 = vmatpush1.bf16.msra.mxu0 0
      %4232 = vmatprep.subr.bf16.mxu0 0
      %4233 = vmatpush1.bf16.msra.mxu0 0
      %4234 = vmatprep.subr.bf16.mxu0 0
      %4235 = vmatpush1.bf16.msra.mxu0 %v4215
      %4236 = vmatprep.subr.bf16.mxu0 0
      %4237 = vmatpush1.bf16.msra.mxu0 %v4214
      %4238 = vmatprep.subr.bf16.mxu0 0
      %4239 = vmatpush1.bf16.msra.mxu0 %v4213
      %4240 = vmatprep.subr.bf16.mxu0 0
      %4241 = vmatpush1.bf16.msra.mxu0 %v4212
      %4242 = vmatprep.subr.bf16.mxu0 0
      %4243 = vmatpush2.bf16.msra.mxu0 0
      %4244 = vmatprep.subr.bf16.mxu0 0
      %4245 = vmatpush2.bf16.msra.mxu0 0
      %4246 = vmatprep.subr.bf16.mxu0 0
      %4247 = vmatpush2.bf16.msra.mxu0 0
      %4248 = vmatprep.subr.bf16.mxu0 0
      %4249 = vmatpush2.bf16.msra.mxu0 0
      %4250 = vmatprep.subr.bf16.mxu0 0
      %4251 = vmatpush2.bf16.msra.mxu0 0
      %4252 = vmatprep.subr.bf16.mxu0 0
      %4253 = vmatpush2.bf16.msra.mxu0 0
      %4254 = vmatprep.subr.bf16.mxu0 0
      %4255 = vmatpush2.bf16.msra.mxu0 0
      %4256 = vmatprep.subr.bf16.mxu0 0
      %4257 = vmatpush2.bf16.msra.mxu0 0
      %4258 = vmatprep.mubr.bf16.mxu0 0
      %4259 = vmatmul.mubr.bf16.gmra.mxu0 %v4221
      %v4260 = vpop.f32.mrf.mxu0
      %v4261 = vadd.f32 0.0, %v4260
      %v4262 = vpop.f32.mrf.mxu0
      %v4263 = vpop.f32.mrf.mxu0
      %v4264 = vadd.f32 0.0, %v4263
      %v4265 = vpop.f32.mrf.mxu0
      %4266 = vmatprep.mubr.bf16.mxu0 0
      %4267 = vmatmul.mubr.bf16.gmra.mxu0 %v4224
      %v4268 = vpop.f32.mrf.mxu0
      %v4269 = vadd.f32 0.0, %v4268
      %v4270 = vpop.f32.mrf.mxu0
      %v4271 = vpop.f32.mrf.mxu0
      %v4272 = vpop.f32.mrf.mxu0
      %4273 = vdwg.mxu0
      %s4274 = scalar_lea.vmem %s13, 32
      %v4275 = vld [vmem:[%s4274] sm:$0xf]
      %v4276 = vld [vmem:[%s4274 + $0x4] sm:$0xf]
      %v4277 = vld [vmem:[%s4274 + $0x8] sm:$0xf]
      %v4278 = vld [vmem:[%s4274 + $0xc] sm:$0xf]
      %v4279 = vld [vmem:[%s4274 + $0x10] sm:$0xf]
      %v4280 = vld [vmem:[%s4274 + $0x14] sm:$0xf]
      %v4281 = vld [vmem:[%s4274 + $0x18] sm:$0xf]
      %v4282 = vld [vmem:[%s4274 + $0x1c] sm:$0xf]
      %v4283 = vpack.c.bf16 %v4094, %v4093
      %v4284 = vpack.c.bf16 %v4095, %v4095
      %v4293 = vunpack.c.l.b16 %v4275
      %v4294 = vunpack.c.l.b16 %v4276
      %v4295 = vunpack.c.l.b16 %v4277
      %v4296 = vunpack.c.l.b16 %v4278
      %v4297 = vunpack.c.l.b16 %v4279
      %v4298 = vunpack.c.l.b16 %v4280
      %v4299 = vunpack.c.l.b16 %v4281
      %v4300 = vunpack.c.l.b16 %v4282
      %v4301 = vpack.c.b16 %v4294, %v4293
      %v4302 = vpack.c.b16 %v4296, %v4295
      %v4303 = vpack.c.b16 %v4298, %v4297
      %v4304 = vpack.c.b16 %v4300, %v4299
      %v4310 = vsel %vm766, %v4283, 0
      %v4313 = vsel %vm766, %v4284, 0
      %4315 = vmatprep.subr.bf16.mxu0 0
      %4316 = vmatpush1.bf16.msra.mxu0 0
      %4317 = vmatprep.subr.bf16.mxu0 0
      %4318 = vmatpush1.bf16.msra.mxu0 0
      %4319 = vmatprep.subr.bf16.mxu0 0
      %4320 = vmatpush1.bf16.msra.mxu0 0
      %4321 = vmatprep.subr.bf16.mxu0 0
      %4322 = vmatpush1.bf16.msra.mxu0 0
      %4323 = vmatprep.subr.bf16.mxu0 0
      %4324 = vmatpush1.bf16.msra.mxu0 %v4304
      %4325 = vmatprep.subr.bf16.mxu0 0
      %4326 = vmatpush1.bf16.msra.mxu0 %v4303
      %4327 = vmatprep.subr.bf16.mxu0 0
      %4328 = vmatpush1.bf16.msra.mxu0 %v4302
      %4329 = vmatprep.subr.bf16.mxu0 0
      %4330 = vmatpush1.bf16.msra.mxu0 %v4301
      %4331 = vmatprep.subr.bf16.mxu0 0
      %4332 = vmatpush2.bf16.msra.mxu0 0
      %4333 = vmatprep.subr.bf16.mxu0 0
      %4334 = vmatpush2.bf16.msra.mxu0 0
      %4335 = vmatprep.subr.bf16.mxu0 0
      %4336 = vmatpush2.bf16.msra.mxu0 0
      %4337 = vmatprep.subr.bf16.mxu0 0
      %4338 = vmatpush2.bf16.msra.mxu0 0
      %4339 = vmatprep.subr.bf16.mxu0 0
      %4340 = vmatpush2.bf16.msra.mxu0 0
      %4341 = vmatprep.subr.bf16.mxu0 0
      %4342 = vmatpush2.bf16.msra.mxu0 0
      %4343 = vmatprep.subr.bf16.mxu0 0
      %4344 = vmatpush2.bf16.msra.mxu0 0
      %4345 = vmatprep.subr.bf16.mxu0 0
      %4346 = vmatpush2.bf16.msra.mxu0 0
      %4347 = vmatprep.mubr.bf16.mxu0 0
      %4348 = vmatmul.mubr.bf16.gmra.mxu0 %v4310
      %v4349 = vpop.f32.mrf.mxu0
      %v4350 = vadd.f32 0.0, %v4349
      %v4351 = vpop.f32.mrf.mxu0
      %v4352 = vpop.f32.mrf.mxu0
      %v4353 = vadd.f32 0.0, %v4352
      %v4354 = vpop.f32.mrf.mxu0
      %4355 = vmatprep.mubr.bf16.mxu0 0
      %4356 = vmatmul.mubr.bf16.gmra.mxu0 %v4313
      %v4357 = vpop.f32.mrf.mxu0
      %v4358 = vadd.f32 0.0, %v4357
      %v4359 = vpop.f32.mrf.mxu0
      %v4360 = vpop.f32.mrf.mxu0
      %v4361 = vpop.f32.mrf.mxu0
      %4362 = vdwg.mxu0
      %v4363 = vpack.c.bf16 %v4175, %v4172
      %v4364 = vpack.c.bf16 %v4180, %v4180
      %v4365 = vpack.c.bf16 %v4264, %v4261
      %v4366 = vpack.c.bf16 %v4269, %v4269
      %v4368 = vsel %vm2030, %v4363, 0
      %v4371 = vsel %vm2030, %v4364, 0
      %v4374 = vsel %vm2030, %v4365, 0
      %v4377 = vsel %vm2030, %v4366, 0
      %4379 = vmatprep.subr.bf16.mxu0 0
      %4380 = vmatpush1.bf16.xpose.msra.mxu0 0
      %4381 = vmatprep.subr.bf16.mxu0 0
      %4382 = vmatpush1.bf16.xpose.msra.mxu0 0
      %4383 = vmatprep.subr.bf16.mxu0 0
      %4384 = vmatpush1.bf16.xpose.msra.mxu0 0
      %4385 = vmatprep.subr.bf16.mxu0 0
      %4386 = vmatpush1.bf16.xpose.msra.mxu0 0
      %4387 = vmatprep.subr.bf16.mxu0 0
      %4388 = vmatpush1.bf16.xpose.msra.mxu0 0
      %4389 = vmatprep.subr.bf16.mxu0 0
      %4390 = vmatpush1.bf16.xpose.msra.mxu0 0
      %4391 = vmatprep.subr.bf16.mxu0 0
      %4392 = vmatpush1.bf16.xpose.msra.mxu0 %v4377
      %4393 = vmatprep.subr.bf16.mxu0 0
      %4394 = vmatpush1.bf16.xpose.msra.mxu0 %v4374
      %4395 = vmatprep.subr.bf16.mxu0 0
      %4396 = vmatpush2.bf16.xpose.msra.mxu0 0
      %4397 = vmatprep.subr.bf16.mxu0 0
      %4398 = vmatpush2.bf16.xpose.msra.mxu0 0
      %4399 = vmatprep.subr.bf16.mxu0 0
      %4400 = vmatpush2.bf16.xpose.msra.mxu0 0
      %4401 = vmatprep.subr.bf16.mxu0 0
      %4402 = vmatpush2.bf16.xpose.msra.mxu0 0
      %4403 = vmatprep.subr.bf16.mxu0 0
      %4404 = vmatpush2.bf16.xpose.msra.mxu0 0
      %4405 = vmatprep.subr.bf16.mxu0 0
      %4406 = vmatpush2.bf16.xpose.msra.mxu0 0
      %4407 = vmatprep.subr.bf16.mxu0 0
      %4408 = vmatpush2.bf16.xpose.msra.mxu0 0
      %4409 = vmatprep.subr.bf16.mxu0 0
      %4410 = vmatpush2.bf16.xpose.msra.mxu0 0
      %4411 = vmatprep.mubr.bf16.mxu0 0
      %4412 = vmatmul.mubr.bf16.gmra.mxu0 %v4368
      %v4413 = vpop.f32.mrf.mxu0
      %v4414 = vadd.f32 0.0, %v4413
      %v4415 = vpop.f32.mrf.mxu0
      %v4416 = vpop.f32.mrf.mxu0
      %v4417 = vadd.f32 0.0, %v4416
      %v4418 = vpop.f32.mrf.mxu0
      %4419 = vmatprep.mubr.bf16.mxu0 0
      %4420 = vmatmul.mubr.bf16.gmra.mxu0 %v4371
      %v4421 = vpop.f32.mrf.mxu0
      %v4422 = vadd.f32 0.0, %v4421
      %v4423 = vpop.f32.mrf.mxu0
      %v4424 = vpop.f32.mrf.mxu0
      %v4425 = vpop.f32.mrf.mxu0
      %4426 = vdwg.mxu0
      %v4427 = vmul.f32 %v4414, 0.125
      %v4428 = vmul.f32 %v4417, 0.125
      %v4429 = vmul.f32 %v4422, 0.125
      %v4430 = vsel %vm904, %v4427, -inf
      %4431 = vmax.xlane.f32.xlu0 %v4430
      %v4432 = vpop.xlane.xlu0 %4431
      %v4433 = vsel %vm904, %v4428, -inf
      %4434 = vmax.xlane.f32.xlu0 %v4433
      %v4435 = vpop.xlane.xlu0 %4434
      %v4436 = vsel %vm2100, %v4429, -inf
      %4437 = vmax.xlane.f32.xlu0 %v4436
      %v4438 = vpop.xlane.xlu0 %4437
      %v4439 = vsub.f32 %v4427, %v4432
      %v4440 = vsub.f32 %v4428, %v4435
      %v4441 = vsub.f32 %v4429, %v4438
      %v4442 = vmul.f32 %v4439, 1.442695
      %v4443 = vpow.pop %v4442
      %v4444 = vmul.f32 %v4440, 1.442695
      %v4445 = vpow.pop %v4444
      %v4446 = vmul.f32 %v4441, 1.442695
      %v4447 = vpow.pop %v4446
      %v4448 = vsel %vm904, %v4443, 0.0
      %4449 = vadd.xlane.f32.xlu0 %v4448
      %v4450 = vpop.xlane.xlu0 %4449
      %v4451 = vsel %vm904, %v4445, 0.0
      %4452 = vadd.xlane.f32.xlu0 %v4451
      %v4453 = vpop.xlane.xlu0 %4452
      %v4454 = vsel %vm2100, %v4447, 0.0
      %4455 = vadd.xlane.f32.xlu0 %v4454
      %v4456 = vpop.xlane.xlu0 %4455
      %v4457 = vrcp.pop %v4450
      %v4458 = vmul.f32 %v4443, %v4457
      %v4459 = vrcp.pop %v4453
      %v4460 = vmul.f32 %v4445, %v4459
      %v4461 = vrcp.pop %v4456
      %v4462 = vmul.f32 %v4447, %v4461
      %v4463 = vpack.c.bf16 %v4460, %v4458
      %v4464 = vpack.c.bf16 %v4462, %v4462
      %v4465 = vpack.c.bf16 %v4353, %v4350
      %v4466 = vpack.c.bf16 %v4358, %v4358
      %v4468 = vsel %vm904, %v4463, 0
      %v4471 = vsel %vm904, %v4464, 0
      %v4474 = vand.u32 %v4466, %v2139
      %4476 = vmatprep.subr.bf16.mxu0 0
      %4477 = vmatpush1.bf16.msra.mxu0 0
      %4478 = vmatprep.subr.bf16.mxu0 0
      %4479 = vmatpush1.bf16.msra.mxu0 0
      %4480 = vmatprep.subr.bf16.mxu0 0
      %4481 = vmatpush1.bf16.msra.mxu0 0
      %4482 = vmatprep.subr.bf16.mxu0 0
      %4483 = vmatpush1.bf16.msra.mxu0 0
      %4484 = vmatprep.subr.bf16.mxu0 0
      %4485 = vmatpush1.bf16.msra.mxu0 0
      %4486 = vmatprep.subr.bf16.mxu0 0
      %4487 = vmatpush1.bf16.msra.mxu0 0
      %4488 = vmatprep.subr.bf16.mxu0 0
      %4489 = vmatpush1.bf16.msra.mxu0 %v4474
      %4490 = vmatprep.subr.bf16.mxu0 0
      %4491 = vmatpush1.bf16.msra.mxu0 %v4465
      %4492 = vmatprep.subr.bf16.mxu0 0
      %4493 = vmatpush2.bf16.msra.mxu0 0
      %4494 = vmatprep.subr.bf16.mxu0 0
      %4495 = vmatpush2.bf16.msra.mxu0 0
      %4496 = vmatprep.subr.bf16.mxu0 0
      %4497 = vmatpush2.bf16.msra.mxu0 0
      %4498 = vmatprep.subr.bf16.mxu0 0
      %4499 = vmatpush2.bf16.msra.mxu0 0
      %4500 = vmatprep.subr.bf16.mxu0 0
      %4501 = vmatpush2.bf16.msra.mxu0 0
      %4502 = vmatprep.subr.bf16.mxu0 0
      %4503 = vmatpush2.bf16.msra.mxu0 0
      %4504 = vmatprep.subr.bf16.mxu0 0
      %4505 = vmatpush2.bf16.msra.mxu0 0
      %4506 = vmatprep.subr.bf16.mxu0 0
      %4507 = vmatpush2.bf16.msra.mxu0 0
      %4508 = vmatprep.mubr.bf16.mxu0 0
      %4509 = vmatmul.mubr.bf16.gmra.mxu0 %v4468
      %v4510 = vpop.f32.mrf.mxu0
      %v4511 = vadd.f32 0.0, %v4510
      %v4512 = vpop.f32.mrf.mxu0
      %v4513 = vpop.f32.mrf.mxu0
      %v4514 = vadd.f32 0.0, %v4513
      %v4515 = vpop.f32.mrf.mxu0
      %4516 = vmatprep.mubr.bf16.mxu0 0
      %4517 = vmatmul.mubr.bf16.gmra.mxu0 %v4471
      %v4518 = vpop.f32.mrf.mxu0
      %v4519 = vadd.f32 0.0, %v4518
      %v4520 = vpop.f32.mrf.mxu0
      %v4521 = vpop.f32.mrf.mxu0
      %v4522 = vpop.f32.mrf.mxu0
      %4523 = vdwg.mxu0
      %4526 = vrot.lane.b32.xlu0 %v4363, 112
      %v4527 = vpop.permute.xlu0 %4526
      %4528 = vrot.lane.b32.xlu0 %v4364, 112
      %v4529 = vpop.permute.xlu0 %4528
      %4532 = vrot.lane.b32.xlu0 %v4365, 112
      %v4533 = vpop.permute.xlu0 %4532
      %4534 = vrot.lane.b32.xlu0 %v4366, 112
      %v4535 = vpop.permute.xlu0 %4534
      %v4537 = vsel %vm2030, %v4527, 0
      %v4540 = vsel %vm2030, %v4529, 0
      %v4543 = vsel %vm2030, %v4533, 0
      %v4546 = vsel %vm2030, %v4535, 0
      %4548 = vmatprep.subr.bf16.mxu0 0
      %4549 = vmatpush1.bf16.xpose.msra.mxu0 0
      %4550 = vmatprep.subr.bf16.mxu0 0
      %4551 = vmatpush1.bf16.xpose.msra.mxu0 0
      %4552 = vmatprep.subr.bf16.mxu0 0
      %4553 = vmatpush1.bf16.xpose.msra.mxu0 0
      %4554 = vmatprep.subr.bf16.mxu0 0
      %4555 = vmatpush1.bf16.xpose.msra.mxu0 0
      %4556 = vmatprep.subr.bf16.mxu0 0
      %4557 = vmatpush1.bf16.xpose.msra.mxu0 0
      %4558 = vmatprep.subr.bf16.mxu0 0
      %4559 = vmatpush1.bf16.xpose.msra.mxu0 0
      %4560 = vmatprep.subr.bf16.mxu0 0
      %4561 = vmatpush1.bf16.xpose.msra.mxu0 %v4546
      %4562 = vmatprep.subr.bf16.mxu0 0
      %4563 = vmatpush1.bf16.xpose.msra.mxu0 %v4543
      %4564 = vmatprep.subr.bf16.mxu0 0
      %4565 = vmatpush2.bf16.xpose.msra.mxu0 0
      %4566 = vmatprep.subr.bf16.mxu0 0
      %4567 = vmatpush2.bf16.xpose.msra.mxu0 0
      %4568 = vmatprep.subr.bf16.mxu0 0
      %4569 = vmatpush2.bf16.xpose.msra.mxu0 0
      %4570 = vmatprep.subr.bf16.mxu0 0
      %4571 = vmatpush2.bf16.xpose.msra.mxu0 0
      %4572 = vmatprep.subr.bf16.mxu0 0
      %4573 = vmatpush2.bf16.xpose.msra.mxu0 0
      %4574 = vmatprep.subr.bf16.mxu0 0
      %4575 = vmatpush2.bf16.xpose.msra.mxu0 0
      %4576 = vmatprep.subr.bf16.mxu0 0
      %4577 = vmatpush2.bf16.xpose.msra.mxu0 0
      %4578 = vmatprep.subr.bf16.mxu0 0
      %4579 = vmatpush2.bf16.xpose.msra.mxu0 0
      %4580 = vmatprep.mubr.bf16.mxu0 0
      %4581 = vmatmul.mubr.bf16.gmra.mxu0 %v4537
      %v4582 = vpop.f32.mrf.mxu0
      %v4583 = vadd.f32 0.0, %v4582
      %v4584 = vpop.f32.mrf.mxu0
      %v4585 = vpop.f32.mrf.mxu0
      %v4586 = vadd.f32 0.0, %v4585
      %v4587 = vpop.f32.mrf.mxu0
      %4588 = vmatprep.mubr.bf16.mxu0 0
      %4589 = vmatmul.mubr.bf16.gmra.mxu0 %v4540
      %v4590 = vpop.f32.mrf.mxu0
      %v4591 = vadd.f32 0.0, %v4590
      %v4592 = vpop.f32.mrf.mxu0
      %v4593 = vpop.f32.mrf.mxu0
      %v4594 = vpop.f32.mrf.mxu0
      %4595 = vdwg.mxu0
      %v4596 = vmul.f32 %v4583, 0.125
      %v4597 = vmul.f32 %v4586, 0.125
      %v4598 = vmul.f32 %v4591, 0.125
      %v4599 = vsel %vm904, %v4596, -inf
      %4600 = vmax.xlane.f32.xlu0 %v4599
      %v4601 = vpop.xlane.xlu0 %4600
      %v4602 = vsel %vm904, %v4597, -inf
      %4603 = vmax.xlane.f32.xlu0 %v4602
      %v4604 = vpop.xlane.xlu0 %4603
      %v4605 = vsel %vm2100, %v4598, -inf
      %4606 = vmax.xlane.f32.xlu0 %v4605
      %v4607 = vpop.xlane.xlu0 %4606
      %v4608 = vsub.f32 %v4596, %v4601
      %v4609 = vsub.f32 %v4597, %v4604
      %v4610 = vsub.f32 %v4598, %v4607
      %v4611 = vmul.f32 %v4608, 1.442695
      %v4612 = vpow.pop %v4611
      %v4613 = vmul.f32 %v4609, 1.442695
      %v4614 = vpow.pop %v4613
      %v4615 = vmul.f32 %v4610, 1.442695
      %v4616 = vpow.pop %v4615
      %v4617 = vsel %vm904, %v4612, 0.0
      %4618 = vadd.xlane.f32.xlu0 %v4617
      %v4619 = vpop.xlane.xlu0 %4618
      %v4620 = vsel %vm904, %v4614, 0.0
      %4621 = vadd.xlane.f32.xlu0 %v4620
      %v4622 = vpop.xlane.xlu0 %4621
      %v4623 = vsel %vm2100, %v4616, 0.0
      %4624 = vadd.xlane.f32.xlu0 %v4623
      %v4625 = vpop.xlane.xlu0 %4624
      %v4626 = vrcp.pop %v4619
      %v4627 = vmul.f32 %v4612, %v4626
      %v4628 = vrcp.pop %v4622
      %v4629 = vmul.f32 %v4614, %v4628
      %v4630 = vrcp.pop %v4625
      %v4631 = vmul.f32 %v4616, %v4630
      %v4632 = vpack.c.bf16 %v4629, %v4627
      %v4633 = vpack.c.bf16 %v4631, %v4631
      %4636 = vrot.lane.b32.xlu0 %v4465, 112
      %v4637 = vpop.permute.xlu0 %4636
      %4638 = vrot.lane.b32.xlu0 %v4466, 112
      %v4639 = vpop.permute.xlu0 %4638
      %v4642 = vsel %vm904, %v4632, 0
      %v4645 = vsel %vm904, %v4633, 0
      %v4648 = vand.u32 %v4639, %v2139
      %4650 = vmatprep.subr.bf16.mxu0 0
      %4651 = vmatpush1.bf16.msra.mxu0 0
      %4652 = vmatprep.subr.bf16.mxu0 0
      %4653 = vmatpush1.bf16.msra.mxu0 0
      %4654 = vmatprep.subr.bf16.mxu0 0
      %4655 = vmatpush1.bf16.msra.mxu0 0
      %4656 = vmatprep.subr.bf16.mxu0 0
      %4657 = vmatpush1.bf16.msra.mxu0 0
      %4658 = vmatprep.subr.bf16.mxu0 0
      %4659 = vmatpush1.bf16.msra.mxu0 0
      %4660 = vmatprep.subr.bf16.mxu0 0
      %4661 = vmatpush1.bf16.msra.mxu0 0
      %4662 = vmatprep.subr.bf16.mxu0 0
      %4663 = vmatpush1.bf16.msra.mxu0 %v4648
      %4664 = vmatprep.subr.bf16.mxu0 0
      %4665 = vmatpush1.bf16.msra.mxu0 %v4637
      %4666 = vmatprep.subr.bf16.mxu0 0
      %4667 = vmatpush2.bf16.msra.mxu0 0
      %4668 = vmatprep.subr.bf16.mxu0 0
      %4669 = vmatpush2.bf16.msra.mxu0 0
      %4670 = vmatprep.subr.bf16.mxu0 0
      %4671 = vmatpush2.bf16.msra.mxu0 0
      %4672 = vmatprep.subr.bf16.mxu0 0
      %4673 = vmatpush2.bf16.msra.mxu0 0
      %4674 = vmatprep.subr.bf16.mxu0 0
      %4675 = vmatpush2.bf16.msra.mxu0 0
      %4676 = vmatprep.subr.bf16.mxu0 0
      %4677 = vmatpush2.bf16.msra.mxu0 0
      %4678 = vmatprep.subr.bf16.mxu0 0
      %4679 = vmatpush2.bf16.msra.mxu0 0
      %4680 = vmatprep.subr.bf16.mxu0 0
      %4681 = vmatpush2.bf16.msra.mxu0 0
      %4682 = vmatprep.mubr.bf16.mxu0 0
      %4683 = vmatmul.mubr.bf16.gmra.mxu0 %v4642
      %v4684 = vpop.f32.mrf.mxu0
      %v4685 = vadd.f32 0.0, %v4684
      %v4686 = vpop.f32.mrf.mxu0
      %v4687 = vpop.f32.mrf.mxu0
      %v4688 = vadd.f32 0.0, %v4687
      %v4689 = vpop.f32.mrf.mxu0
      %4690 = vmatprep.mubr.bf16.mxu0 0
      %4691 = vmatmul.mubr.bf16.gmra.mxu0 %v4645
      %v4692 = vpop.f32.mrf.mxu0
      %v4693 = vadd.f32 0.0, %v4692
      %v4694 = vpop.f32.mrf.mxu0
      %v4695 = vpop.f32.mrf.mxu0
      %v4696 = vpop.f32.mrf.mxu0
      %4697 = vdwg.mxu0
      %4698 = vrot.lane.b32.xlu0 %v4363, 96
      %v4699 = vpop.permute.xlu0 %4698
      %4700 = vrot.lane.b32.xlu0 %v4364, 96
      %v4701 = vpop.permute.xlu0 %4700
      %4702 = vrot.lane.b32.xlu0 %v4365, 96
      %v4703 = vpop.permute.xlu0 %4702
      %4704 = vrot.lane.b32.xlu0 %v4366, 96
      %v4705 = vpop.permute.xlu0 %4704
      %v4707 = vsel %vm2030, %v4699, 0
      %v4710 = vsel %vm2030, %v4701, 0
      %v4713 = vsel %vm2030, %v4703, 0
      %v4716 = vsel %vm2030, %v4705, 0
      %4718 = vmatprep.subr.bf16.mxu0 0
      %4719 = vmatpush1.bf16.xpose.msra.mxu0 0
      %4720 = vmatprep.subr.bf16.mxu0 0
      %4721 = vmatpush1.bf16.xpose.msra.mxu0 0
      %4722 = vmatprep.subr.bf16.mxu0 0
      %4723 = vmatpush1.bf16.xpose.msra.mxu0 0
      %4724 = vmatprep.subr.bf16.mxu0 0
      %4725 = vmatpush1.bf16.xpose.msra.mxu0 0
      %4726 = vmatprep.subr.bf16.mxu0 0
      %4727 = vmatpush1.bf16.xpose.msra.mxu0 0
      %4728 = vmatprep.subr.bf16.mxu0 0
      %4729 = vmatpush1.bf16.xpose.msra.mxu0 0
      %4730 = vmatprep.subr.bf16.mxu0 0
      %4731 = vmatpush1.bf16.xpose.msra.mxu0 %v4716
      %4732 = vmatprep.subr.bf16.mxu0 0
      %4733 = vmatpush1.bf16.xpose.msra.mxu0 %v4713
      %4734 = vmatprep.subr.bf16.mxu0 0
      %4735 = vmatpush2.bf16.xpose.msra.mxu0 0
      %4736 = vmatprep.subr.bf16.mxu0 0
      %4737 = vmatpush2.bf16.xpose.msra.mxu0 0
      %4738 = vmatprep.subr.bf16.mxu0 0
      %4739 = vmatpush2.bf16.xpose.msra.mxu0 0
      %4740 = vmatprep.subr.bf16.mxu0 0
      %4741 = vmatpush2.bf16.xpose.msra.mxu0 0
      %4742 = vmatprep.subr.bf16.mxu0 0
      %4743 = vmatpush2.bf16.xpose.msra.mxu0 0
      %4744 = vmatprep.subr.bf16.mxu0 0
      %4745 = vmatpush2.bf16.xpose.msra.mxu0 0
      %4746 = vmatprep.subr.bf16.mxu0 0
      %4747 = vmatpush2.bf16.xpose.msra.mxu0 0
      %4748 = vmatprep.subr.bf16.mxu0 0
      %4749 = vmatpush2.bf16.xpose.msra.mxu0 0
      %4750 = vmatprep.mubr.bf16.mxu0 0
      %4751 = vmatmul.mubr.bf16.gmra.mxu0 %v4707
      %v4752 = vpop.f32.mrf.mxu0
      %v4753 = vadd.f32 0.0, %v4752
      %v4754 = vpop.f32.mrf.mxu0
      %v4755 = vpop.f32.mrf.mxu0
      %v4756 = vadd.f32 0.0, %v4755
      %v4757 = vpop.f32.mrf.mxu0
      %4758 = vmatprep.mubr.bf16.mxu0 0
      %4759 = vmatmul.mubr.bf16.gmra.mxu0 %v4710
      %v4760 = vpop.f32.mrf.mxu0
      %v4761 = vadd.f32 0.0, %v4760
      %v4762 = vpop.f32.mrf.mxu0
      %v4763 = vpop.f32.mrf.mxu0
      %v4764 = vpop.f32.mrf.mxu0
      %4765 = vdwg.mxu0
      %v4766 = vmul.f32 %v4753, 0.125
      %v4767 = vmul.f32 %v4756, 0.125
      %v4768 = vmul.f32 %v4761, 0.125
      %v4769 = vsel %vm904, %v4766, -inf
      %4770 = vmax.xlane.f32.xlu0 %v4769
      %v4771 = vpop.xlane.xlu0 %4770
      %v4772 = vsel %vm904, %v4767, -inf
      %4773 = vmax.xlane.f32.xlu0 %v4772
      %v4774 = vpop.xlane.xlu0 %4773
      %v4775 = vsel %vm2100, %v4768, -inf
      %4776 = vmax.xlane.f32.xlu0 %v4775
      %v4777 = vpop.xlane.xlu0 %4776
      %v4778 = vsub.f32 %v4766, %v4771
      %v4779 = vsub.f32 %v4767, %v4774
      %v4780 = vsub.f32 %v4768, %v4777
      %v4781 = vmul.f32 %v4778, 1.442695
      %v4782 = vpow.pop %v4781
      %v4783 = vmul.f32 %v4779, 1.442695
      %v4784 = vpow.pop %v4783
      %v4785 = vmul.f32 %v4780, 1.442695
      %v4786 = vpow.pop %v4785
      %v4787 = vsel %vm904, %v4782, 0.0
      %4788 = vadd.xlane.f32.xlu0 %v4787
      %v4789 = vpop.xlane.xlu0 %4788
      %v4790 = vsel %vm904, %v4784, 0.0
      %4791 = vadd.xlane.f32.xlu0 %v4790
      %v4792 = vpop.xlane.xlu0 %4791
      %v4793 = vsel %vm2100, %v4786, 0.0
      %4794 = vadd.xlane.f32.xlu0 %v4793
      %v4795 = vpop.xlane.xlu0 %4794
      %v4796 = vrcp.pop %v4789
      %v4797 = vmul.f32 %v4782, %v4796
      %v4798 = vrcp.pop %v4792
      %v4799 = vmul.f32 %v4784, %v4798
      %v4800 = vrcp.pop %v4795
      %v4801 = vmul.f32 %v4786, %v4800
      %v4802 = vpack.c.bf16 %v4799, %v4797
      %v4803 = vpack.c.bf16 %v4801, %v4801
      %4804 = vrot.lane.b32.xlu0 %v4465, 96
      %v4805 = vpop.permute.xlu0 %4804
      %4806 = vrot.lane.b32.xlu0 %v4466, 96
      %v4807 = vpop.permute.xlu0 %4806
      %v4810 = vsel %vm904, %v4802, 0
      %v4813 = vsel %vm904, %v4803, 0
      %v4816 = vand.u32 %v4807, %v2139
      %4818 = vmatprep.subr.bf16.mxu0 0
      %4819 = vmatpush1.bf16.msra.mxu0 0
      %4820 = vmatprep.subr.bf16.mxu0 0
      %4821 = vmatpush1.bf16.msra.mxu0 0
      %4822 = vmatprep.subr.bf16.mxu0 0
      %4823 = vmatpush1.bf16.msra.mxu0 0
      %4824 = vmatprep.subr.bf16.mxu0 0
      %4825 = vmatpush1.bf16.msra.mxu0 0
      %4826 = vmatprep.subr.bf16.mxu0 0
      %4827 = vmatpush1.bf16.msra.mxu0 0
      %4828 = vmatprep.subr.bf16.mxu0 0
      %4829 = vmatpush1.bf16.msra.mxu0 0
      %4830 = vmatprep.subr.bf16.mxu0 0
      %4831 = vmatpush1.bf16.msra.mxu0 %v4816
      %4832 = vmatprep.subr.bf16.mxu0 0
      %4833 = vmatpush1.bf16.msra.mxu0 %v4805
      %4834 = vmatprep.subr.bf16.mxu0 0
      %4835 = vmatpush2.bf16.msra.mxu0 0
      %4836 = vmatprep.subr.bf16.mxu0 0
      %4837 = vmatpush2.bf16.msra.mxu0 0
      %4838 = vmatprep.subr.bf16.mxu0 0
      %4839 = vmatpush2.bf16.msra.mxu0 0
      %4840 = vmatprep.subr.bf16.mxu0 0
      %4841 = vmatpush2.bf16.msra.mxu0 0
      %4842 = vmatprep.subr.bf16.mxu0 0
      %4843 = vmatpush2.bf16.msra.mxu0 0
      %4844 = vmatprep.subr.bf16.mxu0 0
      %4845 = vmatpush2.bf16.msra.mxu0 0
      %4846 = vmatprep.subr.bf16.mxu0 0
      %4847 = vmatpush2.bf16.msra.mxu0 0
      %4848 = vmatprep.subr.bf16.mxu0 0
      %4849 = vmatpush2.bf16.msra.mxu0 0
      %4850 = vmatprep.mubr.bf16.mxu0 0
      %4851 = vmatmul.mubr.bf16.gmra.mxu0 %v4810
      %v4852 = vpop.f32.mrf.mxu0
      %v4853 = vadd.f32 0.0, %v4852
      %v4854 = vpop.f32.mrf.mxu0
      %v4855 = vpop.f32.mrf.mxu0
      %v4856 = vadd.f32 0.0, %v4855
      %v4857 = vpop.f32.mrf.mxu0
      %4858 = vmatprep.mubr.bf16.mxu0 0
      %4859 = vmatmul.mubr.bf16.gmra.mxu0 %v4813
      %v4860 = vpop.f32.mrf.mxu0
      %v4861 = vadd.f32 0.0, %v4860
      %v4862 = vpop.f32.mrf.mxu0
      %v4863 = vpop.f32.mrf.mxu0
      %v4864 = vpop.f32.mrf.mxu0
      %4865 = vdwg.mxu0
      %4866 = vrot.lane.b32.xlu0 %v4363, 80
      %v4867 = vpop.permute.xlu0 %4866
      %4868 = vrot.lane.b32.xlu0 %v4364, 80
      %v4869 = vpop.permute.xlu0 %4868
      %4870 = vrot.lane.b32.xlu0 %v4365, 80
      %v4871 = vpop.permute.xlu0 %4870
      %4872 = vrot.lane.b32.xlu0 %v4366, 80
      %v4873 = vpop.permute.xlu0 %4872
      %v4875 = vsel %vm2030, %v4867, 0
      %v4878 = vsel %vm2030, %v4869, 0
      %v4881 = vsel %vm2030, %v4871, 0
      %v4884 = vsel %vm2030, %v4873, 0
      %4886 = vmatprep.subr.bf16.mxu0 0
      %4887 = vmatpush1.bf16.xpose.msra.mxu0 0
      %4888 = vmatprep.subr.bf16.mxu0 0
      %4889 = vmatpush1.bf16.xpose.msra.mxu0 0
      %4890 = vmatprep.subr.bf16.mxu0 0
      %4891 = vmatpush1.bf16.xpose.msra.mxu0 0
      %4892 = vmatprep.subr.bf16.mxu0 0
      %4893 = vmatpush1.bf16.xpose.msra.mxu0 0
      %4894 = vmatprep.subr.bf16.mxu0 0
      %4895 = vmatpush1.bf16.xpose.msra.mxu0 0
      %4896 = vmatprep.subr.bf16.mxu0 0
      %4897 = vmatpush1.bf16.xpose.msra.mxu0 0
      %4898 = vmatprep.subr.bf16.mxu0 0
      %4899 = vmatpush1.bf16.xpose.msra.mxu0 %v4884
      %4900 = vmatprep.subr.bf16.mxu0 0
      %4901 = vmatpush1.bf16.xpose.msra.mxu0 %v4881
      %4902 = vmatprep.subr.bf16.mxu0 0
      %4903 = vmatpush2.bf16.xpose.msra.mxu0 0
      %4904 = vmatprep.subr.bf16.mxu0 0
      %4905 = vmatpush2.bf16.xpose.msra.mxu0 0
      %4906 = vmatprep.subr.bf16.mxu0 0
      %4907 = vmatpush2.bf16.xpose.msra.mxu0 0
      %4908 = vmatprep.subr.bf16.mxu0 0
      %4909 = vmatpush2.bf16.xpose.msra.mxu0 0
      %4910 = vmatprep.subr.bf16.mxu0 0
      %4911 = vmatpush2.bf16.xpose.msra.mxu0 0
      %4912 = vmatprep.subr.bf16.mxu0 0
      %4913 = vmatpush2.bf16.xpose.msra.mxu0 0
      %4914 = vmatprep.subr.bf16.mxu0 0
      %4915 = vmatpush2.bf16.xpose.msra.mxu0 0
      %4916 = vmatprep.subr.bf16.mxu0 0
      %4917 = vmatpush2.bf16.xpose.msra.mxu0 0
      %4918 = vmatprep.mubr.bf16.mxu0 0
      %4919 = vmatmul.mubr.bf16.gmra.mxu0 %v4875
      %v4920 = vpop.f32.mrf.mxu0
      %v4921 = vadd.f32 0.0, %v4920
      %v4922 = vpop.f32.mrf.mxu0
      %v4923 = vpop.f32.mrf.mxu0
      %v4924 = vadd.f32 0.0, %v4923
      %v4925 = vpop.f32.mrf.mxu0
      %4926 = vmatprep.mubr.bf16.mxu0 0
      %4927 = vmatmul.mubr.bf16.gmra.mxu0 %v4878
      %v4928 = vpop.f32.mrf.mxu0
      %v4929 = vadd.f32 0.0, %v4928
      %v4930 = vpop.f32.mrf.mxu0
      %v4931 = vpop.f32.mrf.mxu0
      %v4932 = vpop.f32.mrf.mxu0
      %4933 = vdwg.mxu0
      %v4934 = vmul.f32 %v4921, 0.125
      %v4935 = vmul.f32 %v4924, 0.125
      %v4936 = vmul.f32 %v4929, 0.125
      %v4937 = vsel %vm904, %v4934, -inf
      %4938 = vmax.xlane.f32.xlu0 %v4937
      %v4939 = vpop.xlane.xlu0 %4938
      %v4940 = vsel %vm904, %v4935, -inf
      %4941 = vmax.xlane.f32.xlu0 %v4940
      %v4942 = vpop.xlane.xlu0 %4941
      %v4943 = vsel %vm2100, %v4936, -inf
      %4944 = vmax.xlane.f32.xlu0 %v4943
      %v4945 = vpop.xlane.xlu0 %4944
      %v4946 = vsub.f32 %v4934, %v4939
      %v4947 = vsub.f32 %v4935, %v4942
      %v4948 = vsub.f32 %v4936, %v4945
      %v4949 = vmul.f32 %v4946, 1.442695
      %v4950 = vpow.pop %v4949
      %v4951 = vmul.f32 %v4947, 1.442695
      %v4952 = vpow.pop %v4951
      %v4953 = vmul.f32 %v4948, 1.442695
      %v4954 = vpow.pop %v4953
      %v4955 = vsel %vm904, %v4950, 0.0
      %4956 = vadd.xlane.f32.xlu0 %v4955
      %v4957 = vpop.xlane.xlu0 %4956
      %v4958 = vsel %vm904, %v4952, 0.0
      %4959 = vadd.xlane.f32.xlu0 %v4958
      %v4960 = vpop.xlane.xlu0 %4959
      %v4961 = vsel %vm2100, %v4954, 0.0
      %4962 = vadd.xlane.f32.xlu0 %v4961
      %v4963 = vpop.xlane.xlu0 %4962
      %v4964 = vrcp.pop %v4957
      %v4965 = vmul.f32 %v4950, %v4964
      %v4966 = vrcp.pop %v4960
      %v4967 = vmul.f32 %v4952, %v4966
      %v4968 = vrcp.pop %v4963
      %v4969 = vmul.f32 %v4954, %v4968
      %v4970 = vpack.c.bf16 %v4967, %v4965
      %v4971 = vpack.c.bf16 %v4969, %v4969
      %4972 = vrot.lane.b32.xlu0 %v4465, 80
      %v4973 = vpop.permute.xlu0 %4972
      %4974 = vrot.lane.b32.xlu0 %v4466, 80
      %v4975 = vpop.permute.xlu0 %4974
      %v4978 = vsel %vm904, %v4970, 0
      %v4981 = vsel %vm904, %v4971, 0
      %v4984 = vand.u32 %v4975, %v2139
      %4986 = vmatprep.subr.bf16.mxu0 0
      %4987 = vmatpush1.bf16.msra.mxu0 0
      %4988 = vmatprep.subr.bf16.mxu0 0
      %4989 = vmatpush1.bf16.msra.mxu0 0
      %4990 = vmatprep.subr.bf16.mxu0 0
      %4991 = vmatpush1.bf16.msra.mxu0 0
      %4992 = vmatprep.subr.bf16.mxu0 0
      %4993 = vmatpush1.bf16.msra.mxu0 0
      %4994 = vmatprep.subr.bf16.mxu0 0
      %4995 = vmatpush1.bf16.msra.mxu0 0
      %4996 = vmatprep.subr.bf16.mxu0 0
      %4997 = vmatpush1.bf16.msra.mxu0 0
      %4998 = vmatprep.subr.bf16.mxu0 0
      %4999 = vmatpush1.bf16.msra.mxu0 %v4984
      %5000 = vmatprep.subr.bf16.mxu0 0
      %5001 = vmatpush1.bf16.msra.mxu0 %v4973
      %5002 = vmatprep.subr.bf16.mxu0 0
      %5003 = vmatpush2.bf16.msra.mxu0 0
      %5004 = vmatprep.subr.bf16.mxu0 0
      %5005 = vmatpush2.bf16.msra.mxu0 0
      %5006 = vmatprep.subr.bf16.mxu0 0
      %5007 = vmatpush2.bf16.msra.mxu0 0
      %5008 = vmatprep.subr.bf16.mxu0 0
      %5009 = vmatpush2.bf16.msra.mxu0 0
      %5010 = vmatprep.subr.bf16.mxu0 0
      %5011 = vmatpush2.bf16.msra.mxu0 0
      %5012 = vmatprep.subr.bf16.mxu0 0
      %5013 = vmatpush2.bf16.msra.mxu0 0
      %5014 = vmatprep.subr.bf16.mxu0 0
      %5015 = vmatpush2.bf16.msra.mxu0 0
      %5016 = vmatprep.subr.bf16.mxu0 0
      %5017 = vmatpush2.bf16.msra.mxu0 0
      %5018 = vmatprep.mubr.bf16.mxu0 0
      %5019 = vmatmul.mubr.bf16.gmra.mxu0 %v4978
      %v5020 = vpop.f32.mrf.mxu0
      %v5021 = vadd.f32 0.0, %v5020
      %v5022 = vpop.f32.mrf.mxu0
      %v5023 = vpop.f32.mrf.mxu0
      %v5024 = vadd.f32 0.0, %v5023
      %v5025 = vpop.f32.mrf.mxu0
      %5026 = vmatprep.mubr.bf16.mxu0 0
      %5027 = vmatmul.mubr.bf16.gmra.mxu0 %v4981
      %v5028 = vpop.f32.mrf.mxu0
      %v5029 = vadd.f32 0.0, %v5028
      %v5030 = vpop.f32.mrf.mxu0
      %v5031 = vpop.f32.mrf.mxu0
      %v5032 = vpop.f32.mrf.mxu0
      %5033 = vdwg.mxu0
      %5037 = vrot.lane.b32.xlu0 %v4685, 16
      %v5038 = vpop.permute.xlu0 %5037
      %5039 = vrot.lane.b32.xlu0 %v4688, 16
      %v5040 = vpop.permute.xlu0 %5039
      %5041 = vrot.lane.b32.xlu0 %v4693, 16
      %v5042 = vpop.permute.xlu0 %5041
      %5049 = vrot.lane.b32.xlu0 %v4853, 32
      %v5050 = vpop.permute.xlu0 %5049
      %5051 = vrot.lane.b32.xlu0 %v4856, 32
      %v5052 = vpop.permute.xlu0 %5051
      %5053 = vrot.lane.b32.xlu0 %v4861, 32
      %v5054 = vpop.permute.xlu0 %5053
      %5061 = vrot.lane.b32.xlu0 %v5021, 48
      %v5062 = vpop.permute.xlu0 %5061
      %5063 = vrot.lane.b32.xlu0 %v5024, 48
      %v5064 = vpop.permute.xlu0 %5063
      %5065 = vrot.lane.b32.xlu0 %v5029, 48
      %v5066 = vpop.permute.xlu0 %5065
      %v5070 = vsel %vm2030, %v4511, %v5038
      %v5071 = vsel %vm2030, %v4514, %v5040
      %v5072 = vsel %vm2030, %v4519, %v5042
      %v5073 = vsel %vm2740, %v5070, %v5050
      %v5074 = vsel %vm2740, %v5071, %v5052
      %v5075 = vsel %vm2740, %v5072, %v5054
      %v5076 = vsel %vm719, %v5073, %v5062
      %v5077 = vsel %vm719, %v5074, %v5064
      %v5078 = vsel %vm719, %v5075, %v5066
      %s5079 = scalar_lea.vmem %s14, 32
      %v5080 = vld [vmem:[%s5079] sm:$0xf]
      %v5081 = vld [vmem:[%s5079 + $0x4] sm:$0xf]
      %v5082 = vld [vmem:[%s5079 + $0x8] sm:$0xf]
      %v5083 = vld [vmem:[%s5079 + $0xc] sm:$0xf]
      %v5084 = vld [vmem:[%s5079 + $0x10] sm:$0xf]
      %v5085 = vld [vmem:[%s5079 + $0x14] sm:$0xf]
      %v5086 = vld [vmem:[%s5079 + $0x18] sm:$0xf]
      %v5087 = vld [vmem:[%s5079 + $0x1c] sm:$0xf]
      %v5088 = vpack.c.bf16 %v5077, %v5076
      %v5089 = vpack.c.bf16 %v5078, %v5078
      %v5098 = vunpack.c.l.b16 %v5080
      %v5099 = vunpack.c.l.b16 %v5081
      %v5100 = vunpack.c.l.b16 %v5082
      %v5101 = vunpack.c.l.b16 %v5083
      %v5102 = vunpack.c.l.b16 %v5084
      %v5103 = vunpack.c.l.b16 %v5085
      %v5104 = vunpack.c.l.b16 %v5086
      %v5105 = vunpack.c.l.b16 %v5087
      %v5106 = vpack.c.b16 %v5099, %v5098
      %v5107 = vpack.c.b16 %v5101, %v5100
      %v5108 = vpack.c.b16 %v5103, %v5102
      %v5109 = vpack.c.b16 %v5105, %v5104
      %v5115 = vsel %vm766, %v5088, 0
      %v5118 = vsel %vm766, %v5089, 0
      %5120 = vmatprep.subr.bf16.mxu0 0
      %5121 = vmatpush1.bf16.msra.mxu0 0
      %5122 = vmatprep.subr.bf16.mxu0 0
      %5123 = vmatpush1.bf16.msra.mxu0 0
      %5124 = vmatprep.subr.bf16.mxu0 0
      %5125 = vmatpush1.bf16.msra.mxu0 0
      %5126 = vmatprep.subr.bf16.mxu0 0
      %5127 = vmatpush1.bf16.msra.mxu0 0
      %5128 = vmatprep.subr.bf16.mxu0 0
      %5129 = vmatpush1.bf16.msra.mxu0 %v5109
      %5130 = vmatprep.subr.bf16.mxu0 0
      %5131 = vmatpush1.bf16.msra.mxu0 %v5108
      %5132 = vmatprep.subr.bf16.mxu0 0
      %5133 = vmatpush1.bf16.msra.mxu0 %v5107
      %5134 = vmatprep.subr.bf16.mxu0 0
      %5135 = vmatpush1.bf16.msra.mxu0 %v5106
      %5136 = vmatprep.subr.bf16.mxu0 0
      %5137 = vmatpush2.bf16.msra.mxu0 0
      %5138 = vmatprep.subr.bf16.mxu0 0
      %5139 = vmatpush2.bf16.msra.mxu0 0
      %5140 = vmatprep.subr.bf16.mxu0 0
      %5141 = vmatpush2.bf16.msra.mxu0 0
      %5142 = vmatprep.subr.bf16.mxu0 0
      %5143 = vmatpush2.bf16.msra.mxu0 0
      %5144 = vmatprep.subr.bf16.mxu0 0
      %5145 = vmatpush2.bf16.msra.mxu0 0
      %5146 = vmatprep.subr.bf16.mxu0 0
      %5147 = vmatpush2.bf16.msra.mxu0 0
      %5148 = vmatprep.subr.bf16.mxu0 0
      %5149 = vmatpush2.bf16.msra.mxu0 0
      %5150 = vmatprep.subr.bf16.mxu0 0
      %5151 = vmatpush2.bf16.msra.mxu0 0
      %5152 = vmatprep.mubr.bf16.mxu0 0
      %5153 = vmatmul.mubr.bf16.gmra.mxu0 %v5115
      %v5154 = vpop.f32.mrf.mxu0
      %v5155 = vadd.f32 0.0, %v5154
      %v5156 = vpop.f32.mrf.mxu0
      %v5157 = vpop.f32.mrf.mxu0
      %v5158 = vadd.f32 0.0, %v5157
      %v5159 = vpop.f32.mrf.mxu0
      %5160 = vmatprep.mubr.bf16.mxu0 0
      %5161 = vmatmul.mubr.bf16.gmra.mxu0 %v5118
      %v5162 = vpop.f32.mrf.mxu0
      %v5163 = vadd.f32 0.0, %v5162
      %v5164 = vpop.f32.mrf.mxu0
      %v5165 = vpop.f32.mrf.mxu0
      %v5166 = vpop.f32.mrf.mxu0
      %5167 = vdwg.mxu0
      %v5168 = vadd.f32 %v3246, %v5155
      %v5169 = vadd.f32 %v3247, %v5158
      %v5170 = vadd.f32 %v3248, %v5163
      %s5171 = scalar_lea.vmem %s15, 1
      %v5172 = vld [vmem:[%s5171] sm:$0x1]
      %v5174 = vlaneseq
      %v5175 = vshrl.u32 %v5174, 7
      %v5176 = vsub.s32 0, %v5175
      %v5177 = vrot.slane %v5172, %v5176
      %v5179 = vadd.f32 %v5168, %v5177
      %v5180 = vadd.f32 %v5169, %v5177
      %v5181 = vadd.f32 %v5170, %v5177
      %s5182 = scalar_lea.vmem %s16, 1
      %v5183 = vld [vmem:[%s5182] sm:$0x1]
      %s5184 = scalar_lea.vmem %s17, 1
      %v5185 = vld [vmem:[%s5184] sm:$0x1]
      %v5186 = vsel %vm766, %v5179, 0.0
      %5187 = vadd.xlane.f32.xlu0 %v5186
      %v5188 = vpop.xlane.xlu0 %5187
      %v5189 = vsel %vm766, %v5180, 0.0
      %5190 = vadd.xlane.f32.xlu0 %v5189
      %v5191 = vpop.xlane.xlu0 %5190
      %v5192 = vsel %vm811, %v5181, 0.0
      %5193 = vadd.xlane.f32.xlu0 %v5192
      %v5194 = vpop.xlane.xlu0 %5193
      %v5195 = vmul.f32 %v5188, %v773
      %v5196 = vmul.f32 %v5191, %v773
      %v5197 = vmul.f32 %v5194, %v773
      %v5198 = vsub.f32 %v5179, %v5195
      %v5199 = vsub.f32 %v5180, %v5196
      %v5200 = vsub.f32 %v5181, %v5197
      %v5201 = vmul.f32 %v5198, %v5198
      %v5202 = vmul.f32 %v5199, %v5199
      %v5203 = vmul.f32 %v5200, %v5200
      %v5204 = vsel %vm766, %v5201, 0.0
      %5205 = vadd.xlane.f32.xlu0 %v5204
      %v5206 = vpop.xlane.xlu0 %5205
      %v5207 = vsel %vm766, %v5202, 0.0
      %5208 = vadd.xlane.f32.xlu0 %v5207
      %v5209 = vpop.xlane.xlu0 %5208
      %v5210 = vsel %vm811, %v5203, 0.0
      %5211 = vadd.xlane.f32.xlu0 %v5210
      %v5212 = vpop.xlane.xlu0 %5211
      %v5213 = vmul.f32 %v5206, %v773
      %v5214 = vmul.f32 %v5209, %v773
      %v5215 = vmul.f32 %v5212, %v773
      %v5216 = vadd.f32 %v5213, 1e-05
      %v5217 = vadd.f32 %v5214, 1e-05
      %v5218 = vadd.f32 %v5215, 1e-05
      %v5219 = vrsqrt.pop %v5216
      %v5220 = vrsqrt.pop %v5217
      %v5221 = vrsqrt.pop %v5218
      %v5222 = vmul.f32 %v5198, %v5219
      %v5223 = vmul.f32 %v5199, %v5220
      %v5224 = vmul.f32 %v5200, %v5221
      %v5226 = vlaneseq
      %v5227 = vshrl.u32 %v5226, 7
      %v5228 = vsub.s32 0, %v5227
      %v5229 = vrot.slane %v5183, %v5228
      %v5231 = vmul.f32 %v5222, %v5229
      %v5232 = vmul.f32 %v5223, %v5229
      %v5233 = vmul.f32 %v5224, %v5229
      %v5235 = vlaneseq
      %v5236 = vshrl.u32 %v5235, 7
      %v5237 = vsub.s32 0, %v5236
      %v5238 = vrot.slane %v5185, %v5237
      %v5240 = vadd.f32 %v5231, %v5238
      %v5241 = vadd.f32 %v5232, %v5238
      %v5242 = vadd.f32 %v5233, %v5238
      %s5243 = scalar_lea.vmem %s18, 64
      %v5244 = vld [vmem:[%s5243] sm:$0xff]
      %v5245 = vld [vmem:[%s5243 + $0x8] sm:$0xff]
      %v5246 = vld [vmem:[%s5243 + $0x10] sm:$0xff]
      %v5247 = vld [vmem:[%s5243 + $0x18] sm:$0xff]
      %v5248 = vld [vmem:[%s5243 + $0x20] sm:$0xff]
      %v5249 = vld [vmem:[%s5243 + $0x28] sm:$0xff]
      %v5250 = vld [vmem:[%s5243 + $0x30] sm:$0xff]
      %v5251 = vld [vmem:[%s5243 + $0x38] sm:$0xff]
      %v5252 = vpack.c.bf16 %v5241, %v5240
      %v5253 = vpack.c.bf16 %v5242, %v5242
      %s5254 = scalar_lea.vmem %s19, 2
      %v5255 = vld [vmem:[%s5254] sm:$0x3]
      %v5257 = vlaneseq
      %v5258 = vshrl.u32 %v5257, 7
      %v5259 = vsub.s32 0, %v5258
      %v5260 = vrot.slane %v5255, %v5259
      %v5261 = vlaneseq
      %v5262 = vshrl.u32 %v5261, 7
      %v5263 = vsub.s32 1, %v5262
      %v5264 = vrot.slane %v5255, %v5263
      %v5275 = vunpack.c.l.b16 %v5244
      %v5276 = vunpack.c.h.b16 %v5244
      %v5277 = vunpack.c.l.b16 %v5245
      %v5278 = vunpack.c.h.b16 %v5245
      %v5279 = vunpack.c.l.b16 %v5246
      %v5280 = vunpack.c.h.b16 %v5246
      %v5281 = vunpack.c.l.b16 %v5247
      %v5282 = vunpack.c.h.b16 %v5247
      %v5283 = vunpack.c.l.b16 %v5248
      %v5284 = vunpack.c.h.b16 %v5248
      %v5285 = vunpack.c.l.b16 %v5249
      %v5286 = vunpack.c.h.b16 %v5249
      %v5287 = vunpack.c.l.b16 %v5250
      %v5288 = vunpack.c.h.b16 %v5250
      %v5289 = vunpack.c.l.b16 %v5251
      %v5290 = vunpack.c.h.b16 %v5251
      %v5291 = vpack.c.b16 %v5277, %v5275
      %v5292 = vpack.c.b16 %v5278, %v5276
      %v5293 = vpack.c.b16 %v5281, %v5279
      %v5294 = vpack.c.b16 %v5282, %v5280
      %v5295 = vpack.c.b16 %v5285, %v5283
      %v5296 = vpack.c.b16 %v5286, %v5284
      %v5297 = vpack.c.b16 %v5289, %v5287
      %v5298 = vpack.c.b16 %v5290, %v5288
      %v5308 = vsel %vm766, %v5252, 0
      %v5311 = vsel %vm766, %v5253, 0
      %5313 = vmatprep.subr.bf16.mxu0 0
      %5314 = vmatpush1.bf16.msra.mxu0 0
      %5315 = vmatprep.subr.bf16.mxu0 0
      %5316 = vmatpush1.bf16.msra.mxu0 0
      %5317 = vmatprep.subr.bf16.mxu0 0
      %5318 = vmatpush1.bf16.msra.mxu0 0
      %5319 = vmatprep.subr.bf16.mxu0 0
      %5320 = vmatpush1.bf16.msra.mxu0 0
      %5321 = vmatprep.subr.bf16.mxu0 %v5298
      %5322 = vmatpush1.bf16.msra.mxu0 %v5297
      %5323 = vmatprep.subr.bf16.mxu0 %v5296
      %5324 = vmatpush1.bf16.msra.mxu0 %v5295
      %5325 = vmatprep.subr.bf16.mxu0 %v5294
      %5326 = vmatpush1.bf16.msra.mxu0 %v5293
      %5327 = vmatprep.subr.bf16.mxu0 %v5292
      %5328 = vmatpush1.bf16.msra.mxu0 %v5291
      %5329 = vmatprep.subr.bf16.mxu0 0
      %5330 = vmatpush2.bf16.msra.mxu0 0
      %5331 = vmatprep.subr.bf16.mxu0 0
      %5332 = vmatpush2.bf16.msra.mxu0 0
      %5333 = vmatprep.subr.bf16.mxu0 0
      %5334 = vmatpush2.bf16.msra.mxu0 0
      %5335 = vmatprep.subr.bf16.mxu0 0
      %5336 = vmatpush2.bf16.msra.mxu0 0
      %5337 = vmatprep.subr.bf16.mxu0 0
      %5338 = vmatpush2.bf16.msra.mxu0 0
      %5339 = vmatprep.subr.bf16.mxu0 0
      %5340 = vmatpush2.bf16.msra.mxu0 0
      %5341 = vmatprep.subr.bf16.mxu0 0
      %5342 = vmatpush2.bf16.msra.mxu0 0
      %5343 = vmatprep.subr.bf16.mxu0 0
      %5344 = vmatpush2.bf16.msra.mxu0 0
      %5345 = vmatprep.mubr.bf16.mxu0 0
      %5346 = vmatmul.mubr.bf16.gmra.mxu0 %v5308
      %v5347 = vpop.f32.mrf.mxu0
      %v5348 = vadd.f32 %v5260, %v5347
      %v5349 = vpop.f32.mrf.mxu0
      %v5350 = vadd.f32 %v5264, %v5349
      %v5351 = vpop.f32.mrf.mxu0
      %v5352 = vadd.f32 %v5260, %v5351
      %v5353 = vpop.f32.mrf.mxu0
      %v5354 = vadd.f32 %v5264, %v5353
      %5355 = vmatprep.mubr.bf16.mxu0 0
      %5356 = vmatmul.mubr.bf16.gmra.mxu0 %v5311
      %v5357 = vpop.f32.mrf.mxu0
      %v5358 = vadd.f32 %v5260, %v5357
      %v5359 = vpop.f32.mrf.mxu0
      %v5360 = vadd.f32 %v5264, %v5359
      %v5361 = vpop.f32.mrf.mxu0
      %v5362 = vpop.f32.mrf.mxu0
      %5363 = vdwg.mxu0
      %v5364 = vmul.f32 %v5348, 0.5
      %v5365 = vmul.f32 %v5350, 0.5
      %v5366 = vmul.f32 %v5352, 0.5
      %v5367 = vmul.f32 %v5354, 0.5
      %v5368 = vmul.f32 %v5358, 0.5
      %v5369 = vmul.f32 %v5360, 0.5
      %v5370 = vmul.f32 %v5348, 0.70710677
      %v5371 = vmul.f32 %v5350, 0.70710677
      %v5372 = vmul.f32 %v5352, 0.70710677
      %v5373 = vmul.f32 %v5354, 0.70710677
      %v5374 = vmul.f32 %v5358, 0.70710677
      %v5375 = vmul.f32 %v5360, 0.70710677
      %v5376 = verf.f32.pop %v5370
      %v5377 = verf.f32.pop %v5371
      %v5378 = verf.f32.pop %v5372
      %v5379 = verf.f32.pop %v5373
      %v5380 = verf.f32.pop %v5374
      %v5381 = verf.f32.pop %v5375
      %v5382 = vadd.f32 %v5376, 1.0
      %v5383 = vadd.f32 %v5377, 1.0
      %v5384 = vadd.f32 %v5378, 1.0
      %v5385 = vadd.f32 %v5379, 1.0
      %v5386 = vadd.f32 %v5380, 1.0
      %v5387 = vadd.f32 %v5381, 1.0
      %v5388 = vmul.f32 %v5364, %v5382
      %v5389 = vmul.f32 %v5365, %v5383
      %v5390 = vmul.f32 %v5366, %v5384
      %v5391 = vmul.f32 %v5367, %v5385
      %v5392 = vmul.f32 %v5368, %v5386
      %v5393 = vmul.f32 %v5369, %v5387
      %s5394 = scalar_lea.vmem %s20, 128
      %v5395 = vld [vmem:[%s5394] sm:$0xf]
      %v5396 = vld [vmem:[%s5394 + $0x4] sm:$0xf]
      %v5397 = vld [vmem:[%s5394 + $0x8] sm:$0xf]
      %v5398 = vld [vmem:[%s5394 + $0xc] sm:$0xf]
      %v5399 = vld [vmem:[%s5394 + $0x10] sm:$0xf]
      %v5400 = vld [vmem:[%s5394 + $0x14] sm:$0xf]
      %v5401 = vld [vmem:[%s5394 + $0x18] sm:$0xf]
      %v5402 = vld [vmem:[%s5394 + $0x1c] sm:$0xf]
      %v5403 = vld [vmem:[%s5394 + $0x20] sm:$0xf]
      %v5404 = vld [vmem:[%s5394 + $0x24] sm:$0xf]
      %v5405 = vld [vmem:[%s5394 + $0x28] sm:$0xf]
      %v5406 = vld [vmem:[%s5394 + $0x2c] sm:$0xf]
      %v5407 = vld [vmem:[%s5394 + $0x30] sm:$0xf]
      %v5408 = vld [vmem:[%s5394 + $0x34] sm:$0xf]
      %v5409 = vld [vmem:[%s5394 + $0x38] sm:$0xf]
      %v5410 = vld [vmem:[%s5394 + $0x3c] sm:$0xf]
      %v5411 = vld [vmem:[%s5394 + $0x40] sm:$0xf]
      %v5412 = vld [vmem:[%s5394 + $0x44] sm:$0xf]
      %v5413 = vld [vmem:[%s5394 + $0x48] sm:$0xf]
      %v5414 = vld [vmem:[%s5394 + $0x4c] sm:$0xf]
      %v5415 = vld [vmem:[%s5394 + $0x50] sm:$0xf]
      %v5416 = vld [vmem:[%s5394 + $0x54] sm:$0xf]
      %v5417 = vld [vmem:[%s5394 + $0x58] sm:$0xf]
      %v5418 = vld [vmem:[%s5394 + $0x5c] sm:$0xf]
      %v5419 = vld [vmem:[%s5394 + $0x60] sm:$0xf]
      %v5420 = vld [vmem:[%s5394 + $0x64] sm:$0xf]
      %v5421 = vld [vmem:[%s5394 + $0x68] sm:$0xf]
      %v5422 = vld [vmem:[%s5394 + $0x6c] sm:$0xf]
      %v5423 = vld [vmem:[%s5394 + $0x70] sm:$0xf]
      %v5424 = vld [vmem:[%s5394 + $0x74] sm:$0xf]
      %v5425 = vld [vmem:[%s5394 + $0x78] sm:$0xf]
      %v5426 = vld [vmem:[%s5394 + $0x7c] sm:$0xf]
      %v5427 = vpack.c.bf16 %v5390, %v5388
      %v5428 = vpack.c.bf16 %v5391, %v5389
      %v5429 = vpack.c.bf16 %v5392, %v5392
      %v5430 = vpack.c.bf16 %v5393, %v5393
      %v5463 = vunpack.c.l.b16 %v5395
      %v5464 = vunpack.c.l.b16 %v5396
      %v5465 = vunpack.c.l.b16 %v5397
      %v5466 = vunpack.c.l.b16 %v5398
      %v5467 = vunpack.c.l.b16 %v5399
      %v5468 = vunpack.c.l.b16 %v5400
      %v5469 = vunpack.c.l.b16 %v5401
      %v5470 = vunpack.c.l.b16 %v5402
      %v5471 = vunpack.c.l.b16 %v5403
      %v5472 = vunpack.c.l.b16 %v5404
      %v5473 = vunpack.c.l.b16 %v5405
      %v5474 = vunpack.c.l.b16 %v5406
      %v5475 = vunpack.c.l.b16 %v5407
      %v5476 = vunpack.c.l.b16 %v5408
      %v5477 = vunpack.c.l.b16 %v5409
      %v5478 = vunpack.c.l.b16 %v5410
      %v5479 = vunpack.c.l.b16 %v5411
      %v5480 = vunpack.c.l.b16 %v5412
      %v5481 = vunpack.c.l.b16 %v5413
      %v5482 = vunpack.c.l.b16 %v5414
      %v5483 = vunpack.c.l.b16 %v5415
      %v5484 = vunpack.c.l.b16 %v5416
      %v5485 = vunpack.c.l.b16 %v5417
      %v5486 = vunpack.c.l.b16 %v5418
      %v5487 = vunpack.c.l.b16 %v5419
      %v5488 = vunpack.c.l.b16 %v5420
      %v5489 = vunpack.c.l.b16 %v5421
      %v5490 = vunpack.c.l.b16 %v5422
      %v5491 = vunpack.c.l.b16 %v5423
      %v5492 = vunpack.c.l.b16 %v5424
      %v5493 = vunpack.c.l.b16 %v5425
      %v5494 = vunpack.c.l.b16 %v5426
      %v5495 = vpack.c.b16 %v5464, %v5463
      %v5496 = vpack.c.b16 %v5466, %v5465
      %v5497 = vpack.c.b16 %v5468, %v5467
      %v5498 = vpack.c.b16 %v5470, %v5469
      %v5499 = vpack.c.b16 %v5472, %v5471
      %v5500 = vpack.c.b16 %v5474, %v5473
      %v5501 = vpack.c.b16 %v5476, %v5475
      %v5502 = vpack.c.b16 %v5478, %v5477
      %v5503 = vpack.c.b16 %v5480, %v5479
      %v5504 = vpack.c.b16 %v5482, %v5481
      %v5505 = vpack.c.b16 %v5484, %v5483
      %v5506 = vpack.c.b16 %v5486, %v5485
      %v5507 = vpack.c.b16 %v5488, %v5487
      %v5508 = vpack.c.b16 %v5490, %v5489
      %v5509 = vpack.c.b16 %v5492, %v5491
      %v5510 = vpack.c.b16 %v5494, %v5493
      %5527 = vmatprep.subr.bf16.mxu0 0
      %5528 = vmatpush1.bf16.msra.mxu0 %v5502
      %5529 = vmatprep.subr.bf16.mxu0 0
      %5530 = vmatpush1.bf16.msra.mxu0 %v5501
      %5531 = vmatprep.subr.bf16.mxu0 0
      %5532 = vmatpush1.bf16.msra.mxu0 %v5500
      %5533 = vmatprep.subr.bf16.mxu0 0
      %5534 = vmatpush1.bf16.msra.mxu0 %v5499
      %5535 = vmatprep.subr.bf16.mxu0 0
      %5536 = vmatpush1.bf16.msra.mxu0 %v5498
      %5537 = vmatprep.subr.bf16.mxu0 0
      %5538 = vmatpush1.bf16.msra.mxu0 %v5497
      %5539 = vmatprep.subr.bf16.mxu0 0
      %5540 = vmatpush1.bf16.msra.mxu0 %v5496
      %5541 = vmatprep.subr.bf16.mxu0 0
      %5542 = vmatpush1.bf16.msra.mxu0 %v5495
      %5543 = vmatprep.subr.bf16.mxu0 0
      %5544 = vmatpush2.bf16.msra.mxu0 %v5510
      %5545 = vmatprep.subr.bf16.mxu0 0
      %5546 = vmatpush2.bf16.msra.mxu0 %v5509
      %5547 = vmatprep.subr.bf16.mxu0 0
      %5548 = vmatpush2.bf16.msra.mxu0 %v5508
      %5549 = vmatprep.subr.bf16.mxu0 0
      %5550 = vmatpush2.bf16.msra.mxu0 %v5507
      %5551 = vmatprep.subr.bf16.mxu0 0
      %5552 = vmatpush2.bf16.msra.mxu0 %v5506
      %5553 = vmatprep.subr.bf16.mxu0 0
      %5554 = vmatpush2.bf16.msra.mxu0 %v5505
      %5555 = vmatprep.subr.bf16.mxu0 0
      %5556 = vmatpush2.bf16.msra.mxu0 %v5504
      %5557 = vmatprep.subr.bf16.mxu0 0
      %5558 = vmatpush2.bf16.msra.mxu0 %v5503
      %5559 = vmatprep.mubr.bf16.mxu0 %v5428
      %5560 = vmatmul.mubr.bf16.gmra.mxu0 %v5427
      %v5561 = vpop.f32.mrf.mxu0
      %v5562 = vadd.f32 0.0, %v5561
      %v5563 = vpop.f32.mrf.mxu0
      %v5564 = vpop.f32.mrf.mxu0
      %v5565 = vadd.f32 0.0, %v5564
      %v5566 = vpop.f32.mrf.mxu0
      %5567 = vmatprep.mubr.bf16.mxu0 %v5430
      %5568 = vmatmul.mubr.bf16.gmra.mxu0 %v5429
      %v5569 = vpop.f32.mrf.mxu0
      %v5570 = vadd.f32 0.0, %v5569
      %v5571 = vpop.f32.mrf.mxu0
      %v5572 = vpop.f32.mrf.mxu0
      %v5573 = vpop.f32.mrf.mxu0
      %5574 = vdwg.mxu0
      %v5575 = vadd.f32 %v5179, %v5562
      %v5576 = vadd.f32 %v5180, %v5565
      %v5577 = vadd.f32 %v5181, %v5570
      %s5578 = scalar_lea.vmem %s21, 1
      %v5579 = vld [vmem:[%s5578] sm:$0x1]
      %v5581 = vlaneseq
      %v5582 = vshrl.u32 %v5581, 7
      %v5583 = vsub.s32 0, %v5582
      %v5584 = vrot.slane %v5579, %v5583
      %v5586 = vadd.f32 %v5575, %v5584
      %v5587 = vadd.f32 %v5576, %v5584
      %v5588 = vadd.f32 %v5577, %v5584
      %5589 = vst.msk [vmem:[%s683] sm:$0xff] %vm766, %v5586
      %5590 = vst.msk [vmem:[%s683 + $0x8] sm:$0xff] %vm766, %v5587
      %5591 = vst.msk [vmem:[%s683 + $0x10] sm:$0x1] %vm811, %v5588
      %p5592 = scmp.lt.s32.totalorder %s33, 1
      %s5593 = scalar_select %p5592, %s33, 1
      %s5594 = smul.addr %s5593, 3
      %s5595 = smul.addr %s5594, 8
      %s5596 = scalar_lea.vmem %s22, %s5595
      // Predicated region
      $region109: #{vit_forward.1} parent=107 // pred_check
        %p5597 = pneg %p518
      $region110: #{vit_forward.1} parent=107 // pred_check_branch
        %5599 = sbr.rel (%p5597) target = $region112
      $region111: #{vit_forward.1} parent=107 // pred_region
        _
      $region112: #{vit_forward.1} parent=107 // pred_fallthru
        _
    $region108: #{vit_forward.1} parent=5 // pred_fallthru
      _
    %p5600 = scmp.le.s32.totalorder 2, %s28
    // Predicated region
    $region113: #{vit_forward.1} parent=5 // pred_check
      %p5601 = pneg %p5600
    $region114: #{vit_forward.1} parent=5 // pred_check_branch
      %5603 = sbr.rel (%p5601) target = $region116
    $region115: #{vit_forward.1} parent=5 // pred_region
      %s5604 = ssub.s32 %s28, 2
      // Predicated region
      $region117: #{vit_forward.1} parent=115 // pred_check
        %p5605 = pneg %p524
      $region118: #{vit_forward.1} parent=115 // pred_check_branch
        %5607 = sbr.rel (%p5605) target = $region120
      $region119: #{vit_forward.1} parent=115 // pred_region
        %p5608 = scmp.lt.s32.totalorder %s34, 1
        %s5609 = scalar_select %p5608, %s34, 1
        %s5610 = smul.addr %s5609, 3
        %s5611 = smul.addr %s5610, 8
        %s5612 = scalar_lea.vmem %s22, %s5611
      $region120: #{vit_forward.1} parent=115 // pred_fallthru
        _
    $region116: #{vit_forward.1} parent=5 // pred_fallthru
      _
  $region6: #{vit_forward.1} parent=0 // loop_footer
    %s32 = sadd.s32 1, %s28
  $region7: #{vit_forward.1} parent=0 // loop_footer_branch
    %27 = sbr.rel target = $region3
  $region8: #{vit_forward.1} parent=0 // loop_exit
    _

</llo_original>
